<compile_context>
chip_gen: v6e
topology: v6e:2x2x1
jax: 0.10.0
libtpu: 0.0.40
codegen_flags: <defaults>
</compile_context>

<pallas_src>
import functools

import jax
import jax.numpy as jnp
from jax.experimental import pallas as pl
from jax.experimental.pallas import tpu as pltpu


_LANE = 128
_VMEM_LIMIT = 48 * 1024 * 1024  # raised scoped-VMEM cap (still < v7x 64 MiB)


def _round_up(x, m):
    return ((x + m - 1) // m) * m


# ---------------------------------------------------------------------------
# Static per-layer config (tile sizes are compile-time constants).
# ---------------------------------------------------------------------------
_CFG = {
    # conv layers: M = B*28*28 (1568 @ B=2), K = 25*Cin, N = Cout
    "conv1": dict(kind="conv", cin=1,  cout=16, tm=256, tk=None, tn=128),
    "conv2": dict(kind="conv", cin=16, cout=32, tm=256, tk=None, tn=128),
    "conv3": dict(kind="conv", cin=32, cout=32, tm=256, tk=None, tn=128),
    # fc layers: M = batch (tiny) -> weight-streaming GEMV regime
    "fc1": dict(kind="fc", fin=32 * 28 * 28, fout=1000, tm=8, tk=1792, tn=512),
    "fc2": dict(kind="fc", fin=1000,         fout=250,  tm=8, tk=1024, tn=128),
    "fc3": dict(kind="fc", fin=250,          fout=100,  tm=8, tk=256,  tn=128),
    "fc4": dict(kind="fc", fin=100,          fout=10,   tm=8, tk=128,  tn=128),
}


# ---------------------------------------------------------------------------
# Pallas kernels: out = act(x @ w + b)
# ---------------------------------------------------------------------------
def _mm_single_k_kernel(x_ref, w_ref, b_ref, o_ref, *, activation):
    # Whole K fits in one tile: no accumulator scratch, no init/finalize.
    r = jnp.dot(x_ref[...], w_ref[...], preferred_element_type=jnp.float32)
    r = r + b_ref[...]
    if activation == "relu":
        r = jnp.maximum(r, 0.0)
    o_ref[...] = r.astype(o_ref.dtype)


def _mm_multi_k_kernel(x_ref, w_ref, b_ref, o_ref, acc_ref, *, activation):
    k = pl.program_id(2)

    @pl.when(k == 0)
    def _():
        acc_ref[...] = jnp.zeros_like(acc_ref)

    acc_ref[...] += jnp.dot(
        x_ref[...], w_ref[...], preferred_element_type=jnp.float32
    )

    @pl.when(k == pl.num_programs(2) - 1)
    def _():
        r = acc_ref[...] + b_ref[...]  # (tm, tn) + (1, tn) broadcast
        if activation == "relu":
            r = jnp.maximum(r, 0.0)
        o_ref[...] = r.astype(o_ref.dtype)


def _matmul_bias_act(xp, wp, bp, activation, tm, tk, tn):
    """xp: (Mp, Kp), wp: (Kp, Np), bp: (1, Np) — all pre-padded/tile-aligned."""
    Mp, Kp = xp.shape
    Kp2, Np = wp.shape
    assert Kp == Kp2 and bp.shape == (1, Np)
    gm, gn, gk = Mp // tm, Np // tn, Kp // tk

    if gk == 1:
        return pl.pallas_call(
            functools.partial(_mm_single_k_kernel, activation=activation),
            out_shape=jax.ShapeDtypeStruct((Mp, Np), jnp.float32),
            grid_spec=pltpu.PrefetchScalarGridSpec(
                num_scalar_prefetch=0,
                grid=(gm, gn),
                in_specs=[
                    pl.BlockSpec((tm, Kp), lambda i, j: (i, 0)),
                    pl.BlockSpec((Kp, tn), lambda i, j: (0, j)),
                    pl.BlockSpec((1, tn), lambda i, j: (0, j)),
                ],
                out_specs=pl.BlockSpec((tm, tn), lambda i, j: (i, j)),
            ),
            compiler_params=pltpu.CompilerParams(
                dimension_semantics=("parallel", "parallel"),
                vmem_limit_bytes=_VMEM_LIMIT,
            ),
        )(xp, wp, bp)

    return pl.pallas_call(
        functools.partial(_mm_multi_k_kernel, activation=activation),
        out_shape=jax.ShapeDtypeStruct((Mp, Np), jnp.float32),
        grid_spec=pltpu.PrefetchScalarGridSpec(
            num_scalar_prefetch=0,
            grid=(gm, gn, gk),
            in_specs=[
                pl.BlockSpec((tm, tk), lambda i, j, k: (i, k)),
                pl.BlockSpec((tk, tn), lambda i, j, k: (k, j)),
                pl.BlockSpec((1, tn), lambda i, j, k: (0, j)),
            ],
            out_specs=pl.BlockSpec((tm, tn), lambda i, j, k: (i, j)),
            scratch_shapes=[pltpu.VMEM((tm, tn), jnp.float32)],
        ),
        compiler_params=pltpu.CompilerParams(
            dimension_semantics=("parallel", "parallel", "arbitrary"),
            vmem_limit_bytes=_VMEM_LIMIT,
        ),
    )(xp, wp, bp)


# ---------------------------------------------------------------------------
# im2col for Conv2d(k=5, stride=1, pad=2) — pure-JAX glue.
# ---------------------------------------------------------------------------
def _im2col(x_nhwc, k=5, pad=2):
    B, H, W, C = x_nhwc.shape
    xp = jnp.pad(x_nhwc, ((0, 0), (pad, pad), (pad, pad), (0, 0)))
    patches = []
    for dy in range(k):
        for dx in range(k):
            patches.append(xp[:, dy:dy + H, dx:dx + W, :])
    cols = jnp.stack(patches, axis=3)             # (B, H, W, k*k, C)
    return cols.reshape(B * H * W, k * k * C)     # column order = (dy, dx, cin)


# ---------------------------------------------------------------------------
# Apply one (pre-padded) layer:  y = act(x @ W + b)
# ---------------------------------------------------------------------------
def _apply_layer(x2d, params, name, activation):
    cfg = _CFG[name]
    wp, bp = params[name]["wp"], params[name]["bp"]
    M, K = x2d.shape
    Kp, _ = wp.shape
    tm, tn = cfg["tm"], cfg["tn"]
    tk = Kp if cfg["tk"] is None else cfg["tk"]
    N = cfg["cout"] if cfg["kind"] == "conv" else cfg["fout"]

    Mp = _round_up(M, tm)
    # Only the (small) activation is padded per call; weights/bias were padded
    # once at init.
    xp = jnp.pad(x2d, ((0, Mp - M), (0, Kp - K)))
    out = _matmul_bias_act(xp, wp, bp, activation, tm, tk, tn)
    return out[:M, :N]


# ---------------------------------------------------------------------------
# Parameter init (deterministic, PyTorch-default-style uniform bounds).
# Weights are stored pre-padded and pre-laid-out for the Pallas matmul.
# ---------------------------------------------------------------------------
def _pack_layer(w_mat, b, cfg):
    K, N = w_mat.shape
    tk, tn = cfg["tk"], cfg["tn"]
    Kp = _round_up(K, _LANE) if tk is None else _round_up(K, tk)
    Np = _round_up(N, tn)
    wp = jnp.pad(w_mat, ((0, Kp - K), (0, Np - N)))
    bp = jnp.pad(b, (0, Np - N)).reshape(1, Np)
    return {"wp": wp, "bp": bp}


def init_params(key):
    names = list(_CFG.keys())
    keys = jax.random.split(key, len(names))
    params = {}
    ks = 5
    for name, k in zip(names, keys):
        cfg = _CFG[name]
        kw, kb = jax.random.split(k)
        if cfg["kind"] == "conv":
            cin, cout = cfg["cin"], cfg["cout"]
            fan_in = cin * ks * ks
            bound = float(fan_in) ** -0.5
            # torch layout (Cout, Cin, kh, kw) -> im2col layout (kh, kw, Cin, Cout)
            w_t = jax.random.uniform(kw, (cout, cin, ks, ks), jnp.float32,
                                     -bound, bound)
            w_mat = jnp.transpose(w_t, (2, 3, 1, 0)).reshape(ks * ks * cin, cout)
            b = jax.random.uniform(kb, (cout,), jnp.float32, -bound, bound)
        else:
            fin, fout = cfg["fin"], cfg["fout"]
            bound = float(fin) ** -0.5
            w_t = jax.random.uniform(kw, (fout, fin), jnp.float32, -bound, bound)
            w_mat = w_t.T                         # store as (in, out) for x @ w
            b = jax.random.uniform(kb, (fout,), jnp.float32, -bound, bound)
        params[name] = _pack_layer(w_mat, b, cfg)
    return params


# ---------------------------------------------------------------------------
# Forward pass (matches Expanded_CNN.forward, dropout in eval mode)
# ---------------------------------------------------------------------------
@jax.jit
def expanded_cnn_forward(params, x_nchw):
    B = x_nchw.shape[0]
    x = jnp.transpose(x_nchw, (0, 2, 3, 1))                # NCHW -> NHWC

    for name in ("conv1", "conv2", "conv3"):
        Bq, H, W, _ = x.shape
        cols = _im2col(x)                                   # (B*H*W, 25*Cin)
        y = _apply_layer(cols, params, name, "relu")
        x = y.reshape(Bq, H, W, -1)

    # torch flattens NCHW -> (B, 32*28*28)
    x = jnp.transpose(x, (0, 3, 1, 2)).reshape(B, 32 * 28 * 28)

    x = _apply_layer(x, params, "fc1", "relu")   # Dropout(0.2) -> identity
    x = _apply_layer(x, params, "fc2", "relu")   # Dropout(0.2) -> identity
    x = _apply_layer(x, params, "fc3", "relu")   # Dropout(0.2) -> identity
    x = _apply_layer(x, params, "fc4", "none")
    return x                                                 # (B, 10)


if __name__ == "__main__":
    key = jax.random.PRNGKey(0)
    k_params, k_input = jax.random.split(key)

    params = init_params(k_params)
    # fc1 requires 32*28*28 flattened features, so spatial must be 28x28, Cin=1.
    x = jax.random.normal(k_input, (2, 1, 28, 28), dtype=jnp.float32)

    out = expanded_cnn_forward(params, x)
    out = jax.block_until_ready(out)
    assert out.shape == (2, 10) and out.dtype == jnp.float32
    print("KERNEL_OK")
</pallas_src>

<mosaic_0001>
module attributes {stable_mosaic.version = 11 : i64} {
  func.func @_mm_single_k_kernel(%arg0: i32, %arg1: i32, %arg2: memref<256x128xf32, #tpu.memory_space<vmem>>, %arg3: memref<128x128xf32, #tpu.memory_space<vmem>>, %arg4: memref<1x128xf32, #tpu.memory_space<vmem>>, %arg5: memref<256x128xf32, #tpu.memory_space<vmem>>) attributes {dimension_semantics = [#tpu.dimension_semantics<parallel>, #tpu.dimension_semantics<parallel>], iteration_bounds = array<i64: 7, 1>, scalar_prefetch = 0 : i64, scratch_operands = 0 : i64, tpu.core_type = #tpu.core_type<tc>, window_params = [{transform_indices = @transform_0, window_bounds = array<i64: 256, 128>}, {transform_indices = @transform_1, window_bounds = array<i64: 128, 128>}, {transform_indices = @transform_2, window_bounds = array<i64: 1, 128>}, {transform_indices = @transform_3, window_bounds = array<i64: 256, 128>}]} {
    %c0 = arith.constant 0 : index
    %c0_0 = arith.constant 0 : index
    %0 = vector.load %arg2[%c0, %c0_0] : memref<256x128xf32, #tpu.memory_space<vmem>>, vector<256x128xf32>
    %c0_1 = arith.constant 0 : index
    %c0_2 = arith.constant 0 : index
    %1 = vector.load %arg3[%c0_1, %c0_2] : memref<128x128xf32, #tpu.memory_space<vmem>>, vector<128x128xf32>
    %cst = arith.constant dense<0.000000e+00> : vector<256x128xf32>
    %2 = tpu.matmul %0, %1, %cst {dimension_numbers = #tpu.dot_dimension_numbers<[1], [0], [0], [1], [0, 0, 1, 1], [], []>} : vector<256x128xf32>, vector<128x128xf32>, vector<256x128xf32> -> vector<256x128xf32>
    %c0_3 = arith.constant 0 : index
    %c0_4 = arith.constant 0 : index
    %3 = vector.load %arg4[%c0_3, %c0_4] : memref<1x128xf32, #tpu.memory_space<vmem>>, vector<1x128xf32>
    %4 = vector.broadcast %3 : vector<1x128xf32> to vector<256x128xf32>
    %5 = arith.addf %2, %4 : vector<256x128xf32>
    %cst_5 = arith.constant 0.000000e+00 : f32
    %6 = vector.broadcast %cst_5 : f32 to vector<256x128xf32>
    %7 = arith.maximumf %5, %6 : vector<256x128xf32>
    %c0_6 = arith.constant 0 : index
    %c0_7 = arith.constant 0 : index
    %8 = vector.load %arg5[%c0_6, %c0_7] : memref<256x128xf32, #tpu.memory_space<vmem>>, vector<256x128xf32>
    tpu.vector_store %arg5[%c0_6, %c0_7], %7 {strides = array<i32>} : memref<256x128xf32, #tpu.memory_space<vmem>>, vector<256x128xf32>,
    return
  }
  func.func @transform_0(%arg0: i32, %arg1: i32) -> (i32, i32) {
    %c0_i32 = arith.constant 0 : i32
    %c0_i32_0 = arith.constant 0 : i32
    return %arg0, %c0_i32 : i32, i32
  }
  func.func @transform_1(%arg0: i32, %arg1: i32) -> (i32, i32) {
    %c0_i32 = arith.constant 0 : i32
    %c0_i32_0 = arith.constant 0 : i32
    return %c0_i32, %arg1 : i32, i32
  }
  func.func @transform_2(%arg0: i32, %arg1: i32) -> (i32, i32) {
    %c0_i32 = arith.constant 0 : i32
    %c0_i32_0 = arith.constant 0 : i32
    return %c0_i32, %arg1 : i32, i32
  }
  func.func @transform_3(%arg0: i32, %arg1: i32) -> (i32, i32) {
    %c0_i32 = arith.constant 0 : i32
    return %arg0, %arg1 : i32, i32
  }
}

module attributes {stable_mosaic.version = 11 : i64} {
  func.func @_mm_single_k_kernel(%arg0: i32, %arg1: i32, %arg2: memref<256x512xf32, #tpu.memory_space<vmem>>, %arg3: memref<512x128xf32, #tpu.memory_space<vmem>>, %arg4: memref<1x128xf32, #tpu.memory_space<vmem>>, %arg5: memref<256x128xf32, #tpu.memory_space<vmem>>) attributes {dimension_semantics = [#tpu.dimension_semantics<parallel>, #tpu.dimension_semantics<parallel>], iteration_bounds = array<i64: 7, 1>, scalar_prefetch = 0 : i64, scratch_operands = 0 : i64, tpu.core_type = #tpu.core_type<tc>, window_params = [{transform_indices = @transform_0, window_bounds = array<i64: 256, 512>}, {transform_indices = @transform_1, window_bounds = array<i64: 512, 128>}, {transform_indices = @transform_2, window_bounds = array<i64: 1, 128>}, {transform_indices = @transform_3, window_bounds = array<i64: 256, 128>}]} {
    %c0 = arith.constant 0 : index
    %c0_0 = arith.constant 0 : index
    %0 = vector.load %arg2[%c0, %c0_0] : memref<256x512xf32, #tpu.memory_space<vmem>>, vector<256x512xf32>
    %c0_1 = arith.constant 0 : index
    %c0_2 = arith.constant 0 : index
    %1 = vector.load %arg3[%c0_1, %c0_2] : memref<512x128xf32, #tpu.memory_space<vmem>>, vector<512x128xf32>
    %cst = arith.constant dense<0.000000e+00> : vector<256x128xf32>
    %2 = tpu.matmul %0, %1, %cst {dimension_numbers = #tpu.dot_dimension_numbers<[1], [0], [0], [1], [0, 0, 1, 1], [], []>} : vector<256x512xf32>, vector<512x128xf32>, vector<256x128xf32> -> vector<256x128xf32>
    %c0_3 = arith.constant 0 : index
    %c0_4 = arith.constant 0 : index
    %3 = vector.load %arg4[%c0_3, %c0_4] : memref<1x128xf32, #tpu.memory_space<vmem>>, vector<1x128xf32>
    %4 = vector.broadcast %3 : vector<1x128xf32> to vector<256x128xf32>
    %5 = arith.addf %2, %4 : vector<256x128xf32>
    %cst_5 = arith.constant 0.000000e+00 : f32
    %6 = vector.broadcast %cst_5 : f32 to vector<256x128xf32>
    %7 = arith.maximumf %5, %6 : vector<256x128xf32>
    %c0_6 = arith.constant 0 : index
    %c0_7 = arith.constant 0 : index
    %8 = vector.load %arg5[%c0_6, %c0_7] : memref<256x128xf32, #tpu.memory_space<vmem>>, vector<256x128xf32>
    tpu.vector_store %arg5[%c0_6, %c0_7], %7 {strides = array<i32>} : memref<256x128xf32, #tpu.memory_space<vmem>>, vector<256x128xf32>,
    return
  }
  func.func @transform_0(%arg0: i32, %arg1: i32) -> (i32, i32) {
    %c0_i32 = arith.constant 0 : i32
    %c0_i32_0 = arith.constant 0 : i32
    return %arg0, %c0_i32 : i32, i32
  }
  func.func @transform_1(%arg0: i32, %arg1: i32) -> (i32, i32) {
    %c0_i32 = arith.constant 0 : i32
    %c0_i32_0 = arith.constant 0 : i32
    return %c0_i32, %arg1 : i32, i32
  }
  func.func @transform_2(%arg0: i32, %arg1: i32) -> (i32, i32) {
    %c0_i32 = arith.constant 0 : i32
    %c0_i32_0 = arith.constant 0 : i32
    return %c0_i32, %arg1 : i32, i32
  }
  func.func @transform_3(%arg0: i32, %arg1: i32) -> (i32, i32) {
    %c0_i32 = arith.constant 0 : i32
    return %arg0, %arg1 : i32, i32
  }
}

module attributes {stable_mosaic.version = 11 : i64} {
  func.func @_mm_single_k_kernel(%arg0: i32, %arg1: i32, %arg2: memref<256x896xf32, #tpu.memory_space<vmem>>, %arg3: memref<896x128xf32, #tpu.memory_space<vmem>>, %arg4: memref<1x128xf32, #tpu.memory_space<vmem>>, %arg5: memref<256x128xf32, #tpu.memory_space<vmem>>) attributes {dimension_semantics = [#tpu.dimension_semantics<parallel>, #tpu.dimension_semantics<parallel>], iteration_bounds = array<i64: 7, 1>, scalar_prefetch = 0 : i64, scratch_operands = 0 : i64, tpu.core_type = #tpu.core_type<tc>, window_params = [{transform_indices = @transform_0, window_bounds = array<i64: 256, 896>}, {transform_indices = @transform_1, window_bounds = array<i64: 896, 128>}, {transform_indices = @transform_2, window_bounds = array<i64: 1, 128>}, {transform_indices = @transform_3, window_bounds = array<i64: 256, 128>}]} {
    %c0 = arith.constant 0 : index
    %c0_0 = arith.constant 0 : index
    %0 = vector.load %arg2[%c0, %c0_0] : memref<256x896xf32, #tpu.memory_space<vmem>>, vector<256x896xf32>
    %c0_1 = arith.constant 0 : index
    %c0_2 = arith.constant 0 : index
    %1 = vector.load %arg3[%c0_1, %c0_2] : memref<896x128xf32, #tpu.memory_space<vmem>>, vector<896x128xf32>
    %cst = arith.constant dense<0.000000e+00> : vector<256x128xf32>
    %2 = tpu.matmul %0, %1, %cst {dimension_numbers = #tpu.dot_dimension_numbers<[1], [0], [0], [1], [0, 0, 1, 1], [], []>} : vector<256x896xf32>, vector<896x128xf32>, vector<256x128xf32> -> vector<256x128xf32>
    %c0_3 = arith.constant 0 : index
    %c0_4 = arith.constant 0 : index
    %3 = vector.load %arg4[%c0_3, %c0_4] : memref<1x128xf32, #tpu.memory_space<vmem>>, vector<1x128xf32>
    %4 = vector.broadcast %3 : vector<1x128xf32> to vector<256x128xf32>
    %5 = arith.addf %2, %4 : vector<256x128xf32>
    %cst_5 = arith.constant 0.000000e+00 : f32
    %6 = vector.broadcast %cst_5 : f32 to vector<256x128xf32>
    %7 = arith.maximumf %5, %6 : vector<256x128xf32>
    %c0_6 = arith.constant 0 : index
    %c0_7 = arith.constant 0 : index
    %8 = vector.load %arg5[%c0_6, %c0_7] : memref<256x128xf32, #tpu.memory_space<vmem>>, vector<256x128xf32>
    tpu.vector_store %arg5[%c0_6, %c0_7], %7 {strides = array<i32>} : memref<256x128xf32, #tpu.memory_space<vmem>>, vector<256x128xf32>,
    return
  }
  func.func @transform_0(%arg0: i32, %arg1: i32) -> (i32, i32) {
    %c0_i32 = arith.constant 0 : i32
    %c0_i32_0 = arith.constant 0 : i32
    return %arg0, %c0_i32 : i32, i32
  }
  func.func @transform_1(%arg0: i32, %arg1: i32) -> (i32, i32) {
    %c0_i32 = arith.constant 0 : i32
    %c0_i32_0 = arith.constant 0 : i32
    return %c0_i32, %arg1 : i32, i32
  }
  func.func @transform_2(%arg0: i32, %arg1: i32) -> (i32, i32) {
    %c0_i32 = arith.constant 0 : i32
    %c0_i32_0 = arith.constant 0 : i32
    return %c0_i32, %arg1 : i32, i32
  }
  func.func @transform_3(%arg0: i32, %arg1: i32) -> (i32, i32) {
    %c0_i32 = arith.constant 0 : i32
    return %arg0, %arg1 : i32, i32
  }
}

module attributes {stable_mosaic.version = 11 : i64} {
  func.func @_mm_multi_k_kernel(%arg0: i32, %arg1: i32, %arg2: i32, %arg3: memref<8x1792xf32, #tpu.memory_space<vmem>>, %arg4: memref<1792x512xf32, #tpu.memory_space<vmem>>, %arg5: memref<1x512xf32, #tpu.memory_space<vmem>>, %arg6: memref<8x512xf32, #tpu.memory_space<vmem>>, %arg7: memref<8x512xf32, #tpu.memory_space<vmem>>) attributes {dimension_semantics = [#tpu.dimension_semantics<parallel>, #tpu.dimension_semantics<parallel>, #tpu.dimension_semantics<arbitrary>], iteration_bounds = array<i64: 1, 2, 14>, scalar_prefetch = 0 : i64, scratch_operands = 1 : i64, tpu.core_type = #tpu.core_type<tc>, window_params = [{transform_indices = @transform_0, window_bounds = array<i64: 8, 1792>}, {transform_indices = @transform_1, window_bounds = array<i64: 1792, 512>}, {transform_indices = @transform_2, window_bounds = array<i64: 1, 512>}, {transform_indices = @transform_3, window_bounds = array<i64: 8, 512>}]} {
    %c0_i32 = arith.constant 0 : i32
    %0 = arith.cmpi eq, %arg2, %c0_i32 : i32
    %1 = arith.extui %0 : i1 to i32
    %c0_i32_0 = arith.constant 0 : i32
    %2 = arith.cmpi ne, %1, %c0_i32_0 : i32
    scf.if %2 {
      %cst_9 = arith.constant 0.000000e+00 : f32
      %12 = vector.broadcast %cst_9 : f32 to vector<8x512xf32>
      %c0_10 = arith.constant 0 : index
      %c0_11 = arith.constant 0 : index
      %13 = vector.load %arg7[%c0_10, %c0_11] : memref<8x512xf32, #tpu.memory_space<vmem>>, vector<8x512xf32>
      tpu.vector_store %arg7[%c0_10, %c0_11], %12 {strides = array<i32>} : memref<8x512xf32, #tpu.memory_space<vmem>>, vector<8x512xf32>,
    } else {
    }
    %c0 = arith.constant 0 : index
    %c0_1 = arith.constant 0 : index
    %3 = vector.load %arg7[%c0, %c0_1] : memref<8x512xf32, #tpu.memory_space<vmem>>, vector<8x512xf32>
    %c0_2 = arith.constant 0 : index
    %c0_3 = arith.constant 0 : index
    %4 = vector.load %arg3[%c0_2, %c0_3] : memref<8x1792xf32, #tpu.memory_space<vmem>>, vector<8x1792xf32>
    %c0_4 = arith.constant 0 : index
    %c0_5 = arith.constant 0 : index
    %5 = vector.load %arg4[%c0_4, %c0_5] : memref<1792x512xf32, #tpu.memory_space<vmem>>, vector<1792x512xf32>
    %cst = arith.constant dense<0.000000e+00> : vector<8x512xf32>
    %6 = tpu.matmul %4, %5, %cst {dimension_numbers = #tpu.dot_dimension_numbers<[1], [0], [0], [1], [0, 0, 1, 1], [], []>} : vector<8x1792xf32>, vector<1792x512xf32>, vector<8x512xf32> -> vector<8x512xf32>
    %7 = arith.addf %3, %6 : vector<8x512xf32>
    %c0_6 = arith.constant 0 : index
    %c0_7 = arith.constant 0 : index
    %8 = vector.load %arg7[%c0_6, %c0_7] : memref<8x512xf32, #tpu.memory_space<vmem>>, vector<8x512xf32>
    tpu.vector_store %arg7[%c0_6, %c0_7], %7 {strides = array<i32>} : memref<8x512xf32, #tpu.memory_space<vmem>>, vector<8x512xf32>,
    %c13_i32 = arith.constant 13 : i32
    %9 = arith.cmpi eq, %arg2, %c13_i32 : i32
    %10 = arith.extui %9 : i1 to i32
    %c0_i32_8 = arith.constant 0 : i32
    %11 = arith.cmpi ne, %10, %c0_i32_8 : i32
    scf.if %11 {
      %c0_9 = arith.constant 0 : index
      %c0_10 = arith.constant 0 : index
      %12 = vector.load %arg7[%c0_9, %c0_10] : memref<8x512xf32, #tpu.memory_space<vmem>>, vector<8x512xf32>
      %c0_11 = arith.constant 0 : index
      %c0_12 = arith.constant 0 : index
      %13 = vector.load %arg5[%c0_11, %c0_12] : memref<1x512xf32, #tpu.memory_space<vmem>>, vector<1x512xf32>
      %14 = vector.broadcast %13 : vector<1x512xf32> to vector<8x512xf32>
      %15 = arith.addf %12, %14 : vector<8x512xf32>
      %cst_13 = arith.constant 0.000000e+00 : f32
      %16 = vector.broadcast %cst_13 : f32 to vector<8x512xf32>
      %17 = arith.maximumf %15, %16 : vector<8x512xf32>
      %c0_14 = arith.constant 0 : index
      %c0_15 = arith.constant 0 : index
      %18 = vector.load %arg6[%c0_14, %c0_15] : memref<8x512xf32, #tpu.memory_space<vmem>>, vector<8x512xf32>
      tpu.vector_store %arg6[%c0_14, %c0_15], %17 {strides = array<i32>} : memref<8x512xf32, #tpu.memory_space<vmem>>, vector<8x512xf32>,
    } else {
    }
    return
  }
  func.func @transform_0(%arg0: i32, %arg1: i32, %arg2: i32) -> (i32, i32) {
    %c0_i32 = arith.constant 0 : i32
    return %arg0, %arg2 : i32, i32
  }
  func.func @transform_1(%arg0: i32, %arg1: i32, %arg2: i32) -> (i32, i32) {
    %c0_i32 = arith.constant 0 : i32
    return %arg2, %arg1 : i32, i32
  }
  func.func @transform_2(%arg0: i32, %arg1: i32, %arg2: i32) -> (i32, i32) {
    %c0_i32 = arith.constant 0 : i32
    %c0_i32_0 = arith.constant 0 : i32
    return %c0_i32, %arg1 : i32, i32
  }
  func.func @transform_3(%arg0: i32, %arg1: i32, %arg2: i32) -> (i32, i32) {
    %c0_i32 = arith.constant 0 : i32
    return %arg0, %arg1 : i32, i32
  }
}

module attributes {stable_mosaic.version = 11 : i64} {
  func.func @_mm_single_k_kernel(%arg0: i32, %arg1: i32, %arg2: memref<8x1024xf32, #tpu.memory_space<vmem>>, %arg3: memref<1024x128xf32, #tpu.memory_space<vmem>>, %arg4: memref<1x128xf32, #tpu.memory_space<vmem>>, %arg5: memref<8x128xf32, #tpu.memory_space<vmem>>) attributes {dimension_semantics = [#tpu.dimension_semantics<parallel>, #tpu.dimension_semantics<parallel>], iteration_bounds = array<i64: 1, 2>, scalar_prefetch = 0 : i64, scratch_operands = 0 : i64, tpu.core_type = #tpu.core_type<tc>, window_params = [{transform_indices = @transform_0, window_bounds = array<i64: 8, 1024>}, {transform_indices = @transform_1, window_bounds = array<i64: 1024, 128>}, {transform_indices = @transform_2, window_bounds = array<i64: 1, 128>}, {transform_indices = @transform_3, window_bounds = array<i64: 8, 128>}]} {
    %c0 = arith.constant 0 : index
    %c0_0 = arith.constant 0 : index
    %0 = vector.load %arg2[%c0, %c0_0] : memref<8x1024xf32, #tpu.memory_space<vmem>>, vector<8x1024xf32>
    %c0_1 = arith.constant 0 : index
    %c0_2 = arith.constant 0 : index
    %1 = vector.load %arg3[%c0_1, %c0_2] : memref<1024x128xf32, #tpu.memory_space<vmem>>, vector<1024x128xf32>
    %cst = arith.constant dense<0.000000e+00> : vector<8x128xf32>
    %2 = tpu.matmul %0, %1, %cst {dimension_numbers = #tpu.dot_dimension_numbers<[1], [0], [0], [1], [0, 0, 1, 1], [], []>} : vector<8x1024xf32>, vector<1024x128xf32>, vector<8x128xf32> -> vector<8x128xf32>
    %c0_3 = arith.constant 0 : index
    %c0_4 = arith.constant 0 : index
    %3 = vector.load %arg4[%c0_3, %c0_4] : memref<1x128xf32, #tpu.memory_space<vmem>>, vector<1x128xf32>
    %4 = vector.broadcast %3 : vector<1x128xf32> to vector<8x128xf32>
    %5 = arith.addf %2, %4 : vector<8x128xf32>
    %cst_5 = arith.constant 0.000000e+00 : f32
    %6 = vector.broadcast %cst_5 : f32 to vector<8x128xf32>
    %7 = arith.maximumf %5, %6 : vector<8x128xf32>
    %c0_6 = arith.constant 0 : index
    %c0_7 = arith.constant 0 : index
    %8 = vector.load %arg5[%c0_6, %c0_7] : memref<8x128xf32, #tpu.memory_space<vmem>>, vector<8x128xf32>
    tpu.vector_store %arg5[%c0_6, %c0_7], %7 {strides = array<i32>} : memref<8x128xf32, #tpu.memory_space<vmem>>, vector<8x128xf32>,
    return
  }
  func.func @transform_0(%arg0: i32, %arg1: i32) -> (i32, i32) {
    %c0_i32 = arith.constant 0 : i32
    %c0_i32_0 = arith.constant 0 : i32
    return %arg0, %c0_i32 : i32, i32
  }
  func.func @transform_1(%arg0: i32, %arg1: i32) -> (i32, i32) {
    %c0_i32 = arith.constant 0 : i32
    %c0_i32_0 = arith.constant 0 : i32
    return %c0_i32, %arg1 : i32, i32
  }
  func.func @transform_2(%arg0: i32, %arg1: i32) -> (i32, i32) {
    %c0_i32 = arith.constant 0 : i32
    %c0_i32_0 = arith.constant 0 : i32
    return %c0_i32, %arg1 : i32, i32
  }
  func.func @transform_3(%arg0: i32, %arg1: i32) -> (i32, i32) {
    %c0_i32 = arith.constant 0 : i32
    return %arg0, %arg1 : i32, i32
  }
}

module attributes {stable_mosaic.version = 11 : i64} {
  func.func @_mm_single_k_kernel(%arg0: i32, %arg1: i32, %arg2: memref<8x256xf32, #tpu.memory_space<vmem>>, %arg3: memref<256x128xf32, #tpu.memory_space<vmem>>, %arg4: memref<1x128xf32, #tpu.memory_space<vmem>>, %arg5: memref<8x128xf32, #tpu.memory_space<vmem>>) attributes {dimension_semantics = [#tpu.dimension_semantics<parallel>, #tpu.dimension_semantics<parallel>], iteration_bounds = array<i64: 1, 1>, scalar_prefetch = 0 : i64, scratch_operands = 0 : i64, tpu.core_type = #tpu.core_type<tc>, window_params = [{transform_indices = @transform_0, window_bounds = array<i64: 8, 256>}, {transform_indices = @transform_1, window_bounds = array<i64: 256, 128>}, {transform_indices = @transform_2, window_bounds = array<i64: 1, 128>}, {transform_indices = @transform_3, window_bounds = array<i64: 8, 128>}]} {
    %c0 = arith.constant 0 : index
    %c0_0 = arith.constant 0 : index
    %0 = vector.load %arg2[%c0, %c0_0] : memref<8x256xf32, #tpu.memory_space<vmem>>, vector<8x256xf32>
    %c0_1 = arith.constant 0 : index
    %c0_2 = arith.constant 0 : index
    %1 = vector.load %arg3[%c0_1, %c0_2] : memref<256x128xf32, #tpu.memory_space<vmem>>, vector<256x128xf32>
    %cst = arith.constant dense<0.000000e+00> : vector<8x128xf32>
    %2 = tpu.matmul %0, %1, %cst {dimension_numbers = #tpu.dot_dimension_numbers<[1], [0], [0], [1], [0, 0, 1, 1], [], []>} : vector<8x256xf32>, vector<256x128xf32>, vector<8x128xf32> -> vector<8x128xf32>
    %c0_3 = arith.constant 0 : index
    %c0_4 = arith.constant 0 : index
    %3 = vector.load %arg4[%c0_3, %c0_4] : memref<1x128xf32, #tpu.memory_space<vmem>>, vector<1x128xf32>
    %4 = vector.broadcast %3 : vector<1x128xf32> to vector<8x128xf32>
    %5 = arith.addf %2, %4 : vector<8x128xf32>
    %cst_5 = arith.constant 0.000000e+00 : f32
    %6 = vector.broadcast %cst_5 : f32 to vector<8x128xf32>
    %7 = arith.maximumf %5, %6 : vector<8x128xf32>
    %c0_6 = arith.constant 0 : index
    %c0_7 = arith.constant 0 : index
    %8 = vector.load %arg5[%c0_6, %c0_7] : memref<8x128xf32, #tpu.memory_space<vmem>>, vector<8x128xf32>
    tpu.vector_store %arg5[%c0_6, %c0_7], %7 {strides = array<i32>} : memref<8x128xf32, #tpu.memory_space<vmem>>, vector<8x128xf32>,
    return
  }
  func.func @transform_0(%arg0: i32, %arg1: i32) -> (i32, i32) {
    %c0_i32 = arith.constant 0 : i32
    %c0_i32_0 = arith.constant 0 : i32
    return %arg0, %c0_i32 : i32, i32
  }
  func.func @transform_1(%arg0: i32, %arg1: i32) -> (i32, i32) {
    %c0_i32 = arith.constant 0 : i32
    %c0_i32_0 = arith.constant 0 : i32
    return %c0_i32, %arg1 : i32, i32
  }
  func.func @transform_2(%arg0: i32, %arg1: i32) -> (i32, i32) {
    %c0_i32 = arith.constant 0 : i32
    %c0_i32_0 = arith.constant 0 : i32
    return %c0_i32, %arg1 : i32, i32
  }
  func.func @transform_3(%arg0: i32, %arg1: i32) -> (i32, i32) {
    %c0_i32 = arith.constant 0 : i32
    return %arg0, %arg1 : i32, i32
  }
}

module attributes {stable_mosaic.version = 11 : i64} {
  func.func @_mm_single_k_kernel(%arg0: i32, %arg1: i32, %arg2: memref<8x128xf32, #tpu.memory_space<vmem>>, %arg3: memref<128x128xf32, #tpu.memory_space<vmem>>, %arg4: memref<1x128xf32, #tpu.memory_space<vmem>>, %arg5: memref<8x128xf32, #tpu.memory_space<vmem>>) attributes {dimension_semantics = [#tpu.dimension_semantics<parallel>, #tpu.dimension_semantics<parallel>], iteration_bounds = array<i64: 1, 1>, scalar_prefetch = 0 : i64, scratch_operands = 0 : i64, tpu.core_type = #tpu.core_type<tc>, window_params = [{transform_indices = @transform_0, window_bounds = array<i64: 8, 128>}, {transform_indices = @transform_1, window_bounds = array<i64: 128, 128>}, {transform_indices = @transform_2, window_bounds = array<i64: 1, 128>}, {transform_indices = @transform_3, window_bounds = array<i64: 8, 128>}]} {
    %c0 = arith.constant 0 : index
    %c0_0 = arith.constant 0 : index
    %0 = vector.load %arg2[%c0, %c0_0] : memref<8x128xf32, #tpu.memory_space<vmem>>, vector<8x128xf32>
    %c0_1 = arith.constant 0 : index
    %c0_2 = arith.constant 0 : index
    %1 = vector.load %arg3[%c0_1, %c0_2] : memref<128x128xf32, #tpu.memory_space<vmem>>, vector<128x128xf32>
    %cst = arith.constant dense<0.000000e+00> : vector<8x128xf32>
    %2 = tpu.matmul %0, %1, %cst {dimension_numbers = #tpu.dot_dimension_numbers<[1], [0], [0], [1], [0, 0, 1, 1], [], []>} : vector<8x128xf32>, vector<128x128xf32>, vector<8x128xf32> -> vector<8x128xf32>
    %c0_3 = arith.constant 0 : index
    %c0_4 = arith.constant 0 : index
    %3 = vector.load %arg4[%c0_3, %c0_4] : memref<1x128xf32, #tpu.memory_space<vmem>>, vector<1x128xf32>
    %4 = vector.broadcast %3 : vector<1x128xf32> to vector<8x128xf32>
    %5 = arith.addf %2, %4 : vector<8x128xf32>
    %c0_5 = arith.constant 0 : index
    %c0_6 = arith.constant 0 : index
    %6 = vector.load %arg5[%c0_5, %c0_6] : memref<8x128xf32, #tpu.memory_space<vmem>>, vector<8x128xf32>
    tpu.vector_store %arg5[%c0_5, %c0_6], %5 {strides = array<i32>} : memref<8x128xf32, #tpu.memory_space<vmem>>, vector<8x128xf32>,
    return
  }
  func.func @transform_0(%arg0: i32, %arg1: i32) -> (i32, i32) {
    %c0_i32 = arith.constant 0 : i32
    %c0_i32_0 = arith.constant 0 : i32
    return %arg0, %c0_i32 : i32, i32
  }
  func.func @transform_1(%arg0: i32, %arg1: i32) -> (i32, i32) {
    %c0_i32 = arith.constant 0 : i32
    %c0_i32_0 = arith.constant 0 : i32
    return %c0_i32, %arg1 : i32, i32
  }
  func.func @transform_2(%arg0: i32, %arg1: i32) -> (i32, i32) {
    %c0_i32 = arith.constant 0 : i32
    %c0_i32_0 = arith.constant 0 : i32
    return %c0_i32, %arg1 : i32, i32
  }
  func.func @transform_3(%arg0: i32, %arg1: i32) -> (i32, i32) {
    %c0_i32 = arith.constant 0 : i32
    return %arg0, %arg1 : i32, i32
  }
}

</mosaic_0001>

<llo_original>
// kernel: expanded_cnn_forward.7
$region0: #{expanded_cnn_forward.7}
  #allocation0 [shape = 'u32[]', space=smem, size = 0x4, offset = 0x4, fixed_abs, tag = 'smem constant byte address 0x4 - core index']
  #allocation1 [shape = 'u32[144,128]{1,0:T(1,128)}', space=vmem, size = 0x12000, scoped, tag = 'internal scratch']
  %s0 = inlined_call_operand.vmem [shape: f32[1792,128], index: 0, kind: input, shape index: {}]
  %s1 = inlined_call_operand.hbm [shape: f32[128,128], index: 1, kind: input, shape index: {}]
  %s2 = inlined_call_operand.hbm [shape: f32[1,128], index: 2, kind: input, shape index: {}]
  %s3 = inlined_call_operand.vmem [shape: f32[1792,128], index: 3, kind: output, shape index: {}]
  %s4 = sld [smem:[#allocation0]]
  $region53: #{expanded_cnn_forward.7} parent=0
    _
  %s6 = ssub.s32 1, %s4
  %s7 = scalar_select 0, %s6, %s4
  $region1: #{expanded_cnn_forward.7} parent=0
    #allocation2 [shape = 'u8[65536]{0}', space=vmem, size = 0x10000, scoped, tag = 'input window, operand 1, single buffered']
    #allocation3 [shape = 's32[2]{0}', space=sflag, size = 0x8, scoped, tag = 'scoped memory for expanded_cnn_forward.7']
    #allocation4 [shape = 'u8[512]{0}', space=vmem, size = 0x400, scoped, tag = 'input window, operand 2, single buffered']
    #allocation5 [shape = 's32[1]{0}', space=sflag, size = 0x4, scoped, tag = 'scoped memory for expanded_cnn_forward.7']
    %8 = vsyncpa [#allocation3], 0
    %9 = vsyncpa [#allocation5], 0
    loop: start=0, step=1, limit=9
    $region2: #{expanded_cnn_forward.7} parent=1 // loop_pre_header
      _
    $region3: #{expanded_cnn_forward.7} parent=1 // loop_header
      %s11 = sphi 0, %s15
      %p12 = scmp.ge.s32.totalorder %s11, 9
      %s18 = sphi 0, %s30
      %s19 = sphi 0, %s26
      %s20 = sphi 0, %s18
      %s21 = sphi 0, %s19
      %s22 = sphi 0, %s20
      %s23 = sphi 0, %s21
      %s33 = sphi 0, %s35
      %s36 = sphi 0, %s33
      %s37 = sphi 0, %s36
      %s53 = sphi 0, %s37
      %s59 = sphi 0, %s61
      %s62 = sphi 0, %s59
      %s63 = sphi 0, %s62
      %s79 = sphi 0, %s63
      %s85 = sphi 0, %s87
      %s88 = sphi 0, %s85
      %s89 = sphi 0, %s88
      %s105 = sphi 0, %s89
      %s113 = sphi 0, %s115
      %s116 = sphi 0, %s113
      %s117 = sphi 0, %s116
      %s133 = sphi 0, %s117
    $region4: #{expanded_cnn_forward.7} parent=1 // loop_header_branch
      %14 = sbr.rel (%p12) target = $region8
    $region5: #{expanded_cnn_forward.7} parent=1 // loop_body
      %s16 = ssub.s32 %s11, 1
      %s17 = ssub.s32 %s11, 2
      %s24 = sadd.s32 1, %s19
      %p25 = scmp.ge.s32.totalorder %s24, 1
      %s26 = scalar_select %p25, 0, %s24
      %s27 = sadd.s32 1, %s18
      %s28 = scalar_select %p25, %s27, %s18
      %p29 = scmp.ge.s32.totalorder %s28, 7
      %s30 = scalar_select %p29, 0, %s28
      %s31 = ssub.s32 %s18, %s30
      %p32 = scmp.eq.s32.totalorder %s31, 0
      %s34 = sadd.s32 %s33, 1
      %s35 = scalar_select %p32, %s33, %s34
      %p38 = pneg %p32
      %p39 = scmp.eq.s32.totalorder %s11, 6
      %p40 = por %p38, %p39
      %p41 = scmp.ne.s32.totalorder %s33, %s36
      %p42 = scmp.eq.s32.totalorder %s11, 0
      %p43 = por %p41, %p42
      %p44 = scmp.ne.s32.totalorder %s33, %s36
      %p45 = scmp.eq.s32.totalorder %s16, 6
      %p46 = por %p44, %p45
      %p47 = scmp.ne.s32.totalorder %s36, %s37
      %p48 = scmp.eq.s32.totalorder %s16, 0
      %p49 = por %p47, %p48
      %p50 = scmp.ne.s32.totalorder %s36, %s37
      %p51 = scmp.eq.s32.totalorder %s17, 6
      %p52 = por %p50, %p51
      %p54 = scmp.ne.s32.totalorder %s37, %s53
      %p55 = scmp.eq.s32.totalorder %s17, 0
      %p56 = por %p54, %p55
      %s57 = ssub.s32 %s19, %s26
      %p58 = scmp.eq.s32.totalorder %s57, 0
      %s60 = sadd.s32 %s59, 1
      %s61 = scalar_select %p58, %s59, %s60
      %p64 = pneg %p58
      %p65 = scmp.eq.s32.totalorder %s11, 6
      %p66 = por %p64, %p65
      %p67 = scmp.ne.s32.totalorder %s59, %s62
      %p68 = scmp.eq.s32.totalorder %s11, 0
      %p69 = por %p67, %p68
      %p70 = scmp.ne.s32.totalorder %s59, %s62
      %p71 = scmp.eq.s32.totalorder %s16, 6
      %p72 = por %p70, %p71
      %p73 = scmp.ne.s32.totalorder %s62, %s63
      %p74 = scmp.eq.s32.totalorder %s16, 0
      %p75 = por %p73, %p74
      %p76 = scmp.ne.s32.totalorder %s62, %s63
      %p77 = scmp.eq.s32.totalorder %s17, 6
      %p78 = por %p76, %p77
      %p80 = scmp.ne.s32.totalorder %s63, %s79
      %p81 = scmp.eq.s32.totalorder %s17, 0
      %p82 = por %p80, %p81
      %s83 = ssub.s32 %s19, %s26
      %p84 = scmp.eq.s32.totalorder %s83, 0
      %s86 = sadd.s32 %s85, 1
      %s87 = scalar_select %p84, %s85, %s86
      %p90 = pneg %p84
      %p91 = scmp.eq.s32.totalorder %s11, 6
      %p92 = por %p90, %p91
      %p93 = scmp.ne.s32.totalorder %s85, %s88
      %p94 = scmp.eq.s32.totalorder %s11, 0
      %p95 = por %p93, %p94
      %p96 = scmp.ne.s32.totalorder %s85, %s88
      %p97 = scmp.eq.s32.totalorder %s16, 6
      %p98 = por %p96, %p97
      %p99 = scmp.ne.s32.totalorder %s88, %s89
      %p100 = scmp.eq.s32.totalorder %s16, 0
      %p101 = por %p99, %p100
      %p102 = scmp.ne.s32.totalorder %s88, %s89
      %p103 = scmp.eq.s32.totalorder %s17, 6
      %p104 = por %p102, %p103
      %p106 = scmp.ne.s32.totalorder %s89, %s105
      %p107 = scmp.eq.s32.totalorder %s17, 0
      %p108 = por %p106, %p107
      %s109 = ssub.s32 %s18, %s30
      %s110 = ssub.s32 %s19, %s26
      %s111 = sor.u32 %s109, %s110
      %p112 = scmp.eq.s32.totalorder %s111, 0
      %s114 = sadd.s32 %s113, 1
      %s115 = scalar_select %p112, %s113, %s114
      %p118 = pneg %p112
      %p119 = scmp.eq.s32.totalorder %s11, 6
      %p120 = por %p118, %p119
      %p121 = scmp.ne.s32.totalorder %s113, %s116
      %p122 = scmp.eq.s32.totalorder %s11, 0
      %p123 = por %p121, %p122
      %p124 = scmp.ne.s32.totalorder %s113, %s116
      %p125 = scmp.eq.s32.totalorder %s16, 6
      %p126 = por %p124, %p125
      %p127 = scmp.ne.s32.totalorder %s116, %s117
      %p128 = scmp.eq.s32.totalorder %s16, 0
      %p129 = por %p127, %p128
      %p130 = scmp.ne.s32.totalorder %s116, %s117
      %p131 = scmp.eq.s32.totalorder %s17, 6
      %p132 = por %p130, %p131
      %p134 = scmp.ne.s32.totalorder %s117, %s133
      %p135 = scmp.eq.s32.totalorder %s17, 0
      %p136 = por %p134, %p135
      %p137 = scmp.le.s32.totalorder 1, %s11
      %p138 = scmp.lt.s32.totalorder %s11, 8
      %p139 = pnand %p137, %p138
      %p140 = pneg %p139
      // Predicated region
      $region9: #{expanded_cnn_forward.7} parent=5 // pred_check
        _
      $region10: #{expanded_cnn_forward.7} parent=5 // pred_check_branch
        %142 = sbr.rel (%p139) target = $region12
      $region11: #{expanded_cnn_forward.7} parent=5 // pred_region
        %s143 = ssub.s32 %s11, 1
        // Predicated region
        $region13: #{expanded_cnn_forward.7} parent=11 // pred_check
          %p144 = pneg %p75
        $region14: #{expanded_cnn_forward.7} parent=11 // pred_check_branch
          %146 = sbr.rel (%p144) target = $region16
        $region15: #{expanded_cnn_forward.7} parent=11 // pred_region
          %s148 = ssub.s32 2048, 2048
          %149 = vsyncadd [#allocation3], %s148
          %s150 = smul.addr %s21, 128
          %s151 = scalar_lea.hbm %s1, %s150
          %s152 = sshll.u32 [#allocation2], 4
          %s153 = int_to_ptr.vmem [resolvable:$true] %s152
          %158 = dma.hbm_to_vmem [thread:$0]  %s151, 2048, %s153, [#allocation3], 128, 128, 8
        $region16: #{expanded_cnn_forward.7} parent=11 // pred_fallthru
          _
        // Predicated region
        $region17: #{expanded_cnn_forward.7} parent=11 // pred_check
          %p159 = pneg %p101
        $region18: #{expanded_cnn_forward.7} parent=11 // pred_check_branch
          %161 = sbr.rel (%p159) target = $region20
        $region19: #{expanded_cnn_forward.7} parent=11 // pred_region
          %s163 = ssub.s32 16, 16
          %164 = vsyncadd [#allocation5], %s163
          %s165 = smul.addr %s21, 16
          %s166 = scalar_lea.hbm %s2, %s165
          %s168 = sshll.u32 [#allocation4], 4
          %s169 = int_to_ptr.vmem [resolvable:$true] %s168
          %171 = dma.hbm_to_vmem [thread:$0]  %s166, 16, %s169, [#allocation5]
        $region20: #{expanded_cnn_forward.7} parent=11 // pred_fallthru
          _
      $region12: #{expanded_cnn_forward.7} parent=5 // pred_fallthru
        _
      %p172 = scmp.lt.s32.totalorder %s11, 7
      // Predicated region
      $region21: #{expanded_cnn_forward.7} parent=5 // pred_check
        %p173 = pneg %p172
      $region22: #{expanded_cnn_forward.7} parent=5 // pred_check_branch
        %175 = sbr.rel (%p173) target = $region24
      $region23: #{expanded_cnn_forward.7} parent=5 // pred_region
        // Predicated region
        $region25: #{expanded_cnn_forward.7} parent=23 // pred_check
          %p176 = pneg %p43
        $region26: #{expanded_cnn_forward.7} parent=23 // pred_check_branch
          %178 = sbr.rel (%p176) target = $region28
        $region27: #{expanded_cnn_forward.7} parent=23 // pred_region
          %s179 = smul.u32 32, %s18
          %p180 = scmp.lt.s32.totalorder %s179, 223
          %s181 = scalar_select %p180, %s179, 223
          %s182 = smul.addr %s181, 8
          %s183 = scalar_lea.vmem %s0, %s182
          %s184 = smul.u32 32, %s18
        $region28: #{expanded_cnn_forward.7} parent=23 // pred_fallthru
          _
      $region24: #{expanded_cnn_forward.7} parent=5 // pred_fallthru
        _
      %p185 = scmp.le.s32.totalorder 1, %s11
      %p186 = scmp.lt.s32.totalorder %s11, 8
      %p187 = pnand %p185, %p186
      %p188 = pneg %p187
      // Predicated region
      $region29: #{expanded_cnn_forward.7} parent=5 // pred_check
        _
      $region30: #{expanded_cnn_forward.7} parent=5 // pred_check_branch
        %190 = sbr.rel (%p187) target = $region32
      $region31: #{expanded_cnn_forward.7} parent=5 // pred_region
        %s191 = ssub.s32 %s11, 1
        // Predicated region
        $region33: #{expanded_cnn_forward.7} parent=31 // pred_check
          %p192 = pneg %p75
        $region34: #{expanded_cnn_forward.7} parent=31 // pred_check_branch
          %194 = sbr.rel (%p192) target = $region36
        $region35: #{expanded_cnn_forward.7} parent=31 // pred_region
          %195 = dma.done [#allocation3], 2048
        $region36: #{expanded_cnn_forward.7} parent=31 // pred_fallthru
          _
        // Predicated region
        $region37: #{expanded_cnn_forward.7} parent=31 // pred_check
          %p196 = pneg %p101
        $region38: #{expanded_cnn_forward.7} parent=31 // pred_check_branch
          %198 = sbr.rel (%p196) target = $region40
        $region39: #{expanded_cnn_forward.7} parent=31 // pred_region
          %199 = dma.done [#allocation5], 16
        $region40: #{expanded_cnn_forward.7} parent=31 // pred_fallthru
          _
        %s200 = smul.u32 32, %s20
        %p201 = scmp.lt.s32.totalorder %s200, 223
        %s202 = scalar_select %p201, %s200, 223
        %s203 = smul.addr %s202, 8
        %s204 = scalar_lea.vmem %s0, %s203
        %p205 = pneg %p49
        %p206 = pneg %p46
        %p207 = pneg %p75
        %p208 = pneg %p72
        %p209 = pneg %p101
        %p210 = pneg %p98
        %p211 = pneg %p129
        %p212 = pneg %p126
        %s213 = smul.u32 32, %s20
        %p214 = scmp.lt.s32.totalorder %s213, 223
        %s215 = scalar_select %p214, %s213, 223
        %p216 = scmp.lt.s32.totalorder %s21, 0
        %s217 = scalar_select %p216, %s21, 0
        %s218 = sadd.s32 %s217, %s215
        %s219 = smul.addr %s218, 8
        %s220 = scalar_lea.vmem %s3, %s219
        %s221 = smul.u32 32, %s20
        %p222 = scmp.lt.s32.totalorder %s221, 223
        %s223 = scalar_select %p222, %s221, 223
        %s224 = smul.addr %s223, 8
        %s225 = scalar_lea.vmem %s0, %s224
        %s226 = smul.u32 32, %s20
        %s227 = smul.u32 32, %s20
        %p228 = scmp.lt.s32.totalorder %s227, 223
        %s229 = scalar_select %p228, %s227, 223
        %p230 = scmp.lt.s32.totalorder %s21, 0
        %s231 = scalar_select %p230, %s21, 0
        %s232 = sadd.s32 %s231, %s229
        %s233 = smul.addr %s232, 8
        %s234 = scalar_lea.vmem %s3, %s233
        %s235 = smul.u32 32, %s20
        %v236 = vld [vmem:[%s225] sm:$0xff]
        %v237 = vld [vmem:[%s225 + $0x8] sm:$0xff]
        %v238 = vld [vmem:[%s225 + $0x10] sm:$0xff]
        %v239 = vld [vmem:[%s225 + $0x18] sm:$0xff]
        %v240 = vld [vmem:[%s225 + $0x20] sm:$0xff]
        %v241 = vld [vmem:[%s225 + $0x28] sm:$0xff]
        %v242 = vld [vmem:[%s225 + $0x30] sm:$0xff]
        %v243 = vld [vmem:[%s225 + $0x38] sm:$0xff]
        %v244 = vld [vmem:[%s225 + $0x40] sm:$0xff]
        %v245 = vld [vmem:[%s225 + $0x48] sm:$0xff]
        %v246 = vld [vmem:[%s225 + $0x50] sm:$0xff]
        %v247 = vld [vmem:[%s225 + $0x58] sm:$0xff]
        %v248 = vld [vmem:[%s225 + $0x60] sm:$0xff]
        %v249 = vld [vmem:[%s225 + $0x68] sm:$0xff]
        %v250 = vld [vmem:[%s225 + $0x70] sm:$0xff]
        %v251 = vld [vmem:[%s225 + $0x78] sm:$0xff]
        %v252 = vld [vmem:[%s225 + $0x80] sm:$0xff]
        %v253 = vld [vmem:[%s225 + $0x88] sm:$0xff]
        %v254 = vld [vmem:[%s225 + $0x90] sm:$0xff]
        %v255 = vld [vmem:[%s225 + $0x98] sm:$0xff]
        %v256 = vld [vmem:[%s225 + $0xa0] sm:$0xff]
        %v257 = vld [vmem:[%s225 + $0xa8] sm:$0xff]
        %v258 = vld [vmem:[%s225 + $0xb0] sm:$0xff]
        %v259 = vld [vmem:[%s225 + $0xb8] sm:$0xff]
        %v260 = vld [vmem:[%s225 + $0xc0] sm:$0xff]
        %v261 = vld [vmem:[%s225 + $0xc8] sm:$0xff]
        %v262 = vld [vmem:[%s225 + $0xd0] sm:$0xff]
        %v263 = vld [vmem:[%s225 + $0xd8] sm:$0xff]
        %v264 = vld [vmem:[%s225 + $0xe0] sm:$0xff]
        %v265 = vld [vmem:[%s225 + $0xe8] sm:$0xff]
        %v266 = vld [vmem:[%s225 + $0xf0] sm:$0xff]
        %v267 = vld [vmem:[%s225 + $0xf8] sm:$0xff]
        %v268 = vld [vmem:[#allocation2] sm:$0xff]
        %v269 = vld [vmem:[#allocation2 + $0x8] sm:$0xff]
        %v270 = vld [vmem:[#allocation2 + $0x10] sm:$0xff]
        %v271 = vld [vmem:[#allocation2 + $0x18] sm:$0xff]
        %v272 = vld [vmem:[#allocation2 + $0x20] sm:$0xff]
        %v273 = vld [vmem:[#allocation2 + $0x28] sm:$0xff]
        %v274 = vld [vmem:[#allocation2 + $0x30] sm:$0xff]
        %v275 = vld [vmem:[#allocation2 + $0x38] sm:$0xff]
        %v276 = vld [vmem:[#allocation2 + $0x40] sm:$0xff]
        %v277 = vld [vmem:[#allocation2 + $0x48] sm:$0xff]
        %v278 = vld [vmem:[#allocation2 + $0x50] sm:$0xff]
        %v279 = vld [vmem:[#allocation2 + $0x58] sm:$0xff]
        %v280 = vld [vmem:[#allocation2 + $0x60] sm:$0xff]
        %v281 = vld [vmem:[#allocation2 + $0x68] sm:$0xff]
        %v282 = vld [vmem:[#allocation2 + $0x70] sm:$0xff]
        %v283 = vld [vmem:[#allocation2 + $0x78] sm:$0xff]
        %v284 = vld [vmem:[#allocation4] sm:$0x1]
        %v286 = vlaneseq
        %v287 = vshrl.u32 %v286, 7
        %v288 = vsub.s32 0, %v287
        %v289 = vrot.slane %v284, %v288
        %291 = vmatprep.subr.mxu0 0.0
        %292 = vmatpush1.msra.mxu0 %v283
        %293 = vmatprep.subr.mxu0 0.0
        %294 = vmatpush1.msra.mxu0 %v282
        %295 = vmatprep.subr.mxu0 0.0
        %296 = vmatpush1.msra.mxu0 %v281
        %297 = vmatprep.subr.mxu0 0.0
        %298 = vmatpush1.msra.mxu0 %v280
        %299 = vmatprep.subr.mxu0 0.0
        %300 = vmatpush1.msra.mxu0 %v279
        %301 = vmatprep.subr.mxu0 0.0
        %302 = vmatpush1.msra.mxu0 %v278
        %303 = vmatprep.subr.mxu0 0.0
        %304 = vmatpush1.msra.mxu0 %v277
        %305 = vmatprep.subr.mxu0 0.0
        %306 = vmatpush1.msra.mxu0 %v276
        %307 = vmatprep.subr.mxu0 0.0
        %308 = vmatpush1.msra.mxu0 %v275
        %309 = vmatprep.subr.mxu0 0.0
        %310 = vmatpush1.msra.mxu0 %v274
        %311 = vmatprep.subr.mxu0 0.0
        %312 = vmatpush1.msra.mxu0 %v273
        %313 = vmatprep.subr.mxu0 0.0
        %314 = vmatpush1.msra.mxu0 %v272
        %315 = vmatprep.subr.mxu0 0.0
        %316 = vmatpush1.msra.mxu0 %v271
        %317 = vmatprep.subr.mxu0 0.0
        %318 = vmatpush1.msra.mxu0 %v270
        %319 = vmatprep.subr.mxu0 0.0
        %320 = vmatpush1.msra.mxu0 %v269
        %321 = vmatprep.subr.mxu0 0.0
        %322 = vmatpush1.msra.mxu0 %v268
        %323 = vmatprep.subr.mxu0 0.0
        %324 = vmatpush2.msra.mxu0 0.0
        %325 = vmatprep.subr.mxu0 0.0
        %326 = vmatpush2.msra.mxu0 0.0
        %327 = vmatprep.subr.mxu0 0.0
        %328 = vmatpush2.msra.mxu0 0.0
        %329 = vmatprep.subr.mxu0 0.0
        %330 = vmatpush2.msra.mxu0 0.0
        %331 = vmatprep.subr.mxu0 0.0
        %332 = vmatpush2.msra.mxu0 0.0
        %333 = vmatprep.subr.mxu0 0.0
        %334 = vmatpush2.msra.mxu0 0.0
        %335 = vmatprep.subr.mxu0 0.0
        %336 = vmatpush2.msra.mxu0 0.0
        %337 = vmatprep.subr.mxu0 0.0
        %338 = vmatpush2.msra.mxu0 0.0
        %339 = vmatprep.subr.mxu0 0.0
        %340 = vmatpush2.msra.mxu0 0.0
        %341 = vmatprep.subr.mxu0 0.0
        %342 = vmatpush2.msra.mxu0 0.0
        %343 = vmatprep.subr.mxu0 0.0
        %344 = vmatpush2.msra.mxu0 0.0
        %345 = vmatprep.subr.mxu0 0.0
        %346 = vmatpush2.msra.mxu0 0.0
        %347 = vmatprep.subr.mxu0 0.0
        %348 = vmatpush2.msra.mxu0 0.0
        %349 = vmatprep.subr.mxu0 0.0
        %350 = vmatpush2.msra.mxu0 0.0
        %351 = vmatprep.subr.mxu0 0.0
        %352 = vmatpush2.msra.mxu0 0.0
        %353 = vmatprep.subr.mxu0 0.0
        %354 = vmatpush2.msra.mxu0 0.0
        %355 = vmatprep.mubr.f32.mxu0 0.0
        %356 = vmatmul.mubr.f32.gmra.mxu0 %v236
        %v357 = vpop.f32.mrf.mxu0
        %v358 = vadd.f32 %v289, %v357
        %v359 = vpop.f32.mrf.mxu0
        %360 = vmatprep.mubr.f32.mxu0 0.0
        %361 = vmatmul.mubr.f32.gmra.mxu0 %v237
        %v362 = vpop.f32.mrf.mxu0
        %v363 = vadd.f32 %v289, %v362
        %v364 = vpop.f32.mrf.mxu0
        %365 = vmatprep.mubr.f32.mxu0 0.0
        %366 = vmatmul.mubr.f32.gmra.mxu0 %v238
        %v367 = vpop.f32.mrf.mxu0
        %v368 = vadd.f32 %v289, %v367
        %v369 = vpop.f32.mrf.mxu0
        %370 = vmatprep.mubr.f32.mxu0 0.0
        %371 = vmatmul.mubr.f32.gmra.mxu0 %v239
        %v372 = vpop.f32.mrf.mxu0
        %v373 = vadd.f32 %v289, %v372
        %v374 = vpop.f32.mrf.mxu0
        %375 = vmatprep.mubr.f32.mxu0 0.0
        %376 = vmatmul.mubr.f32.gmra.mxu0 %v240
        %v377 = vpop.f32.mrf.mxu0
        %v378 = vadd.f32 %v289, %v377
        %v379 = vpop.f32.mrf.mxu0
        %380 = vmatprep.mubr.f32.mxu0 0.0
        %381 = vmatmul.mubr.f32.gmra.mxu0 %v241
        %v382 = vpop.f32.mrf.mxu0
        %v383 = vadd.f32 %v289, %v382
        %v384 = vpop.f32.mrf.mxu0
        %385 = vmatprep.mubr.f32.mxu0 0.0
        %386 = vmatmul.mubr.f32.gmra.mxu0 %v242
        %v387 = vpop.f32.mrf.mxu0
        %v388 = vadd.f32 %v289, %v387
        %v389 = vpop.f32.mrf.mxu0
        %390 = vmatprep.mubr.f32.mxu0 0.0
        %391 = vmatmul.mubr.f32.gmra.mxu0 %v243
        %v392 = vpop.f32.mrf.mxu0
        %v393 = vadd.f32 %v289, %v392
        %v394 = vpop.f32.mrf.mxu0
        %395 = vmatprep.mubr.f32.mxu0 0.0
        %396 = vmatmul.mubr.f32.gmra.mxu0 %v244
        %v397 = vpop.f32.mrf.mxu0
        %v398 = vadd.f32 %v289, %v397
        %v399 = vpop.f32.mrf.mxu0
        %400 = vmatprep.mubr.f32.mxu0 0.0
        %401 = vmatmul.mubr.f32.gmra.mxu0 %v245
        %v402 = vpop.f32.mrf.mxu0
        %v403 = vadd.f32 %v289, %v402
        %v404 = vpop.f32.mrf.mxu0
        %405 = vmatprep.mubr.f32.mxu0 0.0
        %406 = vmatmul.mubr.f32.gmra.mxu0 %v246
        %v407 = vpop.f32.mrf.mxu0
        %v408 = vadd.f32 %v289, %v407
        %v409 = vpop.f32.mrf.mxu0
        %410 = vmatprep.mubr.f32.mxu0 0.0
        %411 = vmatmul.mubr.f32.gmra.mxu0 %v247
        %v412 = vpop.f32.mrf.mxu0
        %v413 = vadd.f32 %v289, %v412
        %v414 = vpop.f32.mrf.mxu0
        %415 = vmatprep.mubr.f32.mxu0 0.0
        %416 = vmatmul.mubr.f32.gmra.mxu0 %v248
        %v417 = vpop.f32.mrf.mxu0
        %v418 = vadd.f32 %v289, %v417
        %v419 = vpop.f32.mrf.mxu0
        %420 = vmatprep.mubr.f32.mxu0 0.0
        %421 = vmatmul.mubr.f32.gmra.mxu0 %v249
        %v422 = vpop.f32.mrf.mxu0
        %v423 = vadd.f32 %v289, %v422
        %v424 = vpop.f32.mrf.mxu0
        %425 = vmatprep.mubr.f32.mxu0 0.0
        %426 = vmatmul.mubr.f32.gmra.mxu0 %v250
        %v427 = vpop.f32.mrf.mxu0
        %v428 = vadd.f32 %v289, %v427
        %v429 = vpop.f32.mrf.mxu0
        %430 = vmatprep.mubr.f32.mxu0 0.0
        %431 = vmatmul.mubr.f32.gmra.mxu0 %v251
        %v432 = vpop.f32.mrf.mxu0
        %v433 = vadd.f32 %v289, %v432
        %v434 = vpop.f32.mrf.mxu0
        %435 = vmatprep.mubr.f32.mxu0 0.0
        %436 = vmatmul.mubr.f32.gmra.mxu0 %v252
        %v437 = vpop.f32.mrf.mxu0
        %v438 = vadd.f32 %v289, %v437
        %v439 = vpop.f32.mrf.mxu0
        %440 = vmatprep.mubr.f32.mxu0 0.0
        %441 = vmatmul.mubr.f32.gmra.mxu0 %v253
        %v442 = vpop.f32.mrf.mxu0
        %v443 = vadd.f32 %v289, %v442
        %v444 = vpop.f32.mrf.mxu0
        %445 = vmatprep.mubr.f32.mxu0 0.0
        %446 = vmatmul.mubr.f32.gmra.mxu0 %v254
        %v447 = vpop.f32.mrf.mxu0
        %v448 = vadd.f32 %v289, %v447
        %v449 = vpop.f32.mrf.mxu0
        %450 = vmatprep.mubr.f32.mxu0 0.0
        %451 = vmatmul.mubr.f32.gmra.mxu0 %v255
        %v452 = vpop.f32.mrf.mxu0
        %v453 = vadd.f32 %v289, %v452
        %v454 = vpop.f32.mrf.mxu0
        %455 = vmatprep.mubr.f32.mxu0 0.0
        %456 = vmatmul.mubr.f32.gmra.mxu0 %v256
        %v457 = vpop.f32.mrf.mxu0
        %v458 = vadd.f32 %v289, %v457
        %v459 = vpop.f32.mrf.mxu0
        %460 = vmatprep.mubr.f32.mxu0 0.0
        %461 = vmatmul.mubr.f32.gmra.mxu0 %v257
        %v462 = vpop.f32.mrf.mxu0
        %v463 = vadd.f32 %v289, %v462
        %v464 = vpop.f32.mrf.mxu0
        %465 = vmatprep.mubr.f32.mxu0 0.0
        %466 = vmatmul.mubr.f32.gmra.mxu0 %v258
        %v467 = vpop.f32.mrf.mxu0
        %v468 = vadd.f32 %v289, %v467
        %v469 = vpop.f32.mrf.mxu0
        %470 = vmatprep.mubr.f32.mxu0 0.0
        %471 = vmatmul.mubr.f32.gmra.mxu0 %v259
        %v472 = vpop.f32.mrf.mxu0
        %v473 = vadd.f32 %v289, %v472
        %v474 = vpop.f32.mrf.mxu0
        %475 = vmatprep.mubr.f32.mxu0 0.0
        %476 = vmatmul.mubr.f32.gmra.mxu0 %v260
        %v477 = vpop.f32.mrf.mxu0
        %v478 = vadd.f32 %v289, %v477
        %v479 = vpop.f32.mrf.mxu0
        %480 = vmatprep.mubr.f32.mxu0 0.0
        %481 = vmatmul.mubr.f32.gmra.mxu0 %v261
        %v482 = vpop.f32.mrf.mxu0
        %v483 = vadd.f32 %v289, %v482
        %v484 = vpop.f32.mrf.mxu0
        %485 = vmatprep.mubr.f32.mxu0 0.0
        %486 = vmatmul.mubr.f32.gmra.mxu0 %v262
        %v487 = vpop.f32.mrf.mxu0
        %v488 = vadd.f32 %v289, %v487
        %v489 = vpop.f32.mrf.mxu0
        %490 = vmatprep.mubr.f32.mxu0 0.0
        %491 = vmatmul.mubr.f32.gmra.mxu0 %v263
        %v492 = vpop.f32.mrf.mxu0
        %v493 = vadd.f32 %v289, %v492
        %v494 = vpop.f32.mrf.mxu0
        %495 = vmatprep.mubr.f32.mxu0 0.0
        %496 = vmatmul.mubr.f32.gmra.mxu0 %v264
        %v497 = vpop.f32.mrf.mxu0
        %v498 = vadd.f32 %v289, %v497
        %v499 = vpop.f32.mrf.mxu0
        %500 = vmatprep.mubr.f32.mxu0 0.0
        %501 = vmatmul.mubr.f32.gmra.mxu0 %v265
        %v502 = vpop.f32.mrf.mxu0
        %v503 = vadd.f32 %v289, %v502
        %v504 = vpop.f32.mrf.mxu0
        %505 = vmatprep.mubr.f32.mxu0 0.0
        %506 = vmatmul.mubr.f32.gmra.mxu0 %v266
        %v507 = vpop.f32.mrf.mxu0
        %v508 = vadd.f32 %v289, %v507
        %v509 = vpop.f32.mrf.mxu0
        %510 = vmatprep.mubr.f32.mxu0 0.0
        %511 = vmatmul.mubr.f32.gmra.mxu0 %v267
        %v512 = vpop.f32.mrf.mxu0
        %v513 = vadd.f32 %v289, %v512
        %v514 = vpop.f32.mrf.mxu0
        %515 = vdwg.mxu0
        %v516 = vmax.f32 %v358, 0.0
        %v517 = vmax.f32 %v363, 0.0
        %v518 = vmax.f32 %v368, 0.0
        %v519 = vmax.f32 %v373, 0.0
        %v520 = vmax.f32 %v378, 0.0
        %v521 = vmax.f32 %v383, 0.0
        %v522 = vmax.f32 %v388, 0.0
        %v523 = vmax.f32 %v393, 0.0
        %v524 = vmax.f32 %v398, 0.0
        %v525 = vmax.f32 %v403, 0.0
        %v526 = vmax.f32 %v408, 0.0
        %v527 = vmax.f32 %v413, 0.0
        %v528 = vmax.f32 %v418, 0.0
        %v529 = vmax.f32 %v423, 0.0
        %v530 = vmax.f32 %v428, 0.0
        %v531 = vmax.f32 %v433, 0.0
        %v532 = vmax.f32 %v438, 0.0
        %v533 = vmax.f32 %v443, 0.0
        %v534 = vmax.f32 %v448, 0.0
        %v535 = vmax.f32 %v453, 0.0
        %v536 = vmax.f32 %v458, 0.0
        %v537 = vmax.f32 %v463, 0.0
        %v538 = vmax.f32 %v468, 0.0
        %v539 = vmax.f32 %v473, 0.0
        %v540 = vmax.f32 %v478, 0.0
        %v541 = vmax.f32 %v483, 0.0
        %v542 = vmax.f32 %v488, 0.0
        %v543 = vmax.f32 %v493, 0.0
        %v544 = vmax.f32 %v498, 0.0
        %v545 = vmax.f32 %v503, 0.0
        %v546 = vmax.f32 %v508, 0.0
        %v547 = vmax.f32 %v513, 0.0
        %548 = vst [vmem:[%s234] sm:$0xff] %v516
        %549 = vst [vmem:[%s234 + $0x8] sm:$0xff] %v517
        %550 = vst [vmem:[%s234 + $0x10] sm:$0xff] %v518
        %551 = vst [vmem:[%s234 + $0x18] sm:$0xff] %v519
        %552 = vst [vmem:[%s234 + $0x20] sm:$0xff] %v520
        %553 = vst [vmem:[%s234 + $0x28] sm:$0xff] %v521
        %554 = vst [vmem:[%s234 + $0x30] sm:$0xff] %v522
        %555 = vst [vmem:[%s234 + $0x38] sm:$0xff] %v523
        %556 = vst [vmem:[%s234 + $0x40] sm:$0xff] %v524
        %557 = vst [vmem:[%s234 + $0x48] sm:$0xff] %v525
        %558 = vst [vmem:[%s234 + $0x50] sm:$0xff] %v526
        %559 = vst [vmem:[%s234 + $0x58] sm:$0xff] %v527
        %560 = vst [vmem:[%s234 + $0x60] sm:$0xff] %v528
        %561 = vst [vmem:[%s234 + $0x68] sm:$0xff] %v529
        %562 = vst [vmem:[%s234 + $0x70] sm:$0xff] %v530
        %563 = vst [vmem:[%s234 + $0x78] sm:$0xff] %v531
        %564 = vst [vmem:[%s234 + $0x80] sm:$0xff] %v532
        %565 = vst [vmem:[%s234 + $0x88] sm:$0xff] %v533
        %566 = vst [vmem:[%s234 + $0x90] sm:$0xff] %v534
        %567 = vst [vmem:[%s234 + $0x98] sm:$0xff] %v535
        %568 = vst [vmem:[%s234 + $0xa0] sm:$0xff] %v536
        %569 = vst [vmem:[%s234 + $0xa8] sm:$0xff] %v537
        %570 = vst [vmem:[%s234 + $0xb0] sm:$0xff] %v538
        %571 = vst [vmem:[%s234 + $0xb8] sm:$0xff] %v539
        %572 = vst [vmem:[%s234 + $0xc0] sm:$0xff] %v540
        %573 = vst [vmem:[%s234 + $0xc8] sm:$0xff] %v541
        %574 = vst [vmem:[%s234 + $0xd0] sm:$0xff] %v542
        %575 = vst [vmem:[%s234 + $0xd8] sm:$0xff] %v543
        %576 = vst [vmem:[%s234 + $0xe0] sm:$0xff] %v544
        %577 = vst [vmem:[%s234 + $0xe8] sm:$0xff] %v545
        %578 = vst [vmem:[%s234 + $0xf0] sm:$0xff] %v546
        %579 = vst [vmem:[%s234 + $0xf8] sm:$0xff] %v547
        %s580 = smul.u32 32, %s20
        %p581 = scmp.lt.s32.totalorder %s580, 223
        %s582 = scalar_select %p581, %s580, 223
        %p583 = scmp.lt.s32.totalorder %s21, 0
        %s584 = scalar_select %p583, %s21, 0
        %s585 = sadd.s32 %s584, %s582
        %s586 = smul.addr %s585, 8
        %s587 = scalar_lea.vmem %s3, %s586
        // Predicated region
        $region41: #{expanded_cnn_forward.7} parent=31 // pred_check
          %p588 = pneg %p126
        $region42: #{expanded_cnn_forward.7} parent=31 // pred_check_branch
          %590 = sbr.rel (%p588) target = $region44
        $region43: #{expanded_cnn_forward.7} parent=31 // pred_region
          %s591 = smul.u32 32, %s20
        $region44: #{expanded_cnn_forward.7} parent=31 // pred_fallthru
          _
      $region32: #{expanded_cnn_forward.7} parent=5 // pred_fallthru
        _
      %p592 = scmp.le.s32.totalorder 2, %s11
      // Predicated region
      $region45: #{expanded_cnn_forward.7} parent=5 // pred_check
        %p593 = pneg %p592
      $region46: #{expanded_cnn_forward.7} parent=5 // pred_check_branch
        %595 = sbr.rel (%p593) target = $region48
      $region47: #{expanded_cnn_forward.7} parent=5 // pred_region
        %s596 = ssub.s32 %s11, 2
        // Predicated region
        $region49: #{expanded_cnn_forward.7} parent=47 // pred_check
          %p597 = pneg %p132
        $region50: #{expanded_cnn_forward.7} parent=47 // pred_check_branch
          %599 = sbr.rel (%p597) target = $region52
        $region51: #{expanded_cnn_forward.7} parent=47 // pred_region
          %s600 = smul.u32 32, %s22
          %p601 = scmp.lt.s32.totalorder %s600, 223
          %s602 = scalar_select %p601, %s600, 223
          %p603 = scmp.lt.s32.totalorder %s23, 0
          %s604 = scalar_select %p603, %s23, 0
          %s605 = sadd.s32 %s604, %s602
          %s606 = smul.addr %s605, 8
          %s607 = scalar_lea.vmem %s3, %s606
        $region52: #{expanded_cnn_forward.7} parent=47 // pred_fallthru
          _
      $region48: #{expanded_cnn_forward.7} parent=5 // pred_fallthru
        _
    $region6: #{expanded_cnn_forward.7} parent=1 // loop_footer
      %s15 = sadd.s32 1, %s11
    $region7: #{expanded_cnn_forward.7} parent=1 // loop_footer_branch
      %10 = sbr.rel target = $region3
    $region8: #{expanded_cnn_forward.7} parent=1 // loop_exit
      _
    %608 = vsyncpa [#allocation3], 1
    %s609 = scalar_lea.sflag [#allocation3], 1
    %610 = vsyncpa %s609, 1
    %611 = vsyncpa [#allocation5], 1

// kernel: expanded_cnn_forward.8
$region0: #{expanded_cnn_forward.8}
  #allocation0 [shape = 'u32[]', space=smem, size = 0x4, offset = 0x4, fixed_abs, tag = 'smem constant byte address 0x4 - core index']
  #allocation1 [shape = 'u32[144,128]{1,0:T(1,128)}', space=vmem, size = 0x12000, scoped, tag = 'internal scratch']
  %s0 = inlined_call_operand.vmem [shape: f32[1792,512], index: 0, kind: input, shape index: {}]
  %s1 = inlined_call_operand.vmem [shape: f32[512,128], index: 1, kind: input, shape index: {}]
  %s2 = inlined_call_operand.vmem [shape: f32[1,128], index: 2, kind: input, shape index: {}]
  %s3 = inlined_call_operand.vmem [shape: f32[1792,128], index: 3, kind: output, shape index: {}]
  %s4 = sld [smem:[#allocation0]]
  $region45: #{expanded_cnn_forward.8} parent=0
    _
  %s6 = ssub.s32 1, %s4
  %s7 = scalar_select 0, %s6, %s4
  loop: start=0, step=1, limit=9
  $region2: #{expanded_cnn_forward.8} parent=0 // loop_pre_header
    _
  $region3: #{expanded_cnn_forward.8} parent=0 // loop_header
    %s9 = sphi 0, %s13
    %p10 = scmp.ge.s32.totalorder %s9, 9
    %s16 = sphi 0, %s28
    %s17 = sphi 0, %s24
    %s18 = sphi 0, %s16
    %s19 = sphi 0, %s17
    %s20 = sphi 0, %s18
    %s21 = sphi 0, %s19
    %s31 = sphi 0, %s33
    %s34 = sphi 0, %s31
    %s35 = sphi 0, %s34
    %s51 = sphi 0, %s35
    %s57 = sphi 0, %s59
    %s60 = sphi 0, %s57
    %s61 = sphi 0, %s60
    %s77 = sphi 0, %s61
    %s83 = sphi 0, %s85
    %s86 = sphi 0, %s83
    %s87 = sphi 0, %s86
    %s103 = sphi 0, %s87
    %s111 = sphi 0, %s113
    %s114 = sphi 0, %s111
    %s115 = sphi 0, %s114
    %s131 = sphi 0, %s115
  $region4: #{expanded_cnn_forward.8} parent=0 // loop_header_branch
    %12 = sbr.rel (%p10) target = $region8
  $region5: #{expanded_cnn_forward.8} parent=0 // loop_body
    %s14 = ssub.s32 %s9, 1
    %s15 = ssub.s32 %s9, 2
    %s22 = sadd.s32 1, %s17
    %p23 = scmp.ge.s32.totalorder %s22, 1
    %s24 = scalar_select %p23, 0, %s22
    %s25 = sadd.s32 1, %s16
    %s26 = scalar_select %p23, %s25, %s16
    %p27 = scmp.ge.s32.totalorder %s26, 7
    %s28 = scalar_select %p27, 0, %s26
    %s29 = ssub.s32 %s16, %s28
    %p30 = scmp.eq.s32.totalorder %s29, 0
    %s32 = sadd.s32 %s31, 1
    %s33 = scalar_select %p30, %s31, %s32
    %p36 = pneg %p30
    %p37 = scmp.eq.s32.totalorder %s9, 6
    %p38 = por %p36, %p37
    %p39 = scmp.ne.s32.totalorder %s31, %s34
    %p40 = scmp.eq.s32.totalorder %s9, 0
    %p41 = por %p39, %p40
    %p42 = scmp.ne.s32.totalorder %s31, %s34
    %p43 = scmp.eq.s32.totalorder %s14, 6
    %p44 = por %p42, %p43
    %p45 = scmp.ne.s32.totalorder %s34, %s35
    %p46 = scmp.eq.s32.totalorder %s14, 0
    %p47 = por %p45, %p46
    %p48 = scmp.ne.s32.totalorder %s34, %s35
    %p49 = scmp.eq.s32.totalorder %s15, 6
    %p50 = por %p48, %p49
    %p52 = scmp.ne.s32.totalorder %s35, %s51
    %p53 = scmp.eq.s32.totalorder %s15, 0
    %p54 = por %p52, %p53
    %s55 = ssub.s32 %s17, %s24
    %p56 = scmp.eq.s32.totalorder %s55, 0
    %s58 = sadd.s32 %s57, 1
    %s59 = scalar_select %p56, %s57, %s58
    %p62 = pneg %p56
    %p63 = scmp.eq.s32.totalorder %s9, 6
    %p64 = por %p62, %p63
    %p65 = scmp.ne.s32.totalorder %s57, %s60
    %p66 = scmp.eq.s32.totalorder %s9, 0
    %p67 = por %p65, %p66
    %p68 = scmp.ne.s32.totalorder %s57, %s60
    %p69 = scmp.eq.s32.totalorder %s14, 6
    %p70 = por %p68, %p69
    %p71 = scmp.ne.s32.totalorder %s60, %s61
    %p72 = scmp.eq.s32.totalorder %s14, 0
    %p73 = por %p71, %p72
    %p74 = scmp.ne.s32.totalorder %s60, %s61
    %p75 = scmp.eq.s32.totalorder %s15, 6
    %p76 = por %p74, %p75
    %p78 = scmp.ne.s32.totalorder %s61, %s77
    %p79 = scmp.eq.s32.totalorder %s15, 0
    %p80 = por %p78, %p79
    %s81 = ssub.s32 %s17, %s24
    %p82 = scmp.eq.s32.totalorder %s81, 0
    %s84 = sadd.s32 %s83, 1
    %s85 = scalar_select %p82, %s83, %s84
    %p88 = pneg %p82
    %p89 = scmp.eq.s32.totalorder %s9, 6
    %p90 = por %p88, %p89
    %p91 = scmp.ne.s32.totalorder %s83, %s86
    %p92 = scmp.eq.s32.totalorder %s9, 0
    %p93 = por %p91, %p92
    %p94 = scmp.ne.s32.totalorder %s83, %s86
    %p95 = scmp.eq.s32.totalorder %s14, 6
    %p96 = por %p94, %p95
    %p97 = scmp.ne.s32.totalorder %s86, %s87
    %p98 = scmp.eq.s32.totalorder %s14, 0
    %p99 = por %p97, %p98
    %p100 = scmp.ne.s32.totalorder %s86, %s87
    %p101 = scmp.eq.s32.totalorder %s15, 6
    %p102 = por %p100, %p101
    %p104 = scmp.ne.s32.totalorder %s87, %s103
    %p105 = scmp.eq.s32.totalorder %s15, 0
    %p106 = por %p104, %p105
    %s107 = ssub.s32 %s16, %s28
    %s108 = ssub.s32 %s17, %s24
    %s109 = sor.u32 %s107, %s108
    %p110 = scmp.eq.s32.totalorder %s109, 0
    %s112 = sadd.s32 %s111, 1
    %s113 = scalar_select %p110, %s111, %s112
    %p116 = pneg %p110
    %p117 = scmp.eq.s32.totalorder %s9, 6
    %p118 = por %p116, %p117
    %p119 = scmp.ne.s32.totalorder %s111, %s114
    %p120 = scmp.eq.s32.totalorder %s9, 0
    %p121 = por %p119, %p120
    %p122 = scmp.ne.s32.totalorder %s111, %s114
    %p123 = scmp.eq.s32.totalorder %s14, 6
    %p124 = por %p122, %p123
    %p125 = scmp.ne.s32.totalorder %s114, %s115
    %p126 = scmp.eq.s32.totalorder %s14, 0
    %p127 = por %p125, %p126
    %p128 = scmp.ne.s32.totalorder %s114, %s115
    %p129 = scmp.eq.s32.totalorder %s15, 6
    %p130 = por %p128, %p129
    %p132 = scmp.ne.s32.totalorder %s115, %s131
    %p133 = scmp.eq.s32.totalorder %s15, 0
    %p134 = por %p132, %p133
    %p135 = scmp.le.s32.totalorder 1, %s9
    %p136 = scmp.lt.s32.totalorder %s9, 8
    %p137 = pnand %p135, %p136
    %p138 = pneg %p137
    // Predicated region
    $region9: #{expanded_cnn_forward.8} parent=5 // pred_check
      _
    $region10: #{expanded_cnn_forward.8} parent=5 // pred_check_branch
      %140 = sbr.rel (%p137) target = $region12
    $region11: #{expanded_cnn_forward.8} parent=5 // pred_region
      %s141 = ssub.s32 %s9, 1
      // Predicated region
      $region13: #{expanded_cnn_forward.8} parent=11 // pred_check
        %p142 = pneg %p73
      $region14: #{expanded_cnn_forward.8} parent=11 // pred_check_branch
        %144 = sbr.rel (%p142) target = $region16
      $region15: #{expanded_cnn_forward.8} parent=11 // pred_region
        %p145 = scmp.lt.s32.totalorder %s19, 0
        %s146 = scalar_select %p145, %s19, 0
        %s147 = smul.addr %s146, 8
        %s148 = scalar_lea.vmem %s1, %s147
      $region16: #{expanded_cnn_forward.8} parent=11 // pred_fallthru
        _
      // Predicated region
      $region17: #{expanded_cnn_forward.8} parent=11 // pred_check
        %p149 = pneg %p99
      $region18: #{expanded_cnn_forward.8} parent=11 // pred_check_branch
        %151 = sbr.rel (%p149) target = $region20
      $region19: #{expanded_cnn_forward.8} parent=11 // pred_region
        %p152 = scmp.lt.s32.totalorder %s19, 0
        %s153 = scalar_select %p152, %s19, 0
        %s154 = scalar_lea.vmem %s2, %s153
      $region20: #{expanded_cnn_forward.8} parent=11 // pred_fallthru
        _
    $region12: #{expanded_cnn_forward.8} parent=5 // pred_fallthru
      _
    %p155 = scmp.lt.s32.totalorder %s9, 7
    // Predicated region
    $region21: #{expanded_cnn_forward.8} parent=5 // pred_check
      %p156 = pneg %p155
    $region22: #{expanded_cnn_forward.8} parent=5 // pred_check_branch
      %158 = sbr.rel (%p156) target = $region24
    $region23: #{expanded_cnn_forward.8} parent=5 // pred_region
      // Predicated region
      $region25: #{expanded_cnn_forward.8} parent=23 // pred_check
        %p159 = pneg %p41
      $region26: #{expanded_cnn_forward.8} parent=23 // pred_check_branch
        %161 = sbr.rel (%p159) target = $region28
      $region27: #{expanded_cnn_forward.8} parent=23 // pred_region
        %s162 = smul.u32 32, %s16
        %p163 = scmp.lt.s32.totalorder %s162, 223
        %s164 = scalar_select %p163, %s162, 223
        %s165 = smul.addr %s164, 4
        %s166 = smul.addr %s165, 8
        %s167 = scalar_lea.vmem %s0, %s166
        %s168 = smul.u32 32, %s16
      $region28: #{expanded_cnn_forward.8} parent=23 // pred_fallthru
        _
    $region24: #{expanded_cnn_forward.8} parent=5 // pred_fallthru
      _
    %p169 = scmp.le.s32.totalorder 1, %s9
    %p170 = scmp.lt.s32.totalorder %s9, 8
    %p171 = pnand %p169, %p170
    %p172 = pneg %p171
    // Predicated region
    $region29: #{expanded_cnn_forward.8} parent=5 // pred_check
      _
    $region30: #{expanded_cnn_forward.8} parent=5 // pred_check_branch
      %174 = sbr.rel (%p171) target = $region32
    $region31: #{expanded_cnn_forward.8} parent=5 // pred_region
      %s175 = ssub.s32 %s9, 1
      %s176 = smul.u32 32, %s18
      %p177 = scmp.lt.s32.totalorder %s176, 223
      %s178 = scalar_select %p177, %s176, 223
      %s179 = smul.addr %s178, 4
      %s180 = smul.addr %s179, 8
      %s181 = scalar_lea.vmem %s0, %s180
      %p182 = pneg %p47
      %p183 = pneg %p44
      %p184 = scmp.lt.s32.totalorder %s19, 0
      %s185 = scalar_select %p184, %s19, 0
      %s186 = smul.addr %s185, 8
      %s187 = scalar_lea.vmem %s1, %s186
      %p188 = pneg %p73
      %p189 = pneg %p70
      %p190 = scmp.lt.s32.totalorder %s19, 0
      %s191 = scalar_select %p190, %s19, 0
      %s192 = scalar_lea.vmem %s2, %s191
      %p193 = pneg %p99
      %p194 = pneg %p96
      %p195 = pneg %p127
      %p196 = pneg %p124
      %s197 = smul.u32 32, %s18
      %p198 = scmp.lt.s32.totalorder %s197, 223
      %s199 = scalar_select %p198, %s197, 223
      %p200 = scmp.lt.s32.totalorder %s19, 0
      %s201 = scalar_select %p200, %s19, 0
      %s202 = sadd.s32 %s201, %s199
      %s203 = smul.addr %s202, 8
      %s204 = scalar_lea.vmem %s3, %s203
      %s205 = smul.u32 32, %s18
      %p206 = scmp.lt.s32.totalorder %s205, 223
      %s207 = scalar_select %p206, %s205, 223
      %s208 = smul.addr %s207, 4
      %s209 = smul.addr %s208, 8
      %s210 = scalar_lea.vmem %s0, %s209
      %s211 = smul.u32 32, %s18
      %p212 = scmp.lt.s32.totalorder %s19, 0
      %s213 = scalar_select %p212, %s19, 0
      %s214 = smul.addr %s213, 8
      %s215 = scalar_lea.vmem %s1, %s214
      %p216 = scmp.lt.s32.totalorder %s19, 0
      %s217 = scalar_select %p216, %s19, 0
      %s218 = scalar_lea.vmem %s2, %s217
      %s219 = smul.u32 32, %s18
      %p220 = scmp.lt.s32.totalorder %s219, 223
      %s221 = scalar_select %p220, %s219, 223
      %p222 = scmp.lt.s32.totalorder %s19, 0
      %s223 = scalar_select %p222, %s19, 0
      %s224 = sadd.s32 %s223, %s221
      %s225 = smul.addr %s224, 8
      %s226 = scalar_lea.vmem %s3, %s225
      %s227 = smul.u32 32, %s18
      %v228 = vld [vmem:[%s210] sm:$0xff]
      %v229 = vld [vmem:[%s210 + $0x8] sm:$0xff]
      %v230 = vld [vmem:[%s210 + $0x10] sm:$0xff]
      %v231 = vld [vmem:[%s210 + $0x18] sm:$0xff]
      %v232 = vld [vmem:[%s210 + $0x20] sm:$0xff]
      %v233 = vld [vmem:[%s210 + $0x28] sm:$0xff]
      %v234 = vld [vmem:[%s210 + $0x30] sm:$0xff]
      %v235 = vld [vmem:[%s210 + $0x38] sm:$0xff]
      %v236 = vld [vmem:[%s210 + $0x40] sm:$0xff]
      %v237 = vld [vmem:[%s210 + $0x48] sm:$0xff]
      %v238 = vld [vmem:[%s210 + $0x50] sm:$0xff]
      %v239 = vld [vmem:[%s210 + $0x58] sm:$0xff]
      %v240 = vld [vmem:[%s210 + $0x60] sm:$0xff]
      %v241 = vld [vmem:[%s210 + $0x68] sm:$0xff]
      %v242 = vld [vmem:[%s210 + $0x70] sm:$0xff]
      %v243 = vld [vmem:[%s210 + $0x78] sm:$0xff]
      %v244 = vld [vmem:[%s210 + $0x80] sm:$0xff]
      %v245 = vld [vmem:[%s210 + $0x88] sm:$0xff]
      %v246 = vld [vmem:[%s210 + $0x90] sm:$0xff]
      %v247 = vld [vmem:[%s210 + $0x98] sm:$0xff]
      %v248 = vld [vmem:[%s210 + $0xa0] sm:$0xff]
      %v249 = vld [vmem:[%s210 + $0xa8] sm:$0xff]
      %v250 = vld [vmem:[%s210 + $0xb0] sm:$0xff]
      %v251 = vld [vmem:[%s210 + $0xb8] sm:$0xff]
      %v252 = vld [vmem:[%s210 + $0xc0] sm:$0xff]
      %v253 = vld [vmem:[%s210 + $0xc8] sm:$0xff]
      %v254 = vld [vmem:[%s210 + $0xd0] sm:$0xff]
      %v255 = vld [vmem:[%s210 + $0xd8] sm:$0xff]
      %v256 = vld [vmem:[%s210 + $0xe0] sm:$0xff]
      %v257 = vld [vmem:[%s210 + $0xe8] sm:$0xff]
      %v258 = vld [vmem:[%s210 + $0xf0] sm:$0xff]
      %v259 = vld [vmem:[%s210 + $0xf8] sm:$0xff]
      %v260 = vld [vmem:[%s210 + $0x100] sm:$0xff]
      %v261 = vld [vmem:[%s210 + $0x108] sm:$0xff]
      %v262 = vld [vmem:[%s210 + $0x110] sm:$0xff]
      %v263 = vld [vmem:[%s210 + $0x118] sm:$0xff]
      %v264 = vld [vmem:[%s210 + $0x120] sm:$0xff]
      %v265 = vld [vmem:[%s210 + $0x128] sm:$0xff]
      %v266 = vld [vmem:[%s210 + $0x130] sm:$0xff]
      %v267 = vld [vmem:[%s210 + $0x138] sm:$0xff]
      %v268 = vld [vmem:[%s210 + $0x140] sm:$0xff]
      %v269 = vld [vmem:[%s210 + $0x148] sm:$0xff]
      %v270 = vld [vmem:[%s210 + $0x150] sm:$0xff]
      %v271 = vld [vmem:[%s210 + $0x158] sm:$0xff]
      %v272 = vld [vmem:[%s210 + $0x160] sm:$0xff]
      %v273 = vld [vmem:[%s210 + $0x168] sm:$0xff]
      %v274 = vld [vmem:[%s210 + $0x170] sm:$0xff]
      %v275 = vld [vmem:[%s210 + $0x178] sm:$0xff]
      %v276 = vld [vmem:[%s210 + $0x180] sm:$0xff]
      %v277 = vld [vmem:[%s210 + $0x188] sm:$0xff]
      %v278 = vld [vmem:[%s210 + $0x190] sm:$0xff]
      %v279 = vld [vmem:[%s210 + $0x198] sm:$0xff]
      %v280 = vld [vmem:[%s210 + $0x1a0] sm:$0xff]
      %v281 = vld [vmem:[%s210 + $0x1a8] sm:$0xff]
      %v282 = vld [vmem:[%s210 + $0x1b0] sm:$0xff]
      %v283 = vld [vmem:[%s210 + $0x1b8] sm:$0xff]
      %v284 = vld [vmem:[%s210 + $0x1c0] sm:$0xff]
      %v285 = vld [vmem:[%s210 + $0x1c8] sm:$0xff]
      %v286 = vld [vmem:[%s210 + $0x1d0] sm:$0xff]
      %v287 = vld [vmem:[%s210 + $0x1d8] sm:$0xff]
      %v288 = vld [vmem:[%s210 + $0x1e0] sm:$0xff]
      %v289 = vld [vmem:[%s210 + $0x1e8] sm:$0xff]
      %v290 = vld [vmem:[%s210 + $0x1f0] sm:$0xff]
      %v291 = vld [vmem:[%s210 + $0x1f8] sm:$0xff]
      %v292 = vld [vmem:[%s210 + $0x200] sm:$0xff]
      %v293 = vld [vmem:[%s210 + $0x208] sm:$0xff]
      %v294 = vld [vmem:[%s210 + $0x210] sm:$0xff]
      %v295 = vld [vmem:[%s210 + $0x218] sm:$0xff]
      %v296 = vld [vmem:[%s210 + $0x220] sm:$0xff]
      %v297 = vld [vmem:[%s210 + $0x228] sm:$0xff]
      %v298 = vld [vmem:[%s210 + $0x230] sm:$0xff]
      %v299 = vld [vmem:[%s210 + $0x238] sm:$0xff]
      %v300 = vld [vmem:[%s210 + $0x240] sm:$0xff]
      %v301 = vld [vmem:[%s210 + $0x248] sm:$0xff]
      %v302 = vld [vmem:[%s210 + $0x250] sm:$0xff]
      %v303 = vld [vmem:[%s210 + $0x258] sm:$0xff]
      %v304 = vld [vmem:[%s210 + $0x260] sm:$0xff]
      %v305 = vld [vmem:[%s210 + $0x268] sm:$0xff]
      %v306 = vld [vmem:[%s210 + $0x270] sm:$0xff]
      %v307 = vld [vmem:[%s210 + $0x278] sm:$0xff]
      %v308 = vld [vmem:[%s210 + $0x280] sm:$0xff]
      %v309 = vld [vmem:[%s210 + $0x288] sm:$0xff]
      %v310 = vld [vmem:[%s210 + $0x290] sm:$0xff]
      %v311 = vld [vmem:[%s210 + $0x298] sm:$0xff]
      %v312 = vld [vmem:[%s210 + $0x2a0] sm:$0xff]
      %v313 = vld [vmem:[%s210 + $0x2a8] sm:$0xff]
      %v314 = vld [vmem:[%s210 + $0x2b0] sm:$0xff]
      %v315 = vld [vmem:[%s210 + $0x2b8] sm:$0xff]
      %v316 = vld [vmem:[%s210 + $0x2c0] sm:$0xff]
      %v317 = vld [vmem:[%s210 + $0x2c8] sm:$0xff]
      %v318 = vld [vmem:[%s210 + $0x2d0] sm:$0xff]
      %v319 = vld [vmem:[%s210 + $0x2d8] sm:$0xff]
      %v320 = vld [vmem:[%s210 + $0x2e0] sm:$0xff]
      %v321 = vld [vmem:[%s210 + $0x2e8] sm:$0xff]
      %v322 = vld [vmem:[%s210 + $0x2f0] sm:$0xff]
      %v323 = vld [vmem:[%s210 + $0x2f8] sm:$0xff]
      %v324 = vld [vmem:[%s210 + $0x300] sm:$0xff]
      %v325 = vld [vmem:[%s210 + $0x308] sm:$0xff]
      %v326 = vld [vmem:[%s210 + $0x310] sm:$0xff]
      %v327 = vld [vmem:[%s210 + $0x318] sm:$0xff]
      %v328 = vld [vmem:[%s210 + $0x320] sm:$0xff]
      %v329 = vld [vmem:[%s210 + $0x328] sm:$0xff]
      %v330 = vld [vmem:[%s210 + $0x330] sm:$0xff]
      %v331 = vld [vmem:[%s210 + $0x338] sm:$0xff]
      %v332 = vld [vmem:[%s210 + $0x340] sm:$0xff]
      %v333 = vld [vmem:[%s210 + $0x348] sm:$0xff]
      %v334 = vld [vmem:[%s210 + $0x350] sm:$0xff]
      %v335 = vld [vmem:[%s210 + $0x358] sm:$0xff]
      %v336 = vld [vmem:[%s210 + $0x360] sm:$0xff]
      %v337 = vld [vmem:[%s210 + $0x368] sm:$0xff]
      %v338 = vld [vmem:[%s210 + $0x370] sm:$0xff]
      %v339 = vld [vmem:[%s210 + $0x378] sm:$0xff]
      %v340 = vld [vmem:[%s210 + $0x380] sm:$0xff]
      %v341 = vld [vmem:[%s210 + $0x388] sm:$0xff]
      %v342 = vld [vmem:[%s210 + $0x390] sm:$0xff]
      %v343 = vld [vmem:[%s210 + $0x398] sm:$0xff]
      %v344 = vld [vmem:[%s210 + $0x3a0] sm:$0xff]
      %v345 = vld [vmem:[%s210 + $0x3a8] sm:$0xff]
      %v346 = vld [vmem:[%s210 + $0x3b0] sm:$0xff]
      %v347 = vld [vmem:[%s210 + $0x3b8] sm:$0xff]
      %v348 = vld [vmem:[%s210 + $0x3c0] sm:$0xff]
      %v349 = vld [vmem:[%s210 + $0x3c8] sm:$0xff]
      %v350 = vld [vmem:[%s210 + $0x3d0] sm:$0xff]
      %v351 = vld [vmem:[%s210 + $0x3d8] sm:$0xff]
      %v352 = vld [vmem:[%s210 + $0x3e0] sm:$0xff]
      %v353 = vld [vmem:[%s210 + $0x3e8] sm:$0xff]
      %v354 = vld [vmem:[%s210 + $0x3f0] sm:$0xff]
      %v355 = vld [vmem:[%s210 + $0x3f8] sm:$0xff]
      %v356 = vld [vmem:[%s215] sm:$0xff]
      %v357 = vld [vmem:[%s215 + $0x8] sm:$0xff]
      %v358 = vld [vmem:[%s215 + $0x10] sm:$0xff]
      %v359 = vld [vmem:[%s215 + $0x18] sm:$0xff]
      %v360 = vld [vmem:[%s215 + $0x20] sm:$0xff]
      %v361 = vld [vmem:[%s215 + $0x28] sm:$0xff]
      %v362 = vld [vmem:[%s215 + $0x30] sm:$0xff]
      %v363 = vld [vmem:[%s215 + $0x38] sm:$0xff]
      %v364 = vld [vmem:[%s215 + $0x40] sm:$0xff]
      %v365 = vld [vmem:[%s215 + $0x48] sm:$0xff]
      %v366 = vld [vmem:[%s215 + $0x50] sm:$0xff]
      %v367 = vld [vmem:[%s215 + $0x58] sm:$0xff]
      %v368 = vld [vmem:[%s215 + $0x60] sm:$0xff]
      %v369 = vld [vmem:[%s215 + $0x68] sm:$0xff]
      %v370 = vld [vmem:[%s215 + $0x70] sm:$0xff]
      %v371 = vld [vmem:[%s215 + $0x78] sm:$0xff]
      %v372 = vld [vmem:[%s215 + $0x80] sm:$0xff]
      %v373 = vld [vmem:[%s215 + $0x88] sm:$0xff]
      %v374 = vld [vmem:[%s215 + $0x90] sm:$0xff]
      %v375 = vld [vmem:[%s215 + $0x98] sm:$0xff]
      %v376 = vld [vmem:[%s215 + $0xa0] sm:$0xff]
      %v377 = vld [vmem:[%s215 + $0xa8] sm:$0xff]
      %v378 = vld [vmem:[%s215 + $0xb0] sm:$0xff]
      %v379 = vld [vmem:[%s215 + $0xb8] sm:$0xff]
      %v380 = vld [vmem:[%s215 + $0xc0] sm:$0xff]
      %v381 = vld [vmem:[%s215 + $0xc8] sm:$0xff]
      %v382 = vld [vmem:[%s215 + $0xd0] sm:$0xff]
      %v383 = vld [vmem:[%s215 + $0xd8] sm:$0xff]
      %v384 = vld [vmem:[%s215 + $0xe0] sm:$0xff]
      %v385 = vld [vmem:[%s215 + $0xe8] sm:$0xff]
      %v386 = vld [vmem:[%s215 + $0xf0] sm:$0xff]
      %v387 = vld [vmem:[%s215 + $0xf8] sm:$0xff]
      %v388 = vld [vmem:[%s215 + $0x100] sm:$0xff]
      %v389 = vld [vmem:[%s215 + $0x108] sm:$0xff]
      %v390 = vld [vmem:[%s215 + $0x110] sm:$0xff]
      %v391 = vld [vmem:[%s215 + $0x118] sm:$0xff]
      %v392 = vld [vmem:[%s215 + $0x120] sm:$0xff]
      %v393 = vld [vmem:[%s215 + $0x128] sm:$0xff]
      %v394 = vld [vmem:[%s215 + $0x130] sm:$0xff]
      %v395 = vld [vmem:[%s215 + $0x138] sm:$0xff]
      %v396 = vld [vmem:[%s215 + $0x140] sm:$0xff]
      %v397 = vld [vmem:[%s215 + $0x148] sm:$0xff]
      %v398 = vld [vmem:[%s215 + $0x150] sm:$0xff]
      %v399 = vld [vmem:[%s215 + $0x158] sm:$0xff]
      %v400 = vld [vmem:[%s215 + $0x160] sm:$0xff]
      %v401 = vld [vmem:[%s215 + $0x168] sm:$0xff]
      %v402 = vld [vmem:[%s215 + $0x170] sm:$0xff]
      %v403 = vld [vmem:[%s215 + $0x178] sm:$0xff]
      %v404 = vld [vmem:[%s215 + $0x180] sm:$0xff]
      %v405 = vld [vmem:[%s215 + $0x188] sm:$0xff]
      %v406 = vld [vmem:[%s215 + $0x190] sm:$0xff]
      %v407 = vld [vmem:[%s215 + $0x198] sm:$0xff]
      %v408 = vld [vmem:[%s215 + $0x1a0] sm:$0xff]
      %v409 = vld [vmem:[%s215 + $0x1a8] sm:$0xff]
      %v410 = vld [vmem:[%s215 + $0x1b0] sm:$0xff]
      %v411 = vld [vmem:[%s215 + $0x1b8] sm:$0xff]
      %v412 = vld [vmem:[%s215 + $0x1c0] sm:$0xff]
      %v413 = vld [vmem:[%s215 + $0x1c8] sm:$0xff]
      %v414 = vld [vmem:[%s215 + $0x1d0] sm:$0xff]
      %v415 = vld [vmem:[%s215 + $0x1d8] sm:$0xff]
      %v416 = vld [vmem:[%s215 + $0x1e0] sm:$0xff]
      %v417 = vld [vmem:[%s215 + $0x1e8] sm:$0xff]
      %v418 = vld [vmem:[%s215 + $0x1f0] sm:$0xff]
      %v419 = vld [vmem:[%s215 + $0x1f8] sm:$0xff]
      %v420 = vld [vmem:[%s218] sm:$0x1]
      %v422 = vlaneseq
      %v423 = vshrl.u32 %v422, 7
      %v424 = vsub.s32 0, %v423
      %v425 = vrot.slane %v420, %v424
      %427 = vmatprep.subr.mxu0 0.0
      %428 = vmatpush1.msra.mxu0 %v371
      %429 = vmatprep.subr.mxu0 0.0
      %430 = vmatpush1.msra.mxu0 %v370
      %431 = vmatprep.subr.mxu0 0.0
      %432 = vmatpush1.msra.mxu0 %v369
      %433 = vmatprep.subr.mxu0 0.0
      %434 = vmatpush1.msra.mxu0 %v368
      %435 = vmatprep.subr.mxu0 0.0
      %436 = vmatpush1.msra.mxu0 %v367
      %437 = vmatprep.subr.mxu0 0.0
      %438 = vmatpush1.msra.mxu0 %v366
      %439 = vmatprep.subr.mxu0 0.0
      %440 = vmatpush1.msra.mxu0 %v365
      %441 = vmatprep.subr.mxu0 0.0
      %442 = vmatpush1.msra.mxu0 %v364
      %443 = vmatprep.subr.mxu0 0.0
      %444 = vmatpush1.msra.mxu0 %v363
      %445 = vmatprep.subr.mxu0 0.0
      %446 = vmatpush1.msra.mxu0 %v362
      %447 = vmatprep.subr.mxu0 0.0
      %448 = vmatpush1.msra.mxu0 %v361
      %449 = vmatprep.subr.mxu0 0.0
      %450 = vmatpush1.msra.mxu0 %v360
      %451 = vmatprep.subr.mxu0 0.0
      %452 = vmatpush1.msra.mxu0 %v359
      %453 = vmatprep.subr.mxu0 0.0
      %454 = vmatpush1.msra.mxu0 %v358
      %455 = vmatprep.subr.mxu0 0.0
      %456 = vmatpush1.msra.mxu0 %v357
      %457 = vmatprep.subr.mxu0 0.0
      %458 = vmatpush1.msra.mxu0 %v356
      %459 = vmatprep.subr.mxu0 0.0
      %460 = vmatpush2.msra.mxu0 %v387
      %461 = vmatprep.subr.mxu0 0.0
      %462 = vmatpush2.msra.mxu0 %v386
      %463 = vmatprep.subr.mxu0 0.0
      %464 = vmatpush2.msra.mxu0 %v385
      %465 = vmatprep.subr.mxu0 0.0
      %466 = vmatpush2.msra.mxu0 %v384
      %467 = vmatprep.subr.mxu0 0.0
      %468 = vmatpush2.msra.mxu0 %v383
      %469 = vmatprep.subr.mxu0 0.0
      %470 = vmatpush2.msra.mxu0 %v382
      %471 = vmatprep.subr.mxu0 0.0
      %472 = vmatpush2.msra.mxu0 %v381
      %473 = vmatprep.subr.mxu0 0.0
      %474 = vmatpush2.msra.mxu0 %v380
      %475 = vmatprep.subr.mxu0 0.0
      %476 = vmatpush2.msra.mxu0 %v379
      %477 = vmatprep.subr.mxu0 0.0
      %478 = vmatpush2.msra.mxu0 %v378
      %479 = vmatprep.subr.mxu0 0.0
      %480 = vmatpush2.msra.mxu0 %v377
      %481 = vmatprep.subr.mxu0 0.0
      %482 = vmatpush2.msra.mxu0 %v376
      %483 = vmatprep.subr.mxu0 0.0
      %484 = vmatpush2.msra.mxu0 %v375
      %485 = vmatprep.subr.mxu0 0.0
      %486 = vmatpush2.msra.mxu0 %v374
      %487 = vmatprep.subr.mxu0 0.0
      %488 = vmatpush2.msra.mxu0 %v373
      %489 = vmatprep.subr.mxu0 0.0
      %490 = vmatpush2.msra.mxu0 %v372
      %491 = vmatprep.mubr.f32.mxu0 %v229
      %492 = vmatmul.mubr.f32.gmra.mxu0 %v228
      %v493 = vpop.f32.mrf.mxu0
      %v494 = vadd.f32 %v425, %v493
      %v495 = vpop.f32.mrf.mxu0
      %496 = vmatprep.mubr.f32.mxu0 %v233
      %497 = vmatmul.mubr.f32.gmra.mxu0 %v232
      %v498 = vpop.f32.mrf.mxu0
      %v499 = vadd.f32 %v425, %v498
      %v500 = vpop.f32.mrf.mxu0
      %501 = vmatprep.mubr.f32.mxu0 %v237
      %502 = vmatmul.mubr.f32.gmra.mxu0 %v236
      %v503 = vpop.f32.mrf.mxu0
      %v504 = vadd.f32 %v425, %v503
      %v505 = vpop.f32.mrf.mxu0
      %506 = vmatprep.mubr.f32.mxu0 %v241
      %507 = vmatmul.mubr.f32.gmra.mxu0 %v240
      %v508 = vpop.f32.mrf.mxu0
      %v509 = vadd.f32 %v425, %v508
      %v510 = vpop.f32.mrf.mxu0
      %511 = vmatprep.mubr.f32.mxu0 %v245
      %512 = vmatmul.mubr.f32.gmra.mxu0 %v244
      %v513 = vpop.f32.mrf.mxu0
      %v514 = vadd.f32 %v425, %v513
      %v515 = vpop.f32.mrf.mxu0
      %516 = vmatprep.mubr.f32.mxu0 %v249
      %517 = vmatmul.mubr.f32.gmra.mxu0 %v248
      %v518 = vpop.f32.mrf.mxu0
      %v519 = vadd.f32 %v425, %v518
      %v520 = vpop.f32.mrf.mxu0
      %521 = vmatprep.mubr.f32.mxu0 %v253
      %522 = vmatmul.mubr.f32.gmra.mxu0 %v252
      %v523 = vpop.f32.mrf.mxu0
      %v524 = vadd.f32 %v425, %v523
      %v525 = vpop.f32.mrf.mxu0
      %526 = vmatprep.mubr.f32.mxu0 %v257
      %527 = vmatmul.mubr.f32.gmra.mxu0 %v256
      %v528 = vpop.f32.mrf.mxu0
      %v529 = vadd.f32 %v425, %v528
      %v530 = vpop.f32.mrf.mxu0
      %531 = vmatprep.mubr.f32.mxu0 %v261
      %532 = vmatmul.mubr.f32.gmra.mxu0 %v260
      %v533 = vpop.f32.mrf.mxu0
      %v534 = vadd.f32 %v425, %v533
      %v535 = vpop.f32.mrf.mxu0
      %536 = vmatprep.mubr.f32.mxu0 %v265
      %537 = vmatmul.mubr.f32.gmra.mxu0 %v264
      %v538 = vpop.f32.mrf.mxu0
      %v539 = vadd.f32 %v425, %v538
      %v540 = vpop.f32.mrf.mxu0
      %541 = vmatprep.mubr.f32.mxu0 %v269
      %542 = vmatmul.mubr.f32.gmra.mxu0 %v268
      %v543 = vpop.f32.mrf.mxu0
      %v544 = vadd.f32 %v425, %v543
      %v545 = vpop.f32.mrf.mxu0
      %546 = vmatprep.mubr.f32.mxu0 %v273
      %547 = vmatmul.mubr.f32.gmra.mxu0 %v272
      %v548 = vpop.f32.mrf.mxu0
      %v549 = vadd.f32 %v425, %v548
      %v550 = vpop.f32.mrf.mxu0
      %551 = vmatprep.mubr.f32.mxu0 %v277
      %552 = vmatmul.mubr.f32.gmra.mxu0 %v276
      %v553 = vpop.f32.mrf.mxu0
      %v554 = vadd.f32 %v425, %v553
      %v555 = vpop.f32.mrf.mxu0
      %556 = vmatprep.mubr.f32.mxu0 %v281
      %557 = vmatmul.mubr.f32.gmra.mxu0 %v280
      %v558 = vpop.f32.mrf.mxu0
      %v559 = vadd.f32 %v425, %v558
      %v560 = vpop.f32.mrf.mxu0
      %561 = vmatprep.mubr.f32.mxu0 %v285
      %562 = vmatmul.mubr.f32.gmra.mxu0 %v284
      %v563 = vpop.f32.mrf.mxu0
      %v564 = vadd.f32 %v425, %v563
      %v565 = vpop.f32.mrf.mxu0
      %566 = vmatprep.mubr.f32.mxu0 %v289
      %567 = vmatmul.mubr.f32.gmra.mxu0 %v288
      %v568 = vpop.f32.mrf.mxu0
      %v569 = vadd.f32 %v425, %v568
      %v570 = vpop.f32.mrf.mxu0
      %571 = vmatprep.mubr.f32.mxu0 %v293
      %572 = vmatmul.mubr.f32.gmra.mxu0 %v292
      %v573 = vpop.f32.mrf.mxu0
      %v574 = vadd.f32 %v425, %v573
      %v575 = vpop.f32.mrf.mxu0
      %576 = vmatprep.mubr.f32.mxu0 %v297
      %577 = vmatmul.mubr.f32.gmra.mxu0 %v296
      %v578 = vpop.f32.mrf.mxu0
      %v579 = vadd.f32 %v425, %v578
      %v580 = vpop.f32.mrf.mxu0
      %581 = vmatprep.mubr.f32.mxu0 %v301
      %582 = vmatmul.mubr.f32.gmra.mxu0 %v300
      %v583 = vpop.f32.mrf.mxu0
      %v584 = vadd.f32 %v425, %v583
      %v585 = vpop.f32.mrf.mxu0
      %586 = vmatprep.mubr.f32.mxu0 %v305
      %587 = vmatmul.mubr.f32.gmra.mxu0 %v304
      %v588 = vpop.f32.mrf.mxu0
      %v589 = vadd.f32 %v425, %v588
      %v590 = vpop.f32.mrf.mxu0
      %591 = vmatprep.mubr.f32.mxu0 %v309
      %592 = vmatmul.mubr.f32.gmra.mxu0 %v308
      %v593 = vpop.f32.mrf.mxu0
      %v594 = vadd.f32 %v425, %v593
      %v595 = vpop.f32.mrf.mxu0
      %596 = vmatprep.mubr.f32.mxu0 %v313
      %597 = vmatmul.mubr.f32.gmra.mxu0 %v312
      %v598 = vpop.f32.mrf.mxu0
      %v599 = vadd.f32 %v425, %v598
      %v600 = vpop.f32.mrf.mxu0
      %601 = vmatprep.mubr.f32.mxu0 %v317
      %602 = vmatmul.mubr.f32.gmra.mxu0 %v316
      %v603 = vpop.f32.mrf.mxu0
      %v604 = vadd.f32 %v425, %v603
      %v605 = vpop.f32.mrf.mxu0
      %606 = vmatprep.mubr.f32.mxu0 %v321
      %607 = vmatmul.mubr.f32.gmra.mxu0 %v320
      %v608 = vpop.f32.mrf.mxu0
      %v609 = vadd.f32 %v425, %v608
      %v610 = vpop.f32.mrf.mxu0
      %611 = vmatprep.mubr.f32.mxu0 %v325
      %612 = vmatmul.mubr.f32.gmra.mxu0 %v324
      %v613 = vpop.f32.mrf.mxu0
      %v614 = vadd.f32 %v425, %v613
      %v615 = vpop.f32.mrf.mxu0
      %616 = vmatprep.mubr.f32.mxu0 %v329
      %617 = vmatmul.mubr.f32.gmra.mxu0 %v328
      %v618 = vpop.f32.mrf.mxu0
      %v619 = vadd.f32 %v425, %v618
      %v620 = vpop.f32.mrf.mxu0
      %621 = vmatprep.mubr.f32.mxu0 %v333
      %622 = vmatmul.mubr.f32.gmra.mxu0 %v332
      %v623 = vpop.f32.mrf.mxu0
      %v624 = vadd.f32 %v425, %v623
      %v625 = vpop.f32.mrf.mxu0
      %626 = vmatprep.mubr.f32.mxu0 %v337
      %627 = vmatmul.mubr.f32.gmra.mxu0 %v336
      %v628 = vpop.f32.mrf.mxu0
      %v629 = vadd.f32 %v425, %v628
      %v630 = vpop.f32.mrf.mxu0
      %631 = vmatprep.mubr.f32.mxu0 %v341
      %632 = vmatmul.mubr.f32.gmra.mxu0 %v340
      %v633 = vpop.f32.mrf.mxu0
      %v634 = vadd.f32 %v425, %v633
      %v635 = vpop.f32.mrf.mxu0
      %636 = vmatprep.mubr.f32.mxu0 %v345
      %637 = vmatmul.mubr.f32.gmra.mxu0 %v344
      %v638 = vpop.f32.mrf.mxu0
      %v639 = vadd.f32 %v425, %v638
      %v640 = vpop.f32.mrf.mxu0
      %641 = vmatprep.mubr.f32.mxu0 %v349
      %642 = vmatmul.mubr.f32.gmra.mxu0 %v348
      %v643 = vpop.f32.mrf.mxu0
      %v644 = vadd.f32 %v425, %v643
      %v645 = vpop.f32.mrf.mxu0
      %646 = vmatprep.mubr.f32.mxu0 %v353
      %647 = vmatmul.mubr.f32.gmra.mxu0 %v352
      %v648 = vpop.f32.mrf.mxu0
      %v649 = vadd.f32 %v425, %v648
      %v650 = vpop.f32.mrf.mxu0
      %651 = vdwg.mxu0
      %652 = vmatprep.subr.mxu0 0.0
      %653 = vmatpush1.msra.mxu0 %v403
      %654 = vmatprep.subr.mxu0 0.0
      %655 = vmatpush1.msra.mxu0 %v402
      %656 = vmatprep.subr.mxu0 0.0
      %657 = vmatpush1.msra.mxu0 %v401
      %658 = vmatprep.subr.mxu0 0.0
      %659 = vmatpush1.msra.mxu0 %v400
      %660 = vmatprep.subr.mxu0 0.0
      %661 = vmatpush1.msra.mxu0 %v399
      %662 = vmatprep.subr.mxu0 0.0
      %663 = vmatpush1.msra.mxu0 %v398
      %664 = vmatprep.subr.mxu0 0.0
      %665 = vmatpush1.msra.mxu0 %v397
      %666 = vmatprep.subr.mxu0 0.0
      %667 = vmatpush1.msra.mxu0 %v396
      %668 = vmatprep.subr.mxu0 0.0
      %669 = vmatpush1.msra.mxu0 %v395
      %670 = vmatprep.subr.mxu0 0.0
      %671 = vmatpush1.msra.mxu0 %v394
      %672 = vmatprep.subr.mxu0 0.0
      %673 = vmatpush1.msra.mxu0 %v393
      %674 = vmatprep.subr.mxu0 0.0
      %675 = vmatpush1.msra.mxu0 %v392
      %676 = vmatprep.subr.mxu0 0.0
      %677 = vmatpush1.msra.mxu0 %v391
      %678 = vmatprep.subr.mxu0 0.0
      %679 = vmatpush1.msra.mxu0 %v390
      %680 = vmatprep.subr.mxu0 0.0
      %681 = vmatpush1.msra.mxu0 %v389
      %682 = vmatprep.subr.mxu0 0.0
      %683 = vmatpush1.msra.mxu0 %v388
      %684 = vmatprep.subr.mxu0 0.0
      %685 = vmatpush2.msra.mxu0 %v419
      %686 = vmatprep.subr.mxu0 0.0
      %687 = vmatpush2.msra.mxu0 %v418
      %688 = vmatprep.subr.mxu0 0.0
      %689 = vmatpush2.msra.mxu0 %v417
      %690 = vmatprep.subr.mxu0 0.0
      %691 = vmatpush2.msra.mxu0 %v416
      %692 = vmatprep.subr.mxu0 0.0
      %693 = vmatpush2.msra.mxu0 %v415
      %694 = vmatprep.subr.mxu0 0.0
      %695 = vmatpush2.msra.mxu0 %v414
      %696 = vmatprep.subr.mxu0 0.0
      %697 = vmatpush2.msra.mxu0 %v413
      %698 = vmatprep.subr.mxu0 0.0
      %699 = vmatpush2.msra.mxu0 %v412
      %700 = vmatprep.subr.mxu0 0.0
      %701 = vmatpush2.msra.mxu0 %v411
      %702 = vmatprep.subr.mxu0 0.0
      %703 = vmatpush2.msra.mxu0 %v410
      %704 = vmatprep.subr.mxu0 0.0
      %705 = vmatpush2.msra.mxu0 %v409
      %706 = vmatprep.subr.mxu0 0.0
      %707 = vmatpush2.msra.mxu0 %v408
      %708 = vmatprep.subr.mxu0 0.0
      %709 = vmatpush2.msra.mxu0 %v407
      %710 = vmatprep.subr.mxu0 0.0
      %711 = vmatpush2.msra.mxu0 %v406
      %712 = vmatprep.subr.mxu0 0.0
      %713 = vmatpush2.msra.mxu0 %v405
      %714 = vmatprep.subr.mxu0 0.0
      %715 = vmatpush2.msra.mxu0 %v404
      %716 = vmatprep.mubr.f32.mxu0 %v231
      %717 = vmatmul.mubr.f32.gmra.mxu0 %v230
      %v718 = vpop.f32.mrf.mxu0
      %v719 = vadd.f32 %v494, %v718
      %v720 = vpop.f32.mrf.mxu0
      %721 = vmatprep.mubr.f32.mxu0 %v235
      %722 = vmatmul.mubr.f32.gmra.mxu0 %v234
      %v723 = vpop.f32.mrf.mxu0
      %v724 = vadd.f32 %v499, %v723
      %v725 = vpop.f32.mrf.mxu0
      %726 = vmatprep.mubr.f32.mxu0 %v239
      %727 = vmatmul.mubr.f32.gmra.mxu0 %v238
      %v728 = vpop.f32.mrf.mxu0
      %v729 = vadd.f32 %v504, %v728
      %v730 = vpop.f32.mrf.mxu0
      %731 = vmatprep.mubr.f32.mxu0 %v243
      %732 = vmatmul.mubr.f32.gmra.mxu0 %v242
      %v733 = vpop.f32.mrf.mxu0
      %v734 = vadd.f32 %v509, %v733
      %v735 = vpop.f32.mrf.mxu0
      %736 = vmatprep.mubr.f32.mxu0 %v247
      %737 = vmatmul.mubr.f32.gmra.mxu0 %v246
      %v738 = vpop.f32.mrf.mxu0
      %v739 = vadd.f32 %v514, %v738
      %v740 = vpop.f32.mrf.mxu0
      %741 = vmatprep.mubr.f32.mxu0 %v251
      %742 = vmatmul.mubr.f32.gmra.mxu0 %v250
      %v743 = vpop.f32.mrf.mxu0
      %v744 = vadd.f32 %v519, %v743
      %v745 = vpop.f32.mrf.mxu0
      %746 = vmatprep.mubr.f32.mxu0 %v255
      %747 = vmatmul.mubr.f32.gmra.mxu0 %v254
      %v748 = vpop.f32.mrf.mxu0
      %v749 = vadd.f32 %v524, %v748
      %v750 = vpop.f32.mrf.mxu0
      %751 = vmatprep.mubr.f32.mxu0 %v259
      %752 = vmatmul.mubr.f32.gmra.mxu0 %v258
      %v753 = vpop.f32.mrf.mxu0
      %v754 = vadd.f32 %v529, %v753
      %v755 = vpop.f32.mrf.mxu0
      %756 = vmatprep.mubr.f32.mxu0 %v263
      %757 = vmatmul.mubr.f32.gmra.mxu0 %v262
      %v758 = vpop.f32.mrf.mxu0
      %v759 = vadd.f32 %v534, %v758
      %v760 = vpop.f32.mrf.mxu0
      %761 = vmatprep.mubr.f32.mxu0 %v267
      %762 = vmatmul.mubr.f32.gmra.mxu0 %v266
      %v763 = vpop.f32.mrf.mxu0
      %v764 = vadd.f32 %v539, %v763
      %v765 = vpop.f32.mrf.mxu0
      %766 = vmatprep.mubr.f32.mxu0 %v271
      %767 = vmatmul.mubr.f32.gmra.mxu0 %v270
      %v768 = vpop.f32.mrf.mxu0
      %v769 = vadd.f32 %v544, %v768
      %v770 = vpop.f32.mrf.mxu0
      %771 = vmatprep.mubr.f32.mxu0 %v275
      %772 = vmatmul.mubr.f32.gmra.mxu0 %v274
      %v773 = vpop.f32.mrf.mxu0
      %v774 = vadd.f32 %v549, %v773
      %v775 = vpop.f32.mrf.mxu0
      %776 = vmatprep.mubr.f32.mxu0 %v279
      %777 = vmatmul.mubr.f32.gmra.mxu0 %v278
      %v778 = vpop.f32.mrf.mxu0
      %v779 = vadd.f32 %v554, %v778
      %v780 = vpop.f32.mrf.mxu0
      %781 = vmatprep.mubr.f32.mxu0 %v283
      %782 = vmatmul.mubr.f32.gmra.mxu0 %v282
      %v783 = vpop.f32.mrf.mxu0
      %v784 = vadd.f32 %v559, %v783
      %v785 = vpop.f32.mrf.mxu0
      %786 = vmatprep.mubr.f32.mxu0 %v287
      %787 = vmatmul.mubr.f32.gmra.mxu0 %v286
      %v788 = vpop.f32.mrf.mxu0
      %v789 = vadd.f32 %v564, %v788
      %v790 = vpop.f32.mrf.mxu0
      %791 = vmatprep.mubr.f32.mxu0 %v291
      %792 = vmatmul.mubr.f32.gmra.mxu0 %v290
      %v793 = vpop.f32.mrf.mxu0
      %v794 = vadd.f32 %v569, %v793
      %v795 = vpop.f32.mrf.mxu0
      %796 = vmatprep.mubr.f32.mxu0 %v295
      %797 = vmatmul.mubr.f32.gmra.mxu0 %v294
      %v798 = vpop.f32.mrf.mxu0
      %v799 = vadd.f32 %v574, %v798
      %v800 = vpop.f32.mrf.mxu0
      %801 = vmatprep.mubr.f32.mxu0 %v299
      %802 = vmatmul.mubr.f32.gmra.mxu0 %v298
      %v803 = vpop.f32.mrf.mxu0
      %v804 = vadd.f32 %v579, %v803
      %v805 = vpop.f32.mrf.mxu0
      %806 = vmatprep.mubr.f32.mxu0 %v303
      %807 = vmatmul.mubr.f32.gmra.mxu0 %v302
      %v808 = vpop.f32.mrf.mxu0
      %v809 = vadd.f32 %v584, %v808
      %v810 = vpop.f32.mrf.mxu0
      %811 = vmatprep.mubr.f32.mxu0 %v307
      %812 = vmatmul.mubr.f32.gmra.mxu0 %v306
      %v813 = vpop.f32.mrf.mxu0
      %v814 = vadd.f32 %v589, %v813
      %v815 = vpop.f32.mrf.mxu0
      %816 = vmatprep.mubr.f32.mxu0 %v311
      %817 = vmatmul.mubr.f32.gmra.mxu0 %v310
      %v818 = vpop.f32.mrf.mxu0
      %v819 = vadd.f32 %v594, %v818
      %v820 = vpop.f32.mrf.mxu0
      %821 = vmatprep.mubr.f32.mxu0 %v315
      %822 = vmatmul.mubr.f32.gmra.mxu0 %v314
      %v823 = vpop.f32.mrf.mxu0
      %v824 = vadd.f32 %v599, %v823
      %v825 = vpop.f32.mrf.mxu0
      %826 = vmatprep.mubr.f32.mxu0 %v319
      %827 = vmatmul.mubr.f32.gmra.mxu0 %v318
      %v828 = vpop.f32.mrf.mxu0
      %v829 = vadd.f32 %v604, %v828
      %v830 = vpop.f32.mrf.mxu0
      %831 = vmatprep.mubr.f32.mxu0 %v323
      %832 = vmatmul.mubr.f32.gmra.mxu0 %v322
      %v833 = vpop.f32.mrf.mxu0
      %v834 = vadd.f32 %v609, %v833
      %v835 = vpop.f32.mrf.mxu0
      %836 = vmatprep.mubr.f32.mxu0 %v327
      %837 = vmatmul.mubr.f32.gmra.mxu0 %v326
      %v838 = vpop.f32.mrf.mxu0
      %v839 = vadd.f32 %v614, %v838
      %v840 = vpop.f32.mrf.mxu0
      %841 = vmatprep.mubr.f32.mxu0 %v331
      %842 = vmatmul.mubr.f32.gmra.mxu0 %v330
      %v843 = vpop.f32.mrf.mxu0
      %v844 = vadd.f32 %v619, %v843
      %v845 = vpop.f32.mrf.mxu0
      %846 = vmatprep.mubr.f32.mxu0 %v335
      %847 = vmatmul.mubr.f32.gmra.mxu0 %v334
      %v848 = vpop.f32.mrf.mxu0
      %v849 = vadd.f32 %v624, %v848
      %v850 = vpop.f32.mrf.mxu0
      %851 = vmatprep.mubr.f32.mxu0 %v339
      %852 = vmatmul.mubr.f32.gmra.mxu0 %v338
      %v853 = vpop.f32.mrf.mxu0
      %v854 = vadd.f32 %v629, %v853
      %v855 = vpop.f32.mrf.mxu0
      %856 = vmatprep.mubr.f32.mxu0 %v343
      %857 = vmatmul.mubr.f32.gmra.mxu0 %v342
      %v858 = vpop.f32.mrf.mxu0
      %v859 = vadd.f32 %v634, %v858
      %v860 = vpop.f32.mrf.mxu0
      %861 = vmatprep.mubr.f32.mxu0 %v347
      %862 = vmatmul.mubr.f32.gmra.mxu0 %v346
      %v863 = vpop.f32.mrf.mxu0
      %v864 = vadd.f32 %v639, %v863
      %v865 = vpop.f32.mrf.mxu0
      %866 = vmatprep.mubr.f32.mxu0 %v351
      %867 = vmatmul.mubr.f32.gmra.mxu0 %v350
      %v868 = vpop.f32.mrf.mxu0
      %v869 = vadd.f32 %v644, %v868
      %v870 = vpop.f32.mrf.mxu0
      %871 = vmatprep.mubr.f32.mxu0 %v355
      %872 = vmatmul.mubr.f32.gmra.mxu0 %v354
      %v873 = vpop.f32.mrf.mxu0
      %v874 = vadd.f32 %v649, %v873
      %v875 = vpop.f32.mrf.mxu0
      %876 = vdwg.mxu0
      %v877 = vmax.f32 %v719, 0.0
      %v878 = vmax.f32 %v724, 0.0
      %v879 = vmax.f32 %v729, 0.0
      %v880 = vmax.f32 %v734, 0.0
      %v881 = vmax.f32 %v739, 0.0
      %v882 = vmax.f32 %v744, 0.0
      %v883 = vmax.f32 %v749, 0.0
      %v884 = vmax.f32 %v754, 0.0
      %v885 = vmax.f32 %v759, 0.0
      %v886 = vmax.f32 %v764, 0.0
      %v887 = vmax.f32 %v769, 0.0
      %v888 = vmax.f32 %v774, 0.0
      %v889 = vmax.f32 %v779, 0.0
      %v890 = vmax.f32 %v784, 0.0
      %v891 = vmax.f32 %v789, 0.0
      %v892 = vmax.f32 %v794, 0.0
      %v893 = vmax.f32 %v799, 0.0
      %v894 = vmax.f32 %v804, 0.0
      %v895 = vmax.f32 %v809, 0.0
      %v896 = vmax.f32 %v814, 0.0
      %v897 = vmax.f32 %v819, 0.0
      %v898 = vmax.f32 %v824, 0.0
      %v899 = vmax.f32 %v829, 0.0
      %v900 = vmax.f32 %v834, 0.0
      %v901 = vmax.f32 %v839, 0.0
      %v902 = vmax.f32 %v844, 0.0
      %v903 = vmax.f32 %v849, 0.0
      %v904 = vmax.f32 %v854, 0.0
      %v905 = vmax.f32 %v859, 0.0
      %v906 = vmax.f32 %v864, 0.0
      %v907 = vmax.f32 %v869, 0.0
      %v908 = vmax.f32 %v874, 0.0
      %909 = vst [vmem:[%s226] sm:$0xff] %v877
      %910 = vst [vmem:[%s226 + $0x8] sm:$0xff] %v878
      %911 = vst [vmem:[%s226 + $0x10] sm:$0xff] %v879
      %912 = vst [vmem:[%s226 + $0x18] sm:$0xff] %v880
      %913 = vst [vmem:[%s226 + $0x20] sm:$0xff] %v881
      %914 = vst [vmem:[%s226 + $0x28] sm:$0xff] %v882
      %915 = vst [vmem:[%s226 + $0x30] sm:$0xff] %v883
      %916 = vst [vmem:[%s226 + $0x38] sm:$0xff] %v884
      %917 = vst [vmem:[%s226 + $0x40] sm:$0xff] %v885
      %918 = vst [vmem:[%s226 + $0x48] sm:$0xff] %v886
      %919 = vst [vmem:[%s226 + $0x50] sm:$0xff] %v887
      %920 = vst [vmem:[%s226 + $0x58] sm:$0xff] %v888
      %921 = vst [vmem:[%s226 + $0x60] sm:$0xff] %v889
      %922 = vst [vmem:[%s226 + $0x68] sm:$0xff] %v890
      %923 = vst [vmem:[%s226 + $0x70] sm:$0xff] %v891
      %924 = vst [vmem:[%s226 + $0x78] sm:$0xff] %v892
      %925 = vst [vmem:[%s226 + $0x80] sm:$0xff] %v893
      %926 = vst [vmem:[%s226 + $0x88] sm:$0xff] %v894
      %927 = vst [vmem:[%s226 + $0x90] sm:$0xff] %v895
      %928 = vst [vmem:[%s226 + $0x98] sm:$0xff] %v896
      %929 = vst [vmem:[%s226 + $0xa0] sm:$0xff] %v897
      %930 = vst [vmem:[%s226 + $0xa8] sm:$0xff] %v898
      %931 = vst [vmem:[%s226 + $0xb0] sm:$0xff] %v899
      %932 = vst [vmem:[%s226 + $0xb8] sm:$0xff] %v900
      %933 = vst [vmem:[%s226 + $0xc0] sm:$0xff] %v901
      %934 = vst [vmem:[%s226 + $0xc8] sm:$0xff] %v902
      %935 = vst [vmem:[%s226 + $0xd0] sm:$0xff] %v903
      %936 = vst [vmem:[%s226 + $0xd8] sm:$0xff] %v904
      %937 = vst [vmem:[%s226 + $0xe0] sm:$0xff] %v905
      %938 = vst [vmem:[%s226 + $0xe8] sm:$0xff] %v906
      %939 = vst [vmem:[%s226 + $0xf0] sm:$0xff] %v907
      %940 = vst [vmem:[%s226 + $0xf8] sm:$0xff] %v908
      %s941 = smul.u32 32, %s18
      %p942 = scmp.lt.s32.totalorder %s941, 223
      %s943 = scalar_select %p942, %s941, 223
      %p944 = scmp.lt.s32.totalorder %s19, 0
      %s945 = scalar_select %p944, %s19, 0
      %s946 = sadd.s32 %s945, %s943
      %s947 = smul.addr %s946, 8
      %s948 = scalar_lea.vmem %s3, %s947
      // Predicated region
      $region33: #{expanded_cnn_forward.8} parent=31 // pred_check
        %p949 = pneg %p124
      $region34: #{expanded_cnn_forward.8} parent=31 // pred_check_branch
        %951 = sbr.rel (%p949) target = $region36
      $region35: #{expanded_cnn_forward.8} parent=31 // pred_region
        %s952 = smul.u32 32, %s18
      $region36: #{expanded_cnn_forward.8} parent=31 // pred_fallthru
        _
    $region32: #{expanded_cnn_forward.8} parent=5 // pred_fallthru
      _
    %p953 = scmp.le.s32.totalorder 2, %s9
    // Predicated region
    $region37: #{expanded_cnn_forward.8} parent=5 // pred_check
      %p954 = pneg %p953
    $region38: #{expanded_cnn_forward.8} parent=5 // pred_check_branch
      %956 = sbr.rel (%p954) target = $region40
    $region39: #{expanded_cnn_forward.8} parent=5 // pred_region
      %s957 = ssub.s32 %s9, 2
      // Predicated region
      $region41: #{expanded_cnn_forward.8} parent=39 // pred_check
        %p958 = pneg %p130
      $region42: #{expanded_cnn_forward.8} parent=39 // pred_check_branch
        %960 = sbr.rel (%p958) target = $region44
      $region43: #{expanded_cnn_forward.8} parent=39 // pred_region
        %s961 = smul.u32 32, %s20
        %p962 = scmp.lt.s32.totalorder %s961, 223
        %s963 = scalar_select %p962, %s961, 223
        %p964 = scmp.lt.s32.totalorder %s21, 0
        %s965 = scalar_select %p964, %s21, 0
        %s966 = sadd.s32 %s965, %s963
        %s967 = smul.addr %s966, 8
        %s968 = scalar_lea.vmem %s3, %s967
      $region44: #{expanded_cnn_forward.8} parent=39 // pred_fallthru
        _
    $region40: #{expanded_cnn_forward.8} parent=5 // pred_fallthru
      _
  $region6: #{expanded_cnn_forward.8} parent=0 // loop_footer
    %s13 = sadd.s32 1, %s9
  $region7: #{expanded_cnn_forward.8} parent=0 // loop_footer_branch
    %8 = sbr.rel target = $region3
  $region8: #{expanded_cnn_forward.8} parent=0 // loop_exit
    _

// kernel: expanded_cnn_forward.9
$region0: #{expanded_cnn_forward.9}
  #allocation0 [shape = 'u32[]', space=smem, size = 0x4, offset = 0x4, fixed_abs, tag = 'smem constant byte address 0x4 - core index']
  #allocation1 [shape = 'u32[144,128]{1,0:T(1,128)}', space=vmem, size = 0x12000, scoped, tag = 'internal scratch']
  %s0 = inlined_call_operand.vmem [shape: f32[1792,896], index: 0, kind: input, shape index: {}]
  %s1 = inlined_call_operand.vmem [shape: f32[896,128], index: 1, kind: input, shape index: {}]
  %s2 = inlined_call_operand.vmem [shape: f32[1,128], index: 2, kind: input, shape index: {}]
  %s3 = inlined_call_operand.vmem [shape: f32[1792,128], index: 3, kind: output, shape index: {}]
  %s4 = sld [smem:[#allocation0]]
  $region45: #{expanded_cnn_forward.9} parent=0
    _
  %s6 = ssub.s32 1, %s4
  %s7 = scalar_select 0, %s6, %s4
  loop: start=0, step=1, limit=9
  $region2: #{expanded_cnn_forward.9} parent=0 // loop_pre_header
    _
  $region3: #{expanded_cnn_forward.9} parent=0 // loop_header
    %s9 = sphi 0, %s13
    %p10 = scmp.ge.s32.totalorder %s9, 9
    %s16 = sphi 0, %s28
    %s17 = sphi 0, %s24
    %s18 = sphi 0, %s16
    %s19 = sphi 0, %s17
    %s20 = sphi 0, %s18
    %s21 = sphi 0, %s19
    %s31 = sphi 0, %s33
    %s34 = sphi 0, %s31
    %s35 = sphi 0, %s34
    %s51 = sphi 0, %s35
    %s57 = sphi 0, %s59
    %s60 = sphi 0, %s57
    %s61 = sphi 0, %s60
    %s77 = sphi 0, %s61
    %s83 = sphi 0, %s85
    %s86 = sphi 0, %s83
    %s87 = sphi 0, %s86
    %s103 = sphi 0, %s87
    %s111 = sphi 0, %s113
    %s114 = sphi 0, %s111
    %s115 = sphi 0, %s114
    %s131 = sphi 0, %s115
  $region4: #{expanded_cnn_forward.9} parent=0 // loop_header_branch
    %12 = sbr.rel (%p10) target = $region8
  $region5: #{expanded_cnn_forward.9} parent=0 // loop_body
    %s14 = ssub.s32 %s9, 1
    %s15 = ssub.s32 %s9, 2
    %s22 = sadd.s32 1, %s17
    %p23 = scmp.ge.s32.totalorder %s22, 1
    %s24 = scalar_select %p23, 0, %s22
    %s25 = sadd.s32 1, %s16
    %s26 = scalar_select %p23, %s25, %s16
    %p27 = scmp.ge.s32.totalorder %s26, 7
    %s28 = scalar_select %p27, 0, %s26
    %s29 = ssub.s32 %s16, %s28
    %p30 = scmp.eq.s32.totalorder %s29, 0
    %s32 = sadd.s32 %s31, 1
    %s33 = scalar_select %p30, %s31, %s32
    %p36 = pneg %p30
    %p37 = scmp.eq.s32.totalorder %s9, 6
    %p38 = por %p36, %p37
    %p39 = scmp.ne.s32.totalorder %s31, %s34
    %p40 = scmp.eq.s32.totalorder %s9, 0
    %p41 = por %p39, %p40
    %p42 = scmp.ne.s32.totalorder %s31, %s34
    %p43 = scmp.eq.s32.totalorder %s14, 6
    %p44 = por %p42, %p43
    %p45 = scmp.ne.s32.totalorder %s34, %s35
    %p46 = scmp.eq.s32.totalorder %s14, 0
    %p47 = por %p45, %p46
    %p48 = scmp.ne.s32.totalorder %s34, %s35
    %p49 = scmp.eq.s32.totalorder %s15, 6
    %p50 = por %p48, %p49
    %p52 = scmp.ne.s32.totalorder %s35, %s51
    %p53 = scmp.eq.s32.totalorder %s15, 0
    %p54 = por %p52, %p53
    %s55 = ssub.s32 %s17, %s24
    %p56 = scmp.eq.s32.totalorder %s55, 0
    %s58 = sadd.s32 %s57, 1
    %s59 = scalar_select %p56, %s57, %s58
    %p62 = pneg %p56
    %p63 = scmp.eq.s32.totalorder %s9, 6
    %p64 = por %p62, %p63
    %p65 = scmp.ne.s32.totalorder %s57, %s60
    %p66 = scmp.eq.s32.totalorder %s9, 0
    %p67 = por %p65, %p66
    %p68 = scmp.ne.s32.totalorder %s57, %s60
    %p69 = scmp.eq.s32.totalorder %s14, 6
    %p70 = por %p68, %p69
    %p71 = scmp.ne.s32.totalorder %s60, %s61
    %p72 = scmp.eq.s32.totalorder %s14, 0
    %p73 = por %p71, %p72
    %p74 = scmp.ne.s32.totalorder %s60, %s61
    %p75 = scmp.eq.s32.totalorder %s15, 6
    %p76 = por %p74, %p75
    %p78 = scmp.ne.s32.totalorder %s61, %s77
    %p79 = scmp.eq.s32.totalorder %s15, 0
    %p80 = por %p78, %p79
    %s81 = ssub.s32 %s17, %s24
    %p82 = scmp.eq.s32.totalorder %s81, 0
    %s84 = sadd.s32 %s83, 1
    %s85 = scalar_select %p82, %s83, %s84
    %p88 = pneg %p82
    %p89 = scmp.eq.s32.totalorder %s9, 6
    %p90 = por %p88, %p89
    %p91 = scmp.ne.s32.totalorder %s83, %s86
    %p92 = scmp.eq.s32.totalorder %s9, 0
    %p93 = por %p91, %p92
    %p94 = scmp.ne.s32.totalorder %s83, %s86
    %p95 = scmp.eq.s32.totalorder %s14, 6
    %p96 = por %p94, %p95
    %p97 = scmp.ne.s32.totalorder %s86, %s87
    %p98 = scmp.eq.s32.totalorder %s14, 0
    %p99 = por %p97, %p98
    %p100 = scmp.ne.s32.totalorder %s86, %s87
    %p101 = scmp.eq.s32.totalorder %s15, 6
    %p102 = por %p100, %p101
    %p104 = scmp.ne.s32.totalorder %s87, %s103
    %p105 = scmp.eq.s32.totalorder %s15, 0
    %p106 = por %p104, %p105
    %s107 = ssub.s32 %s16, %s28
    %s108 = ssub.s32 %s17, %s24
    %s109 = sor.u32 %s107, %s108
    %p110 = scmp.eq.s32.totalorder %s109, 0
    %s112 = sadd.s32 %s111, 1
    %s113 = scalar_select %p110, %s111, %s112
    %p116 = pneg %p110
    %p117 = scmp.eq.s32.totalorder %s9, 6
    %p118 = por %p116, %p117
    %p119 = scmp.ne.s32.totalorder %s111, %s114
    %p120 = scmp.eq.s32.totalorder %s9, 0
    %p121 = por %p119, %p120
    %p122 = scmp.ne.s32.totalorder %s111, %s114
    %p123 = scmp.eq.s32.totalorder %s14, 6
    %p124 = por %p122, %p123
    %p125 = scmp.ne.s32.totalorder %s114, %s115
    %p126 = scmp.eq.s32.totalorder %s14, 0
    %p127 = por %p125, %p126
    %p128 = scmp.ne.s32.totalorder %s114, %s115
    %p129 = scmp.eq.s32.totalorder %s15, 6
    %p130 = por %p128, %p129
    %p132 = scmp.ne.s32.totalorder %s115, %s131
    %p133 = scmp.eq.s32.totalorder %s15, 0
    %p134 = por %p132, %p133
    %p135 = scmp.le.s32.totalorder 1, %s9
    %p136 = scmp.lt.s32.totalorder %s9, 8
    %p137 = pnand %p135, %p136
    %p138 = pneg %p137
    // Predicated region
    $region9: #{expanded_cnn_forward.9} parent=5 // pred_check
      _
    $region10: #{expanded_cnn_forward.9} parent=5 // pred_check_branch
      %140 = sbr.rel (%p137) target = $region12
    $region11: #{expanded_cnn_forward.9} parent=5 // pred_region
      %s141 = ssub.s32 %s9, 1
      // Predicated region
      $region13: #{expanded_cnn_forward.9} parent=11 // pred_check
        %p142 = pneg %p73
      $region14: #{expanded_cnn_forward.9} parent=11 // pred_check_branch
        %144 = sbr.rel (%p142) target = $region16
      $region15: #{expanded_cnn_forward.9} parent=11 // pred_region
        %p145 = scmp.lt.s32.totalorder %s19, 0
        %s146 = scalar_select %p145, %s19, 0
        %s147 = smul.addr %s146, 8
        %s148 = scalar_lea.vmem %s1, %s147
      $region16: #{expanded_cnn_forward.9} parent=11 // pred_fallthru
        _
      // Predicated region
      $region17: #{expanded_cnn_forward.9} parent=11 // pred_check
        %p149 = pneg %p99
      $region18: #{expanded_cnn_forward.9} parent=11 // pred_check_branch
        %151 = sbr.rel (%p149) target = $region20
      $region19: #{expanded_cnn_forward.9} parent=11 // pred_region
        %p152 = scmp.lt.s32.totalorder %s19, 0
        %s153 = scalar_select %p152, %s19, 0
        %s154 = scalar_lea.vmem %s2, %s153
      $region20: #{expanded_cnn_forward.9} parent=11 // pred_fallthru
        _
    $region12: #{expanded_cnn_forward.9} parent=5 // pred_fallthru
      _
    %p155 = scmp.lt.s32.totalorder %s9, 7
    // Predicated region
    $region21: #{expanded_cnn_forward.9} parent=5 // pred_check
      %p156 = pneg %p155
    $region22: #{expanded_cnn_forward.9} parent=5 // pred_check_branch
      %158 = sbr.rel (%p156) target = $region24
    $region23: #{expanded_cnn_forward.9} parent=5 // pred_region
      // Predicated region
      $region25: #{expanded_cnn_forward.9} parent=23 // pred_check
        %p159 = pneg %p41
      $region26: #{expanded_cnn_forward.9} parent=23 // pred_check_branch
        %161 = sbr.rel (%p159) target = $region28
      $region27: #{expanded_cnn_forward.9} parent=23 // pred_region
        %s162 = smul.u32 32, %s16
        %p163 = scmp.lt.s32.totalorder %s162, 223
        %s164 = scalar_select %p163, %s162, 223
        %s165 = smul.addr %s164, 7
        %s166 = smul.addr %s165, 8
        %s167 = scalar_lea.vmem %s0, %s166
        %s168 = smul.u32 32, %s16
      $region28: #{expanded_cnn_forward.9} parent=23 // pred_fallthru
        _
    $region24: #{expanded_cnn_forward.9} parent=5 // pred_fallthru
      _
    %p169 = scmp.le.s32.totalorder 1, %s9
    %p170 = scmp.lt.s32.totalorder %s9, 8
    %p171 = pnand %p169, %p170
    %p172 = pneg %p171
    // Predicated region
    $region29: #{expanded_cnn_forward.9} parent=5 // pred_check
      _
    $region30: #{expanded_cnn_forward.9} parent=5 // pred_check_branch
      %174 = sbr.rel (%p171) target = $region32
    $region31: #{expanded_cnn_forward.9} parent=5 // pred_region
      %s175 = ssub.s32 %s9, 1
      %s176 = smul.u32 32, %s18
      %p177 = scmp.lt.s32.totalorder %s176, 223
      %s178 = scalar_select %p177, %s176, 223
      %s179 = smul.addr %s178, 7
      %s180 = smul.addr %s179, 8
      %s181 = scalar_lea.vmem %s0, %s180
      %p182 = pneg %p47
      %p183 = pneg %p44
      %p184 = scmp.lt.s32.totalorder %s19, 0
      %s185 = scalar_select %p184, %s19, 0
      %s186 = smul.addr %s185, 8
      %s187 = scalar_lea.vmem %s1, %s186
      %p188 = pneg %p73
      %p189 = pneg %p70
      %p190 = scmp.lt.s32.totalorder %s19, 0
      %s191 = scalar_select %p190, %s19, 0
      %s192 = scalar_lea.vmem %s2, %s191
      %p193 = pneg %p99
      %p194 = pneg %p96
      %p195 = pneg %p127
      %p196 = pneg %p124
      %s197 = smul.u32 32, %s18
      %p198 = scmp.lt.s32.totalorder %s197, 223
      %s199 = scalar_select %p198, %s197, 223
      %p200 = scmp.lt.s32.totalorder %s19, 0
      %s201 = scalar_select %p200, %s19, 0
      %s202 = sadd.s32 %s201, %s199
      %s203 = smul.addr %s202, 8
      %s204 = scalar_lea.vmem %s3, %s203
      %s205 = smul.u32 32, %s18
      %p206 = scmp.lt.s32.totalorder %s205, 223
      %s207 = scalar_select %p206, %s205, 223
      %s208 = smul.addr %s207, 7
      %s209 = smul.addr %s208, 8
      %s210 = scalar_lea.vmem %s0, %s209
      %s211 = smul.u32 32, %s18
      %p212 = scmp.lt.s32.totalorder %s19, 0
      %s213 = scalar_select %p212, %s19, 0
      %s214 = smul.addr %s213, 8
      %s215 = scalar_lea.vmem %s1, %s214
      %p216 = scmp.lt.s32.totalorder %s19, 0
      %s217 = scalar_select %p216, %s19, 0
      %s218 = scalar_lea.vmem %s2, %s217
      %s219 = smul.u32 32, %s18
      %p220 = scmp.lt.s32.totalorder %s219, 223
      %s221 = scalar_select %p220, %s219, 223
      %p222 = scmp.lt.s32.totalorder %s19, 0
      %s223 = scalar_select %p222, %s19, 0
      %s224 = sadd.s32 %s223, %s221
      %s225 = smul.addr %s224, 8
      %s226 = scalar_lea.vmem %s3, %s225
      %s227 = smul.u32 32, %s18
      %v228 = vld [vmem:[%s210] sm:$0xff]
      %v229 = vld [vmem:[%s210 + $0x8] sm:$0xff]
      %v230 = vld [vmem:[%s210 + $0x10] sm:$0xff]
      %v231 = vld [vmem:[%s210 + $0x18] sm:$0xff]
      %v232 = vld [vmem:[%s210 + $0x20] sm:$0xff]
      %v233 = vld [vmem:[%s210 + $0x28] sm:$0xff]
      %v234 = vld [vmem:[%s210 + $0x30] sm:$0xff]
      %v235 = vld [vmem:[%s210 + $0x38] sm:$0xff]
      %v236 = vld [vmem:[%s210 + $0x40] sm:$0xff]
      %v237 = vld [vmem:[%s210 + $0x48] sm:$0xff]
      %v238 = vld [vmem:[%s210 + $0x50] sm:$0xff]
      %v239 = vld [vmem:[%s210 + $0x58] sm:$0xff]
      %v240 = vld [vmem:[%s210 + $0x60] sm:$0xff]
      %v241 = vld [vmem:[%s210 + $0x68] sm:$0xff]
      %v242 = vld [vmem:[%s210 + $0x70] sm:$0xff]
      %v243 = vld [vmem:[%s210 + $0x78] sm:$0xff]
      %v244 = vld [vmem:[%s210 + $0x80] sm:$0xff]
      %v245 = vld [vmem:[%s210 + $0x88] sm:$0xff]
      %v246 = vld [vmem:[%s210 + $0x90] sm:$0xff]
      %v247 = vld [vmem:[%s210 + $0x98] sm:$0xff]
      %v248 = vld [vmem:[%s210 + $0xa0] sm:$0xff]
      %v249 = vld [vmem:[%s210 + $0xa8] sm:$0xff]
      %v250 = vld [vmem:[%s210 + $0xb0] sm:$0xff]
      %v251 = vld [vmem:[%s210 + $0xb8] sm:$0xff]
      %v252 = vld [vmem:[%s210 + $0xc0] sm:$0xff]
      %v253 = vld [vmem:[%s210 + $0xc8] sm:$0xff]
      %v254 = vld [vmem:[%s210 + $0xd0] sm:$0xff]
      %v255 = vld [vmem:[%s210 + $0xd8] sm:$0xff]
      %v256 = vld [vmem:[%s210 + $0xe0] sm:$0xff]
      %v257 = vld [vmem:[%s210 + $0xe8] sm:$0xff]
      %v258 = vld [vmem:[%s210 + $0xf0] sm:$0xff]
      %v259 = vld [vmem:[%s210 + $0xf8] sm:$0xff]
      %v260 = vld [vmem:[%s210 + $0x100] sm:$0xff]
      %v261 = vld [vmem:[%s210 + $0x108] sm:$0xff]
      %v262 = vld [vmem:[%s210 + $0x110] sm:$0xff]
      %v263 = vld [vmem:[%s210 + $0x118] sm:$0xff]
      %v264 = vld [vmem:[%s210 + $0x120] sm:$0xff]
      %v265 = vld [vmem:[%s210 + $0x128] sm:$0xff]
      %v266 = vld [vmem:[%s210 + $0x130] sm:$0xff]
      %v267 = vld [vmem:[%s210 + $0x138] sm:$0xff]
      %v268 = vld [vmem:[%s210 + $0x140] sm:$0xff]
      %v269 = vld [vmem:[%s210 + $0x148] sm:$0xff]
      %v270 = vld [vmem:[%s210 + $0x150] sm:$0xff]
      %v271 = vld [vmem:[%s210 + $0x158] sm:$0xff]
      %v272 = vld [vmem:[%s210 + $0x160] sm:$0xff]
      %v273 = vld [vmem:[%s210 + $0x168] sm:$0xff]
      %v274 = vld [vmem:[%s210 + $0x170] sm:$0xff]
      %v275 = vld [vmem:[%s210 + $0x178] sm:$0xff]
      %v276 = vld [vmem:[%s210 + $0x180] sm:$0xff]
      %v277 = vld [vmem:[%s210 + $0x188] sm:$0xff]
      %v278 = vld [vmem:[%s210 + $0x190] sm:$0xff]
      %v279 = vld [vmem:[%s210 + $0x198] sm:$0xff]
      %v280 = vld [vmem:[%s210 + $0x1a0] sm:$0xff]
      %v281 = vld [vmem:[%s210 + $0x1a8] sm:$0xff]
      %v282 = vld [vmem:[%s210 + $0x1b0] sm:$0xff]
      %v283 = vld [vmem:[%s210 + $0x1b8] sm:$0xff]
      %v284 = vld [vmem:[%s210 + $0x1c0] sm:$0xff]
      %v285 = vld [vmem:[%s210 + $0x1c8] sm:$0xff]
      %v286 = vld [vmem:[%s210 + $0x1d0] sm:$0xff]
      %v287 = vld [vmem:[%s210 + $0x1d8] sm:$0xff]
      %v288 = vld [vmem:[%s210 + $0x1e0] sm:$0xff]
      %v289 = vld [vmem:[%s210 + $0x1e8] sm:$0xff]
      %v290 = vld [vmem:[%s210 + $0x1f0] sm:$0xff]
      %v291 = vld [vmem:[%s210 + $0x1f8] sm:$0xff]
      %v292 = vld [vmem:[%s210 + $0x200] sm:$0xff]
      %v293 = vld [vmem:[%s210 + $0x208] sm:$0xff]
      %v294 = vld [vmem:[%s210 + $0x210] sm:$0xff]
      %v295 = vld [vmem:[%s210 + $0x218] sm:$0xff]
      %v296 = vld [vmem:[%s210 + $0x220] sm:$0xff]
      %v297 = vld [vmem:[%s210 + $0x228] sm:$0xff]
      %v298 = vld [vmem:[%s210 + $0x230] sm:$0xff]
      %v299 = vld [vmem:[%s210 + $0x238] sm:$0xff]
      %v300 = vld [vmem:[%s210 + $0x240] sm:$0xff]
      %v301 = vld [vmem:[%s210 + $0x248] sm:$0xff]
      %v302 = vld [vmem:[%s210 + $0x250] sm:$0xff]
      %v303 = vld [vmem:[%s210 + $0x258] sm:$0xff]
      %v304 = vld [vmem:[%s210 + $0x260] sm:$0xff]
      %v305 = vld [vmem:[%s210 + $0x268] sm:$0xff]
      %v306 = vld [vmem:[%s210 + $0x270] sm:$0xff]
      %v307 = vld [vmem:[%s210 + $0x278] sm:$0xff]
      %v308 = vld [vmem:[%s210 + $0x280] sm:$0xff]
      %v309 = vld [vmem:[%s210 + $0x288] sm:$0xff]
      %v310 = vld [vmem:[%s210 + $0x290] sm:$0xff]
      %v311 = vld [vmem:[%s210 + $0x298] sm:$0xff]
      %v312 = vld [vmem:[%s210 + $0x2a0] sm:$0xff]
      %v313 = vld [vmem:[%s210 + $0x2a8] sm:$0xff]
      %v314 = vld [vmem:[%s210 + $0x2b0] sm:$0xff]
      %v315 = vld [vmem:[%s210 + $0x2b8] sm:$0xff]
      %v316 = vld [vmem:[%s210 + $0x2c0] sm:$0xff]
      %v317 = vld [vmem:[%s210 + $0x2c8] sm:$0xff]
      %v318 = vld [vmem:[%s210 + $0x2d0] sm:$0xff]
      %v319 = vld [vmem:[%s210 + $0x2d8] sm:$0xff]
      %v320 = vld [vmem:[%s210 + $0x2e0] sm:$0xff]
      %v321 = vld [vmem:[%s210 + $0x2e8] sm:$0xff]
      %v322 = vld [vmem:[%s210 + $0x2f0] sm:$0xff]
      %v323 = vld [vmem:[%s210 + $0x2f8] sm:$0xff]
      %v324 = vld [vmem:[%s210 + $0x300] sm:$0xff]
      %v325 = vld [vmem:[%s210 + $0x308] sm:$0xff]
      %v326 = vld [vmem:[%s210 + $0x310] sm:$0xff]
      %v327 = vld [vmem:[%s210 + $0x318] sm:$0xff]
      %v328 = vld [vmem:[%s210 + $0x320] sm:$0xff]
      %v329 = vld [vmem:[%s210 + $0x328] sm:$0xff]
      %v330 = vld [vmem:[%s210 + $0x330] sm:$0xff]
      %v331 = vld [vmem:[%s210 + $0x338] sm:$0xff]
      %v332 = vld [vmem:[%s210 + $0x340] sm:$0xff]
      %v333 = vld [vmem:[%s210 + $0x348] sm:$0xff]
      %v334 = vld [vmem:[%s210 + $0x350] sm:$0xff]
      %v335 = vld [vmem:[%s210 + $0x358] sm:$0xff]
      %v336 = vld [vmem:[%s210 + $0x360] sm:$0xff]
      %v337 = vld [vmem:[%s210 + $0x368] sm:$0xff]
      %v338 = vld [vmem:[%s210 + $0x370] sm:$0xff]
      %v339 = vld [vmem:[%s210 + $0x378] sm:$0xff]
      %v340 = vld [vmem:[%s210 + $0x380] sm:$0xff]
      %v341 = vld [vmem:[%s210 + $0x388] sm:$0xff]
      %v342 = vld [vmem:[%s210 + $0x390] sm:$0xff]
      %v343 = vld [vmem:[%s210 + $0x398] sm:$0xff]
      %v344 = vld [vmem:[%s210 + $0x3a0] sm:$0xff]
      %v345 = vld [vmem:[%s210 + $0x3a8] sm:$0xff]
      %v346 = vld [vmem:[%s210 + $0x3b0] sm:$0xff]
      %v347 = vld [vmem:[%s210 + $0x3b8] sm:$0xff]
      %v348 = vld [vmem:[%s210 + $0x3c0] sm:$0xff]
      %v349 = vld [vmem:[%s210 + $0x3c8] sm:$0xff]
      %v350 = vld [vmem:[%s210 + $0x3d0] sm:$0xff]
      %v351 = vld [vmem:[%s210 + $0x3d8] sm:$0xff]
      %v352 = vld [vmem:[%s210 + $0x3e0] sm:$0xff]
      %v353 = vld [vmem:[%s210 + $0x3e8] sm:$0xff]
      %v354 = vld [vmem:[%s210 + $0x3f0] sm:$0xff]
      %v355 = vld [vmem:[%s210 + $0x3f8] sm:$0xff]
      %v356 = vld [vmem:[%s210 + $0x400] sm:$0xff]
      %v357 = vld [vmem:[%s210 + $0x408] sm:$0xff]
      %v358 = vld [vmem:[%s210 + $0x410] sm:$0xff]
      %v359 = vld [vmem:[%s210 + $0x418] sm:$0xff]
      %v360 = vld [vmem:[%s210 + $0x420] sm:$0xff]
      %v361 = vld [vmem:[%s210 + $0x428] sm:$0xff]
      %v362 = vld [vmem:[%s210 + $0x430] sm:$0xff]
      %v363 = vld [vmem:[%s210 + $0x438] sm:$0xff]
      %v364 = vld [vmem:[%s210 + $0x440] sm:$0xff]
      %v365 = vld [vmem:[%s210 + $0x448] sm:$0xff]
      %v366 = vld [vmem:[%s210 + $0x450] sm:$0xff]
      %v367 = vld [vmem:[%s210 + $0x458] sm:$0xff]
      %v368 = vld [vmem:[%s210 + $0x460] sm:$0xff]
      %v369 = vld [vmem:[%s210 + $0x468] sm:$0xff]
      %v370 = vld [vmem:[%s210 + $0x470] sm:$0xff]
      %v371 = vld [vmem:[%s210 + $0x478] sm:$0xff]
      %v372 = vld [vmem:[%s210 + $0x480] sm:$0xff]
      %v373 = vld [vmem:[%s210 + $0x488] sm:$0xff]
      %v374 = vld [vmem:[%s210 + $0x490] sm:$0xff]
      %v375 = vld [vmem:[%s210 + $0x498] sm:$0xff]
      %v376 = vld [vmem:[%s210 + $0x4a0] sm:$0xff]
      %v377 = vld [vmem:[%s210 + $0x4a8] sm:$0xff]
      %v378 = vld [vmem:[%s210 + $0x4b0] sm:$0xff]
      %v379 = vld [vmem:[%s210 + $0x4b8] sm:$0xff]
      %v380 = vld [vmem:[%s210 + $0x4c0] sm:$0xff]
      %v381 = vld [vmem:[%s210 + $0x4c8] sm:$0xff]
      %v382 = vld [vmem:[%s210 + $0x4d0] sm:$0xff]
      %v383 = vld [vmem:[%s210 + $0x4d8] sm:$0xff]
      %v384 = vld [vmem:[%s210 + $0x4e0] sm:$0xff]
      %v385 = vld [vmem:[%s210 + $0x4e8] sm:$0xff]
      %v386 = vld [vmem:[%s210 + $0x4f0] sm:$0xff]
      %v387 = vld [vmem:[%s210 + $0x4f8] sm:$0xff]
      %v388 = vld [vmem:[%s210 + $0x500] sm:$0xff]
      %v389 = vld [vmem:[%s210 + $0x508] sm:$0xff]
      %v390 = vld [vmem:[%s210 + $0x510] sm:$0xff]
      %v391 = vld [vmem:[%s210 + $0x518] sm:$0xff]
      %v392 = vld [vmem:[%s210 + $0x520] sm:$0xff]
      %v393 = vld [vmem:[%s210 + $0x528] sm:$0xff]
      %v394 = vld [vmem:[%s210 + $0x530] sm:$0xff]
      %v395 = vld [vmem:[%s210 + $0x538] sm:$0xff]
      %v396 = vld [vmem:[%s210 + $0x540] sm:$0xff]
      %v397 = vld [vmem:[%s210 + $0x548] sm:$0xff]
      %v398 = vld [vmem:[%s210 + $0x550] sm:$0xff]
      %v399 = vld [vmem:[%s210 + $0x558] sm:$0xff]
      %v400 = vld [vmem:[%s210 + $0x560] sm:$0xff]
      %v401 = vld [vmem:[%s210 + $0x568] sm:$0xff]
      %v402 = vld [vmem:[%s210 + $0x570] sm:$0xff]
      %v403 = vld [vmem:[%s210 + $0x578] sm:$0xff]
      %v404 = vld [vmem:[%s210 + $0x580] sm:$0xff]
      %v405 = vld [vmem:[%s210 + $0x588] sm:$0xff]
      %v406 = vld [vmem:[%s210 + $0x590] sm:$0xff]
      %v407 = vld [vmem:[%s210 + $0x598] sm:$0xff]
      %v408 = vld [vmem:[%s210 + $0x5a0] sm:$0xff]
      %v409 = vld [vmem:[%s210 + $0x5a8] sm:$0xff]
      %v410 = vld [vmem:[%s210 + $0x5b0] sm:$0xff]
      %v411 = vld [vmem:[%s210 + $0x5b8] sm:$0xff]
      %v412 = vld [vmem:[%s210 + $0x5c0] sm:$0xff]
      %v413 = vld [vmem:[%s210 + $0x5c8] sm:$0xff]
      %v414 = vld [vmem:[%s210 + $0x5d0] sm:$0xff]
      %v415 = vld [vmem:[%s210 + $0x5d8] sm:$0xff]
      %v416 = vld [vmem:[%s210 + $0x5e0] sm:$0xff]
      %v417 = vld [vmem:[%s210 + $0x5e8] sm:$0xff]
      %v418 = vld [vmem:[%s210 + $0x5f0] sm:$0xff]
      %v419 = vld [vmem:[%s210 + $0x5f8] sm:$0xff]
      %v420 = vld [vmem:[%s210 + $0x600] sm:$0xff]
      %v421 = vld [vmem:[%s210 + $0x608] sm:$0xff]
      %v422 = vld [vmem:[%s210 + $0x610] sm:$0xff]
      %v423 = vld [vmem:[%s210 + $0x618] sm:$0xff]
      %v424 = vld [vmem:[%s210 + $0x620] sm:$0xff]
      %v425 = vld [vmem:[%s210 + $0x628] sm:$0xff]
      %v426 = vld [vmem:[%s210 + $0x630] sm:$0xff]
      %v427 = vld [vmem:[%s210 + $0x638] sm:$0xff]
      %v428 = vld [vmem:[%s210 + $0x640] sm:$0xff]
      %v429 = vld [vmem:[%s210 + $0x648] sm:$0xff]
      %v430 = vld [vmem:[%s210 + $0x650] sm:$0xff]
      %v431 = vld [vmem:[%s210 + $0x658] sm:$0xff]
      %v432 = vld [vmem:[%s210 + $0x660] sm:$0xff]
      %v433 = vld [vmem:[%s210 + $0x668] sm:$0xff]
      %v434 = vld [vmem:[%s210 + $0x670] sm:$0xff]
      %v435 = vld [vmem:[%s210 + $0x678] sm:$0xff]
      %v436 = vld [vmem:[%s210 + $0x680] sm:$0xff]
      %v437 = vld [vmem:[%s210 + $0x688] sm:$0xff]
      %v438 = vld [vmem:[%s210 + $0x690] sm:$0xff]
      %v439 = vld [vmem:[%s210 + $0x698] sm:$0xff]
      %v440 = vld [vmem:[%s210 + $0x6a0] sm:$0xff]
      %v441 = vld [vmem:[%s210 + $0x6a8] sm:$0xff]
      %v442 = vld [vmem:[%s210 + $0x6b0] sm:$0xff]
      %v443 = vld [vmem:[%s210 + $0x6b8] sm:$0xff]
      %v444 = vld [vmem:[%s210 + $0x6c0] sm:$0xff]
      %v445 = vld [vmem:[%s210 + $0x6c8] sm:$0xff]
      %v446 = vld [vmem:[%s210 + $0x6d0] sm:$0xff]
      %v447 = vld [vmem:[%s210 + $0x6d8] sm:$0xff]
      %v448 = vld [vmem:[%s210 + $0x6e0] sm:$0xff]
      %v449 = vld [vmem:[%s210 + $0x6e8] sm:$0xff]
      %v450 = vld [vmem:[%s210 + $0x6f0] sm:$0xff]
      %v451 = vld [vmem:[%s210 + $0x6f8] sm:$0xff]
      %v452 = vld [vmem:[%s215] sm:$0xff]
      %v453 = vld [vmem:[%s215 + $0x8] sm:$0xff]
      %v454 = vld [vmem:[%s215 + $0x10] sm:$0xff]
      %v455 = vld [vmem:[%s215 + $0x18] sm:$0xff]
      %v456 = vld [vmem:[%s215 + $0x20] sm:$0xff]
      %v457 = vld [vmem:[%s215 + $0x28] sm:$0xff]
      %v458 = vld [vmem:[%s215 + $0x30] sm:$0xff]
      %v459 = vld [vmem:[%s215 + $0x38] sm:$0xff]
      %v460 = vld [vmem:[%s215 + $0x40] sm:$0xff]
      %v461 = vld [vmem:[%s215 + $0x48] sm:$0xff]
      %v462 = vld [vmem:[%s215 + $0x50] sm:$0xff]
      %v463 = vld [vmem:[%s215 + $0x58] sm:$0xff]
      %v464 = vld [vmem:[%s215 + $0x60] sm:$0xff]
      %v465 = vld [vmem:[%s215 + $0x68] sm:$0xff]
      %v466 = vld [vmem:[%s215 + $0x70] sm:$0xff]
      %v467 = vld [vmem:[%s215 + $0x78] sm:$0xff]
      %v468 = vld [vmem:[%s215 + $0x80] sm:$0xff]
      %v469 = vld [vmem:[%s215 + $0x88] sm:$0xff]
      %v470 = vld [vmem:[%s215 + $0x90] sm:$0xff]
      %v471 = vld [vmem:[%s215 + $0x98] sm:$0xff]
      %v472 = vld [vmem:[%s215 + $0xa0] sm:$0xff]
      %v473 = vld [vmem:[%s215 + $0xa8] sm:$0xff]
      %v474 = vld [vmem:[%s215 + $0xb0] sm:$0xff]
      %v475 = vld [vmem:[%s215 + $0xb8] sm:$0xff]
      %v476 = vld [vmem:[%s215 + $0xc0] sm:$0xff]
      %v477 = vld [vmem:[%s215 + $0xc8] sm:$0xff]
      %v478 = vld [vmem:[%s215 + $0xd0] sm:$0xff]
      %v479 = vld [vmem:[%s215 + $0xd8] sm:$0xff]
      %v480 = vld [vmem:[%s215 + $0xe0] sm:$0xff]
      %v481 = vld [vmem:[%s215 + $0xe8] sm:$0xff]
      %v482 = vld [vmem:[%s215 + $0xf0] sm:$0xff]
      %v483 = vld [vmem:[%s215 + $0xf8] sm:$0xff]
      %v484 = vld [vmem:[%s215 + $0x100] sm:$0xff]
      %v485 = vld [vmem:[%s215 + $0x108] sm:$0xff]
      %v486 = vld [vmem:[%s215 + $0x110] sm:$0xff]
      %v487 = vld [vmem:[%s215 + $0x118] sm:$0xff]
      %v488 = vld [vmem:[%s215 + $0x120] sm:$0xff]
      %v489 = vld [vmem:[%s215 + $0x128] sm:$0xff]
      %v490 = vld [vmem:[%s215 + $0x130] sm:$0xff]
      %v491 = vld [vmem:[%s215 + $0x138] sm:$0xff]
      %v492 = vld [vmem:[%s215 + $0x140] sm:$0xff]
      %v493 = vld [vmem:[%s215 + $0x148] sm:$0xff]
      %v494 = vld [vmem:[%s215 + $0x150] sm:$0xff]
      %v495 = vld [vmem:[%s215 + $0x158] sm:$0xff]
      %v496 = vld [vmem:[%s215 + $0x160] sm:$0xff]
      %v497 = vld [vmem:[%s215 + $0x168] sm:$0xff]
      %v498 = vld [vmem:[%s215 + $0x170] sm:$0xff]
      %v499 = vld [vmem:[%s215 + $0x178] sm:$0xff]
      %v500 = vld [vmem:[%s215 + $0x180] sm:$0xff]
      %v501 = vld [vmem:[%s215 + $0x188] sm:$0xff]
      %v502 = vld [vmem:[%s215 + $0x190] sm:$0xff]
      %v503 = vld [vmem:[%s215 + $0x198] sm:$0xff]
      %v504 = vld [vmem:[%s215 + $0x1a0] sm:$0xff]
      %v505 = vld [vmem:[%s215 + $0x1a8] sm:$0xff]
      %v506 = vld [vmem:[%s215 + $0x1b0] sm:$0xff]
      %v507 = vld [vmem:[%s215 + $0x1b8] sm:$0xff]
      %v508 = vld [vmem:[%s215 + $0x1c0] sm:$0xff]
      %v509 = vld [vmem:[%s215 + $0x1c8] sm:$0xff]
      %v510 = vld [vmem:[%s215 + $0x1d0] sm:$0xff]
      %v511 = vld [vmem:[%s215 + $0x1d8] sm:$0xff]
      %v512 = vld [vmem:[%s215 + $0x1e0] sm:$0xff]
      %v513 = vld [vmem:[%s215 + $0x1e8] sm:$0xff]
      %v514 = vld [vmem:[%s215 + $0x1f0] sm:$0xff]
      %v515 = vld [vmem:[%s215 + $0x1f8] sm:$0xff]
      %v516 = vld [vmem:[%s215 + $0x200] sm:$0xff]
      %v517 = vld [vmem:[%s215 + $0x208] sm:$0xff]
      %v518 = vld [vmem:[%s215 + $0x210] sm:$0xff]
      %v519 = vld [vmem:[%s215 + $0x218] sm:$0xff]
      %v520 = vld [vmem:[%s215 + $0x220] sm:$0xff]
      %v521 = vld [vmem:[%s215 + $0x228] sm:$0xff]
      %v522 = vld [vmem:[%s215 + $0x230] sm:$0xff]
      %v523 = vld [vmem:[%s215 + $0x238] sm:$0xff]
      %v524 = vld [vmem:[%s215 + $0x240] sm:$0xff]
      %v525 = vld [vmem:[%s215 + $0x248] sm:$0xff]
      %v526 = vld [vmem:[%s215 + $0x250] sm:$0xff]
      %v527 = vld [vmem:[%s215 + $0x258] sm:$0xff]
      %v528 = vld [vmem:[%s215 + $0x260] sm:$0xff]
      %v529 = vld [vmem:[%s215 + $0x268] sm:$0xff]
      %v530 = vld [vmem:[%s215 + $0x270] sm:$0xff]
      %v531 = vld [vmem:[%s215 + $0x278] sm:$0xff]
      %v532 = vld [vmem:[%s215 + $0x280] sm:$0xff]
      %v533 = vld [vmem:[%s215 + $0x288] sm:$0xff]
      %v534 = vld [vmem:[%s215 + $0x290] sm:$0xff]
      %v535 = vld [vmem:[%s215 + $0x298] sm:$0xff]
      %v536 = vld [vmem:[%s215 + $0x2a0] sm:$0xff]
      %v537 = vld [vmem:[%s215 + $0x2a8] sm:$0xff]
      %v538 = vld [vmem:[%s215 + $0x2b0] sm:$0xff]
      %v539 = vld [vmem:[%s215 + $0x2b8] sm:$0xff]
      %v540 = vld [vmem:[%s215 + $0x2c0] sm:$0xff]
      %v541 = vld [vmem:[%s215 + $0x2c8] sm:$0xff]
      %v542 = vld [vmem:[%s215 + $0x2d0] sm:$0xff]
      %v543 = vld [vmem:[%s215 + $0x2d8] sm:$0xff]
      %v544 = vld [vmem:[%s215 + $0x2e0] sm:$0xff]
      %v545 = vld [vmem:[%s215 + $0x2e8] sm:$0xff]
      %v546 = vld [vmem:[%s215 + $0x2f0] sm:$0xff]
      %v547 = vld [vmem:[%s215 + $0x2f8] sm:$0xff]
      %v548 = vld [vmem:[%s215 + $0x300] sm:$0xff]
      %v549 = vld [vmem:[%s215 + $0x308] sm:$0xff]
      %v550 = vld [vmem:[%s215 + $0x310] sm:$0xff]
      %v551 = vld [vmem:[%s215 + $0x318] sm:$0xff]
      %v552 = vld [vmem:[%s215 + $0x320] sm:$0xff]
      %v553 = vld [vmem:[%s215 + $0x328] sm:$0xff]
      %v554 = vld [vmem:[%s215 + $0x330] sm:$0xff]
      %v555 = vld [vmem:[%s215 + $0x338] sm:$0xff]
      %v556 = vld [vmem:[%s215 + $0x340] sm:$0xff]
      %v557 = vld [vmem:[%s215 + $0x348] sm:$0xff]
      %v558 = vld [vmem:[%s215 + $0x350] sm:$0xff]
      %v559 = vld [vmem:[%s215 + $0x358] sm:$0xff]
      %v560 = vld [vmem:[%s215 + $0x360] sm:$0xff]
      %v561 = vld [vmem:[%s215 + $0x368] sm:$0xff]
      %v562 = vld [vmem:[%s215 + $0x370] sm:$0xff]
      %v563 = vld [vmem:[%s215 + $0x378] sm:$0xff]
      %v564 = vld [vmem:[%s218] sm:$0x1]
      %v566 = vlaneseq
      %v567 = vshrl.u32 %v566, 7
      %v568 = vsub.s32 0, %v567
      %v569 = vrot.slane %v564, %v568
      %571 = vmatprep.subr.mxu0 0.0
      %572 = vmatpush1.msra.mxu0 %v467
      %573 = vmatprep.subr.mxu0 0.0
      %574 = vmatpush1.msra.mxu0 %v466
      %575 = vmatprep.subr.mxu0 0.0
      %576 = vmatpush1.msra.mxu0 %v465
      %577 = vmatprep.subr.mxu0 0.0
      %578 = vmatpush1.msra.mxu0 %v464
      %579 = vmatprep.subr.mxu0 0.0
      %580 = vmatpush1.msra.mxu0 %v463
      %581 = vmatprep.subr.mxu0 0.0
      %582 = vmatpush1.msra.mxu0 %v462
      %583 = vmatprep.subr.mxu0 0.0
      %584 = vmatpush1.msra.mxu0 %v461
      %585 = vmatprep.subr.mxu0 0.0
      %586 = vmatpush1.msra.mxu0 %v460
      %587 = vmatprep.subr.mxu0 0.0
      %588 = vmatpush1.msra.mxu0 %v459
      %589 = vmatprep.subr.mxu0 0.0
      %590 = vmatpush1.msra.mxu0 %v458
      %591 = vmatprep.subr.mxu0 0.0
      %592 = vmatpush1.msra.mxu0 %v457
      %593 = vmatprep.subr.mxu0 0.0
      %594 = vmatpush1.msra.mxu0 %v456
      %595 = vmatprep.subr.mxu0 0.0
      %596 = vmatpush1.msra.mxu0 %v455
      %597 = vmatprep.subr.mxu0 0.0
      %598 = vmatpush1.msra.mxu0 %v454
      %599 = vmatprep.subr.mxu0 0.0
      %600 = vmatpush1.msra.mxu0 %v453
      %601 = vmatprep.subr.mxu0 0.0
      %602 = vmatpush1.msra.mxu0 %v452
      %603 = vmatprep.subr.mxu0 0.0
      %604 = vmatpush2.msra.mxu0 %v483
      %605 = vmatprep.subr.mxu0 0.0
      %606 = vmatpush2.msra.mxu0 %v482
      %607 = vmatprep.subr.mxu0 0.0
      %608 = vmatpush2.msra.mxu0 %v481
      %609 = vmatprep.subr.mxu0 0.0
      %610 = vmatpush2.msra.mxu0 %v480
      %611 = vmatprep.subr.mxu0 0.0
      %612 = vmatpush2.msra.mxu0 %v479
      %613 = vmatprep.subr.mxu0 0.0
      %614 = vmatpush2.msra.mxu0 %v478
      %615 = vmatprep.subr.mxu0 0.0
      %616 = vmatpush2.msra.mxu0 %v477
      %617 = vmatprep.subr.mxu0 0.0
      %618 = vmatpush2.msra.mxu0 %v476
      %619 = vmatprep.subr.mxu0 0.0
      %620 = vmatpush2.msra.mxu0 %v475
      %621 = vmatprep.subr.mxu0 0.0
      %622 = vmatpush2.msra.mxu0 %v474
      %623 = vmatprep.subr.mxu0 0.0
      %624 = vmatpush2.msra.mxu0 %v473
      %625 = vmatprep.subr.mxu0 0.0
      %626 = vmatpush2.msra.mxu0 %v472
      %627 = vmatprep.subr.mxu0 0.0
      %628 = vmatpush2.msra.mxu0 %v471
      %629 = vmatprep.subr.mxu0 0.0
      %630 = vmatpush2.msra.mxu0 %v470
      %631 = vmatprep.subr.mxu0 0.0
      %632 = vmatpush2.msra.mxu0 %v469
      %633 = vmatprep.subr.mxu0 0.0
      %634 = vmatpush2.msra.mxu0 %v468
      %635 = vmatprep.mubr.f32.mxu0 %v229
      %636 = vmatmul.mubr.f32.gmra.mxu0 %v228
      %v637 = vpop.f32.mrf.mxu0
      %v638 = vadd.f32 %v569, %v637
      %v639 = vpop.f32.mrf.mxu0
      %640 = vmatprep.mubr.f32.mxu0 %v236
      %641 = vmatmul.mubr.f32.gmra.mxu0 %v235
      %v642 = vpop.f32.mrf.mxu0
      %v643 = vadd.f32 %v569, %v642
      %v644 = vpop.f32.mrf.mxu0
      %645 = vmatprep.mubr.f32.mxu0 %v243
      %646 = vmatmul.mubr.f32.gmra.mxu0 %v242
      %v647 = vpop.f32.mrf.mxu0
      %v648 = vadd.f32 %v569, %v647
      %v649 = vpop.f32.mrf.mxu0
      %650 = vmatprep.mubr.f32.mxu0 %v250
      %651 = vmatmul.mubr.f32.gmra.mxu0 %v249
      %v652 = vpop.f32.mrf.mxu0
      %v653 = vadd.f32 %v569, %v652
      %v654 = vpop.f32.mrf.mxu0
      %655 = vmatprep.mubr.f32.mxu0 %v257
      %656 = vmatmul.mubr.f32.gmra.mxu0 %v256
      %v657 = vpop.f32.mrf.mxu0
      %v658 = vadd.f32 %v569, %v657
      %v659 = vpop.f32.mrf.mxu0
      %660 = vmatprep.mubr.f32.mxu0 %v264
      %661 = vmatmul.mubr.f32.gmra.mxu0 %v263
      %v662 = vpop.f32.mrf.mxu0
      %v663 = vadd.f32 %v569, %v662
      %v664 = vpop.f32.mrf.mxu0
      %665 = vmatprep.mubr.f32.mxu0 %v271
      %666 = vmatmul.mubr.f32.gmra.mxu0 %v270
      %v667 = vpop.f32.mrf.mxu0
      %v668 = vadd.f32 %v569, %v667
      %v669 = vpop.f32.mrf.mxu0
      %670 = vmatprep.mubr.f32.mxu0 %v278
      %671 = vmatmul.mubr.f32.gmra.mxu0 %v277
      %v672 = vpop.f32.mrf.mxu0
      %v673 = vadd.f32 %v569, %v672
      %v674 = vpop.f32.mrf.mxu0
      %675 = vmatprep.mubr.f32.mxu0 %v285
      %676 = vmatmul.mubr.f32.gmra.mxu0 %v284
      %v677 = vpop.f32.mrf.mxu0
      %v678 = vadd.f32 %v569, %v677
      %v679 = vpop.f32.mrf.mxu0
      %680 = vmatprep.mubr.f32.mxu0 %v292
      %681 = vmatmul.mubr.f32.gmra.mxu0 %v291
      %v682 = vpop.f32.mrf.mxu0
      %v683 = vadd.f32 %v569, %v682
      %v684 = vpop.f32.mrf.mxu0
      %685 = vmatprep.mubr.f32.mxu0 %v299
      %686 = vmatmul.mubr.f32.gmra.mxu0 %v298
      %v687 = vpop.f32.mrf.mxu0
      %v688 = vadd.f32 %v569, %v687
      %v689 = vpop.f32.mrf.mxu0
      %690 = vmatprep.mubr.f32.mxu0 %v306
      %691 = vmatmul.mubr.f32.gmra.mxu0 %v305
      %v692 = vpop.f32.mrf.mxu0
      %v693 = vadd.f32 %v569, %v692
      %v694 = vpop.f32.mrf.mxu0
      %695 = vmatprep.mubr.f32.mxu0 %v313
      %696 = vmatmul.mubr.f32.gmra.mxu0 %v312
      %v697 = vpop.f32.mrf.mxu0
      %v698 = vadd.f32 %v569, %v697
      %v699 = vpop.f32.mrf.mxu0
      %700 = vmatprep.mubr.f32.mxu0 %v320
      %701 = vmatmul.mubr.f32.gmra.mxu0 %v319
      %v702 = vpop.f32.mrf.mxu0
      %v703 = vadd.f32 %v569, %v702
      %v704 = vpop.f32.mrf.mxu0
      %705 = vmatprep.mubr.f32.mxu0 %v327
      %706 = vmatmul.mubr.f32.gmra.mxu0 %v326
      %v707 = vpop.f32.mrf.mxu0
      %v708 = vadd.f32 %v569, %v707
      %v709 = vpop.f32.mrf.mxu0
      %710 = vmatprep.mubr.f32.mxu0 %v334
      %711 = vmatmul.mubr.f32.gmra.mxu0 %v333
      %v712 = vpop.f32.mrf.mxu0
      %v713 = vadd.f32 %v569, %v712
      %v714 = vpop.f32.mrf.mxu0
      %715 = vmatprep.mubr.f32.mxu0 %v341
      %716 = vmatmul.mubr.f32.gmra.mxu0 %v340
      %v717 = vpop.f32.mrf.mxu0
      %v718 = vadd.f32 %v569, %v717
      %v719 = vpop.f32.mrf.mxu0
      %720 = vmatprep.mubr.f32.mxu0 %v348
      %721 = vmatmul.mubr.f32.gmra.mxu0 %v347
      %v722 = vpop.f32.mrf.mxu0
      %v723 = vadd.f32 %v569, %v722
      %v724 = vpop.f32.mrf.mxu0
      %725 = vmatprep.mubr.f32.mxu0 %v355
      %726 = vmatmul.mubr.f32.gmra.mxu0 %v354
      %v727 = vpop.f32.mrf.mxu0
      %v728 = vadd.f32 %v569, %v727
      %v729 = vpop.f32.mrf.mxu0
      %730 = vmatprep.mubr.f32.mxu0 %v362
      %731 = vmatmul.mubr.f32.gmra.mxu0 %v361
      %v732 = vpop.f32.mrf.mxu0
      %v733 = vadd.f32 %v569, %v732
      %v734 = vpop.f32.mrf.mxu0
      %735 = vmatprep.mubr.f32.mxu0 %v369
      %736 = vmatmul.mubr.f32.gmra.mxu0 %v368
      %v737 = vpop.f32.mrf.mxu0
      %v738 = vadd.f32 %v569, %v737
      %v739 = vpop.f32.mrf.mxu0
      %740 = vmatprep.mubr.f32.mxu0 %v376
      %741 = vmatmul.mubr.f32.gmra.mxu0 %v375
      %v742 = vpop.f32.mrf.mxu0
      %v743 = vadd.f32 %v569, %v742
      %v744 = vpop.f32.mrf.mxu0
      %745 = vmatprep.mubr.f32.mxu0 %v383
      %746 = vmatmul.mubr.f32.gmra.mxu0 %v382
      %v747 = vpop.f32.mrf.mxu0
      %v748 = vadd.f32 %v569, %v747
      %v749 = vpop.f32.mrf.mxu0
      %750 = vmatprep.mubr.f32.mxu0 %v390
      %751 = vmatmul.mubr.f32.gmra.mxu0 %v389
      %v752 = vpop.f32.mrf.mxu0
      %v753 = vadd.f32 %v569, %v752
      %v754 = vpop.f32.mrf.mxu0
      %755 = vmatprep.mubr.f32.mxu0 %v397
      %756 = vmatmul.mubr.f32.gmra.mxu0 %v396
      %v757 = vpop.f32.mrf.mxu0
      %v758 = vadd.f32 %v569, %v757
      %v759 = vpop.f32.mrf.mxu0
      %760 = vmatprep.mubr.f32.mxu0 %v404
      %761 = vmatmul.mubr.f32.gmra.mxu0 %v403
      %v762 = vpop.f32.mrf.mxu0
      %v763 = vadd.f32 %v569, %v762
      %v764 = vpop.f32.mrf.mxu0
      %765 = vmatprep.mubr.f32.mxu0 %v411
      %766 = vmatmul.mubr.f32.gmra.mxu0 %v410
      %v767 = vpop.f32.mrf.mxu0
      %v768 = vadd.f32 %v569, %v767
      %v769 = vpop.f32.mrf.mxu0
      %770 = vmatprep.mubr.f32.mxu0 %v418
      %771 = vmatmul.mubr.f32.gmra.mxu0 %v417
      %v772 = vpop.f32.mrf.mxu0
      %v773 = vadd.f32 %v569, %v772
      %v774 = vpop.f32.mrf.mxu0
      %775 = vmatprep.mubr.f32.mxu0 %v425
      %776 = vmatmul.mubr.f32.gmra.mxu0 %v424
      %v777 = vpop.f32.mrf.mxu0
      %v778 = vadd.f32 %v569, %v777
      %v779 = vpop.f32.mrf.mxu0
      %780 = vmatprep.mubr.f32.mxu0 %v432
      %781 = vmatmul.mubr.f32.gmra.mxu0 %v431
      %v782 = vpop.f32.mrf.mxu0
      %v783 = vadd.f32 %v569, %v782
      %v784 = vpop.f32.mrf.mxu0
      %785 = vmatprep.mubr.f32.mxu0 %v439
      %786 = vmatmul.mubr.f32.gmra.mxu0 %v438
      %v787 = vpop.f32.mrf.mxu0
      %v788 = vadd.f32 %v569, %v787
      %v789 = vpop.f32.mrf.mxu0
      %790 = vmatprep.mubr.f32.mxu0 %v446
      %791 = vmatmul.mubr.f32.gmra.mxu0 %v445
      %v792 = vpop.f32.mrf.mxu0
      %v793 = vadd.f32 %v569, %v792
      %v794 = vpop.f32.mrf.mxu0
      %795 = vdwg.mxu0
      %796 = vmatprep.subr.mxu0 0.0
      %797 = vmatpush1.msra.mxu0 %v499
      %798 = vmatprep.subr.mxu0 0.0
      %799 = vmatpush1.msra.mxu0 %v498
      %800 = vmatprep.subr.mxu0 0.0
      %801 = vmatpush1.msra.mxu0 %v497
      %802 = vmatprep.subr.mxu0 0.0
      %803 = vmatpush1.msra.mxu0 %v496
      %804 = vmatprep.subr.mxu0 0.0
      %805 = vmatpush1.msra.mxu0 %v495
      %806 = vmatprep.subr.mxu0 0.0
      %807 = vmatpush1.msra.mxu0 %v494
      %808 = vmatprep.subr.mxu0 0.0
      %809 = vmatpush1.msra.mxu0 %v493
      %810 = vmatprep.subr.mxu0 0.0
      %811 = vmatpush1.msra.mxu0 %v492
      %812 = vmatprep.subr.mxu0 0.0
      %813 = vmatpush1.msra.mxu0 %v491
      %814 = vmatprep.subr.mxu0 0.0
      %815 = vmatpush1.msra.mxu0 %v490
      %816 = vmatprep.subr.mxu0 0.0
      %817 = vmatpush1.msra.mxu0 %v489
      %818 = vmatprep.subr.mxu0 0.0
      %819 = vmatpush1.msra.mxu0 %v488
      %820 = vmatprep.subr.mxu0 0.0
      %821 = vmatpush1.msra.mxu0 %v487
      %822 = vmatprep.subr.mxu0 0.0
      %823 = vmatpush1.msra.mxu0 %v486
      %824 = vmatprep.subr.mxu0 0.0
      %825 = vmatpush1.msra.mxu0 %v485
      %826 = vmatprep.subr.mxu0 0.0
      %827 = vmatpush1.msra.mxu0 %v484
      %828 = vmatprep.subr.mxu0 0.0
      %829 = vmatpush2.msra.mxu0 %v515
      %830 = vmatprep.subr.mxu0 0.0
      %831 = vmatpush2.msra.mxu0 %v514
      %832 = vmatprep.subr.mxu0 0.0
      %833 = vmatpush2.msra.mxu0 %v513
      %834 = vmatprep.subr.mxu0 0.0
      %835 = vmatpush2.msra.mxu0 %v512
      %836 = vmatprep.subr.mxu0 0.0
      %837 = vmatpush2.msra.mxu0 %v511
      %838 = vmatprep.subr.mxu0 0.0
      %839 = vmatpush2.msra.mxu0 %v510
      %840 = vmatprep.subr.mxu0 0.0
      %841 = vmatpush2.msra.mxu0 %v509
      %842 = vmatprep.subr.mxu0 0.0
      %843 = vmatpush2.msra.mxu0 %v508
      %844 = vmatprep.subr.mxu0 0.0
      %845 = vmatpush2.msra.mxu0 %v507
      %846 = vmatprep.subr.mxu0 0.0
      %847 = vmatpush2.msra.mxu0 %v506
      %848 = vmatprep.subr.mxu0 0.0
      %849 = vmatpush2.msra.mxu0 %v505
      %850 = vmatprep.subr.mxu0 0.0
      %851 = vmatpush2.msra.mxu0 %v504
      %852 = vmatprep.subr.mxu0 0.0
      %853 = vmatpush2.msra.mxu0 %v503
      %854 = vmatprep.subr.mxu0 0.0
      %855 = vmatpush2.msra.mxu0 %v502
      %856 = vmatprep.subr.mxu0 0.0
      %857 = vmatpush2.msra.mxu0 %v501
      %858 = vmatprep.subr.mxu0 0.0
      %859 = vmatpush2.msra.mxu0 %v500
      %860 = vmatprep.mubr.f32.mxu0 %v231
      %861 = vmatmul.mubr.f32.gmra.mxu0 %v230
      %v862 = vpop.f32.mrf.mxu0
      %v863 = vadd.f32 %v638, %v862
      %v864 = vpop.f32.mrf.mxu0
      %865 = vmatprep.mubr.f32.mxu0 %v238
      %866 = vmatmul.mubr.f32.gmra.mxu0 %v237
      %v867 = vpop.f32.mrf.mxu0
      %v868 = vadd.f32 %v643, %v867
      %v869 = vpop.f32.mrf.mxu0
      %870 = vmatprep.mubr.f32.mxu0 %v245
      %871 = vmatmul.mubr.f32.gmra.mxu0 %v244
      %v872 = vpop.f32.mrf.mxu0
      %v873 = vadd.f32 %v648, %v872
      %v874 = vpop.f32.mrf.mxu0
      %875 = vmatprep.mubr.f32.mxu0 %v252
      %876 = vmatmul.mubr.f32.gmra.mxu0 %v251
      %v877 = vpop.f32.mrf.mxu0
      %v878 = vadd.f32 %v653, %v877
      %v879 = vpop.f32.mrf.mxu0
      %880 = vmatprep.mubr.f32.mxu0 %v259
      %881 = vmatmul.mubr.f32.gmra.mxu0 %v258
      %v882 = vpop.f32.mrf.mxu0
      %v883 = vadd.f32 %v658, %v882
      %v884 = vpop.f32.mrf.mxu0
      %885 = vmatprep.mubr.f32.mxu0 %v266
      %886 = vmatmul.mubr.f32.gmra.mxu0 %v265
      %v887 = vpop.f32.mrf.mxu0
      %v888 = vadd.f32 %v663, %v887
      %v889 = vpop.f32.mrf.mxu0
      %890 = vmatprep.mubr.f32.mxu0 %v273
      %891 = vmatmul.mubr.f32.gmra.mxu0 %v272
      %v892 = vpop.f32.mrf.mxu0
      %v893 = vadd.f32 %v668, %v892
      %v894 = vpop.f32.mrf.mxu0
      %895 = vmatprep.mubr.f32.mxu0 %v280
      %896 = vmatmul.mubr.f32.gmra.mxu0 %v279
      %v897 = vpop.f32.mrf.mxu0
      %v898 = vadd.f32 %v673, %v897
      %v899 = vpop.f32.mrf.mxu0
      %900 = vmatprep.mubr.f32.mxu0 %v287
      %901 = vmatmul.mubr.f32.gmra.mxu0 %v286
      %v902 = vpop.f32.mrf.mxu0
      %v903 = vadd.f32 %v678, %v902
      %v904 = vpop.f32.mrf.mxu0
      %905 = vmatprep.mubr.f32.mxu0 %v294
      %906 = vmatmul.mubr.f32.gmra.mxu0 %v293
      %v907 = vpop.f32.mrf.mxu0
      %v908 = vadd.f32 %v683, %v907
      %v909 = vpop.f32.mrf.mxu0
      %910 = vmatprep.mubr.f32.mxu0 %v301
      %911 = vmatmul.mubr.f32.gmra.mxu0 %v300
      %v912 = vpop.f32.mrf.mxu0
      %v913 = vadd.f32 %v688, %v912
      %v914 = vpop.f32.mrf.mxu0
      %915 = vmatprep.mubr.f32.mxu0 %v308
      %916 = vmatmul.mubr.f32.gmra.mxu0 %v307
      %v917 = vpop.f32.mrf.mxu0
      %v918 = vadd.f32 %v693, %v917
      %v919 = vpop.f32.mrf.mxu0
      %920 = vmatprep.mubr.f32.mxu0 %v315
      %921 = vmatmul.mubr.f32.gmra.mxu0 %v314
      %v922 = vpop.f32.mrf.mxu0
      %v923 = vadd.f32 %v698, %v922
      %v924 = vpop.f32.mrf.mxu0
      %925 = vmatprep.mubr.f32.mxu0 %v322
      %926 = vmatmul.mubr.f32.gmra.mxu0 %v321
      %v927 = vpop.f32.mrf.mxu0
      %v928 = vadd.f32 %v703, %v927
      %v929 = vpop.f32.mrf.mxu0
      %930 = vmatprep.mubr.f32.mxu0 %v329
      %931 = vmatmul.mubr.f32.gmra.mxu0 %v328
      %v932 = vpop.f32.mrf.mxu0
      %v933 = vadd.f32 %v708, %v932
      %v934 = vpop.f32.mrf.mxu0
      %935 = vmatprep.mubr.f32.mxu0 %v336
      %936 = vmatmul.mubr.f32.gmra.mxu0 %v335
      %v937 = vpop.f32.mrf.mxu0
      %v938 = vadd.f32 %v713, %v937
      %v939 = vpop.f32.mrf.mxu0
      %940 = vmatprep.mubr.f32.mxu0 %v343
      %941 = vmatmul.mubr.f32.gmra.mxu0 %v342
      %v942 = vpop.f32.mrf.mxu0
      %v943 = vadd.f32 %v718, %v942
      %v944 = vpop.f32.mrf.mxu0
      %945 = vmatprep.mubr.f32.mxu0 %v350
      %946 = vmatmul.mubr.f32.gmra.mxu0 %v349
      %v947 = vpop.f32.mrf.mxu0
      %v948 = vadd.f32 %v723, %v947
      %v949 = vpop.f32.mrf.mxu0
      %950 = vmatprep.mubr.f32.mxu0 %v357
      %951 = vmatmul.mubr.f32.gmra.mxu0 %v356
      %v952 = vpop.f32.mrf.mxu0
      %v953 = vadd.f32 %v728, %v952
      %v954 = vpop.f32.mrf.mxu0
      %955 = vmatprep.mubr.f32.mxu0 %v364
      %956 = vmatmul.mubr.f32.gmra.mxu0 %v363
      %v957 = vpop.f32.mrf.mxu0
      %v958 = vadd.f32 %v733, %v957
      %v959 = vpop.f32.mrf.mxu0
      %960 = vmatprep.mubr.f32.mxu0 %v371
      %961 = vmatmul.mubr.f32.gmra.mxu0 %v370
      %v962 = vpop.f32.mrf.mxu0
      %v963 = vadd.f32 %v738, %v962
      %v964 = vpop.f32.mrf.mxu0
      %965 = vmatprep.mubr.f32.mxu0 %v378
      %966 = vmatmul.mubr.f32.gmra.mxu0 %v377
      %v967 = vpop.f32.mrf.mxu0
      %v968 = vadd.f32 %v743, %v967
      %v969 = vpop.f32.mrf.mxu0
      %970 = vmatprep.mubr.f32.mxu0 %v385
      %971 = vmatmul.mubr.f32.gmra.mxu0 %v384
      %v972 = vpop.f32.mrf.mxu0
      %v973 = vadd.f32 %v748, %v972
      %v974 = vpop.f32.mrf.mxu0
      %975 = vmatprep.mubr.f32.mxu0 %v392
      %976 = vmatmul.mubr.f32.gmra.mxu0 %v391
      %v977 = vpop.f32.mrf.mxu0
      %v978 = vadd.f32 %v753, %v977
      %v979 = vpop.f32.mrf.mxu0
      %980 = vmatprep.mubr.f32.mxu0 %v399
      %981 = vmatmul.mubr.f32.gmra.mxu0 %v398
      %v982 = vpop.f32.mrf.mxu0
      %v983 = vadd.f32 %v758, %v982
      %v984 = vpop.f32.mrf.mxu0
      %985 = vmatprep.mubr.f32.mxu0 %v406
      %986 = vmatmul.mubr.f32.gmra.mxu0 %v405
      %v987 = vpop.f32.mrf.mxu0
      %v988 = vadd.f32 %v763, %v987
      %v989 = vpop.f32.mrf.mxu0
      %990 = vmatprep.mubr.f32.mxu0 %v413
      %991 = vmatmul.mubr.f32.gmra.mxu0 %v412
      %v992 = vpop.f32.mrf.mxu0
      %v993 = vadd.f32 %v768, %v992
      %v994 = vpop.f32.mrf.mxu0
      %995 = vmatprep.mubr.f32.mxu0 %v420
      %996 = vmatmul.mubr.f32.gmra.mxu0 %v419
      %v997 = vpop.f32.mrf.mxu0
      %v998 = vadd.f32 %v773, %v997
      %v999 = vpop.f32.mrf.mxu0
      %1000 = vmatprep.mubr.f32.mxu0 %v427
      %1001 = vmatmul.mubr.f32.gmra.mxu0 %v426
      %v1002 = vpop.f32.mrf.mxu0
      %v1003 = vadd.f32 %v778, %v1002
      %v1004 = vpop.f32.mrf.mxu0
      %1005 = vmatprep.mubr.f32.mxu0 %v434
      %1006 = vmatmul.mubr.f32.gmra.mxu0 %v433
      %v1007 = vpop.f32.mrf.mxu0
      %v1008 = vadd.f32 %v783, %v1007
      %v1009 = vpop.f32.mrf.mxu0
      %1010 = vmatprep.mubr.f32.mxu0 %v441
      %1011 = vmatmul.mubr.f32.gmra.mxu0 %v440
      %v1012 = vpop.f32.mrf.mxu0
      %v1013 = vadd.f32 %v788, %v1012
      %v1014 = vpop.f32.mrf.mxu0
      %1015 = vmatprep.mubr.f32.mxu0 %v448
      %1016 = vmatmul.mubr.f32.gmra.mxu0 %v447
      %v1017 = vpop.f32.mrf.mxu0
      %v1018 = vadd.f32 %v793, %v1017
      %v1019 = vpop.f32.mrf.mxu0
      %1020 = vdwg.mxu0
      %1021 = vmatprep.subr.mxu0 0.0
      %1022 = vmatpush1.msra.mxu0 %v531
      %1023 = vmatprep.subr.mxu0 0.0
      %1024 = vmatpush1.msra.mxu0 %v530
      %1025 = vmatprep.subr.mxu0 0.0
      %1026 = vmatpush1.msra.mxu0 %v529
      %1027 = vmatprep.subr.mxu0 0.0
      %1028 = vmatpush1.msra.mxu0 %v528
      %1029 = vmatprep.subr.mxu0 0.0
      %1030 = vmatpush1.msra.mxu0 %v527
      %1031 = vmatprep.subr.mxu0 0.0
      %1032 = vmatpush1.msra.mxu0 %v526
      %1033 = vmatprep.subr.mxu0 0.0
      %1034 = vmatpush1.msra.mxu0 %v525
      %1035 = vmatprep.subr.mxu0 0.0
      %1036 = vmatpush1.msra.mxu0 %v524
      %1037 = vmatprep.subr.mxu0 0.0
      %1038 = vmatpush1.msra.mxu0 %v523
      %1039 = vmatprep.subr.mxu0 0.0
      %1040 = vmatpush1.msra.mxu0 %v522
      %1041 = vmatprep.subr.mxu0 0.0
      %1042 = vmatpush1.msra.mxu0 %v521
      %1043 = vmatprep.subr.mxu0 0.0
      %1044 = vmatpush1.msra.mxu0 %v520
      %1045 = vmatprep.subr.mxu0 0.0
      %1046 = vmatpush1.msra.mxu0 %v519
      %1047 = vmatprep.subr.mxu0 0.0
      %1048 = vmatpush1.msra.mxu0 %v518
      %1049 = vmatprep.subr.mxu0 0.0
      %1050 = vmatpush1.msra.mxu0 %v517
      %1051 = vmatprep.subr.mxu0 0.0
      %1052 = vmatpush1.msra.mxu0 %v516
      %1053 = vmatprep.subr.mxu0 0.0
      %1054 = vmatpush2.msra.mxu0 %v547
      %1055 = vmatprep.subr.mxu0 0.0
      %1056 = vmatpush2.msra.mxu0 %v546
      %1057 = vmatprep.subr.mxu0 0.0
      %1058 = vmatpush2.msra.mxu0 %v545
      %1059 = vmatprep.subr.mxu0 0.0
      %1060 = vmatpush2.msra.mxu0 %v544
      %1061 = vmatprep.subr.mxu0 0.0
      %1062 = vmatpush2.msra.mxu0 %v543
      %1063 = vmatprep.subr.mxu0 0.0
      %1064 = vmatpush2.msra.mxu0 %v542
      %1065 = vmatprep.subr.mxu0 0.0
      %1066 = vmatpush2.msra.mxu0 %v541
      %1067 = vmatprep.subr.mxu0 0.0
      %1068 = vmatpush2.msra.mxu0 %v540
      %1069 = vmatprep.subr.mxu0 0.0
      %1070 = vmatpush2.msra.mxu0 %v539
      %1071 = vmatprep.subr.mxu0 0.0
      %1072 = vmatpush2.msra.mxu0 %v538
      %1073 = vmatprep.subr.mxu0 0.0
      %1074 = vmatpush2.msra.mxu0 %v537
      %1075 = vmatprep.subr.mxu0 0.0
      %1076 = vmatpush2.msra.mxu0 %v536
      %1077 = vmatprep.subr.mxu0 0.0
      %1078 = vmatpush2.msra.mxu0 %v535
      %1079 = vmatprep.subr.mxu0 0.0
      %1080 = vmatpush2.msra.mxu0 %v534
      %1081 = vmatprep.subr.mxu0 0.0
      %1082 = vmatpush2.msra.mxu0 %v533
      %1083 = vmatprep.subr.mxu0 0.0
      %1084 = vmatpush2.msra.mxu0 %v532
      %1085 = vmatprep.mubr.f32.mxu0 %v233
      %1086 = vmatmul.mubr.f32.gmra.mxu0 %v232
      %v1087 = vpop.f32.mrf.mxu0
      %v1088 = vadd.f32 %v863, %v1087
      %v1089 = vpop.f32.mrf.mxu0
      %1090 = vmatprep.mubr.f32.mxu0 %v240
      %1091 = vmatmul.mubr.f32.gmra.mxu0 %v239
      %v1092 = vpop.f32.mrf.mxu0
      %v1093 = vadd.f32 %v868, %v1092
      %v1094 = vpop.f32.mrf.mxu0
      %1095 = vmatprep.mubr.f32.mxu0 %v247
      %1096 = vmatmul.mubr.f32.gmra.mxu0 %v246
      %v1097 = vpop.f32.mrf.mxu0
      %v1098 = vadd.f32 %v873, %v1097
      %v1099 = vpop.f32.mrf.mxu0
      %1100 = vmatprep.mubr.f32.mxu0 %v254
      %1101 = vmatmul.mubr.f32.gmra.mxu0 %v253
      %v1102 = vpop.f32.mrf.mxu0
      %v1103 = vadd.f32 %v878, %v1102
      %v1104 = vpop.f32.mrf.mxu0
      %1105 = vmatprep.mubr.f32.mxu0 %v261
      %1106 = vmatmul.mubr.f32.gmra.mxu0 %v260
      %v1107 = vpop.f32.mrf.mxu0
      %v1108 = vadd.f32 %v883, %v1107
      %v1109 = vpop.f32.mrf.mxu0
      %1110 = vmatprep.mubr.f32.mxu0 %v268
      %1111 = vmatmul.mubr.f32.gmra.mxu0 %v267
      %v1112 = vpop.f32.mrf.mxu0
      %v1113 = vadd.f32 %v888, %v1112
      %v1114 = vpop.f32.mrf.mxu0
      %1115 = vmatprep.mubr.f32.mxu0 %v275
      %1116 = vmatmul.mubr.f32.gmra.mxu0 %v274
      %v1117 = vpop.f32.mrf.mxu0
      %v1118 = vadd.f32 %v893, %v1117
      %v1119 = vpop.f32.mrf.mxu0
      %1120 = vmatprep.mubr.f32.mxu0 %v282
      %1121 = vmatmul.mubr.f32.gmra.mxu0 %v281
      %v1122 = vpop.f32.mrf.mxu0
      %v1123 = vadd.f32 %v898, %v1122
      %v1124 = vpop.f32.mrf.mxu0
      %1125 = vmatprep.mubr.f32.mxu0 %v289
      %1126 = vmatmul.mubr.f32.gmra.mxu0 %v288
      %v1127 = vpop.f32.mrf.mxu0
      %v1128 = vadd.f32 %v903, %v1127
      %v1129 = vpop.f32.mrf.mxu0
      %1130 = vmatprep.mubr.f32.mxu0 %v296
      %1131 = vmatmul.mubr.f32.gmra.mxu0 %v295
      %v1132 = vpop.f32.mrf.mxu0
      %v1133 = vadd.f32 %v908, %v1132
      %v1134 = vpop.f32.mrf.mxu0
      %1135 = vmatprep.mubr.f32.mxu0 %v303
      %1136 = vmatmul.mubr.f32.gmra.mxu0 %v302
      %v1137 = vpop.f32.mrf.mxu0
      %v1138 = vadd.f32 %v913, %v1137
      %v1139 = vpop.f32.mrf.mxu0
      %1140 = vmatprep.mubr.f32.mxu0 %v310
      %1141 = vmatmul.mubr.f32.gmra.mxu0 %v309
      %v1142 = vpop.f32.mrf.mxu0
      %v1143 = vadd.f32 %v918, %v1142
      %v1144 = vpop.f32.mrf.mxu0
      %1145 = vmatprep.mubr.f32.mxu0 %v317
      %1146 = vmatmul.mubr.f32.gmra.mxu0 %v316
      %v1147 = vpop.f32.mrf.mxu0
      %v1148 = vadd.f32 %v923, %v1147
      %v1149 = vpop.f32.mrf.mxu0
      %1150 = vmatprep.mubr.f32.mxu0 %v324
      %1151 = vmatmul.mubr.f32.gmra.mxu0 %v323
      %v1152 = vpop.f32.mrf.mxu0
      %v1153 = vadd.f32 %v928, %v1152
      %v1154 = vpop.f32.mrf.mxu0
      %1155 = vmatprep.mubr.f32.mxu0 %v331
      %1156 = vmatmul.mubr.f32.gmra.mxu0 %v330
      %v1157 = vpop.f32.mrf.mxu0
      %v1158 = vadd.f32 %v933, %v1157
      %v1159 = vpop.f32.mrf.mxu0
      %1160 = vmatprep.mubr.f32.mxu0 %v338
      %1161 = vmatmul.mubr.f32.gmra.mxu0 %v337
      %v1162 = vpop.f32.mrf.mxu0
      %v1163 = vadd.f32 %v938, %v1162
      %v1164 = vpop.f32.mrf.mxu0
      %1165 = vmatprep.mubr.f32.mxu0 %v345
      %1166 = vmatmul.mubr.f32.gmra.mxu0 %v344
      %v1167 = vpop.f32.mrf.mxu0
      %v1168 = vadd.f32 %v943, %v1167
      %v1169 = vpop.f32.mrf.mxu0
      %1170 = vmatprep.mubr.f32.mxu0 %v352
      %1171 = vmatmul.mubr.f32.gmra.mxu0 %v351
      %v1172 = vpop.f32.mrf.mxu0
      %v1173 = vadd.f32 %v948, %v1172
      %v1174 = vpop.f32.mrf.mxu0
      %1175 = vmatprep.mubr.f32.mxu0 %v359
      %1176 = vmatmul.mubr.f32.gmra.mxu0 %v358
      %v1177 = vpop.f32.mrf.mxu0
      %v1178 = vadd.f32 %v953, %v1177
      %v1179 = vpop.f32.mrf.mxu0
      %1180 = vmatprep.mubr.f32.mxu0 %v366
      %1181 = vmatmul.mubr.f32.gmra.mxu0 %v365
      %v1182 = vpop.f32.mrf.mxu0
      %v1183 = vadd.f32 %v958, %v1182
      %v1184 = vpop.f32.mrf.mxu0
      %1185 = vmatprep.mubr.f32.mxu0 %v373
      %1186 = vmatmul.mubr.f32.gmra.mxu0 %v372
      %v1187 = vpop.f32.mrf.mxu0
      %v1188 = vadd.f32 %v963, %v1187
      %v1189 = vpop.f32.mrf.mxu0
      %1190 = vmatprep.mubr.f32.mxu0 %v380
      %1191 = vmatmul.mubr.f32.gmra.mxu0 %v379
      %v1192 = vpop.f32.mrf.mxu0
      %v1193 = vadd.f32 %v968, %v1192
      %v1194 = vpop.f32.mrf.mxu0
      %1195 = vmatprep.mubr.f32.mxu0 %v387
      %1196 = vmatmul.mubr.f32.gmra.mxu0 %v386
      %v1197 = vpop.f32.mrf.mxu0
      %v1198 = vadd.f32 %v973, %v1197
      %v1199 = vpop.f32.mrf.mxu0
      %1200 = vmatprep.mubr.f32.mxu0 %v394
      %1201 = vmatmul.mubr.f32.gmra.mxu0 %v393
      %v1202 = vpop.f32.mrf.mxu0
      %v1203 = vadd.f32 %v978, %v1202
      %v1204 = vpop.f32.mrf.mxu0
      %1205 = vmatprep.mubr.f32.mxu0 %v401
      %1206 = vmatmul.mubr.f32.gmra.mxu0 %v400
      %v1207 = vpop.f32.mrf.mxu0
      %v1208 = vadd.f32 %v983, %v1207
      %v1209 = vpop.f32.mrf.mxu0
      %1210 = vmatprep.mubr.f32.mxu0 %v408
      %1211 = vmatmul.mubr.f32.gmra.mxu0 %v407
      %v1212 = vpop.f32.mrf.mxu0
      %v1213 = vadd.f32 %v988, %v1212
      %v1214 = vpop.f32.mrf.mxu0
      %1215 = vmatprep.mubr.f32.mxu0 %v415
      %1216 = vmatmul.mubr.f32.gmra.mxu0 %v414
      %v1217 = vpop.f32.mrf.mxu0
      %v1218 = vadd.f32 %v993, %v1217
      %v1219 = vpop.f32.mrf.mxu0
      %1220 = vmatprep.mubr.f32.mxu0 %v422
      %1221 = vmatmul.mubr.f32.gmra.mxu0 %v421
      %v1222 = vpop.f32.mrf.mxu0
      %v1223 = vadd.f32 %v998, %v1222
      %v1224 = vpop.f32.mrf.mxu0
      %1225 = vmatprep.mubr.f32.mxu0 %v429
      %1226 = vmatmul.mubr.f32.gmra.mxu0 %v428
      %v1227 = vpop.f32.mrf.mxu0
      %v1228 = vadd.f32 %v1003, %v1227
      %v1229 = vpop.f32.mrf.mxu0
      %1230 = vmatprep.mubr.f32.mxu0 %v436
      %1231 = vmatmul.mubr.f32.gmra.mxu0 %v435
      %v1232 = vpop.f32.mrf.mxu0
      %v1233 = vadd.f32 %v1008, %v1232
      %v1234 = vpop.f32.mrf.mxu0
      %1235 = vmatprep.mubr.f32.mxu0 %v443
      %1236 = vmatmul.mubr.f32.gmra.mxu0 %v442
      %v1237 = vpop.f32.mrf.mxu0
      %v1238 = vadd.f32 %v1013, %v1237
      %v1239 = vpop.f32.mrf.mxu0
      %1240 = vmatprep.mubr.f32.mxu0 %v450
      %1241 = vmatmul.mubr.f32.gmra.mxu0 %v449
      %v1242 = vpop.f32.mrf.mxu0
      %v1243 = vadd.f32 %v1018, %v1242
      %v1244 = vpop.f32.mrf.mxu0
      %1245 = vdwg.mxu0
      %1246 = vmatprep.subr.mxu0 0.0
      %1247 = vmatpush1.msra.mxu0 %v563
      %1248 = vmatprep.subr.mxu0 0.0
      %1249 = vmatpush1.msra.mxu0 %v562
      %1250 = vmatprep.subr.mxu0 0.0
      %1251 = vmatpush1.msra.mxu0 %v561
      %1252 = vmatprep.subr.mxu0 0.0
      %1253 = vmatpush1.msra.mxu0 %v560
      %1254 = vmatprep.subr.mxu0 0.0
      %1255 = vmatpush1.msra.mxu0 %v559
      %1256 = vmatprep.subr.mxu0 0.0
      %1257 = vmatpush1.msra.mxu0 %v558
      %1258 = vmatprep.subr.mxu0 0.0
      %1259 = vmatpush1.msra.mxu0 %v557
      %1260 = vmatprep.subr.mxu0 0.0
      %1261 = vmatpush1.msra.mxu0 %v556
      %1262 = vmatprep.subr.mxu0 0.0
      %1263 = vmatpush1.msra.mxu0 %v555
      %1264 = vmatprep.subr.mxu0 0.0
      %1265 = vmatpush1.msra.mxu0 %v554
      %1266 = vmatprep.subr.mxu0 0.0
      %1267 = vmatpush1.msra.mxu0 %v553
      %1268 = vmatprep.subr.mxu0 0.0
      %1269 = vmatpush1.msra.mxu0 %v552
      %1270 = vmatprep.subr.mxu0 0.0
      %1271 = vmatpush1.msra.mxu0 %v551
      %1272 = vmatprep.subr.mxu0 0.0
      %1273 = vmatpush1.msra.mxu0 %v550
      %1274 = vmatprep.subr.mxu0 0.0
      %1275 = vmatpush1.msra.mxu0 %v549
      %1276 = vmatprep.subr.mxu0 0.0
      %1277 = vmatpush1.msra.mxu0 %v548
      %1278 = vmatprep.subr.mxu0 0.0
      %1279 = vmatpush2.msra.mxu0 0.0
      %1280 = vmatprep.subr.mxu0 0.0
      %1281 = vmatpush2.msra.mxu0 0.0
      %1282 = vmatprep.subr.mxu0 0.0
      %1283 = vmatpush2.msra.mxu0 0.0
      %1284 = vmatprep.subr.mxu0 0.0
      %1285 = vmatpush2.msra.mxu0 0.0
      %1286 = vmatprep.subr.mxu0 0.0
      %1287 = vmatpush2.msra.mxu0 0.0
      %1288 = vmatprep.subr.mxu0 0.0
      %1289 = vmatpush2.msra.mxu0 0.0
      %1290 = vmatprep.subr.mxu0 0.0
      %1291 = vmatpush2.msra.mxu0 0.0
      %1292 = vmatprep.subr.mxu0 0.0
      %1293 = vmatpush2.msra.mxu0 0.0
      %1294 = vmatprep.subr.mxu0 0.0
      %1295 = vmatpush2.msra.mxu0 0.0
      %1296 = vmatprep.subr.mxu0 0.0
      %1297 = vmatpush2.msra.mxu0 0.0
      %1298 = vmatprep.subr.mxu0 0.0
      %1299 = vmatpush2.msra.mxu0 0.0
      %1300 = vmatprep.subr.mxu0 0.0
      %1301 = vmatpush2.msra.mxu0 0.0
      %1302 = vmatprep.subr.mxu0 0.0
      %1303 = vmatpush2.msra.mxu0 0.0
      %1304 = vmatprep.subr.mxu0 0.0
      %1305 = vmatpush2.msra.mxu0 0.0
      %1306 = vmatprep.subr.mxu0 0.0
      %1307 = vmatpush2.msra.mxu0 0.0
      %1308 = vmatprep.subr.mxu0 0.0
      %1309 = vmatpush2.msra.mxu0 0.0
      %1310 = vmatprep.mubr.f32.mxu0 0.0
      %1311 = vmatmul.mubr.f32.gmra.mxu0 %v234
      %v1312 = vpop.f32.mrf.mxu0
      %v1313 = vadd.f32 %v1088, %v1312
      %v1314 = vpop.f32.mrf.mxu0
      %1315 = vmatprep.mubr.f32.mxu0 0.0
      %1316 = vmatmul.mubr.f32.gmra.mxu0 %v241
      %v1317 = vpop.f32.mrf.mxu0
      %v1318 = vadd.f32 %v1093, %v1317
      %v1319 = vpop.f32.mrf.mxu0
      %1320 = vmatprep.mubr.f32.mxu0 0.0
      %1321 = vmatmul.mubr.f32.gmra.mxu0 %v248
      %v1322 = vpop.f32.mrf.mxu0
      %v1323 = vadd.f32 %v1098, %v1322
      %v1324 = vpop.f32.mrf.mxu0
      %1325 = vmatprep.mubr.f32.mxu0 0.0
      %1326 = vmatmul.mubr.f32.gmra.mxu0 %v255
      %v1327 = vpop.f32.mrf.mxu0
      %v1328 = vadd.f32 %v1103, %v1327
      %v1329 = vpop.f32.mrf.mxu0
      %1330 = vmatprep.mubr.f32.mxu0 0.0
      %1331 = vmatmul.mubr.f32.gmra.mxu0 %v262
      %v1332 = vpop.f32.mrf.mxu0
      %v1333 = vadd.f32 %v1108, %v1332
      %v1334 = vpop.f32.mrf.mxu0
      %1335 = vmatprep.mubr.f32.mxu0 0.0
      %1336 = vmatmul.mubr.f32.gmra.mxu0 %v269
      %v1337 = vpop.f32.mrf.mxu0
      %v1338 = vadd.f32 %v1113, %v1337
      %v1339 = vpop.f32.mrf.mxu0
      %1340 = vmatprep.mubr.f32.mxu0 0.0
      %1341 = vmatmul.mubr.f32.gmra.mxu0 %v276
      %v1342 = vpop.f32.mrf.mxu0
      %v1343 = vadd.f32 %v1118, %v1342
      %v1344 = vpop.f32.mrf.mxu0
      %1345 = vmatprep.mubr.f32.mxu0 0.0
      %1346 = vmatmul.mubr.f32.gmra.mxu0 %v283
      %v1347 = vpop.f32.mrf.mxu0
      %v1348 = vadd.f32 %v1123, %v1347
      %v1349 = vpop.f32.mrf.mxu0
      %1350 = vmatprep.mubr.f32.mxu0 0.0
      %1351 = vmatmul.mubr.f32.gmra.mxu0 %v290
      %v1352 = vpop.f32.mrf.mxu0
      %v1353 = vadd.f32 %v1128, %v1352
      %v1354 = vpop.f32.mrf.mxu0
      %1355 = vmatprep.mubr.f32.mxu0 0.0
      %1356 = vmatmul.mubr.f32.gmra.mxu0 %v297
      %v1357 = vpop.f32.mrf.mxu0
      %v1358 = vadd.f32 %v1133, %v1357
      %v1359 = vpop.f32.mrf.mxu0
      %1360 = vmatprep.mubr.f32.mxu0 0.0
      %1361 = vmatmul.mubr.f32.gmra.mxu0 %v304
      %v1362 = vpop.f32.mrf.mxu0
      %v1363 = vadd.f32 %v1138, %v1362
      %v1364 = vpop.f32.mrf.mxu0
      %1365 = vmatprep.mubr.f32.mxu0 0.0
      %1366 = vmatmul.mubr.f32.gmra.mxu0 %v311
      %v1367 = vpop.f32.mrf.mxu0
      %v1368 = vadd.f32 %v1143, %v1367
      %v1369 = vpop.f32.mrf.mxu0
      %1370 = vmatprep.mubr.f32.mxu0 0.0
      %1371 = vmatmul.mubr.f32.gmra.mxu0 %v318
      %v1372 = vpop.f32.mrf.mxu0
      %v1373 = vadd.f32 %v1148, %v1372
      %v1374 = vpop.f32.mrf.mxu0
      %1375 = vmatprep.mubr.f32.mxu0 0.0
      %1376 = vmatmul.mubr.f32.gmra.mxu0 %v325
      %v1377 = vpop.f32.mrf.mxu0
      %v1378 = vadd.f32 %v1153, %v1377
      %v1379 = vpop.f32.mrf.mxu0
      %1380 = vmatprep.mubr.f32.mxu0 0.0
      %1381 = vmatmul.mubr.f32.gmra.mxu0 %v332
      %v1382 = vpop.f32.mrf.mxu0
      %v1383 = vadd.f32 %v1158, %v1382
      %v1384 = vpop.f32.mrf.mxu0
      %1385 = vmatprep.mubr.f32.mxu0 0.0
      %1386 = vmatmul.mubr.f32.gmra.mxu0 %v339
      %v1387 = vpop.f32.mrf.mxu0
      %v1388 = vadd.f32 %v1163, %v1387
      %v1389 = vpop.f32.mrf.mxu0
      %1390 = vmatprep.mubr.f32.mxu0 0.0
      %1391 = vmatmul.mubr.f32.gmra.mxu0 %v346
      %v1392 = vpop.f32.mrf.mxu0
      %v1393 = vadd.f32 %v1168, %v1392
      %v1394 = vpop.f32.mrf.mxu0
      %1395 = vmatprep.mubr.f32.mxu0 0.0
      %1396 = vmatmul.mubr.f32.gmra.mxu0 %v353
      %v1397 = vpop.f32.mrf.mxu0
      %v1398 = vadd.f32 %v1173, %v1397
      %v1399 = vpop.f32.mrf.mxu0
      %1400 = vmatprep.mubr.f32.mxu0 0.0
      %1401 = vmatmul.mubr.f32.gmra.mxu0 %v360
      %v1402 = vpop.f32.mrf.mxu0
      %v1403 = vadd.f32 %v1178, %v1402
      %v1404 = vpop.f32.mrf.mxu0
      %1405 = vmatprep.mubr.f32.mxu0 0.0
      %1406 = vmatmul.mubr.f32.gmra.mxu0 %v367
      %v1407 = vpop.f32.mrf.mxu0
      %v1408 = vadd.f32 %v1183, %v1407
      %v1409 = vpop.f32.mrf.mxu0
      %1410 = vmatprep.mubr.f32.mxu0 0.0
      %1411 = vmatmul.mubr.f32.gmra.mxu0 %v374
      %v1412 = vpop.f32.mrf.mxu0
      %v1413 = vadd.f32 %v1188, %v1412
      %v1414 = vpop.f32.mrf.mxu0
      %1415 = vmatprep.mubr.f32.mxu0 0.0
      %1416 = vmatmul.mubr.f32.gmra.mxu0 %v381
      %v1417 = vpop.f32.mrf.mxu0
      %v1418 = vadd.f32 %v1193, %v1417
      %v1419 = vpop.f32.mrf.mxu0
      %1420 = vmatprep.mubr.f32.mxu0 0.0
      %1421 = vmatmul.mubr.f32.gmra.mxu0 %v388
      %v1422 = vpop.f32.mrf.mxu0
      %v1423 = vadd.f32 %v1198, %v1422
      %v1424 = vpop.f32.mrf.mxu0
      %1425 = vmatprep.mubr.f32.mxu0 0.0
      %1426 = vmatmul.mubr.f32.gmra.mxu0 %v395
      %v1427 = vpop.f32.mrf.mxu0
      %v1428 = vadd.f32 %v1203, %v1427
      %v1429 = vpop.f32.mrf.mxu0
      %1430 = vmatprep.mubr.f32.mxu0 0.0
      %1431 = vmatmul.mubr.f32.gmra.mxu0 %v402
      %v1432 = vpop.f32.mrf.mxu0
      %v1433 = vadd.f32 %v1208, %v1432
      %v1434 = vpop.f32.mrf.mxu0
      %1435 = vmatprep.mubr.f32.mxu0 0.0
      %1436 = vmatmul.mubr.f32.gmra.mxu0 %v409
      %v1437 = vpop.f32.mrf.mxu0
      %v1438 = vadd.f32 %v1213, %v1437
      %v1439 = vpop.f32.mrf.mxu0
      %1440 = vmatprep.mubr.f32.mxu0 0.0
      %1441 = vmatmul.mubr.f32.gmra.mxu0 %v416
      %v1442 = vpop.f32.mrf.mxu0
      %v1443 = vadd.f32 %v1218, %v1442
      %v1444 = vpop.f32.mrf.mxu0
      %1445 = vmatprep.mubr.f32.mxu0 0.0
      %1446 = vmatmul.mubr.f32.gmra.mxu0 %v423
      %v1447 = vpop.f32.mrf.mxu0
      %v1448 = vadd.f32 %v1223, %v1447
      %v1449 = vpop.f32.mrf.mxu0
      %1450 = vmatprep.mubr.f32.mxu0 0.0
      %1451 = vmatmul.mubr.f32.gmra.mxu0 %v430
      %v1452 = vpop.f32.mrf.mxu0
      %v1453 = vadd.f32 %v1228, %v1452
      %v1454 = vpop.f32.mrf.mxu0
      %1455 = vmatprep.mubr.f32.mxu0 0.0
      %1456 = vmatmul.mubr.f32.gmra.mxu0 %v437
      %v1457 = vpop.f32.mrf.mxu0
      %v1458 = vadd.f32 %v1233, %v1457
      %v1459 = vpop.f32.mrf.mxu0
      %1460 = vmatprep.mubr.f32.mxu0 0.0
      %1461 = vmatmul.mubr.f32.gmra.mxu0 %v444
      %v1462 = vpop.f32.mrf.mxu0
      %v1463 = vadd.f32 %v1238, %v1462
      %v1464 = vpop.f32.mrf.mxu0
      %1465 = vmatprep.mubr.f32.mxu0 0.0
      %1466 = vmatmul.mubr.f32.gmra.mxu0 %v451
      %v1467 = vpop.f32.mrf.mxu0
      %v1468 = vadd.f32 %v1243, %v1467
      %v1469 = vpop.f32.mrf.mxu0
      %1470 = vdwg.mxu0
      %v1471 = vmax.f32 %v1313, 0.0
      %v1472 = vmax.f32 %v1318, 0.0
      %v1473 = vmax.f32 %v1323, 0.0
      %v1474 = vmax.f32 %v1328, 0.0
      %v1475 = vmax.f32 %v1333, 0.0
      %v1476 = vmax.f32 %v1338, 0.0
      %v1477 = vmax.f32 %v1343, 0.0
      %v1478 = vmax.f32 %v1348, 0.0
      %v1479 = vmax.f32 %v1353, 0.0
      %v1480 = vmax.f32 %v1358, 0.0
      %v1481 = vmax.f32 %v1363, 0.0
      %v1482 = vmax.f32 %v1368, 0.0
      %v1483 = vmax.f32 %v1373, 0.0
      %v1484 = vmax.f32 %v1378, 0.0
      %v1485 = vmax.f32 %v1383, 0.0
      %v1486 = vmax.f32 %v1388, 0.0
      %v1487 = vmax.f32 %v1393, 0.0
      %v1488 = vmax.f32 %v1398, 0.0
      %v1489 = vmax.f32 %v1403, 0.0
      %v1490 = vmax.f32 %v1408, 0.0
      %v1491 = vmax.f32 %v1413, 0.0
      %v1492 = vmax.f32 %v1418, 0.0
      %v1493 = vmax.f32 %v1423, 0.0
      %v1494 = vmax.f32 %v1428, 0.0
      %v1495 = vmax.f32 %v1433, 0.0
      %v1496 = vmax.f32 %v1438, 0.0
      %v1497 = vmax.f32 %v1443, 0.0
      %v1498 = vmax.f32 %v1448, 0.0
      %v1499 = vmax.f32 %v1453, 0.0
      %v1500 = vmax.f32 %v1458, 0.0
      %v1501 = vmax.f32 %v1463, 0.0
      %v1502 = vmax.f32 %v1468, 0.0
      %1503 = vst [vmem:[%s226] sm:$0xff] %v1471
      %1504 = vst [vmem:[%s226 + $0x8] sm:$0xff] %v1472
      %1505 = vst [vmem:[%s226 + $0x10] sm:$0xff] %v1473
      %1506 = vst [vmem:[%s226 + $0x18] sm:$0xff] %v1474
      %1507 = vst [vmem:[%s226 + $0x20] sm:$0xff] %v1475
      %1508 = vst [vmem:[%s226 + $0x28] sm:$0xff] %v1476
      %1509 = vst [vmem:[%s226 + $0x30] sm:$0xff] %v1477
      %1510 = vst [vmem:[%s226 + $0x38] sm:$0xff] %v1478
      %1511 = vst [vmem:[%s226 + $0x40] sm:$0xff] %v1479
      %1512 = vst [vmem:[%s226 + $0x48] sm:$0xff] %v1480
      %1513 = vst [vmem:[%s226 + $0x50] sm:$0xff] %v1481
      %1514 = vst [vmem:[%s226 + $0x58] sm:$0xff] %v1482
      %1515 = vst [vmem:[%s226 + $0x60] sm:$0xff] %v1483
      %1516 = vst [vmem:[%s226 + $0x68] sm:$0xff] %v1484
      %1517 = vst [vmem:[%s226 + $0x70] sm:$0xff] %v1485
      %1518 = vst [vmem:[%s226 + $0x78] sm:$0xff] %v1486
      %1519 = vst [vmem:[%s226 + $0x80] sm:$0xff] %v1487
      %1520 = vst [vmem:[%s226 + $0x88] sm:$0xff] %v1488
      %1521 = vst [vmem:[%s226 + $0x90] sm:$0xff] %v1489
      %1522 = vst [vmem:[%s226 + $0x98] sm:$0xff] %v1490
      %1523 = vst [vmem:[%s226 + $0xa0] sm:$0xff] %v1491
      %1524 = vst [vmem:[%s226 + $0xa8] sm:$0xff] %v1492
      %1525 = vst [vmem:[%s226 + $0xb0] sm:$0xff] %v1493
      %1526 = vst [vmem:[%s226 + $0xb8] sm:$0xff] %v1494
      %1527 = vst [vmem:[%s226 + $0xc0] sm:$0xff] %v1495
      %1528 = vst [vmem:[%s226 + $0xc8] sm:$0xff] %v1496
      %1529 = vst [vmem:[%s226 + $0xd0] sm:$0xff] %v1497
      %1530 = vst [vmem:[%s226 + $0xd8] sm:$0xff] %v1498
      %1531 = vst [vmem:[%s226 + $0xe0] sm:$0xff] %v1499
      %1532 = vst [vmem:[%s226 + $0xe8] sm:$0xff] %v1500
      %1533 = vst [vmem:[%s226 + $0xf0] sm:$0xff] %v1501
      %1534 = vst [vmem:[%s226 + $0xf8] sm:$0xff] %v1502
      %s1535 = smul.u32 32, %s18
      %p1536 = scmp.lt.s32.totalorder %s1535, 223
      %s1537 = scalar_select %p1536, %s1535, 223
      %p1538 = scmp.lt.s32.totalorder %s19, 0
      %s1539 = scalar_select %p1538, %s19, 0
      %s1540 = sadd.s32 %s1539, %s1537
      %s1541 = smul.addr %s1540, 8
      %s1542 = scalar_lea.vmem %s3, %s1541
      // Predicated region
      $region33: #{expanded_cnn_forward.9} parent=31 // pred_check
        %p1543 = pneg %p124
      $region34: #{expanded_cnn_forward.9} parent=31 // pred_check_branch
        %1545 = sbr.rel (%p1543) target = $region36
      $region35: #{expanded_cnn_forward.9} parent=31 // pred_region
        %s1546 = smul.u32 32, %s18
      $region36: #{expanded_cnn_forward.9} parent=31 // pred_fallthru
        _
    $region32: #{expanded_cnn_forward.9} parent=5 // pred_fallthru
      _
    %p1547 = scmp.le.s32.totalorder 2, %s9
    // Predicated region
    $region37: #{expanded_cnn_forward.9} parent=5 // pred_check
      %p1548 = pneg %p1547
    $region38: #{expanded_cnn_forward.9} parent=5 // pred_check_branch
      %1550 = sbr.rel (%p1548) target = $region40
    $region39: #{expanded_cnn_forward.9} parent=5 // pred_region
      %s1551 = ssub.s32 %s9, 2
      // Predicated region
      $region41: #{expanded_cnn_forward.9} parent=39 // pred_check
        %p1552 = pneg %p130
      $region42: #{expanded_cnn_forward.9} parent=39 // pred_check_branch
        %1554 = sbr.rel (%p1552) target = $region44
      $region43: #{expanded_cnn_forward.9} parent=39 // pred_region
        %s1555 = smul.u32 32, %s20
        %p1556 = scmp.lt.s32.totalorder %s1555, 223
        %s1557 = scalar_select %p1556, %s1555, 223
        %p1558 = scmp.lt.s32.totalorder %s21, 0
        %s1559 = scalar_select %p1558, %s21, 0
        %s1560 = sadd.s32 %s1559, %s1557
        %s1561 = smul.addr %s1560, 8
        %s1562 = scalar_lea.vmem %s3, %s1561
      $region44: #{expanded_cnn_forward.9} parent=39 // pred_fallthru
        _
    $region40: #{expanded_cnn_forward.9} parent=5 // pred_fallthru
      _
  $region6: #{expanded_cnn_forward.9} parent=0 // loop_footer
    %s13 = sadd.s32 1, %s9
  $region7: #{expanded_cnn_forward.9} parent=0 // loop_footer_branch
    %8 = sbr.rel target = $region3
  $region8: #{expanded_cnn_forward.9} parent=0 // loop_exit
    _

// kernel: expanded_cnn_forward.11
$region0: #{expanded_cnn_forward.11}
  #allocation0 [shape = 'u32[]', space=smem, size = 0x4, offset = 0x4, fixed_abs, tag = 'smem constant byte address 0x4 - core index']
  #allocation1 [shape = 'u32[144,128]{1,0:T(1,128)}', space=vmem, size = 0x12000, scoped, tag = 'internal scratch']
  %s0 = inlined_call_operand.vmem [shape: f32[8,1024], index: 0, kind: input, shape index: {}]
  %s1 = inlined_call_operand.vmem [shape: f32[1024,256], index: 1, kind: input, shape index: {}]
  %s2 = inlined_call_operand.vmem [shape: f32[1,256], index: 2, kind: input, shape index: {}]
  %s3 = inlined_call_operand.vmem [shape: f32[8,256], index: 3, kind: output, shape index: {}]
  %s4 = sld [smem:[#allocation0]]
  $region83: #{expanded_cnn_forward.11} parent=0
    _
  %s6 = ssub.s32 1, %s4
  %s7 = scalar_select 0, %s6, %s4
  $region1: #{expanded_cnn_forward.11} parent=0
    #allocation2 [shape = 'u8[1048576]{0}', space=vmem, size = 0x100000, scoped, tag = 'input window, operand 1']
    loop: start=0, step=1, limit=4
    $region2: #{expanded_cnn_forward.11} parent=1 // loop_pre_header
      _
    $region3: #{expanded_cnn_forward.11} parent=1 // loop_header
      %s9 = sphi 0, %s13
      %p10 = scmp.ge.s32.totalorder %s9, 4
      %s16 = sphi 0, %s28
      %s17 = sphi 0, %s24
      %s18 = sphi 0, %s16
      %s19 = sphi 0, %s17
      %s20 = sphi 0, %s18
      %s21 = sphi 0, %s19
      %s31 = sphi 0, %s33
      %s34 = sphi 0, %s31
      %s35 = sphi 0, %s34
      %s51 = sphi 0, %s35
      %s57 = sphi 0, %s59
      %s60 = sphi 0, %s57
      %s61 = sphi 0, %s60
      %s77 = sphi 0, %s61
      %s83 = sphi 0, %s85
      %s86 = sphi 0, %s83
      %s87 = sphi 0, %s86
      %s103 = sphi 0, %s87
      %s111 = sphi 0, %s113
      %s114 = sphi 0, %s111
      %s115 = sphi 0, %s114
      %s131 = sphi 0, %s115
    $region4: #{expanded_cnn_forward.11} parent=1 // loop_header_branch
      %12 = sbr.rel (%p10) target = $region8
    $region5: #{expanded_cnn_forward.11} parent=1 // loop_body
      %s14 = ssub.s32 %s9, 1
      %s15 = ssub.s32 %s9, 2
      %s22 = sadd.s32 1, %s17
      %p23 = scmp.ge.s32.totalorder %s22, 2
      %s24 = scalar_select %p23, 0, %s22
      %s25 = sadd.s32 1, %s16
      %s26 = scalar_select %p23, %s25, %s16
      %p27 = scmp.ge.s32.totalorder %s26, 1
      %s28 = scalar_select %p27, 0, %s26
      %s29 = ssub.s32 %s16, %s28
      %p30 = scmp.eq.s32.totalorder %s29, 0
      %s32 = sadd.s32 %s31, 1
      %s33 = scalar_select %p30, %s31, %s32
      %p36 = pneg %p30
      %p37 = scmp.eq.s32.totalorder %s9, 1
      %p38 = por %p36, %p37
      %p39 = scmp.ne.s32.totalorder %s31, %s34
      %p40 = scmp.eq.s32.totalorder %s9, 0
      %p41 = por %p39, %p40
      %p42 = scmp.ne.s32.totalorder %s31, %s34
      %p43 = scmp.eq.s32.totalorder %s14, 1
      %p44 = por %p42, %p43
      %p45 = scmp.ne.s32.totalorder %s34, %s35
      %p46 = scmp.eq.s32.totalorder %s14, 0
      %p47 = por %p45, %p46
      %p48 = scmp.ne.s32.totalorder %s34, %s35
      %p49 = scmp.eq.s32.totalorder %s15, 1
      %p50 = por %p48, %p49
      %p52 = scmp.ne.s32.totalorder %s35, %s51
      %p53 = scmp.eq.s32.totalorder %s15, 0
      %p54 = por %p52, %p53
      %s55 = ssub.s32 %s17, %s24
      %p56 = scmp.eq.s32.totalorder %s55, 0
      %s58 = sadd.s32 %s57, 1
      %s59 = scalar_select %p56, %s57, %s58
      %p62 = pneg %p56
      %p63 = scmp.eq.s32.totalorder %s9, 1
      %p64 = por %p62, %p63
      %p65 = scmp.ne.s32.totalorder %s57, %s60
      %p66 = scmp.eq.s32.totalorder %s9, 0
      %p67 = por %p65, %p66
      %p68 = scmp.ne.s32.totalorder %s57, %s60
      %p69 = scmp.eq.s32.totalorder %s14, 1
      %p70 = por %p68, %p69
      %p71 = scmp.ne.s32.totalorder %s60, %s61
      %p72 = scmp.eq.s32.totalorder %s14, 0
      %p73 = por %p71, %p72
      %p74 = scmp.ne.s32.totalorder %s60, %s61
      %p75 = scmp.eq.s32.totalorder %s15, 1
      %p76 = por %p74, %p75
      %p78 = scmp.ne.s32.totalorder %s61, %s77
      %p79 = scmp.eq.s32.totalorder %s15, 0
      %p80 = por %p78, %p79
      %s81 = ssub.s32 %s17, %s24
      %p82 = scmp.eq.s32.totalorder %s81, 0
      %s84 = sadd.s32 %s83, 1
      %s85 = scalar_select %p82, %s83, %s84
      %p88 = pneg %p82
      %p89 = scmp.eq.s32.totalorder %s9, 1
      %p90 = por %p88, %p89
      %p91 = scmp.ne.s32.totalorder %s83, %s86
      %p92 = scmp.eq.s32.totalorder %s9, 0
      %p93 = por %p91, %p92
      %p94 = scmp.ne.s32.totalorder %s83, %s86
      %p95 = scmp.eq.s32.totalorder %s14, 1
      %p96 = por %p94, %p95
      %p97 = scmp.ne.s32.totalorder %s86, %s87
      %p98 = scmp.eq.s32.totalorder %s14, 0
      %p99 = por %p97, %p98
      %p100 = scmp.ne.s32.totalorder %s86, %s87
      %p101 = scmp.eq.s32.totalorder %s15, 1
      %p102 = por %p100, %p101
      %p104 = scmp.ne.s32.totalorder %s87, %s103
      %p105 = scmp.eq.s32.totalorder %s15, 0
      %p106 = por %p104, %p105
      %s107 = ssub.s32 %s16, %s28
      %s108 = ssub.s32 %s17, %s24
      %s109 = sor.u32 %s107, %s108
      %p110 = scmp.eq.s32.totalorder %s109, 0
      %s112 = sadd.s32 %s111, 1
      %s113 = scalar_select %p110, %s111, %s112
      %p116 = pneg %p110
      %p117 = scmp.eq.s32.totalorder %s9, 1
      %p118 = por %p116, %p117
      %p119 = scmp.ne.s32.totalorder %s111, %s114
      %p120 = scmp.eq.s32.totalorder %s9, 0
      %p121 = por %p119, %p120
      %p122 = scmp.ne.s32.totalorder %s111, %s114
      %p123 = scmp.eq.s32.totalorder %s14, 1
      %p124 = por %p122, %p123
      %p125 = scmp.ne.s32.totalorder %s114, %s115
      %p126 = scmp.eq.s32.totalorder %s14, 0
      %p127 = por %p125, %p126
      %p128 = scmp.ne.s32.totalorder %s114, %s115
      %p129 = scmp.eq.s32.totalorder %s15, 1
      %p130 = por %p128, %p129
      %p132 = scmp.ne.s32.totalorder %s115, %s131
      %p133 = scmp.eq.s32.totalorder %s15, 0
      %p134 = por %p132, %p133
      %p135 = scmp.le.s32.totalorder 1, %s9
      %p136 = scmp.lt.s32.totalorder %s9, 3
      %p137 = pnand %p135, %p136
      %p138 = pneg %p137
      // Predicated region
      $region9: #{expanded_cnn_forward.11} parent=5 // pred_check
        _
      $region10: #{expanded_cnn_forward.11} parent=5 // pred_check_branch
        %140 = sbr.rel (%p137) target = $region12
      $region11: #{expanded_cnn_forward.11} parent=5 // pred_region
        %s141 = ssub.s32 %s9, 1
        // Predicated region
        $region13: #{expanded_cnn_forward.11} parent=11 // pred_check
          %p142 = pneg %p47
        $region14: #{expanded_cnn_forward.11} parent=11 // pred_check_branch
          %144 = sbr.rel (%p142) target = $region16
        $region15: #{expanded_cnn_forward.11} parent=11 // pred_region
          %p145 = scmp.lt.s32.totalorder %s18, 0
          %s146 = scalar_select %p145, %s18, 0
          %s147 = smul.addr %s146, 8
          %s148 = smul.addr %s147, 8
          %s149 = scalar_lea.vmem %s0, %s148
        $region16: #{expanded_cnn_forward.11} parent=11 // pred_fallthru
          _
      $region12: #{expanded_cnn_forward.11} parent=5 // pred_fallthru
        _
      %p150 = scmp.lt.s32.totalorder %s9, 2
      // Predicated region
      $region17: #{expanded_cnn_forward.11} parent=5 // pred_check
        %p151 = pneg %p150
      $region18: #{expanded_cnn_forward.11} parent=5 // pred_check_branch
        %153 = sbr.rel (%p151) target = $region20
      $region19: #{expanded_cnn_forward.11} parent=5 // pred_region
        // Predicated region
        $region21: #{expanded_cnn_forward.11} parent=19 // pred_check
          %p154 = pneg %p67
        $region22: #{expanded_cnn_forward.11} parent=19 // pred_check_branch
          %156 = sbr.rel (%p154) target = $region24
        $region23: #{expanded_cnn_forward.11} parent=19 // pred_region
          %s157 = sand.u32 %s57, 1
          %s158 = sand.u32 %s57, 1
          %s159 = smul.addr %s158, 1024
          %s160 = scalar_lea.vmem [#allocation2], %s159
          %s161 = smul.addr %s17, 8
          %s162 = scalar_lea.vmem %s1, %s161
          // Predicated region
          $region25: #{expanded_cnn_forward.11} parent=23 // pred_check
            _
          $region26: #{expanded_cnn_forward.11} parent=23 // pred_check_branch
            %164 = sbr.rel (0) target = $region28
          $region27: #{expanded_cnn_forward.11} parent=23 // pred_region
            // Predicated region
            $region29: #{expanded_cnn_forward.11} parent=27 // pred_check
              _
            $region30: #{expanded_cnn_forward.11} parent=27 // pred_check_branch
              %166 = sbr.rel (0) target = $region32
            $region31: #{expanded_cnn_forward.11} parent=27 // pred_region
              // Predicated region
              $region44: #{expanded_cnn_forward.11} parent=31 // pred_check
                _
              $region45: #{expanded_cnn_forward.11} parent=31 // pred_check_branch
                %436 = sbr.rel (0) target = $region47
              $region46: #{expanded_cnn_forward.11} parent=31 // pred_region
                loop: start=0, step=1, limit=1
                $region48: #{expanded_cnn_forward.11} parent=46 // loop_pre_header
                  _
                $region49: #{expanded_cnn_forward.11} parent=46 // loop_header
                  %s438 = sphi 0, %s442
                  %p439 = scmp.ge.s32.totalorder %s438, 1
                  %s443 = sphi %s162, %s162
                  %s444 = sphi %s160, %s160
                $region50: #{expanded_cnn_forward.11} parent=46 // loop_header_branch
                  %441 = sbr.rel (%p439) target = $region54
                $region51: #{expanded_cnn_forward.11} parent=46 // loop_body
                  %v445 = vld [vmem:[%s443] sm:$0xff]
                  %446 = vst [vmem:[%s444] sm:$0xff] %v445
                  %v447 = vld [vmem:[%s443 + $0x10] sm:$0xff]
                  %448 = vst [vmem:[%s444 + $0x8] sm:$0xff] %v447
                  %v449 = vld [vmem:[%s443 + $0x20] sm:$0xff]
                  %450 = vst [vmem:[%s444 + $0x10] sm:$0xff] %v449
                  %v451 = vld [vmem:[%s443 + $0x30] sm:$0xff]
                  %452 = vst [vmem:[%s444 + $0x18] sm:$0xff] %v451
                  %v453 = vld [vmem:[%s443 + $0x40] sm:$0xff]
                  %454 = vst [vmem:[%s444 + $0x20] sm:$0xff] %v453
                  %v455 = vld [vmem:[%s443 + $0x50] sm:$0xff]
                  %456 = vst [vmem:[%s444 + $0x28] sm:$0xff] %v455
                  %v457 = vld [vmem:[%s443 + $0x60] sm:$0xff]
                  %458 = vst [vmem:[%s444 + $0x30] sm:$0xff] %v457
                  %v459 = vld [vmem:[%s443 + $0x70] sm:$0xff]
                  %460 = vst [vmem:[%s444 + $0x38] sm:$0xff] %v459
                  %v461 = vld [vmem:[%s443 + $0x80] sm:$0xff]
                  %462 = vst [vmem:[%s444 + $0x40] sm:$0xff] %v461
                  %v463 = vld [vmem:[%s443 + $0x90] sm:$0xff]
                  %464 = vst [vmem:[%s444 + $0x48] sm:$0xff] %v463
                  %v465 = vld [vmem:[%s443 + $0xa0] sm:$0xff]
                  %466 = vst [vmem:[%s444 + $0x50] sm:$0xff] %v465
                  %v467 = vld [vmem:[%s443 + $0xb0] sm:$0xff]
                  %468 = vst [vmem:[%s444 + $0x58] sm:$0xff] %v467
                  %v469 = vld [vmem:[%s443 + $0xc0] sm:$0xff]
                  %470 = vst [vmem:[%s444 + $0x60] sm:$0xff] %v469
                  %v471 = vld [vmem:[%s443 + $0xd0] sm:$0xff]
                  %472 = vst [vmem:[%s444 + $0x68] sm:$0xff] %v471
                  %v473 = vld [vmem:[%s443 + $0xe0] sm:$0xff]
                  %474 = vst [vmem:[%s444 + $0x70] sm:$0xff] %v473
                  %v475 = vld [vmem:[%s443 + $0xf0] sm:$0xff]
                  %476 = vst [vmem:[%s444 + $0x78] sm:$0xff] %v475
                  %v477 = vld [vmem:[%s443 + $0x100] sm:$0xff]
                  %478 = vst [vmem:[%s444 + $0x80] sm:$0xff] %v477
                  %v479 = vld [vmem:[%s443 + $0x110] sm:$0xff]
                  %480 = vst [vmem:[%s444 + $0x88] sm:$0xff] %v479
                  %v481 = vld [vmem:[%s443 + $0x120] sm:$0xff]
                  %482 = vst [vmem:[%s444 + $0x90] sm:$0xff] %v481
                  %v483 = vld [vmem:[%s443 + $0x130] sm:$0xff]
                  %484 = vst [vmem:[%s444 + $0x98] sm:$0xff] %v483
                  %v485 = vld [vmem:[%s443 + $0x140] sm:$0xff]
                  %486 = vst [vmem:[%s444 + $0xa0] sm:$0xff] %v485
                  %v487 = vld [vmem:[%s443 + $0x150] sm:$0xff]
                  %488 = vst [vmem:[%s444 + $0xa8] sm:$0xff] %v487
                  %v489 = vld [vmem:[%s443 + $0x160] sm:$0xff]
                  %490 = vst [vmem:[%s444 + $0xb0] sm:$0xff] %v489
                  %v491 = vld [vmem:[%s443 + $0x170] sm:$0xff]
                  %492 = vst [vmem:[%s444 + $0xb8] sm:$0xff] %v491
                  %v493 = vld [vmem:[%s443 + $0x180] sm:$0xff]
                  %494 = vst [vmem:[%s444 + $0xc0] sm:$0xff] %v493
                  %v495 = vld [vmem:[%s443 + $0x190] sm:$0xff]
                  %496 = vst [vmem:[%s444 + $0xc8] sm:$0xff] %v495
                  %v497 = vld [vmem:[%s443 + $0x1a0] sm:$0xff]
                  %498 = vst [vmem:[%s444 + $0xd0] sm:$0xff] %v497
                  %v499 = vld [vmem:[%s443 + $0x1b0] sm:$0xff]
                  %500 = vst [vmem:[%s444 + $0xd8] sm:$0xff] %v499
                  %v501 = vld [vmem:[%s443 + $0x1c0] sm:$0xff]
                  %502 = vst [vmem:[%s444 + $0xe0] sm:$0xff] %v501
                  %v503 = vld [vmem:[%s443 + $0x1d0] sm:$0xff]
                  %504 = vst [vmem:[%s444 + $0xe8] sm:$0xff] %v503
                  %v505 = vld [vmem:[%s443 + $0x1e0] sm:$0xff]
                  %506 = vst [vmem:[%s444 + $0xf0] sm:$0xff] %v505
                  %v507 = vld [vmem:[%s443 + $0x1f0] sm:$0xff]
                  %508 = vst [vmem:[%s444 + $0xf8] sm:$0xff] %v507
                  %v509 = vld [vmem:[%s443 + $0x200] sm:$0xff]
                  %510 = vst [vmem:[%s444 + $0x100] sm:$0xff] %v509
                  %v511 = vld [vmem:[%s443 + $0x210] sm:$0xff]
                  %512 = vst [vmem:[%s444 + $0x108] sm:$0xff] %v511
                  %v513 = vld [vmem:[%s443 + $0x220] sm:$0xff]
                  %514 = vst [vmem:[%s444 + $0x110] sm:$0xff] %v513
                  %v515 = vld [vmem:[%s443 + $0x230] sm:$0xff]
                  %516 = vst [vmem:[%s444 + $0x118] sm:$0xff] %v515
                  %v517 = vld [vmem:[%s443 + $0x240] sm:$0xff]
                  %518 = vst [vmem:[%s444 + $0x120] sm:$0xff] %v517
                  %v519 = vld [vmem:[%s443 + $0x250] sm:$0xff]
                  %520 = vst [vmem:[%s444 + $0x128] sm:$0xff] %v519
                  %v521 = vld [vmem:[%s443 + $0x260] sm:$0xff]
                  %522 = vst [vmem:[%s444 + $0x130] sm:$0xff] %v521
                  %v523 = vld [vmem:[%s443 + $0x270] sm:$0xff]
                  %524 = vst [vmem:[%s444 + $0x138] sm:$0xff] %v523
                  %v525 = vld [vmem:[%s443 + $0x280] sm:$0xff]
                  %526 = vst [vmem:[%s444 + $0x140] sm:$0xff] %v525
                  %v527 = vld [vmem:[%s443 + $0x290] sm:$0xff]
                  %528 = vst [vmem:[%s444 + $0x148] sm:$0xff] %v527
                  %v529 = vld [vmem:[%s443 + $0x2a0] sm:$0xff]
                  %530 = vst [vmem:[%s444 + $0x150] sm:$0xff] %v529
                  %v531 = vld [vmem:[%s443 + $0x2b0] sm:$0xff]
                  %532 = vst [vmem:[%s444 + $0x158] sm:$0xff] %v531
                  %v533 = vld [vmem:[%s443 + $0x2c0] sm:$0xff]
                  %534 = vst [vmem:[%s444 + $0x160] sm:$0xff] %v533
                  %v535 = vld [vmem:[%s443 + $0x2d0] sm:$0xff]
                  %536 = vst [vmem:[%s444 + $0x168] sm:$0xff] %v535
                  %v537 = vld [vmem:[%s443 + $0x2e0] sm:$0xff]
                  %538 = vst [vmem:[%s444 + $0x170] sm:$0xff] %v537
                  %v539 = vld [vmem:[%s443 + $0x2f0] sm:$0xff]
                  %540 = vst [vmem:[%s444 + $0x178] sm:$0xff] %v539
                  %v541 = vld [vmem:[%s443 + $0x300] sm:$0xff]
                  %542 = vst [vmem:[%s444 + $0x180] sm:$0xff] %v541
                  %v543 = vld [vmem:[%s443 + $0x310] sm:$0xff]
                  %544 = vst [vmem:[%s444 + $0x188] sm:$0xff] %v543
                  %v545 = vld [vmem:[%s443 + $0x320] sm:$0xff]
                  %546 = vst [vmem:[%s444 + $0x190] sm:$0xff] %v545
                  %v547 = vld [vmem:[%s443 + $0x330] sm:$0xff]
                  %548 = vst [vmem:[%s444 + $0x198] sm:$0xff] %v547
                  %v549 = vld [vmem:[%s443 + $0x340] sm:$0xff]
                  %550 = vst [vmem:[%s444 + $0x1a0] sm:$0xff] %v549
                  %v551 = vld [vmem:[%s443 + $0x350] sm:$0xff]
                  %552 = vst [vmem:[%s444 + $0x1a8] sm:$0xff] %v551
                  %v553 = vld [vmem:[%s443 + $0x360] sm:$0xff]
                  %554 = vst [vmem:[%s444 + $0x1b0] sm:$0xff] %v553
                  %v555 = vld [vmem:[%s443 + $0x370] sm:$0xff]
                  %556 = vst [vmem:[%s444 + $0x1b8] sm:$0xff] %v555
                  %v557 = vld [vmem:[%s443 + $0x380] sm:$0xff]
                  %558 = vst [vmem:[%s444 + $0x1c0] sm:$0xff] %v557
                  %v559 = vld [vmem:[%s443 + $0x390] sm:$0xff]
                  %560 = vst [vmem:[%s444 + $0x1c8] sm:$0xff] %v559
                  %v561 = vld [vmem:[%s443 + $0x3a0] sm:$0xff]
                  %562 = vst [vmem:[%s444 + $0x1d0] sm:$0xff] %v561
                  %v563 = vld [vmem:[%s443 + $0x3b0] sm:$0xff]
                  %564 = vst [vmem:[%s444 + $0x1d8] sm:$0xff] %v563
                  %v565 = vld [vmem:[%s443 + $0x3c0] sm:$0xff]
                  %566 = vst [vmem:[%s444 + $0x1e0] sm:$0xff] %v565
                  %v567 = vld [vmem:[%s443 + $0x3d0] sm:$0xff]
                  %568 = vst [vmem:[%s444 + $0x1e8] sm:$0xff] %v567
                  %v569 = vld [vmem:[%s443 + $0x3e0] sm:$0xff]
                  %570 = vst [vmem:[%s444 + $0x1f0] sm:$0xff] %v569
                  %v571 = vld [vmem:[%s443 + $0x3f0] sm:$0xff]
                  %572 = vst [vmem:[%s444 + $0x1f8] sm:$0xff] %v571
                  %v573 = vld [vmem:[%s443 + $0x400] sm:$0xff]
                  %574 = vst [vmem:[%s444 + $0x200] sm:$0xff] %v573
                  %v575 = vld [vmem:[%s443 + $0x410] sm:$0xff]
                  %576 = vst [vmem:[%s444 + $0x208] sm:$0xff] %v575
                  %v577 = vld [vmem:[%s443 + $0x420] sm:$0xff]
                  %578 = vst [vmem:[%s444 + $0x210] sm:$0xff] %v577
                  %v579 = vld [vmem:[%s443 + $0x430] sm:$0xff]
                  %580 = vst [vmem:[%s444 + $0x218] sm:$0xff] %v579
                  %v581 = vld [vmem:[%s443 + $0x440] sm:$0xff]
                  %582 = vst [vmem:[%s444 + $0x220] sm:$0xff] %v581
                  %v583 = vld [vmem:[%s443 + $0x450] sm:$0xff]
                  %584 = vst [vmem:[%s444 + $0x228] sm:$0xff] %v583
                  %v585 = vld [vmem:[%s443 + $0x460] sm:$0xff]
                  %586 = vst [vmem:[%s444 + $0x230] sm:$0xff] %v585
                  %v587 = vld [vmem:[%s443 + $0x470] sm:$0xff]
                  %588 = vst [vmem:[%s444 + $0x238] sm:$0xff] %v587
                  %v589 = vld [vmem:[%s443 + $0x480] sm:$0xff]
                  %590 = vst [vmem:[%s444 + $0x240] sm:$0xff] %v589
                  %v591 = vld [vmem:[%s443 + $0x490] sm:$0xff]
                  %592 = vst [vmem:[%s444 + $0x248] sm:$0xff] %v591
                  %v593 = vld [vmem:[%s443 + $0x4a0] sm:$0xff]
                  %594 = vst [vmem:[%s444 + $0x250] sm:$0xff] %v593
                  %v595 = vld [vmem:[%s443 + $0x4b0] sm:$0xff]
                  %596 = vst [vmem:[%s444 + $0x258] sm:$0xff] %v595
                  %v597 = vld [vmem:[%s443 + $0x4c0] sm:$0xff]
                  %598 = vst [vmem:[%s444 + $0x260] sm:$0xff] %v597
                  %v599 = vld [vmem:[%s443 + $0x4d0] sm:$0xff]
                  %600 = vst [vmem:[%s444 + $0x268] sm:$0xff] %v599
                  %v601 = vld [vmem:[%s443 + $0x4e0] sm:$0xff]
                  %602 = vst [vmem:[%s444 + $0x270] sm:$0xff] %v601
                  %v603 = vld [vmem:[%s443 + $0x4f0] sm:$0xff]
                  %604 = vst [vmem:[%s444 + $0x278] sm:$0xff] %v603
                  %v605 = vld [vmem:[%s443 + $0x500] sm:$0xff]
                  %606 = vst [vmem:[%s444 + $0x280] sm:$0xff] %v605
                  %v607 = vld [vmem:[%s443 + $0x510] sm:$0xff]
                  %608 = vst [vmem:[%s444 + $0x288] sm:$0xff] %v607
                  %v609 = vld [vmem:[%s443 + $0x520] sm:$0xff]
                  %610 = vst [vmem:[%s444 + $0x290] sm:$0xff] %v609
                  %v611 = vld [vmem:[%s443 + $0x530] sm:$0xff]
                  %612 = vst [vmem:[%s444 + $0x298] sm:$0xff] %v611
                  %v613 = vld [vmem:[%s443 + $0x540] sm:$0xff]
                  %614 = vst [vmem:[%s444 + $0x2a0] sm:$0xff] %v613
                  %v615 = vld [vmem:[%s443 + $0x550] sm:$0xff]
                  %616 = vst [vmem:[%s444 + $0x2a8] sm:$0xff] %v615
                  %v617 = vld [vmem:[%s443 + $0x560] sm:$0xff]
                  %618 = vst [vmem:[%s444 + $0x2b0] sm:$0xff] %v617
                  %v619 = vld [vmem:[%s443 + $0x570] sm:$0xff]
                  %620 = vst [vmem:[%s444 + $0x2b8] sm:$0xff] %v619
                  %v621 = vld [vmem:[%s443 + $0x580] sm:$0xff]
                  %622 = vst [vmem:[%s444 + $0x2c0] sm:$0xff] %v621
                  %v623 = vld [vmem:[%s443 + $0x590] sm:$0xff]
                  %624 = vst [vmem:[%s444 + $0x2c8] sm:$0xff] %v623
                  %v625 = vld [vmem:[%s443 + $0x5a0] sm:$0xff]
                  %626 = vst [vmem:[%s444 + $0x2d0] sm:$0xff] %v625
                  %v627 = vld [vmem:[%s443 + $0x5b0] sm:$0xff]
                  %628 = vst [vmem:[%s444 + $0x2d8] sm:$0xff] %v627
                  %v629 = vld [vmem:[%s443 + $0x5c0] sm:$0xff]
                  %630 = vst [vmem:[%s444 + $0x2e0] sm:$0xff] %v629
                  %v631 = vld [vmem:[%s443 + $0x5d0] sm:$0xff]
                  %632 = vst [vmem:[%s444 + $0x2e8] sm:$0xff] %v631
                  %v633 = vld [vmem:[%s443 + $0x5e0] sm:$0xff]
                  %634 = vst [vmem:[%s444 + $0x2f0] sm:$0xff] %v633
                  %v635 = vld [vmem:[%s443 + $0x5f0] sm:$0xff]
                  %636 = vst [vmem:[%s444 + $0x2f8] sm:$0xff] %v635
                  %v637 = vld [vmem:[%s443 + $0x600] sm:$0xff]
                  %638 = vst [vmem:[%s444 + $0x300] sm:$0xff] %v637
                  %v639 = vld [vmem:[%s443 + $0x610] sm:$0xff]
                  %640 = vst [vmem:[%s444 + $0x308] sm:$0xff] %v639
                  %v641 = vld [vmem:[%s443 + $0x620] sm:$0xff]
                  %642 = vst [vmem:[%s444 + $0x310] sm:$0xff] %v641
                  %v643 = vld [vmem:[%s443 + $0x630] sm:$0xff]
                  %644 = vst [vmem:[%s444 + $0x318] sm:$0xff] %v643
                  %v645 = vld [vmem:[%s443 + $0x640] sm:$0xff]
                  %646 = vst [vmem:[%s444 + $0x320] sm:$0xff] %v645
                  %v647 = vld [vmem:[%s443 + $0x650] sm:$0xff]
                  %648 = vst [vmem:[%s444 + $0x328] sm:$0xff] %v647
                  %v649 = vld [vmem:[%s443 + $0x660] sm:$0xff]
                  %650 = vst [vmem:[%s444 + $0x330] sm:$0xff] %v649
                  %v651 = vld [vmem:[%s443 + $0x670] sm:$0xff]
                  %652 = vst [vmem:[%s444 + $0x338] sm:$0xff] %v651
                  %v653 = vld [vmem:[%s443 + $0x680] sm:$0xff]
                  %654 = vst [vmem:[%s444 + $0x340] sm:$0xff] %v653
                  %v655 = vld [vmem:[%s443 + $0x690] sm:$0xff]
                  %656 = vst [vmem:[%s444 + $0x348] sm:$0xff] %v655
                  %v657 = vld [vmem:[%s443 + $0x6a0] sm:$0xff]
                  %658 = vst [vmem:[%s444 + $0x350] sm:$0xff] %v657
                  %v659 = vld [vmem:[%s443 + $0x6b0] sm:$0xff]
                  %660 = vst [vmem:[%s444 + $0x358] sm:$0xff] %v659
                  %v661 = vld [vmem:[%s443 + $0x6c0] sm:$0xff]
                  %662 = vst [vmem:[%s444 + $0x360] sm:$0xff] %v661
                  %v663 = vld [vmem:[%s443 + $0x6d0] sm:$0xff]
                  %664 = vst [vmem:[%s444 + $0x368] sm:$0xff] %v663
                  %v665 = vld [vmem:[%s443 + $0x6e0] sm:$0xff]
                  %666 = vst [vmem:[%s444 + $0x370] sm:$0xff] %v665
                  %v667 = vld [vmem:[%s443 + $0x6f0] sm:$0xff]
                  %668 = vst [vmem:[%s444 + $0x378] sm:$0xff] %v667
                  %v669 = vld [vmem:[%s443 + $0x700] sm:$0xff]
                  %670 = vst [vmem:[%s444 + $0x380] sm:$0xff] %v669
                  %v671 = vld [vmem:[%s443 + $0x710] sm:$0xff]
                  %672 = vst [vmem:[%s444 + $0x388] sm:$0xff] %v671
                  %v673 = vld [vmem:[%s443 + $0x720] sm:$0xff]
                  %674 = vst [vmem:[%s444 + $0x390] sm:$0xff] %v673
                  %v675 = vld [vmem:[%s443 + $0x730] sm:$0xff]
                  %676 = vst [vmem:[%s444 + $0x398] sm:$0xff] %v675
                  %v677 = vld [vmem:[%s443 + $0x740] sm:$0xff]
                  %678 = vst [vmem:[%s444 + $0x3a0] sm:$0xff] %v677
                  %v679 = vld [vmem:[%s443 + $0x750] sm:$0xff]
                  %680 = vst [vmem:[%s444 + $0x3a8] sm:$0xff] %v679
                  %v681 = vld [vmem:[%s443 + $0x760] sm:$0xff]
                  %682 = vst [vmem:[%s444 + $0x3b0] sm:$0xff] %v681
                  %v683 = vld [vmem:[%s443 + $0x770] sm:$0xff]
                  %684 = vst [vmem:[%s444 + $0x3b8] sm:$0xff] %v683
                  %v685 = vld [vmem:[%s443 + $0x780] sm:$0xff]
                  %686 = vst [vmem:[%s444 + $0x3c0] sm:$0xff] %v685
                  %v687 = vld [vmem:[%s443 + $0x790] sm:$0xff]
                  %688 = vst [vmem:[%s444 + $0x3c8] sm:$0xff] %v687
                  %v689 = vld [vmem:[%s443 + $0x7a0] sm:$0xff]
                  %690 = vst [vmem:[%s444 + $0x3d0] sm:$0xff] %v689
                  %v691 = vld [vmem:[%s443 + $0x7b0] sm:$0xff]
                  %692 = vst [vmem:[%s444 + $0x3d8] sm:$0xff] %v691
                  %v693 = vld [vmem:[%s443 + $0x7c0] sm:$0xff]
                  %694 = vst [vmem:[%s444 + $0x3e0] sm:$0xff] %v693
                  %v695 = vld [vmem:[%s443 + $0x7d0] sm:$0xff]
                  %696 = vst [vmem:[%s444 + $0x3e8] sm:$0xff] %v695
                  %v697 = vld [vmem:[%s443 + $0x7e0] sm:$0xff]
                  %698 = vst [vmem:[%s444 + $0x3f0] sm:$0xff] %v697
                  %v699 = vld [vmem:[%s443 + $0x7f0] sm:$0xff]
                  %700 = vst [vmem:[%s444 + $0x3f8] sm:$0xff] %v699
                $region52: #{expanded_cnn_forward.11} parent=46 // loop_footer
                  %s442 = sadd.s32 1, %s438
                $region53: #{expanded_cnn_forward.11} parent=46 // loop_footer_branch
                  %437 = sbr.rel target = $region49
                $region54: #{expanded_cnn_forward.11} parent=46 // loop_exit
                  _
              $region47: #{expanded_cnn_forward.11} parent=31 // pred_fallthru
                _
              // Predicated region
              $region55: #{expanded_cnn_forward.11} parent=31 // pred_check
                _
              $region56: #{expanded_cnn_forward.11} parent=31 // pred_check_branch
                %702 = sbr.rel target = $region58
              $region57: #{expanded_cnn_forward.11} parent=31 // pred_region
                _
              $region58: #{expanded_cnn_forward.11} parent=31 // pred_fallthru
                _
            $region32: #{expanded_cnn_forward.11} parent=27 // pred_fallthru
              _
            // Predicated region
            $region33: #{expanded_cnn_forward.11} parent=27 // pred_check
              _
            $region34: #{expanded_cnn_forward.11} parent=27 // pred_check_branch
              %168 = sbr.rel target = $region36
            $region35: #{expanded_cnn_forward.11} parent=27 // pred_region
              %s170 = ssub.s32 256, 1
              loop: start=0, step=1, limit=1
              $region37: #{expanded_cnn_forward.11} parent=35 // loop_pre_header
                _
              $region38: #{expanded_cnn_forward.11} parent=35 // loop_header
                %s172 = sphi 0, %s176
                %p173 = scmp.ge.s32.totalorder %s172, 1
                %s177 = sphi %s162, %s162
                %s178 = sphi %s160, %s160
              $region39: #{expanded_cnn_forward.11} parent=35 // loop_header_branch
                %175 = sbr.rel (%p173) target = $region43
              $region40: #{expanded_cnn_forward.11} parent=35 // loop_body
                %v179 = vld [vmem:[%s177] sm:%s170]
                %180 = vst [vmem:[%s178] sm:%s170] %v179
                %v181 = vld [vmem:[%s177 + $0x10] sm:%s170]
                %182 = vst [vmem:[%s178 + $0x8] sm:%s170] %v181
                %v183 = vld [vmem:[%s177 + $0x20] sm:%s170]
                %184 = vst [vmem:[%s178 + $0x10] sm:%s170] %v183
                %v185 = vld [vmem:[%s177 + $0x30] sm:%s170]
                %186 = vst [vmem:[%s178 + $0x18] sm:%s170] %v185
                %v187 = vld [vmem:[%s177 + $0x40] sm:%s170]
                %188 = vst [vmem:[%s178 + $0x20] sm:%s170] %v187
                %v189 = vld [vmem:[%s177 + $0x50] sm:%s170]
                %190 = vst [vmem:[%s178 + $0x28] sm:%s170] %v189
                %v191 = vld [vmem:[%s177 + $0x60] sm:%s170]
                %192 = vst [vmem:[%s178 + $0x30] sm:%s170] %v191
                %v193 = vld [vmem:[%s177 + $0x70] sm:%s170]
                %194 = vst [vmem:[%s178 + $0x38] sm:%s170] %v193
                %v195 = vld [vmem:[%s177 + $0x80] sm:%s170]
                %196 = vst [vmem:[%s178 + $0x40] sm:%s170] %v195
                %v197 = vld [vmem:[%s177 + $0x90] sm:%s170]
                %198 = vst [vmem:[%s178 + $0x48] sm:%s170] %v197
                %v199 = vld [vmem:[%s177 + $0xa0] sm:%s170]
                %200 = vst [vmem:[%s178 + $0x50] sm:%s170] %v199
                %v201 = vld [vmem:[%s177 + $0xb0] sm:%s170]
                %202 = vst [vmem:[%s178 + $0x58] sm:%s170] %v201
                %v203 = vld [vmem:[%s177 + $0xc0] sm:%s170]
                %204 = vst [vmem:[%s178 + $0x60] sm:%s170] %v203
                %v205 = vld [vmem:[%s177 + $0xd0] sm:%s170]
                %206 = vst [vmem:[%s178 + $0x68] sm:%s170] %v205
                %v207 = vld [vmem:[%s177 + $0xe0] sm:%s170]
                %208 = vst [vmem:[%s178 + $0x70] sm:%s170] %v207
                %v209 = vld [vmem:[%s177 + $0xf0] sm:%s170]
                %210 = vst [vmem:[%s178 + $0x78] sm:%s170] %v209
                %v211 = vld [vmem:[%s177 + $0x100] sm:%s170]
                %212 = vst [vmem:[%s178 + $0x80] sm:%s170] %v211
                %v213 = vld [vmem:[%s177 + $0x110] sm:%s170]
                %214 = vst [vmem:[%s178 + $0x88] sm:%s170] %v213
                %v215 = vld [vmem:[%s177 + $0x120] sm:%s170]
                %216 = vst [vmem:[%s178 + $0x90] sm:%s170] %v215
                %v217 = vld [vmem:[%s177 + $0x130] sm:%s170]
                %218 = vst [vmem:[%s178 + $0x98] sm:%s170] %v217
                %v219 = vld [vmem:[%s177 + $0x140] sm:%s170]
                %220 = vst [vmem:[%s178 + $0xa0] sm:%s170] %v219
                %v221 = vld [vmem:[%s177 + $0x150] sm:%s170]
                %222 = vst [vmem:[%s178 + $0xa8] sm:%s170] %v221
                %v223 = vld [vmem:[%s177 + $0x160] sm:%s170]
                %224 = vst [vmem:[%s178 + $0xb0] sm:%s170] %v223
                %v225 = vld [vmem:[%s177 + $0x170] sm:%s170]
                %226 = vst [vmem:[%s178 + $0xb8] sm:%s170] %v225
                %v227 = vld [vmem:[%s177 + $0x180] sm:%s170]
                %228 = vst [vmem:[%s178 + $0xc0] sm:%s170] %v227
                %v229 = vld [vmem:[%s177 + $0x190] sm:%s170]
                %230 = vst [vmem:[%s178 + $0xc8] sm:%s170] %v229
                %v231 = vld [vmem:[%s177 + $0x1a0] sm:%s170]
                %232 = vst [vmem:[%s178 + $0xd0] sm:%s170] %v231
                %v233 = vld [vmem:[%s177 + $0x1b0] sm:%s170]
                %234 = vst [vmem:[%s178 + $0xd8] sm:%s170] %v233
                %v235 = vld [vmem:[%s177 + $0x1c0] sm:%s170]
                %236 = vst [vmem:[%s178 + $0xe0] sm:%s170] %v235
                %v237 = vld [vmem:[%s177 + $0x1d0] sm:%s170]
                %238 = vst [vmem:[%s178 + $0xe8] sm:%s170] %v237
                %v239 = vld [vmem:[%s177 + $0x1e0] sm:%s170]
                %240 = vst [vmem:[%s178 + $0xf0] sm:%s170] %v239
                %v241 = vld [vmem:[%s177 + $0x1f0] sm:%s170]
                %242 = vst [vmem:[%s178 + $0xf8] sm:%s170] %v241
                %v243 = vld [vmem:[%s177 + $0x200] sm:%s170]
                %244 = vst [vmem:[%s178 + $0x100] sm:%s170] %v243
                %v245 = vld [vmem:[%s177 + $0x210] sm:%s170]
                %246 = vst [vmem:[%s178 + $0x108] sm:%s170] %v245
                %v247 = vld [vmem:[%s177 + $0x220] sm:%s170]
                %248 = vst [vmem:[%s178 + $0x110] sm:%s170] %v247
                %v249 = vld [vmem:[%s177 + $0x230] sm:%s170]
                %250 = vst [vmem:[%s178 + $0x118] sm:%s170] %v249
                %v251 = vld [vmem:[%s177 + $0x240] sm:%s170]
                %252 = vst [vmem:[%s178 + $0x120] sm:%s170] %v251
                %v253 = vld [vmem:[%s177 + $0x250] sm:%s170]
                %254 = vst [vmem:[%s178 + $0x128] sm:%s170] %v253
                %v255 = vld [vmem:[%s177 + $0x260] sm:%s170]
                %256 = vst [vmem:[%s178 + $0x130] sm:%s170] %v255
                %v257 = vld [vmem:[%s177 + $0x270] sm:%s170]
                %258 = vst [vmem:[%s178 + $0x138] sm:%s170] %v257
                %v259 = vld [vmem:[%s177 + $0x280] sm:%s170]
                %260 = vst [vmem:[%s178 + $0x140] sm:%s170] %v259
                %v261 = vld [vmem:[%s177 + $0x290] sm:%s170]
                %262 = vst [vmem:[%s178 + $0x148] sm:%s170] %v261
                %v263 = vld [vmem:[%s177 + $0x2a0] sm:%s170]
                %264 = vst [vmem:[%s178 + $0x150] sm:%s170] %v263
                %v265 = vld [vmem:[%s177 + $0x2b0] sm:%s170]
                %266 = vst [vmem:[%s178 + $0x158] sm:%s170] %v265
                %v267 = vld [vmem:[%s177 + $0x2c0] sm:%s170]
                %268 = vst [vmem:[%s178 + $0x160] sm:%s170] %v267
                %v269 = vld [vmem:[%s177 + $0x2d0] sm:%s170]
                %270 = vst [vmem:[%s178 + $0x168] sm:%s170] %v269
                %v271 = vld [vmem:[%s177 + $0x2e0] sm:%s170]
                %272 = vst [vmem:[%s178 + $0x170] sm:%s170] %v271
                %v273 = vld [vmem:[%s177 + $0x2f0] sm:%s170]
                %274 = vst [vmem:[%s178 + $0x178] sm:%s170] %v273
                %v275 = vld [vmem:[%s177 + $0x300] sm:%s170]
                %276 = vst [vmem:[%s178 + $0x180] sm:%s170] %v275
                %v277 = vld [vmem:[%s177 + $0x310] sm:%s170]
                %278 = vst [vmem:[%s178 + $0x188] sm:%s170] %v277
                %v279 = vld [vmem:[%s177 + $0x320] sm:%s170]
                %280 = vst [vmem:[%s178 + $0x190] sm:%s170] %v279
                %v281 = vld [vmem:[%s177 + $0x330] sm:%s170]
                %282 = vst [vmem:[%s178 + $0x198] sm:%s170] %v281
                %v283 = vld [vmem:[%s177 + $0x340] sm:%s170]
                %284 = vst [vmem:[%s178 + $0x1a0] sm:%s170] %v283
                %v285 = vld [vmem:[%s177 + $0x350] sm:%s170]
                %286 = vst [vmem:[%s178 + $0x1a8] sm:%s170] %v285
                %v287 = vld [vmem:[%s177 + $0x360] sm:%s170]
                %288 = vst [vmem:[%s178 + $0x1b0] sm:%s170] %v287
                %v289 = vld [vmem:[%s177 + $0x370] sm:%s170]
                %290 = vst [vmem:[%s178 + $0x1b8] sm:%s170] %v289
                %v291 = vld [vmem:[%s177 + $0x380] sm:%s170]
                %292 = vst [vmem:[%s178 + $0x1c0] sm:%s170] %v291
                %v293 = vld [vmem:[%s177 + $0x390] sm:%s170]
                %294 = vst [vmem:[%s178 + $0x1c8] sm:%s170] %v293
                %v295 = vld [vmem:[%s177 + $0x3a0] sm:%s170]
                %296 = vst [vmem:[%s178 + $0x1d0] sm:%s170] %v295
                %v297 = vld [vmem:[%s177 + $0x3b0] sm:%s170]
                %298 = vst [vmem:[%s178 + $0x1d8] sm:%s170] %v297
                %v299 = vld [vmem:[%s177 + $0x3c0] sm:%s170]
                %300 = vst [vmem:[%s178 + $0x1e0] sm:%s170] %v299
                %v301 = vld [vmem:[%s177 + $0x3d0] sm:%s170]
                %302 = vst [vmem:[%s178 + $0x1e8] sm:%s170] %v301
                %v303 = vld [vmem:[%s177 + $0x3e0] sm:%s170]
                %304 = vst [vmem:[%s178 + $0x1f0] sm:%s170] %v303
                %v305 = vld [vmem:[%s177 + $0x3f0] sm:%s170]
                %306 = vst [vmem:[%s178 + $0x1f8] sm:%s170] %v305
                %v307 = vld [vmem:[%s177 + $0x400] sm:%s170]
                %308 = vst [vmem:[%s178 + $0x200] sm:%s170] %v307
                %v309 = vld [vmem:[%s177 + $0x410] sm:%s170]
                %310 = vst [vmem:[%s178 + $0x208] sm:%s170] %v309
                %v311 = vld [vmem:[%s177 + $0x420] sm:%s170]
                %312 = vst [vmem:[%s178 + $0x210] sm:%s170] %v311
                %v313 = vld [vmem:[%s177 + $0x430] sm:%s170]
                %314 = vst [vmem:[%s178 + $0x218] sm:%s170] %v313
                %v315 = vld [vmem:[%s177 + $0x440] sm:%s170]
                %316 = vst [vmem:[%s178 + $0x220] sm:%s170] %v315
                %v317 = vld [vmem:[%s177 + $0x450] sm:%s170]
                %318 = vst [vmem:[%s178 + $0x228] sm:%s170] %v317
                %v319 = vld [vmem:[%s177 + $0x460] sm:%s170]
                %320 = vst [vmem:[%s178 + $0x230] sm:%s170] %v319
                %v321 = vld [vmem:[%s177 + $0x470] sm:%s170]
                %322 = vst [vmem:[%s178 + $0x238] sm:%s170] %v321
                %v323 = vld [vmem:[%s177 + $0x480] sm:%s170]
                %324 = vst [vmem:[%s178 + $0x240] sm:%s170] %v323
                %v325 = vld [vmem:[%s177 + $0x490] sm:%s170]
                %326 = vst [vmem:[%s178 + $0x248] sm:%s170] %v325
                %v327 = vld [vmem:[%s177 + $0x4a0] sm:%s170]
                %328 = vst [vmem:[%s178 + $0x250] sm:%s170] %v327
                %v329 = vld [vmem:[%s177 + $0x4b0] sm:%s170]
                %330 = vst [vmem:[%s178 + $0x258] sm:%s170] %v329
                %v331 = vld [vmem:[%s177 + $0x4c0] sm:%s170]
                %332 = vst [vmem:[%s178 + $0x260] sm:%s170] %v331
                %v333 = vld [vmem:[%s177 + $0x4d0] sm:%s170]
                %334 = vst [vmem:[%s178 + $0x268] sm:%s170] %v333
                %v335 = vld [vmem:[%s177 + $0x4e0] sm:%s170]
                %336 = vst [vmem:[%s178 + $0x270] sm:%s170] %v335
                %v337 = vld [vmem:[%s177 + $0x4f0] sm:%s170]
                %338 = vst [vmem:[%s178 + $0x278] sm:%s170] %v337
                %v339 = vld [vmem:[%s177 + $0x500] sm:%s170]
                %340 = vst [vmem:[%s178 + $0x280] sm:%s170] %v339
                %v341 = vld [vmem:[%s177 + $0x510] sm:%s170]
                %342 = vst [vmem:[%s178 + $0x288] sm:%s170] %v341
                %v343 = vld [vmem:[%s177 + $0x520] sm:%s170]
                %344 = vst [vmem:[%s178 + $0x290] sm:%s170] %v343
                %v345 = vld [vmem:[%s177 + $0x530] sm:%s170]
                %346 = vst [vmem:[%s178 + $0x298] sm:%s170] %v345
                %v347 = vld [vmem:[%s177 + $0x540] sm:%s170]
                %348 = vst [vmem:[%s178 + $0x2a0] sm:%s170] %v347
                %v349 = vld [vmem:[%s177 + $0x550] sm:%s170]
                %350 = vst [vmem:[%s178 + $0x2a8] sm:%s170] %v349
                %v351 = vld [vmem:[%s177 + $0x560] sm:%s170]
                %352 = vst [vmem:[%s178 + $0x2b0] sm:%s170] %v351
                %v353 = vld [vmem:[%s177 + $0x570] sm:%s170]
                %354 = vst [vmem:[%s178 + $0x2b8] sm:%s170] %v353
                %v355 = vld [vmem:[%s177 + $0x580] sm:%s170]
                %356 = vst [vmem:[%s178 + $0x2c0] sm:%s170] %v355
                %v357 = vld [vmem:[%s177 + $0x590] sm:%s170]
                %358 = vst [vmem:[%s178 + $0x2c8] sm:%s170] %v357
                %v359 = vld [vmem:[%s177 + $0x5a0] sm:%s170]
                %360 = vst [vmem:[%s178 + $0x2d0] sm:%s170] %v359
                %v361 = vld [vmem:[%s177 + $0x5b0] sm:%s170]
                %362 = vst [vmem:[%s178 + $0x2d8] sm:%s170] %v361
                %v363 = vld [vmem:[%s177 + $0x5c0] sm:%s170]
                %364 = vst [vmem:[%s178 + $0x2e0] sm:%s170] %v363
                %v365 = vld [vmem:[%s177 + $0x5d0] sm:%s170]
                %366 = vst [vmem:[%s178 + $0x2e8] sm:%s170] %v365
                %v367 = vld [vmem:[%s177 + $0x5e0] sm:%s170]
                %368 = vst [vmem:[%s178 + $0x2f0] sm:%s170] %v367
                %v369 = vld [vmem:[%s177 + $0x5f0] sm:%s170]
                %370 = vst [vmem:[%s178 + $0x2f8] sm:%s170] %v369
                %v371 = vld [vmem:[%s177 + $0x600] sm:%s170]
                %372 = vst [vmem:[%s178 + $0x300] sm:%s170] %v371
                %v373 = vld [vmem:[%s177 + $0x610] sm:%s170]
                %374 = vst [vmem:[%s178 + $0x308] sm:%s170] %v373
                %v375 = vld [vmem:[%s177 + $0x620] sm:%s170]
                %376 = vst [vmem:[%s178 + $0x310] sm:%s170] %v375
                %v377 = vld [vmem:[%s177 + $0x630] sm:%s170]
                %378 = vst [vmem:[%s178 + $0x318] sm:%s170] %v377
                %v379 = vld [vmem:[%s177 + $0x640] sm:%s170]
                %380 = vst [vmem:[%s178 + $0x320] sm:%s170] %v379
                %v381 = vld [vmem:[%s177 + $0x650] sm:%s170]
                %382 = vst [vmem:[%s178 + $0x328] sm:%s170] %v381
                %v383 = vld [vmem:[%s177 + $0x660] sm:%s170]
                %384 = vst [vmem:[%s178 + $0x330] sm:%s170] %v383
                %v385 = vld [vmem:[%s177 + $0x670] sm:%s170]
                %386 = vst [vmem:[%s178 + $0x338] sm:%s170] %v385
                %v387 = vld [vmem:[%s177 + $0x680] sm:%s170]
                %388 = vst [vmem:[%s178 + $0x340] sm:%s170] %v387
                %v389 = vld [vmem:[%s177 + $0x690] sm:%s170]
                %390 = vst [vmem:[%s178 + $0x348] sm:%s170] %v389
                %v391 = vld [vmem:[%s177 + $0x6a0] sm:%s170]
                %392 = vst [vmem:[%s178 + $0x350] sm:%s170] %v391
                %v393 = vld [vmem:[%s177 + $0x6b0] sm:%s170]
                %394 = vst [vmem:[%s178 + $0x358] sm:%s170] %v393
                %v395 = vld [vmem:[%s177 + $0x6c0] sm:%s170]
                %396 = vst [vmem:[%s178 + $0x360] sm:%s170] %v395
                %v397 = vld [vmem:[%s177 + $0x6d0] sm:%s170]
                %398 = vst [vmem:[%s178 + $0x368] sm:%s170] %v397
                %v399 = vld [vmem:[%s177 + $0x6e0] sm:%s170]
                %400 = vst [vmem:[%s178 + $0x370] sm:%s170] %v399
                %v401 = vld [vmem:[%s177 + $0x6f0] sm:%s170]
                %402 = vst [vmem:[%s178 + $0x378] sm:%s170] %v401
                %v403 = vld [vmem:[%s177 + $0x700] sm:%s170]
                %404 = vst [vmem:[%s178 + $0x380] sm:%s170] %v403
                %v405 = vld [vmem:[%s177 + $0x710] sm:%s170]
                %406 = vst [vmem:[%s178 + $0x388] sm:%s170] %v405
                %v407 = vld [vmem:[%s177 + $0x720] sm:%s170]
                %408 = vst [vmem:[%s178 + $0x390] sm:%s170] %v407
                %v409 = vld [vmem:[%s177 + $0x730] sm:%s170]
                %410 = vst [vmem:[%s178 + $0x398] sm:%s170] %v409
                %v411 = vld [vmem:[%s177 + $0x740] sm:%s170]
                %412 = vst [vmem:[%s178 + $0x3a0] sm:%s170] %v411
                %v413 = vld [vmem:[%s177 + $0x750] sm:%s170]
                %414 = vst [vmem:[%s178 + $0x3a8] sm:%s170] %v413
                %v415 = vld [vmem:[%s177 + $0x760] sm:%s170]
                %416 = vst [vmem:[%s178 + $0x3b0] sm:%s170] %v415
                %v417 = vld [vmem:[%s177 + $0x770] sm:%s170]
                %418 = vst [vmem:[%s178 + $0x3b8] sm:%s170] %v417
                %v419 = vld [vmem:[%s177 + $0x780] sm:%s170]
                %420 = vst [vmem:[%s178 + $0x3c0] sm:%s170] %v419
                %v421 = vld [vmem:[%s177 + $0x790] sm:%s170]
                %422 = vst [vmem:[%s178 + $0x3c8] sm:%s170] %v421
                %v423 = vld [vmem:[%s177 + $0x7a0] sm:%s170]
                %424 = vst [vmem:[%s178 + $0x3d0] sm:%s170] %v423
                %v425 = vld [vmem:[%s177 + $0x7b0] sm:%s170]
                %426 = vst [vmem:[%s178 + $0x3d8] sm:%s170] %v425
                %v427 = vld [vmem:[%s177 + $0x7c0] sm:%s170]
                %428 = vst [vmem:[%s178 + $0x3e0] sm:%s170] %v427
                %v429 = vld [vmem:[%s177 + $0x7d0] sm:%s170]
                %430 = vst [vmem:[%s178 + $0x3e8] sm:%s170] %v429
                %v431 = vld [vmem:[%s177 + $0x7e0] sm:%s170]
                %432 = vst [vmem:[%s178 + $0x3f0] sm:%s170] %v431
                %v433 = vld [vmem:[%s177 + $0x7f0] sm:%s170]
                %434 = vst [vmem:[%s178 + $0x3f8] sm:%s170] %v433
              $region41: #{expanded_cnn_forward.11} parent=35 // loop_footer
                %s176 = sadd.s32 1, %s172
              $region42: #{expanded_cnn_forward.11} parent=35 // loop_footer_branch
                %171 = sbr.rel target = $region38
              $region43: #{expanded_cnn_forward.11} parent=35 // loop_exit
                _
            $region36: #{expanded_cnn_forward.11} parent=27 // pred_fallthru
              _
          $region28: #{expanded_cnn_forward.11} parent=23 // pred_fallthru
            _
          %703 = vnop
        $region24: #{expanded_cnn_forward.11} parent=19 // pred_fallthru
          _
        // Predicated region
        $region59: #{expanded_cnn_forward.11} parent=19 // pred_check
          %p704 = pneg %p93
        $region60: #{expanded_cnn_forward.11} parent=19 // pred_check_branch
          %706 = sbr.rel (%p704) target = $region62
        $region61: #{expanded_cnn_forward.11} parent=19 // pred_region
          %p707 = scmp.lt.s32.totalorder %s17, 1
          %s708 = scalar_select %p707, %s17, 1
          %s709 = scalar_lea.vmem %s2, %s708
        $region62: #{expanded_cnn_forward.11} parent=19 // pred_fallthru
          _
      $region20: #{expanded_cnn_forward.11} parent=5 // pred_fallthru
        _
      %p710 = scmp.le.s32.totalorder 1, %s9
      %p711 = scmp.lt.s32.totalorder %s9, 3
      %p712 = pnand %p710, %p711
      %p713 = pneg %p712
      // Predicated region
      $region63: #{expanded_cnn_forward.11} parent=5 // pred_check
        _
      $region64: #{expanded_cnn_forward.11} parent=5 // pred_check_branch
        %715 = sbr.rel (%p712) target = $region66
      $region65: #{expanded_cnn_forward.11} parent=5 // pred_region
        %s716 = ssub.s32 %s9, 1
        %s717 = sand.u32 %s60, 1
        %s718 = sand.u32 %s60, 1
        %s719 = smul.addr %s718, 1024
        %s720 = scalar_lea.vmem [#allocation2], %s719
        // Predicated region
        $region67: #{expanded_cnn_forward.11} parent=65 // pred_check
          %p721 = pneg %p73
        $region68: #{expanded_cnn_forward.11} parent=65 // pred_check_branch
          %723 = sbr.rel (%p721) target = $region70
        $region69: #{expanded_cnn_forward.11} parent=65 // pred_region
          _
        $region70: #{expanded_cnn_forward.11} parent=65 // pred_fallthru
          _
        %p724 = scmp.lt.s32.totalorder %s18, 0
        %s725 = scalar_select %p724, %s18, 0
        %s726 = smul.addr %s725, 8
        %s727 = smul.addr %s726, 8
        %s728 = scalar_lea.vmem %s0, %s727
        %p729 = pneg %p47
        %p730 = pneg %p44
        %s731 = sand.u32 %s60, 1
        %s732 = sand.u32 %s60, 1
        %s733 = smul.addr %s732, 1024
        %s734 = scalar_lea.vmem [#allocation2], %s733
        %p735 = pneg %p73
        %p736 = pneg %p70
        %p737 = scmp.lt.s32.totalorder %s19, 1
        %s738 = scalar_select %p737, %s19, 1
        %s739 = scalar_lea.vmem %s2, %s738
        %p740 = pneg %p99
        %p741 = pneg %p96
        %p742 = pneg %p127
        %p743 = pneg %p124
        %p744 = scmp.lt.s32.totalorder %s18, 0
        %s745 = scalar_select %p744, %s18, 0
        %p746 = scmp.lt.s32.totalorder %s19, 1
        %s747 = scalar_select %p746, %s19, 1
        %s748 = smul.addr %s745, 2
        %s749 = sadd.s32 %s747, %s748
        %s750 = smul.addr %s749, 8
        %s751 = scalar_lea.vmem %s3, %s750
        %p752 = scmp.lt.s32.totalorder %s18, 0
        %s753 = scalar_select %p752, %s18, 0
        %s754 = smul.addr %s753, 8
        %s755 = smul.addr %s754, 8
        %s756 = scalar_lea.vmem %s0, %s755
        %p757 = scmp.lt.s32.totalorder %s19, 1
        %s758 = scalar_select %p757, %s19, 1
        %s759 = scalar_lea.vmem %s2, %s758
        %p760 = scmp.lt.s32.totalorder %s18, 0
        %s761 = scalar_select %p760, %s18, 0
        %p762 = scmp.lt.s32.totalorder %s19, 1
        %s763 = scalar_select %p762, %s19, 1
        %s764 = smul.addr %s761, 2
        %s765 = sadd.s32 %s763, %s764
        %s766 = smul.addr %s765, 8
        %s767 = scalar_lea.vmem %s3, %s766
        %v768 = vld [vmem:[%s756] sm:$0xff]
        %v769 = vld [vmem:[%s756 + $0x8] sm:$0xff]
        %v770 = vld [vmem:[%s756 + $0x10] sm:$0xff]
        %v771 = vld [vmem:[%s756 + $0x18] sm:$0xff]
        %v772 = vld [vmem:[%s756 + $0x20] sm:$0xff]
        %v773 = vld [vmem:[%s756 + $0x28] sm:$0xff]
        %v774 = vld [vmem:[%s756 + $0x30] sm:$0xff]
        %v775 = vld [vmem:[%s756 + $0x38] sm:$0xff]
        %v776 = vld [vmem:[%s720] sm:$0xff]
        %v777 = vld [vmem:[%s720 + $0x8] sm:$0xff]
        %v778 = vld [vmem:[%s720 + $0x10] sm:$0xff]
        %v779 = vld [vmem:[%s720 + $0x18] sm:$0xff]
        %v780 = vld [vmem:[%s720 + $0x20] sm:$0xff]
        %v781 = vld [vmem:[%s720 + $0x28] sm:$0xff]
        %v782 = vld [vmem:[%s720 + $0x30] sm:$0xff]
        %v783 = vld [vmem:[%s720 + $0x38] sm:$0xff]
        %v784 = vld [vmem:[%s720 + $0x40] sm:$0xff]
        %v785 = vld [vmem:[%s720 + $0x48] sm:$0xff]
        %v786 = vld [vmem:[%s720 + $0x50] sm:$0xff]
        %v787 = vld [vmem:[%s720 + $0x58] sm:$0xff]
        %v788 = vld [vmem:[%s720 + $0x60] sm:$0xff]
        %v789 = vld [vmem:[%s720 + $0x68] sm:$0xff]
        %v790 = vld [vmem:[%s720 + $0x70] sm:$0xff]
        %v791 = vld [vmem:[%s720 + $0x78] sm:$0xff]
        %v792 = vld [vmem:[%s720 + $0x80] sm:$0xff]
        %v793 = vld [vmem:[%s720 + $0x88] sm:$0xff]
        %v794 = vld [vmem:[%s720 + $0x90] sm:$0xff]
        %v795 = vld [vmem:[%s720 + $0x98] sm:$0xff]
        %v796 = vld [vmem:[%s720 + $0xa0] sm:$0xff]
        %v797 = vld [vmem:[%s720 + $0xa8] sm:$0xff]
        %v798 = vld [vmem:[%s720 + $0xb0] sm:$0xff]
        %v799 = vld [vmem:[%s720 + $0xb8] sm:$0xff]
        %v800 = vld [vmem:[%s720 + $0xc0] sm:$0xff]
        %v801 = vld [vmem:[%s720 + $0xc8] sm:$0xff]
        %v802 = vld [vmem:[%s720 + $0xd0] sm:$0xff]
        %v803 = vld [vmem:[%s720 + $0xd8] sm:$0xff]
        %v804 = vld [vmem:[%s720 + $0xe0] sm:$0xff]
        %v805 = vld [vmem:[%s720 + $0xe8] sm:$0xff]
        %v806 = vld [vmem:[%s720 + $0xf0] sm:$0xff]
        %v807 = vld [vmem:[%s720 + $0xf8] sm:$0xff]
        %v808 = vld [vmem:[%s720 + $0x100] sm:$0xff]
        %v809 = vld [vmem:[%s720 + $0x108] sm:$0xff]
        %v810 = vld [vmem:[%s720 + $0x110] sm:$0xff]
        %v811 = vld [vmem:[%s720 + $0x118] sm:$0xff]
        %v812 = vld [vmem:[%s720 + $0x120] sm:$0xff]
        %v813 = vld [vmem:[%s720 + $0x128] sm:$0xff]
        %v814 = vld [vmem:[%s720 + $0x130] sm:$0xff]
        %v815 = vld [vmem:[%s720 + $0x138] sm:$0xff]
        %v816 = vld [vmem:[%s720 + $0x140] sm:$0xff]
        %v817 = vld [vmem:[%s720 + $0x148] sm:$0xff]
        %v818 = vld [vmem:[%s720 + $0x150] sm:$0xff]
        %v819 = vld [vmem:[%s720 + $0x158] sm:$0xff]
        %v820 = vld [vmem:[%s720 + $0x160] sm:$0xff]
        %v821 = vld [vmem:[%s720 + $0x168] sm:$0xff]
        %v822 = vld [vmem:[%s720 + $0x170] sm:$0xff]
        %v823 = vld [vmem:[%s720 + $0x178] sm:$0xff]
        %v824 = vld [vmem:[%s720 + $0x180] sm:$0xff]
        %v825 = vld [vmem:[%s720 + $0x188] sm:$0xff]
        %v826 = vld [vmem:[%s720 + $0x190] sm:$0xff]
        %v827 = vld [vmem:[%s720 + $0x198] sm:$0xff]
        %v828 = vld [vmem:[%s720 + $0x1a0] sm:$0xff]
        %v829 = vld [vmem:[%s720 + $0x1a8] sm:$0xff]
        %v830 = vld [vmem:[%s720 + $0x1b0] sm:$0xff]
        %v831 = vld [vmem:[%s720 + $0x1b8] sm:$0xff]
        %v832 = vld [vmem:[%s720 + $0x1c0] sm:$0xff]
        %v833 = vld [vmem:[%s720 + $0x1c8] sm:$0xff]
        %v834 = vld [vmem:[%s720 + $0x1d0] sm:$0xff]
        %v835 = vld [vmem:[%s720 + $0x1d8] sm:$0xff]
        %v836 = vld [vmem:[%s720 + $0x1e0] sm:$0xff]
        %v837 = vld [vmem:[%s720 + $0x1e8] sm:$0xff]
        %v838 = vld [vmem:[%s720 + $0x1f0] sm:$0xff]
        %v839 = vld [vmem:[%s720 + $0x1f8] sm:$0xff]
        %v840 = vld [vmem:[%s720 + $0x200] sm:$0xff]
        %v841 = vld [vmem:[%s720 + $0x208] sm:$0xff]
        %v842 = vld [vmem:[%s720 + $0x210] sm:$0xff]
        %v843 = vld [vmem:[%s720 + $0x218] sm:$0xff]
        %v844 = vld [vmem:[%s720 + $0x220] sm:$0xff]
        %v845 = vld [vmem:[%s720 + $0x228] sm:$0xff]
        %v846 = vld [vmem:[%s720 + $0x230] sm:$0xff]
        %v847 = vld [vmem:[%s720 + $0x238] sm:$0xff]
        %v848 = vld [vmem:[%s720 + $0x240] sm:$0xff]
        %v849 = vld [vmem:[%s720 + $0x248] sm:$0xff]
        %v850 = vld [vmem:[%s720 + $0x250] sm:$0xff]
        %v851 = vld [vmem:[%s720 + $0x258] sm:$0xff]
        %v852 = vld [vmem:[%s720 + $0x260] sm:$0xff]
        %v853 = vld [vmem:[%s720 + $0x268] sm:$0xff]
        %v854 = vld [vmem:[%s720 + $0x270] sm:$0xff]
        %v855 = vld [vmem:[%s720 + $0x278] sm:$0xff]
        %v856 = vld [vmem:[%s720 + $0x280] sm:$0xff]
        %v857 = vld [vmem:[%s720 + $0x288] sm:$0xff]
        %v858 = vld [vmem:[%s720 + $0x290] sm:$0xff]
        %v859 = vld [vmem:[%s720 + $0x298] sm:$0xff]
        %v860 = vld [vmem:[%s720 + $0x2a0] sm:$0xff]
        %v861 = vld [vmem:[%s720 + $0x2a8] sm:$0xff]
        %v862 = vld [vmem:[%s720 + $0x2b0] sm:$0xff]
        %v863 = vld [vmem:[%s720 + $0x2b8] sm:$0xff]
        %v864 = vld [vmem:[%s720 + $0x2c0] sm:$0xff]
        %v865 = vld [vmem:[%s720 + $0x2c8] sm:$0xff]
        %v866 = vld [vmem:[%s720 + $0x2d0] sm:$0xff]
        %v867 = vld [vmem:[%s720 + $0x2d8] sm:$0xff]
        %v868 = vld [vmem:[%s720 + $0x2e0] sm:$0xff]
        %v869 = vld [vmem:[%s720 + $0x2e8] sm:$0xff]
        %v870 = vld [vmem:[%s720 + $0x2f0] sm:$0xff]
        %v871 = vld [vmem:[%s720 + $0x2f8] sm:$0xff]
        %v872 = vld [vmem:[%s720 + $0x300] sm:$0xff]
        %v873 = vld [vmem:[%s720 + $0x308] sm:$0xff]
        %v874 = vld [vmem:[%s720 + $0x310] sm:$0xff]
        %v875 = vld [vmem:[%s720 + $0x318] sm:$0xff]
        %v876 = vld [vmem:[%s720 + $0x320] sm:$0xff]
        %v877 = vld [vmem:[%s720 + $0x328] sm:$0xff]
        %v878 = vld [vmem:[%s720 + $0x330] sm:$0xff]
        %v879 = vld [vmem:[%s720 + $0x338] sm:$0xff]
        %v880 = vld [vmem:[%s720 + $0x340] sm:$0xff]
        %v881 = vld [vmem:[%s720 + $0x348] sm:$0xff]
        %v882 = vld [vmem:[%s720 + $0x350] sm:$0xff]
        %v883 = vld [vmem:[%s720 + $0x358] sm:$0xff]
        %v884 = vld [vmem:[%s720 + $0x360] sm:$0xff]
        %v885 = vld [vmem:[%s720 + $0x368] sm:$0xff]
        %v886 = vld [vmem:[%s720 + $0x370] sm:$0xff]
        %v887 = vld [vmem:[%s720 + $0x378] sm:$0xff]
        %v888 = vld [vmem:[%s720 + $0x380] sm:$0xff]
        %v889 = vld [vmem:[%s720 + $0x388] sm:$0xff]
        %v890 = vld [vmem:[%s720 + $0x390] sm:$0xff]
        %v891 = vld [vmem:[%s720 + $0x398] sm:$0xff]
        %v892 = vld [vmem:[%s720 + $0x3a0] sm:$0xff]
        %v893 = vld [vmem:[%s720 + $0x3a8] sm:$0xff]
        %v894 = vld [vmem:[%s720 + $0x3b0] sm:$0xff]
        %v895 = vld [vmem:[%s720 + $0x3b8] sm:$0xff]
        %v896 = vld [vmem:[%s720 + $0x3c0] sm:$0xff]
        %v897 = vld [vmem:[%s720 + $0x3c8] sm:$0xff]
        %v898 = vld [vmem:[%s720 + $0x3d0] sm:$0xff]
        %v899 = vld [vmem:[%s720 + $0x3d8] sm:$0xff]
        %v900 = vld [vmem:[%s720 + $0x3e0] sm:$0xff]
        %v901 = vld [vmem:[%s720 + $0x3e8] sm:$0xff]
        %v902 = vld [vmem:[%s720 + $0x3f0] sm:$0xff]
        %v903 = vld [vmem:[%s720 + $0x3f8] sm:$0xff]
        %v904 = vld [vmem:[%s759] sm:$0x1]
        %v906 = vlaneseq
        %v907 = vshrl.u32 %v906, 7
        %v908 = vsub.s32 0, %v907
        %v909 = vrot.slane %v904, %v908
        %911 = vmatprep.subr.mxu0 0.0
        %912 = vmatpush1.msra.mxu0 %v791
        %913 = vmatprep.subr.mxu0 0.0
        %914 = vmatpush1.msra.mxu0 %v790
        %915 = vmatprep.subr.mxu0 0.0
        %916 = vmatpush1.msra.mxu0 %v789
        %917 = vmatprep.subr.mxu0 0.0
        %918 = vmatpush1.msra.mxu0 %v788
        %919 = vmatprep.subr.mxu0 0.0
        %920 = vmatpush1.msra.mxu0 %v787
        %921 = vmatprep.subr.mxu0 0.0
        %922 = vmatpush1.msra.mxu0 %v786
        %923 = vmatprep.subr.mxu0 0.0
        %924 = vmatpush1.msra.mxu0 %v785
        %925 = vmatprep.subr.mxu0 0.0
        %926 = vmatpush1.msra.mxu0 %v784
        %927 = vmatprep.subr.mxu0 0.0
        %928 = vmatpush1.msra.mxu0 %v783
        %929 = vmatprep.subr.mxu0 0.0
        %930 = vmatpush1.msra.mxu0 %v782
        %931 = vmatprep.subr.mxu0 0.0
        %932 = vmatpush1.msra.mxu0 %v781
        %933 = vmatprep.subr.mxu0 0.0
        %934 = vmatpush1.msra.mxu0 %v780
        %935 = vmatprep.subr.mxu0 0.0
        %936 = vmatpush1.msra.mxu0 %v779
        %937 = vmatprep.subr.mxu0 0.0
        %938 = vmatpush1.msra.mxu0 %v778
        %939 = vmatprep.subr.mxu0 0.0
        %940 = vmatpush1.msra.mxu0 %v777
        %941 = vmatprep.subr.mxu0 0.0
        %942 = vmatpush1.msra.mxu0 %v776
        %943 = vmatprep.subr.mxu0 0.0
        %944 = vmatpush2.msra.mxu0 %v807
        %945 = vmatprep.subr.mxu0 0.0
        %946 = vmatpush2.msra.mxu0 %v806
        %947 = vmatprep.subr.mxu0 0.0
        %948 = vmatpush2.msra.mxu0 %v805
        %949 = vmatprep.subr.mxu0 0.0
        %950 = vmatpush2.msra.mxu0 %v804
        %951 = vmatprep.subr.mxu0 0.0
        %952 = vmatpush2.msra.mxu0 %v803
        %953 = vmatprep.subr.mxu0 0.0
        %954 = vmatpush2.msra.mxu0 %v802
        %955 = vmatprep.subr.mxu0 0.0
        %956 = vmatpush2.msra.mxu0 %v801
        %957 = vmatprep.subr.mxu0 0.0
        %958 = vmatpush2.msra.mxu0 %v800
        %959 = vmatprep.subr.mxu0 0.0
        %960 = vmatpush2.msra.mxu0 %v799
        %961 = vmatprep.subr.mxu0 0.0
        %962 = vmatpush2.msra.mxu0 %v798
        %963 = vmatprep.subr.mxu0 0.0
        %964 = vmatpush2.msra.mxu0 %v797
        %965 = vmatprep.subr.mxu0 0.0
        %966 = vmatpush2.msra.mxu0 %v796
        %967 = vmatprep.subr.mxu0 0.0
        %968 = vmatpush2.msra.mxu0 %v795
        %969 = vmatprep.subr.mxu0 0.0
        %970 = vmatpush2.msra.mxu0 %v794
        %971 = vmatprep.subr.mxu0 0.0
        %972 = vmatpush2.msra.mxu0 %v793
        %973 = vmatprep.subr.mxu0 0.0
        %974 = vmatpush2.msra.mxu0 %v792
        %975 = vmatprep.mubr.f32.mxu0 %v769
        %976 = vmatmul.mubr.f32.gmra.mxu0 %v768
        %v977 = vpop.f32.mrf.mxu0
        %v978 = vadd.f32 %v909, %v977
        %v979 = vpop.f32.mrf.mxu0
        %980 = vdwg.mxu0
        %981 = vmatprep.subr.mxu0 0.0
        %982 = vmatpush1.msra.mxu0 %v823
        %983 = vmatprep.subr.mxu0 0.0
        %984 = vmatpush1.msra.mxu0 %v822
        %985 = vmatprep.subr.mxu0 0.0
        %986 = vmatpush1.msra.mxu0 %v821
        %987 = vmatprep.subr.mxu0 0.0
        %988 = vmatpush1.msra.mxu0 %v820
        %989 = vmatprep.subr.mxu0 0.0
        %990 = vmatpush1.msra.mxu0 %v819
        %991 = vmatprep.subr.mxu0 0.0
        %992 = vmatpush1.msra.mxu0 %v818
        %993 = vmatprep.subr.mxu0 0.0
        %994 = vmatpush1.msra.mxu0 %v817
        %995 = vmatprep.subr.mxu0 0.0
        %996 = vmatpush1.msra.mxu0 %v816
        %997 = vmatprep.subr.mxu0 0.0
        %998 = vmatpush1.msra.mxu0 %v815
        %999 = vmatprep.subr.mxu0 0.0
        %1000 = vmatpush1.msra.mxu0 %v814
        %1001 = vmatprep.subr.mxu0 0.0
        %1002 = vmatpush1.msra.mxu0 %v813
        %1003 = vmatprep.subr.mxu0 0.0
        %1004 = vmatpush1.msra.mxu0 %v812
        %1005 = vmatprep.subr.mxu0 0.0
        %1006 = vmatpush1.msra.mxu0 %v811
        %1007 = vmatprep.subr.mxu0 0.0
        %1008 = vmatpush1.msra.mxu0 %v810
        %1009 = vmatprep.subr.mxu0 0.0
        %1010 = vmatpush1.msra.mxu0 %v809
        %1011 = vmatprep.subr.mxu0 0.0
        %1012 = vmatpush1.msra.mxu0 %v808
        %1013 = vmatprep.subr.mxu0 0.0
        %1014 = vmatpush2.msra.mxu0 %v839
        %1015 = vmatprep.subr.mxu0 0.0
        %1016 = vmatpush2.msra.mxu0 %v838
        %1017 = vmatprep.subr.mxu0 0.0
        %1018 = vmatpush2.msra.mxu0 %v837
        %1019 = vmatprep.subr.mxu0 0.0
        %1020 = vmatpush2.msra.mxu0 %v836
        %1021 = vmatprep.subr.mxu0 0.0
        %1022 = vmatpush2.msra.mxu0 %v835
        %1023 = vmatprep.subr.mxu0 0.0
        %1024 = vmatpush2.msra.mxu0 %v834
        %1025 = vmatprep.subr.mxu0 0.0
        %1026 = vmatpush2.msra.mxu0 %v833
        %1027 = vmatprep.subr.mxu0 0.0
        %1028 = vmatpush2.msra.mxu0 %v832
        %1029 = vmatprep.subr.mxu0 0.0
        %1030 = vmatpush2.msra.mxu0 %v831
        %1031 = vmatprep.subr.mxu0 0.0
        %1032 = vmatpush2.msra.mxu0 %v830
        %1033 = vmatprep.subr.mxu0 0.0
        %1034 = vmatpush2.msra.mxu0 %v829
        %1035 = vmatprep.subr.mxu0 0.0
        %1036 = vmatpush2.msra.mxu0 %v828
        %1037 = vmatprep.subr.mxu0 0.0
        %1038 = vmatpush2.msra.mxu0 %v827
        %1039 = vmatprep.subr.mxu0 0.0
        %1040 = vmatpush2.msra.mxu0 %v826
        %1041 = vmatprep.subr.mxu0 0.0
        %1042 = vmatpush2.msra.mxu0 %v825
        %1043 = vmatprep.subr.mxu0 0.0
        %1044 = vmatpush2.msra.mxu0 %v824
        %1045 = vmatprep.mubr.f32.mxu0 %v771
        %1046 = vmatmul.mubr.f32.gmra.mxu0 %v770
        %v1047 = vpop.f32.mrf.mxu0
        %v1048 = vadd.f32 %v978, %v1047
        %v1049 = vpop.f32.mrf.mxu0
        %1050 = vdwg.mxu0
        %1051 = vmatprep.subr.mxu0 0.0
        %1052 = vmatpush1.msra.mxu0 %v855
        %1053 = vmatprep.subr.mxu0 0.0
        %1054 = vmatpush1.msra.mxu0 %v854
        %1055 = vmatprep.subr.mxu0 0.0
        %1056 = vmatpush1.msra.mxu0 %v853
        %1057 = vmatprep.subr.mxu0 0.0
        %1058 = vmatpush1.msra.mxu0 %v852
        %1059 = vmatprep.subr.mxu0 0.0
        %1060 = vmatpush1.msra.mxu0 %v851
        %1061 = vmatprep.subr.mxu0 0.0
        %1062 = vmatpush1.msra.mxu0 %v850
        %1063 = vmatprep.subr.mxu0 0.0
        %1064 = vmatpush1.msra.mxu0 %v849
        %1065 = vmatprep.subr.mxu0 0.0
        %1066 = vmatpush1.msra.mxu0 %v848
        %1067 = vmatprep.subr.mxu0 0.0
        %1068 = vmatpush1.msra.mxu0 %v847
        %1069 = vmatprep.subr.mxu0 0.0
        %1070 = vmatpush1.msra.mxu0 %v846
        %1071 = vmatprep.subr.mxu0 0.0
        %1072 = vmatpush1.msra.mxu0 %v845
        %1073 = vmatprep.subr.mxu0 0.0
        %1074 = vmatpush1.msra.mxu0 %v844
        %1075 = vmatprep.subr.mxu0 0.0
        %1076 = vmatpush1.msra.mxu0 %v843
        %1077 = vmatprep.subr.mxu0 0.0
        %1078 = vmatpush1.msra.mxu0 %v842
        %1079 = vmatprep.subr.mxu0 0.0
        %1080 = vmatpush1.msra.mxu0 %v841
        %1081 = vmatprep.subr.mxu0 0.0
        %1082 = vmatpush1.msra.mxu0 %v840
        %1083 = vmatprep.subr.mxu0 0.0
        %1084 = vmatpush2.msra.mxu0 %v871
        %1085 = vmatprep.subr.mxu0 0.0
        %1086 = vmatpush2.msra.mxu0 %v870
        %1087 = vmatprep.subr.mxu0 0.0
        %1088 = vmatpush2.msra.mxu0 %v869
        %1089 = vmatprep.subr.mxu0 0.0
        %1090 = vmatpush2.msra.mxu0 %v868
        %1091 = vmatprep.subr.mxu0 0.0
        %1092 = vmatpush2.msra.mxu0 %v867
        %1093 = vmatprep.subr.mxu0 0.0
        %1094 = vmatpush2.msra.mxu0 %v866
        %1095 = vmatprep.subr.mxu0 0.0
        %1096 = vmatpush2.msra.mxu0 %v865
        %1097 = vmatprep.subr.mxu0 0.0
        %1098 = vmatpush2.msra.mxu0 %v864
        %1099 = vmatprep.subr.mxu0 0.0
        %1100 = vmatpush2.msra.mxu0 %v863
        %1101 = vmatprep.subr.mxu0 0.0
        %1102 = vmatpush2.msra.mxu0 %v862
        %1103 = vmatprep.subr.mxu0 0.0
        %1104 = vmatpush2.msra.mxu0 %v861
        %1105 = vmatprep.subr.mxu0 0.0
        %1106 = vmatpush2.msra.mxu0 %v860
        %1107 = vmatprep.subr.mxu0 0.0
        %1108 = vmatpush2.msra.mxu0 %v859
        %1109 = vmatprep.subr.mxu0 0.0
        %1110 = vmatpush2.msra.mxu0 %v858
        %1111 = vmatprep.subr.mxu0 0.0
        %1112 = vmatpush2.msra.mxu0 %v857
        %1113 = vmatprep.subr.mxu0 0.0
        %1114 = vmatpush2.msra.mxu0 %v856
        %1115 = vmatprep.mubr.f32.mxu0 %v773
        %1116 = vmatmul.mubr.f32.gmra.mxu0 %v772
        %v1117 = vpop.f32.mrf.mxu0
        %v1118 = vadd.f32 %v1048, %v1117
        %v1119 = vpop.f32.mrf.mxu0
        %1120 = vdwg.mxu0
        %1121 = vmatprep.subr.mxu0 0.0
        %1122 = vmatpush1.msra.mxu0 %v887
        %1123 = vmatprep.subr.mxu0 0.0
        %1124 = vmatpush1.msra.mxu0 %v886
        %1125 = vmatprep.subr.mxu0 0.0
        %1126 = vmatpush1.msra.mxu0 %v885
        %1127 = vmatprep.subr.mxu0 0.0
        %1128 = vmatpush1.msra.mxu0 %v884
        %1129 = vmatprep.subr.mxu0 0.0
        %1130 = vmatpush1.msra.mxu0 %v883
        %1131 = vmatprep.subr.mxu0 0.0
        %1132 = vmatpush1.msra.mxu0 %v882
        %1133 = vmatprep.subr.mxu0 0.0
        %1134 = vmatpush1.msra.mxu0 %v881
        %1135 = vmatprep.subr.mxu0 0.0
        %1136 = vmatpush1.msra.mxu0 %v880
        %1137 = vmatprep.subr.mxu0 0.0
        %1138 = vmatpush1.msra.mxu0 %v879
        %1139 = vmatprep.subr.mxu0 0.0
        %1140 = vmatpush1.msra.mxu0 %v878
        %1141 = vmatprep.subr.mxu0 0.0
        %1142 = vmatpush1.msra.mxu0 %v877
        %1143 = vmatprep.subr.mxu0 0.0
        %1144 = vmatpush1.msra.mxu0 %v876
        %1145 = vmatprep.subr.mxu0 0.0
        %1146 = vmatpush1.msra.mxu0 %v875
        %1147 = vmatprep.subr.mxu0 0.0
        %1148 = vmatpush1.msra.mxu0 %v874
        %1149 = vmatprep.subr.mxu0 0.0
        %1150 = vmatpush1.msra.mxu0 %v873
        %1151 = vmatprep.subr.mxu0 0.0
        %1152 = vmatpush1.msra.mxu0 %v872
        %1153 = vmatprep.subr.mxu0 0.0
        %1154 = vmatpush2.msra.mxu0 %v903
        %1155 = vmatprep.subr.mxu0 0.0
        %1156 = vmatpush2.msra.mxu0 %v902
        %1157 = vmatprep.subr.mxu0 0.0
        %1158 = vmatpush2.msra.mxu0 %v901
        %1159 = vmatprep.subr.mxu0 0.0
        %1160 = vmatpush2.msra.mxu0 %v900
        %1161 = vmatprep.subr.mxu0 0.0
        %1162 = vmatpush2.msra.mxu0 %v899
        %1163 = vmatprep.subr.mxu0 0.0
        %1164 = vmatpush2.msra.mxu0 %v898
        %1165 = vmatprep.subr.mxu0 0.0
        %1166 = vmatpush2.msra.mxu0 %v897
        %1167 = vmatprep.subr.mxu0 0.0
        %1168 = vmatpush2.msra.mxu0 %v896
        %1169 = vmatprep.subr.mxu0 0.0
        %1170 = vmatpush2.msra.mxu0 %v895
        %1171 = vmatprep.subr.mxu0 0.0
        %1172 = vmatpush2.msra.mxu0 %v894
        %1173 = vmatprep.subr.mxu0 0.0
        %1174 = vmatpush2.msra.mxu0 %v893
        %1175 = vmatprep.subr.mxu0 0.0
        %1176 = vmatpush2.msra.mxu0 %v892
        %1177 = vmatprep.subr.mxu0 0.0
        %1178 = vmatpush2.msra.mxu0 %v891
        %1179 = vmatprep.subr.mxu0 0.0
        %1180 = vmatpush2.msra.mxu0 %v890
        %1181 = vmatprep.subr.mxu0 0.0
        %1182 = vmatpush2.msra.mxu0 %v889
        %1183 = vmatprep.subr.mxu0 0.0
        %1184 = vmatpush2.msra.mxu0 %v888
        %1185 = vmatprep.mubr.f32.mxu0 %v775
        %1186 = vmatmul.mubr.f32.gmra.mxu0 %v774
        %v1187 = vpop.f32.mrf.mxu0
        %v1188 = vadd.f32 %v1118, %v1187
        %v1189 = vpop.f32.mrf.mxu0
        %1190 = vdwg.mxu0
        %v1191 = vmax.f32 %v1188, 0.0
        %1192 = vst [vmem:[%s767] sm:$0xff] %v1191
        %p1193 = scmp.lt.s32.totalorder %s18, 0
        %s1194 = scalar_select %p1193, %s18, 0
        %p1195 = scmp.lt.s32.totalorder %s19, 1
        %s1196 = scalar_select %p1195, %s19, 1
        %s1197 = smul.addr %s1194, 2
        %s1198 = sadd.s32 %s1196, %s1197
        %s1199 = smul.addr %s1198, 8
        %s1200 = scalar_lea.vmem %s3, %s1199
        // Predicated region
        $region71: #{expanded_cnn_forward.11} parent=65 // pred_check
          %p1201 = pneg %p124
        $region72: #{expanded_cnn_forward.11} parent=65 // pred_check_branch
          %1203 = sbr.rel (%p1201) target = $region74
        $region73: #{expanded_cnn_forward.11} parent=65 // pred_region
          _
        $region74: #{expanded_cnn_forward.11} parent=65 // pred_fallthru
          _
      $region66: #{expanded_cnn_forward.11} parent=5 // pred_fallthru
        _
      %p1204 = scmp.le.s32.totalorder 2, %s9
      // Predicated region
      $region75: #{expanded_cnn_forward.11} parent=5 // pred_check
        %p1205 = pneg %p1204
      $region76: #{expanded_cnn_forward.11} parent=5 // pred_check_branch
        %1207 = sbr.rel (%p1205) target = $region78
      $region77: #{expanded_cnn_forward.11} parent=5 // pred_region
        %s1208 = ssub.s32 %s9, 2
        // Predicated region
        $region79: #{expanded_cnn_forward.11} parent=77 // pred_check
          %p1209 = pneg %p130
        $region80: #{expanded_cnn_forward.11} parent=77 // pred_check_branch
          %1211 = sbr.rel (%p1209) target = $region82
        $region81: #{expanded_cnn_forward.11} parent=77 // pred_region
          %p1212 = scmp.lt.s32.totalorder %s20, 0
          %s1213 = scalar_select %p1212, %s20, 0
          %p1214 = scmp.lt.s32.totalorder %s21, 1
          %s1215 = scalar_select %p1214, %s21, 1
          %s1216 = smul.addr %s1213, 2
          %s1217 = sadd.s32 %s1215, %s1216
          %s1218 = smul.addr %s1217, 8
          %s1219 = scalar_lea.vmem %s3, %s1218
        $region82: #{expanded_cnn_forward.11} parent=77 // pred_fallthru
          _
      $region78: #{expanded_cnn_forward.11} parent=5 // pred_fallthru
        _
    $region6: #{expanded_cnn_forward.11} parent=1 // loop_footer
      %s13 = sadd.s32 1, %s9
    $region7: #{expanded_cnn_forward.11} parent=1 // loop_footer_branch
      %8 = sbr.rel target = $region3
    $region8: #{expanded_cnn_forward.11} parent=1 // loop_exit
      _

// kernel: expanded_cnn_forward.10
$region0: #{expanded_cnn_forward.10}
  #allocation0 [shape = 'u32[]', space=smem, size = 0x4, offset = 0x4, fixed_abs, tag = 'smem constant byte address 0x4 - core index']
  #allocation1 [shape = 'u32[144,128]{1,0:T(1,128)}', space=vmem, size = 0x12000, scoped, tag = 'internal scratch']
  #allocation2 [shape = 'f32[8,512]{1,0:T(8,128)}', space=vmem, size = 0x4000, scoped, tag = 'scratch operand']
  %s0 = inlined_call_operand.vmem [shape: f32[8,25088], index: 0, kind: input, shape index: {}]
  %s1 = inlined_call_operand.hbm [shape: f32[25088,1024], index: 1, kind: input, shape index: {}]
  %s2 = inlined_call_operand.vmem [shape: f32[1,1024], index: 2, kind: input, shape index: {}]
  %s3 = inlined_call_operand.vmem [shape: f32[8,1024], index: 3, kind: output, shape index: {}]
  %s4 = sld [smem:[#allocation0]]
  $region57: #{expanded_cnn_forward.10} parent=0
    _
  %s6 = ssub.s32 1, %s4
  %s7 = scalar_select 0, %s6, %s4
  $region1: #{expanded_cnn_forward.10} parent=0
    #allocation3 [shape = 'u8[7340032]{0}', space=vmem, size = 0x700000, scoped, tag = 'input window, operand 1']
    #allocation4 [shape = 's32[2]{0}', space=sflag, size = 0x8, scoped, tag = 'scoped memory for expanded_cnn_forward.10']
    %8 = vsyncpa [#allocation4], 0
    %s9 = scalar_lea.sflag [#allocation4], 1
    %10 = vsyncpa %s9, 0
    loop: start=0, step=1, limit=30
    $region2: #{expanded_cnn_forward.10} parent=1 // loop_pre_header
      _
    $region3: #{expanded_cnn_forward.10} parent=1 // loop_header
      %s12 = sphi 0, %s16
      %p13 = scmp.ge.s32.totalorder %s12, 30
      %s19 = sphi 0, %s38
      %s20 = sphi 0, %s34
      %s21 = sphi 0, %s30
      %s22 = sphi 0, %s19
      %s23 = sphi 0, %s20
      %s24 = sphi 0, %s21
      %s25 = sphi 0, %s22
      %s26 = sphi 0, %s23
      %s27 = sphi 0, %s24
      %s43 = sphi 0, %s45
      %s46 = sphi 0, %s43
      %s47 = sphi 0, %s46
      %s63 = sphi 0, %s47
      %s71 = sphi 0, %s73
      %s74 = sphi 0, %s71
      %s75 = sphi 0, %s74
      %s91 = sphi 0, %s75
      %s97 = sphi 0, %s99
      %s100 = sphi 0, %s97
      %s101 = sphi 0, %s100
      %s117 = sphi 0, %s101
      %s125 = sphi 0, %s127
      %s128 = sphi 0, %s125
      %s129 = sphi 0, %s128
      %s145 = sphi 0, %s129
    $region4: #{expanded_cnn_forward.10} parent=1 // loop_header_branch
      %15 = sbr.rel (%p13) target = $region8
    $region5: #{expanded_cnn_forward.10} parent=1 // loop_body
      %s17 = ssub.s32 %s12, 1
      %s18 = ssub.s32 %s12, 2
      %s28 = sadd.s32 1, %s21
      %p29 = scmp.ge.s32.totalorder %s28, 14
      %s30 = scalar_select %p29, 0, %s28
      %s31 = sadd.s32 1, %s20
      %s32 = scalar_select %p29, %s31, %s20
      %p33 = scmp.ge.s32.totalorder %s32, 2
      %s34 = scalar_select %p33, 0, %s32
      %s35 = sadd.s32 1, %s19
      %s36 = scalar_select %p33, %s35, %s19
      %p37 = scmp.ge.s32.totalorder %s36, 1
      %s38 = scalar_select %p37, 0, %s36
      %s39 = ssub.s32 %s19, %s38
      %s40 = ssub.s32 %s21, %s30
      %s41 = sor.u32 %s39, %s40
      %p42 = scmp.eq.s32.totalorder %s41, 0
      %s44 = sadd.s32 %s43, 1
      %s45 = scalar_select %p42, %s43, %s44
      %p48 = pneg %p42
      %p49 = scmp.eq.s32.totalorder %s12, 27
      %p50 = por %p48, %p49
      %p51 = scmp.ne.s32.totalorder %s43, %s46
      %p52 = scmp.eq.s32.totalorder %s12, 0
      %p53 = por %p51, %p52
      %p54 = scmp.ne.s32.totalorder %s43, %s46
      %p55 = scmp.eq.s32.totalorder %s17, 27
      %p56 = por %p54, %p55
      %p57 = scmp.ne.s32.totalorder %s46, %s47
      %p58 = scmp.eq.s32.totalorder %s17, 0
      %p59 = por %p57, %p58
      %p60 = scmp.ne.s32.totalorder %s46, %s47
      %p61 = scmp.eq.s32.totalorder %s18, 27
      %p62 = por %p60, %p61
      %p64 = scmp.ne.s32.totalorder %s47, %s63
      %p65 = scmp.eq.s32.totalorder %s18, 0
      %p66 = por %p64, %p65
      %s67 = ssub.s32 %s21, %s30
      %s68 = ssub.s32 %s20, %s34
      %s69 = sor.u32 %s67, %s68
      %p70 = scmp.eq.s32.totalorder %s69, 0
      %s72 = sadd.s32 %s71, 1
      %s73 = scalar_select %p70, %s71, %s72
      %p76 = pneg %p70
      %p77 = scmp.eq.s32.totalorder %s12, 27
      %p78 = por %p76, %p77
      %p79 = scmp.ne.s32.totalorder %s71, %s74
      %p80 = scmp.eq.s32.totalorder %s12, 0
      %p81 = por %p79, %p80
      %p82 = scmp.ne.s32.totalorder %s71, %s74
      %p83 = scmp.eq.s32.totalorder %s17, 27
      %p84 = por %p82, %p83
      %p85 = scmp.ne.s32.totalorder %s74, %s75
      %p86 = scmp.eq.s32.totalorder %s17, 0
      %p87 = por %p85, %p86
      %p88 = scmp.ne.s32.totalorder %s74, %s75
      %p89 = scmp.eq.s32.totalorder %s18, 27
      %p90 = por %p88, %p89
      %p92 = scmp.ne.s32.totalorder %s75, %s91
      %p93 = scmp.eq.s32.totalorder %s18, 0
      %p94 = por %p92, %p93
      %s95 = ssub.s32 %s20, %s34
      %p96 = scmp.eq.s32.totalorder %s95, 0
      %s98 = sadd.s32 %s97, 1
      %s99 = scalar_select %p96, %s97, %s98
      %p102 = pneg %p96
      %p103 = scmp.eq.s32.totalorder %s12, 27
      %p104 = por %p102, %p103
      %p105 = scmp.ne.s32.totalorder %s97, %s100
      %p106 = scmp.eq.s32.totalorder %s12, 0
      %p107 = por %p105, %p106
      %p108 = scmp.ne.s32.totalorder %s97, %s100
      %p109 = scmp.eq.s32.totalorder %s17, 27
      %p110 = por %p108, %p109
      %p111 = scmp.ne.s32.totalorder %s100, %s101
      %p112 = scmp.eq.s32.totalorder %s17, 0
      %p113 = por %p111, %p112
      %p114 = scmp.ne.s32.totalorder %s100, %s101
      %p115 = scmp.eq.s32.totalorder %s18, 27
      %p116 = por %p114, %p115
      %p118 = scmp.ne.s32.totalorder %s101, %s117
      %p119 = scmp.eq.s32.totalorder %s18, 0
      %p120 = por %p118, %p119
      %s121 = ssub.s32 %s19, %s38
      %s122 = ssub.s32 %s20, %s34
      %s123 = sor.u32 %s121, %s122
      %p124 = scmp.eq.s32.totalorder %s123, 0
      %s126 = sadd.s32 %s125, 1
      %s127 = scalar_select %p124, %s125, %s126
      %p130 = pneg %p124
      %p131 = scmp.eq.s32.totalorder %s12, 27
      %p132 = por %p130, %p131
      %p133 = scmp.ne.s32.totalorder %s125, %s128
      %p134 = scmp.eq.s32.totalorder %s12, 0
      %p135 = por %p133, %p134
      %p136 = scmp.ne.s32.totalorder %s125, %s128
      %p137 = scmp.eq.s32.totalorder %s17, 27
      %p138 = por %p136, %p137
      %p139 = scmp.ne.s32.totalorder %s128, %s129
      %p140 = scmp.eq.s32.totalorder %s17, 0
      %p141 = por %p139, %p140
      %p142 = scmp.ne.s32.totalorder %s128, %s129
      %p143 = scmp.eq.s32.totalorder %s18, 27
      %p144 = por %p142, %p143
      %p146 = scmp.ne.s32.totalorder %s129, %s145
      %p147 = scmp.eq.s32.totalorder %s18, 0
      %p148 = por %p146, %p147
      %p149 = scmp.le.s32.totalorder 1, %s12
      %p150 = scmp.lt.s32.totalorder %s12, 29
      %p151 = pnand %p149, %p150
      %p152 = pneg %p151
      // Predicated region
      $region9: #{expanded_cnn_forward.10} parent=5 // pred_check
        _
      $region10: #{expanded_cnn_forward.10} parent=5 // pred_check_branch
        %154 = sbr.rel (%p151) target = $region12
      $region11: #{expanded_cnn_forward.10} parent=5 // pred_region
        %s155 = ssub.s32 %s12, 1
      $region12: #{expanded_cnn_forward.10} parent=5 // pred_fallthru
        _
      %p156 = scmp.lt.s32.totalorder %s12, 28
      // Predicated region
      $region13: #{expanded_cnn_forward.10} parent=5 // pred_check
        %p157 = pneg %p156
      $region14: #{expanded_cnn_forward.10} parent=5 // pred_check_branch
        %159 = sbr.rel (%p157) target = $region16
      $region15: #{expanded_cnn_forward.10} parent=5 // pred_region
        // Predicated region
        $region17: #{expanded_cnn_forward.10} parent=15 // pred_check
          %p160 = pneg %p53
        $region18: #{expanded_cnn_forward.10} parent=15 // pred_check_branch
          %162 = sbr.rel (%p160) target = $region20
        $region19: #{expanded_cnn_forward.10} parent=15 // pred_region
          %s163 = smul.u32 14, %s21
          %p164 = scmp.lt.s32.totalorder %s19, 0
          %s165 = scalar_select %p164, %s19, 0
          %p166 = scmp.lt.s32.totalorder %s163, 195
          %s167 = scalar_select %p166, %s163, 195
          %s168 = smul.addr %s165, 196
          %s169 = sadd.s32 %s167, %s168
          %s170 = smul.addr %s169, 8
          %s171 = scalar_lea.vmem %s0, %s170
          %s172 = smul.u32 14, %s21
        $region20: #{expanded_cnn_forward.10} parent=15 // pred_fallthru
          _
        // Predicated region
        $region21: #{expanded_cnn_forward.10} parent=15 // pred_check
          %p173 = pneg %p81
        $region22: #{expanded_cnn_forward.10} parent=15 // pred_check_branch
          %175 = sbr.rel (%p173) target = $region24
        $region23: #{expanded_cnn_forward.10} parent=15 // pred_region
          %s176 = sand.u32 %s71, 1
          %s177 = scalar_lea.sflag [#allocation4], %s176
          %s178 = sand.u32 %s71, 1
          %s179 = smul.addr %s178, 7168
          %s180 = scalar_lea.vmem [#allocation3], %s179
          %s181 = smul.u32 224, %s21
          %s182 = smul.u32 4, %s20
          %s184 = ssub.s32 114688, 114688
          %185 = vsyncadd %s177, %s184
          %s186 = smul.addr %s181, 8
          %s187 = sadd.s32 %s182, %s186
          %s188 = smul.addr %s187, 128
          %s189 = scalar_lea.hbm %s1, %s188
          %s190 = sshll.u32 %s180, 4
          %s191 = int_to_ptr.vmem [resolvable:$true] %s190
          %196 = dma.hbm_to_vmem [thread:$0]  %s189, 114688, %s191, %s177, 1024, 512, 32
        $region24: #{expanded_cnn_forward.10} parent=15 // pred_fallthru
          _
        // Predicated region
        $region25: #{expanded_cnn_forward.10} parent=15 // pred_check
          %p197 = pneg %p107
        $region26: #{expanded_cnn_forward.10} parent=15 // pred_check_branch
          %199 = sbr.rel (%p197) target = $region28
        $region27: #{expanded_cnn_forward.10} parent=15 // pred_region
          %s200 = smul.u32 4, %s20
          %p201 = scmp.lt.s32.totalorder %s200, 7
          %s202 = scalar_select %p201, %s200, 7
          %s203 = scalar_lea.vmem %s2, %s202
          %s204 = smul.u32 4, %s20
        $region28: #{expanded_cnn_forward.10} parent=15 // pred_fallthru
          _
      $region16: #{expanded_cnn_forward.10} parent=5 // pred_fallthru
        _
      %p205 = scmp.le.s32.totalorder 1, %s12
      %p206 = scmp.lt.s32.totalorder %s12, 29
      %p207 = pnand %p205, %p206
      %p208 = pneg %p207
      // Predicated region
      $region29: #{expanded_cnn_forward.10} parent=5 // pred_check
        _
      $region30: #{expanded_cnn_forward.10} parent=5 // pred_check_branch
        %210 = sbr.rel (%p207) target = $region32
      $region31: #{expanded_cnn_forward.10} parent=5 // pred_region
        %s211 = ssub.s32 %s12, 1
        %s212 = sand.u32 %s74, 1
        %s213 = scalar_lea.sflag [#allocation4], %s212
        %s214 = sand.u32 %s74, 1
        %s215 = smul.addr %s214, 7168
        %s216 = scalar_lea.vmem [#allocation3], %s215
        // Predicated region
        $region33: #{expanded_cnn_forward.10} parent=31 // pred_check
          %p217 = pneg %p87
        $region34: #{expanded_cnn_forward.10} parent=31 // pred_check_branch
          %219 = sbr.rel (%p217) target = $region36
        $region35: #{expanded_cnn_forward.10} parent=31 // pred_region
          %220 = dma.done %s213, 114688
        $region36: #{expanded_cnn_forward.10} parent=31 // pred_fallthru
          _
        %s221 = smul.u32 14, %s24
        %p222 = scmp.lt.s32.totalorder %s22, 0
        %s223 = scalar_select %p222, %s22, 0
        %p224 = scmp.lt.s32.totalorder %s221, 195
        %s225 = scalar_select %p224, %s221, 195
        %s226 = smul.addr %s223, 196
        %s227 = sadd.s32 %s225, %s226
        %s228 = smul.addr %s227, 8
        %s229 = scalar_lea.vmem %s0, %s228
        %p230 = pneg %p59
        %p231 = pneg %p56
        %s232 = sand.u32 %s74, 1
        %s233 = scalar_lea.sflag [#allocation4], %s232
        %s234 = sand.u32 %s74, 1
        %s235 = smul.addr %s234, 7168
        %s236 = scalar_lea.vmem [#allocation3], %s235
        %p237 = pneg %p87
        %p238 = pneg %p84
        %s239 = smul.u32 4, %s23
        %p240 = scmp.lt.s32.totalorder %s239, 7
        %s241 = scalar_select %p240, %s239, 7
        %s242 = scalar_lea.vmem %s2, %s241
        %p243 = pneg %p113
        %p244 = pneg %p110
        %p245 = pneg %p141
        %p246 = pneg %p138
        %s247 = smul.u32 4, %s23
        %p248 = scmp.lt.s32.totalorder %s22, 0
        %s249 = scalar_select %p248, %s22, 0
        %p250 = scmp.lt.s32.totalorder %s247, 7
        %s251 = scalar_select %p250, %s247, 7
        %s252 = smul.addr %s249, 8
        %s253 = sadd.s32 %s251, %s252
        %s254 = smul.addr %s253, 8
        %s255 = scalar_lea.vmem %s3, %s254
        %s256 = smul.u32 14, %s24
        %p257 = scmp.lt.s32.totalorder %s22, 0
        %s258 = scalar_select %p257, %s22, 0
        %p259 = scmp.lt.s32.totalorder %s256, 195
        %s260 = scalar_select %p259, %s256, 195
        %s261 = smul.addr %s258, 196
        %s262 = sadd.s32 %s260, %s261
        %s263 = smul.addr %s262, 8
        %s264 = scalar_lea.vmem %s0, %s263
        %s265 = smul.u32 14, %s24
        %s266 = smul.u32 224, %s24
        %s267 = smul.u32 4, %s23
        %s268 = smul.u32 4, %s23
        %p269 = scmp.lt.s32.totalorder %s268, 7
        %s270 = scalar_select %p269, %s268, 7
        %s271 = scalar_lea.vmem %s2, %s270
        %s272 = smul.u32 4, %s23
        %s273 = smul.u32 4, %s23
        %p274 = scmp.lt.s32.totalorder %s22, 0
        %s275 = scalar_select %p274, %s22, 0
        %p276 = scmp.lt.s32.totalorder %s273, 7
        %s277 = scalar_select %p276, %s273, 7
        %s278 = smul.addr %s275, 8
        %s279 = sadd.s32 %s277, %s278
        %s280 = smul.addr %s279, 8
        %s281 = scalar_lea.vmem %s3, %s280
        %s282 = smul.u32 4, %s23
        %p283 = scmp.eq.s32.totalorder %s24, 0
        // Predicated region
        $region37: #{expanded_cnn_forward.10} parent=31 // pred_check
          %p284 = pneg %p283
        $region38: #{expanded_cnn_forward.10} parent=31 // pred_check_branch
          %286 = sbr.rel (%p284) target = $region40
        $region39: #{expanded_cnn_forward.10} parent=31 // pred_region
          %287 = vst [vmem:[#allocation2] sm:$0xff] 0.0
          %288 = vst [vmem:[#allocation2 + $0x8] sm:$0xff] 0.0
          %289 = vst [vmem:[#allocation2 + $0x10] sm:$0xff] 0.0
          %290 = vst [vmem:[#allocation2 + $0x18] sm:$0xff] 0.0
        $region40: #{expanded_cnn_forward.10} parent=31 // pred_fallthru
          _
        %v291 = vld [vmem:[#allocation2] sm:$0xff]
        %v292 = vld [vmem:[#allocation2 + $0x8] sm:$0xff]
        %v293 = vld [vmem:[#allocation2 + $0x10] sm:$0xff]
        %v294 = vld [vmem:[#allocation2 + $0x18] sm:$0xff]
        %v295 = vld [vmem:[%s264] sm:$0xff]
        %v296 = vld [vmem:[%s264 + $0x8] sm:$0xff]
        %v297 = vld [vmem:[%s264 + $0x10] sm:$0xff]
        %v298 = vld [vmem:[%s264 + $0x18] sm:$0xff]
        %v299 = vld [vmem:[%s264 + $0x20] sm:$0xff]
        %v300 = vld [vmem:[%s264 + $0x28] sm:$0xff]
        %v301 = vld [vmem:[%s264 + $0x30] sm:$0xff]
        %v302 = vld [vmem:[%s264 + $0x38] sm:$0xff]
        %v303 = vld [vmem:[%s264 + $0x40] sm:$0xff]
        %v304 = vld [vmem:[%s264 + $0x48] sm:$0xff]
        %v305 = vld [vmem:[%s264 + $0x50] sm:$0xff]
        %v306 = vld [vmem:[%s264 + $0x58] sm:$0xff]
        %v307 = vld [vmem:[%s264 + $0x60] sm:$0xff]
        %v308 = vld [vmem:[%s264 + $0x68] sm:$0xff]
        %v309 = vld [vmem:[%s216] sm:$0xff]
        %v310 = vld [vmem:[%s216 + $0x8] sm:$0xff]
        %v311 = vld [vmem:[%s216 + $0x10] sm:$0xff]
        %v312 = vld [vmem:[%s216 + $0x18] sm:$0xff]
        %v313 = vld [vmem:[%s216 + $0x20] sm:$0xff]
        %v314 = vld [vmem:[%s216 + $0x28] sm:$0xff]
        %v315 = vld [vmem:[%s216 + $0x30] sm:$0xff]
        %v316 = vld [vmem:[%s216 + $0x38] sm:$0xff]
        %v317 = vld [vmem:[%s216 + $0x40] sm:$0xff]
        %v318 = vld [vmem:[%s216 + $0x48] sm:$0xff]
        %v319 = vld [vmem:[%s216 + $0x50] sm:$0xff]
        %v320 = vld [vmem:[%s216 + $0x58] sm:$0xff]
        %v321 = vld [vmem:[%s216 + $0x60] sm:$0xff]
        %v322 = vld [vmem:[%s216 + $0x68] sm:$0xff]
        %v323 = vld [vmem:[%s216 + $0x70] sm:$0xff]
        %v324 = vld [vmem:[%s216 + $0x78] sm:$0xff]
        %v325 = vld [vmem:[%s216 + $0x80] sm:$0xff]
        %v326 = vld [vmem:[%s216 + $0x88] sm:$0xff]
        %v327 = vld [vmem:[%s216 + $0x90] sm:$0xff]
        %v328 = vld [vmem:[%s216 + $0x98] sm:$0xff]
        %v329 = vld [vmem:[%s216 + $0xa0] sm:$0xff]
        %v330 = vld [vmem:[%s216 + $0xa8] sm:$0xff]
        %v331 = vld [vmem:[%s216 + $0xb0] sm:$0xff]
        %v332 = vld [vmem:[%s216 + $0xb8] sm:$0xff]
        %v333 = vld [vmem:[%s216 + $0xc0] sm:$0xff]
        %v334 = vld [vmem:[%s216 + $0xc8] sm:$0xff]
        %v335 = vld [vmem:[%s216 + $0xd0] sm:$0xff]
        %v336 = vld [vmem:[%s216 + $0xd8] sm:$0xff]
        %v337 = vld [vmem:[%s216 + $0xe0] sm:$0xff]
        %v338 = vld [vmem:[%s216 + $0xe8] sm:$0xff]
        %v339 = vld [vmem:[%s216 + $0xf0] sm:$0xff]
        %v340 = vld [vmem:[%s216 + $0xf8] sm:$0xff]
        %v341 = vld [vmem:[%s216 + $0x100] sm:$0xff]
        %v342 = vld [vmem:[%s216 + $0x108] sm:$0xff]
        %v343 = vld [vmem:[%s216 + $0x110] sm:$0xff]
        %v344 = vld [vmem:[%s216 + $0x118] sm:$0xff]
        %v345 = vld [vmem:[%s216 + $0x120] sm:$0xff]
        %v346 = vld [vmem:[%s216 + $0x128] sm:$0xff]
        %v347 = vld [vmem:[%s216 + $0x130] sm:$0xff]
        %v348 = vld [vmem:[%s216 + $0x138] sm:$0xff]
        %v349 = vld [vmem:[%s216 + $0x140] sm:$0xff]
        %v350 = vld [vmem:[%s216 + $0x148] sm:$0xff]
        %v351 = vld [vmem:[%s216 + $0x150] sm:$0xff]
        %v352 = vld [vmem:[%s216 + $0x158] sm:$0xff]
        %v353 = vld [vmem:[%s216 + $0x160] sm:$0xff]
        %v354 = vld [vmem:[%s216 + $0x168] sm:$0xff]
        %v355 = vld [vmem:[%s216 + $0x170] sm:$0xff]
        %v356 = vld [vmem:[%s216 + $0x178] sm:$0xff]
        %v357 = vld [vmem:[%s216 + $0x180] sm:$0xff]
        %v358 = vld [vmem:[%s216 + $0x188] sm:$0xff]
        %v359 = vld [vmem:[%s216 + $0x190] sm:$0xff]
        %v360 = vld [vmem:[%s216 + $0x198] sm:$0xff]
        %v361 = vld [vmem:[%s216 + $0x1a0] sm:$0xff]
        %v362 = vld [vmem:[%s216 + $0x1a8] sm:$0xff]
        %v363 = vld [vmem:[%s216 + $0x1b0] sm:$0xff]
        %v364 = vld [vmem:[%s216 + $0x1b8] sm:$0xff]
        %v365 = vld [vmem:[%s216 + $0x1c0] sm:$0xff]
        %v366 = vld [vmem:[%s216 + $0x1c8] sm:$0xff]
        %v367 = vld [vmem:[%s216 + $0x1d0] sm:$0xff]
        %v368 = vld [vmem:[%s216 + $0x1d8] sm:$0xff]
        %v369 = vld [vmem:[%s216 + $0x1e0] sm:$0xff]
        %v370 = vld [vmem:[%s216 + $0x1e8] sm:$0xff]
        %v371 = vld [vmem:[%s216 + $0x1f0] sm:$0xff]
        %v372 = vld [vmem:[%s216 + $0x1f8] sm:$0xff]
        %v373 = vld [vmem:[%s216 + $0x200] sm:$0xff]
        %v374 = vld [vmem:[%s216 + $0x208] sm:$0xff]
        %v375 = vld [vmem:[%s216 + $0x210] sm:$0xff]
        %v376 = vld [vmem:[%s216 + $0x218] sm:$0xff]
        %v377 = vld [vmem:[%s216 + $0x220] sm:$0xff]
        %v378 = vld [vmem:[%s216 + $0x228] sm:$0xff]
        %v379 = vld [vmem:[%s216 + $0x230] sm:$0xff]
        %v380 = vld [vmem:[%s216 + $0x238] sm:$0xff]
        %v381 = vld [vmem:[%s216 + $0x240] sm:$0xff]
        %v382 = vld [vmem:[%s216 + $0x248] sm:$0xff]
        %v383 = vld [vmem:[%s216 + $0x250] sm:$0xff]
        %v384 = vld [vmem:[%s216 + $0x258] sm:$0xff]
        %v385 = vld [vmem:[%s216 + $0x260] sm:$0xff]
        %v386 = vld [vmem:[%s216 + $0x268] sm:$0xff]
        %v387 = vld [vmem:[%s216 + $0x270] sm:$0xff]
        %v388 = vld [vmem:[%s216 + $0x278] sm:$0xff]
        %v389 = vld [vmem:[%s216 + $0x280] sm:$0xff]
        %v390 = vld [vmem:[%s216 + $0x288] sm:$0xff]
        %v391 = vld [vmem:[%s216 + $0x290] sm:$0xff]
        %v392 = vld [vmem:[%s216 + $0x298] sm:$0xff]
        %v393 = vld [vmem:[%s216 + $0x2a0] sm:$0xff]
        %v394 = vld [vmem:[%s216 + $0x2a8] sm:$0xff]
        %v395 = vld [vmem:[%s216 + $0x2b0] sm:$0xff]
        %v396 = vld [vmem:[%s216 + $0x2b8] sm:$0xff]
        %v397 = vld [vmem:[%s216 + $0x2c0] sm:$0xff]
        %v398 = vld [vmem:[%s216 + $0x2c8] sm:$0xff]
        %v399 = vld [vmem:[%s216 + $0x2d0] sm:$0xff]
        %v400 = vld [vmem:[%s216 + $0x2d8] sm:$0xff]
        %v401 = vld [vmem:[%s216 + $0x2e0] sm:$0xff]
        %v402 = vld [vmem:[%s216 + $0x2e8] sm:$0xff]
        %v403 = vld [vmem:[%s216 + $0x2f0] sm:$0xff]
        %v404 = vld [vmem:[%s216 + $0x2f8] sm:$0xff]
        %v405 = vld [vmem:[%s216 + $0x300] sm:$0xff]
        %v406 = vld [vmem:[%s216 + $0x308] sm:$0xff]
        %v407 = vld [vmem:[%s216 + $0x310] sm:$0xff]
        %v408 = vld [vmem:[%s216 + $0x318] sm:$0xff]
        %v409 = vld [vmem:[%s216 + $0x320] sm:$0xff]
        %v410 = vld [vmem:[%s216 + $0x328] sm:$0xff]
        %v411 = vld [vmem:[%s216 + $0x330] sm:$0xff]
        %v412 = vld [vmem:[%s216 + $0x338] sm:$0xff]
        %v413 = vld [vmem:[%s216 + $0x340] sm:$0xff]
        %v414 = vld [vmem:[%s216 + $0x348] sm:$0xff]
        %v415 = vld [vmem:[%s216 + $0x350] sm:$0xff]
        %v416 = vld [vmem:[%s216 + $0x358] sm:$0xff]
        %v417 = vld [vmem:[%s216 + $0x360] sm:$0xff]
        %v418 = vld [vmem:[%s216 + $0x368] sm:$0xff]
        %v419 = vld [vmem:[%s216 + $0x370] sm:$0xff]
        %v420 = vld [vmem:[%s216 + $0x378] sm:$0xff]
        %v421 = vld [vmem:[%s216 + $0x380] sm:$0xff]
        %v422 = vld [vmem:[%s216 + $0x388] sm:$0xff]
        %v423 = vld [vmem:[%s216 + $0x390] sm:$0xff]
        %v424 = vld [vmem:[%s216 + $0x398] sm:$0xff]
        %v425 = vld [vmem:[%s216 + $0x3a0] sm:$0xff]
        %v426 = vld [vmem:[%s216 + $0x3a8] sm:$0xff]
        %v427 = vld [vmem:[%s216 + $0x3b0] sm:$0xff]
        %v428 = vld [vmem:[%s216 + $0x3b8] sm:$0xff]
        %v429 = vld [vmem:[%s216 + $0x3c0] sm:$0xff]
        %v430 = vld [vmem:[%s216 + $0x3c8] sm:$0xff]
        %v431 = vld [vmem:[%s216 + $0x3d0] sm:$0xff]
        %v432 = vld [vmem:[%s216 + $0x3d8] sm:$0xff]
        %v433 = vld [vmem:[%s216 + $0x3e0] sm:$0xff]
        %v434 = vld [vmem:[%s216 + $0x3e8] sm:$0xff]
        %v435 = vld [vmem:[%s216 + $0x3f0] sm:$0xff]
        %v436 = vld [vmem:[%s216 + $0x3f8] sm:$0xff]
        %v437 = vld [vmem:[%s216 + $0x400] sm:$0xff]
        %v438 = vld [vmem:[%s216 + $0x408] sm:$0xff]
        %v439 = vld [vmem:[%s216 + $0x410] sm:$0xff]
        %v440 = vld [vmem:[%s216 + $0x418] sm:$0xff]
        %v441 = vld [vmem:[%s216 + $0x420] sm:$0xff]
        %v442 = vld [vmem:[%s216 + $0x428] sm:$0xff]
        %v443 = vld [vmem:[%s216 + $0x430] sm:$0xff]
        %v444 = vld [vmem:[%s216 + $0x438] sm:$0xff]
        %v445 = vld [vmem:[%s216 + $0x440] sm:$0xff]
        %v446 = vld [vmem:[%s216 + $0x448] sm:$0xff]
        %v447 = vld [vmem:[%s216 + $0x450] sm:$0xff]
        %v448 = vld [vmem:[%s216 + $0x458] sm:$0xff]
        %v449 = vld [vmem:[%s216 + $0x460] sm:$0xff]
        %v450 = vld [vmem:[%s216 + $0x468] sm:$0xff]
        %v451 = vld [vmem:[%s216 + $0x470] sm:$0xff]
        %v452 = vld [vmem:[%s216 + $0x478] sm:$0xff]
        %v453 = vld [vmem:[%s216 + $0x480] sm:$0xff]
        %v454 = vld [vmem:[%s216 + $0x488] sm:$0xff]
        %v455 = vld [vmem:[%s216 + $0x490] sm:$0xff]
        %v456 = vld [vmem:[%s216 + $0x498] sm:$0xff]
        %v457 = vld [vmem:[%s216 + $0x4a0] sm:$0xff]
        %v458 = vld [vmem:[%s216 + $0x4a8] sm:$0xff]
        %v459 = vld [vmem:[%s216 + $0x4b0] sm:$0xff]
        %v460 = vld [vmem:[%s216 + $0x4b8] sm:$0xff]
        %v461 = vld [vmem:[%s216 + $0x4c0] sm:$0xff]
        %v462 = vld [vmem:[%s216 + $0x4c8] sm:$0xff]
        %v463 = vld [vmem:[%s216 + $0x4d0] sm:$0xff]
        %v464 = vld [vmem:[%s216 + $0x4d8] sm:$0xff]
        %v465 = vld [vmem:[%s216 + $0x4e0] sm:$0xff]
        %v466 = vld [vmem:[%s216 + $0x4e8] sm:$0xff]
        %v467 = vld [vmem:[%s216 + $0x4f0] sm:$0xff]
        %v468 = vld [vmem:[%s216 + $0x4f8] sm:$0xff]
        %v469 = vld [vmem:[%s216 + $0x500] sm:$0xff]
        %v470 = vld [vmem:[%s216 + $0x508] sm:$0xff]
        %v471 = vld [vmem:[%s216 + $0x510] sm:$0xff]
        %v472 = vld [vmem:[%s216 + $0x518] sm:$0xff]
        %v473 = vld [vmem:[%s216 + $0x520] sm:$0xff]
        %v474 = vld [vmem:[%s216 + $0x528] sm:$0xff]
        %v475 = vld [vmem:[%s216 + $0x530] sm:$0xff]
        %v476 = vld [vmem:[%s216 + $0x538] sm:$0xff]
        %v477 = vld [vmem:[%s216 + $0x540] sm:$0xff]
        %v478 = vld [vmem:[%s216 + $0x548] sm:$0xff]
        %v479 = vld [vmem:[%s216 + $0x550] sm:$0xff]
        %v480 = vld [vmem:[%s216 + $0x558] sm:$0xff]
        %v481 = vld [vmem:[%s216 + $0x560] sm:$0xff]
        %v482 = vld [vmem:[%s216 + $0x568] sm:$0xff]
        %v483 = vld [vmem:[%s216 + $0x570] sm:$0xff]
        %v484 = vld [vmem:[%s216 + $0x578] sm:$0xff]
        %v485 = vld [vmem:[%s216 + $0x580] sm:$0xff]
        %v486 = vld [vmem:[%s216 + $0x588] sm:$0xff]
        %v487 = vld [vmem:[%s216 + $0x590] sm:$0xff]
        %v488 = vld [vmem:[%s216 + $0x598] sm:$0xff]
        %v489 = vld [vmem:[%s216 + $0x5a0] sm:$0xff]
        %v490 = vld [vmem:[%s216 + $0x5a8] sm:$0xff]
        %v491 = vld [vmem:[%s216 + $0x5b0] sm:$0xff]
        %v492 = vld [vmem:[%s216 + $0x5b8] sm:$0xff]
        %v493 = vld [vmem:[%s216 + $0x5c0] sm:$0xff]
        %v494 = vld [vmem:[%s216 + $0x5c8] sm:$0xff]
        %v495 = vld [vmem:[%s216 + $0x5d0] sm:$0xff]
        %v496 = vld [vmem:[%s216 + $0x5d8] sm:$0xff]
        %v497 = vld [vmem:[%s216 + $0x5e0] sm:$0xff]
        %v498 = vld [vmem:[%s216 + $0x5e8] sm:$0xff]
        %v499 = vld [vmem:[%s216 + $0x5f0] sm:$0xff]
        %v500 = vld [vmem:[%s216 + $0x5f8] sm:$0xff]
        %v501 = vld [vmem:[%s216 + $0x600] sm:$0xff]
        %v502 = vld [vmem:[%s216 + $0x608] sm:$0xff]
        %v503 = vld [vmem:[%s216 + $0x610] sm:$0xff]
        %v504 = vld [vmem:[%s216 + $0x618] sm:$0xff]
        %v505 = vld [vmem:[%s216 + $0x620] sm:$0xff]
        %v506 = vld [vmem:[%s216 + $0x628] sm:$0xff]
        %v507 = vld [vmem:[%s216 + $0x630] sm:$0xff]
        %v508 = vld [vmem:[%s216 + $0x638] sm:$0xff]
        %v509 = vld [vmem:[%s216 + $0x640] sm:$0xff]
        %v510 = vld [vmem:[%s216 + $0x648] sm:$0xff]
        %v511 = vld [vmem:[%s216 + $0x650] sm:$0xff]
        %v512 = vld [vmem:[%s216 + $0x658] sm:$0xff]
        %v513 = vld [vmem:[%s216 + $0x660] sm:$0xff]
        %v514 = vld [vmem:[%s216 + $0x668] sm:$0xff]
        %v515 = vld [vmem:[%s216 + $0x670] sm:$0xff]
        %v516 = vld [vmem:[%s216 + $0x678] sm:$0xff]
        %v517 = vld [vmem:[%s216 + $0x680] sm:$0xff]
        %v518 = vld [vmem:[%s216 + $0x688] sm:$0xff]
        %v519 = vld [vmem:[%s216 + $0x690] sm:$0xff]
        %v520 = vld [vmem:[%s216 + $0x698] sm:$0xff]
        %v521 = vld [vmem:[%s216 + $0x6a0] sm:$0xff]
        %v522 = vld [vmem:[%s216 + $0x6a8] sm:$0xff]
        %v523 = vld [vmem:[%s216 + $0x6b0] sm:$0xff]
        %v524 = vld [vmem:[%s216 + $0x6b8] sm:$0xff]
        %v525 = vld [vmem:[%s216 + $0x6c0] sm:$0xff]
        %v526 = vld [vmem:[%s216 + $0x6c8] sm:$0xff]
        %v527 = vld [vmem:[%s216 + $0x6d0] sm:$0xff]
        %v528 = vld [vmem:[%s216 + $0x6d8] sm:$0xff]
        %v529 = vld [vmem:[%s216 + $0x6e0] sm:$0xff]
        %v530 = vld [vmem:[%s216 + $0x6e8] sm:$0xff]
        %v531 = vld [vmem:[%s216 + $0x6f0] sm:$0xff]
        %v532 = vld [vmem:[%s216 + $0x6f8] sm:$0xff]
        %v533 = vld [vmem:[%s216 + $0x700] sm:$0xff]
        %v534 = vld [vmem:[%s216 + $0x708] sm:$0xff]
        %v535 = vld [vmem:[%s216 + $0x710] sm:$0xff]
        %v536 = vld [vmem:[%s216 + $0x718] sm:$0xff]
        %v537 = vld [vmem:[%s216 + $0x720] sm:$0xff]
        %v538 = vld [vmem:[%s216 + $0x728] sm:$0xff]
        %v539 = vld [vmem:[%s216 + $0x730] sm:$0xff]
        %v540 = vld [vmem:[%s216 + $0x738] sm:$0xff]
        %v541 = vld [vmem:[%s216 + $0x740] sm:$0xff]
        %v542 = vld [vmem:[%s216 + $0x748] sm:$0xff]
        %v543 = vld [vmem:[%s216 + $0x750] sm:$0xff]
        %v544 = vld [vmem:[%s216 + $0x758] sm:$0xff]
        %v545 = vld [vmem:[%s216 + $0x760] sm:$0xff]
        %v546 = vld [vmem:[%s216 + $0x768] sm:$0xff]
        %v547 = vld [vmem:[%s216 + $0x770] sm:$0xff]
        %v548 = vld [vmem:[%s216 + $0x778] sm:$0xff]
        %v549 = vld [vmem:[%s216 + $0x780] sm:$0xff]
        %v550 = vld [vmem:[%s216 + $0x788] sm:$0xff]
        %v551 = vld [vmem:[%s216 + $0x790] sm:$0xff]
        %v552 = vld [vmem:[%s216 + $0x798] sm:$0xff]
        %v553 = vld [vmem:[%s216 + $0x7a0] sm:$0xff]
        %v554 = vld [vmem:[%s216 + $0x7a8] sm:$0xff]
        %v555 = vld [vmem:[%s216 + $0x7b0] sm:$0xff]
        %v556 = vld [vmem:[%s216 + $0x7b8] sm:$0xff]
        %v557 = vld [vmem:[%s216 + $0x7c0] sm:$0xff]
        %v558 = vld [vmem:[%s216 + $0x7c8] sm:$0xff]
        %v559 = vld [vmem:[%s216 + $0x7d0] sm:$0xff]
        %v560 = vld [vmem:[%s216 + $0x7d8] sm:$0xff]
        %v561 = vld [vmem:[%s216 + $0x7e0] sm:$0xff]
        %v562 = vld [vmem:[%s216 + $0x7e8] sm:$0xff]
        %v563 = vld [vmem:[%s216 + $0x7f0] sm:$0xff]
        %v564 = vld [vmem:[%s216 + $0x7f8] sm:$0xff]
        %v565 = vld [vmem:[%s216 + $0x800] sm:$0xff]
        %v566 = vld [vmem:[%s216 + $0x808] sm:$0xff]
        %v567 = vld [vmem:[%s216 + $0x810] sm:$0xff]
        %v568 = vld [vmem:[%s216 + $0x818] sm:$0xff]
        %v569 = vld [vmem:[%s216 + $0x820] sm:$0xff]
        %v570 = vld [vmem:[%s216 + $0x828] sm:$0xff]
        %v571 = vld [vmem:[%s216 + $0x830] sm:$0xff]
        %v572 = vld [vmem:[%s216 + $0x838] sm:$0xff]
        %v573 = vld [vmem:[%s216 + $0x840] sm:$0xff]
        %v574 = vld [vmem:[%s216 + $0x848] sm:$0xff]
        %v575 = vld [vmem:[%s216 + $0x850] sm:$0xff]
        %v576 = vld [vmem:[%s216 + $0x858] sm:$0xff]
        %v577 = vld [vmem:[%s216 + $0x860] sm:$0xff]
        %v578 = vld [vmem:[%s216 + $0x868] sm:$0xff]
        %v579 = vld [vmem:[%s216 + $0x870] sm:$0xff]
        %v580 = vld [vmem:[%s216 + $0x878] sm:$0xff]
        %v581 = vld [vmem:[%s216 + $0x880] sm:$0xff]
        %v582 = vld [vmem:[%s216 + $0x888] sm:$0xff]
        %v583 = vld [vmem:[%s216 + $0x890] sm:$0xff]
        %v584 = vld [vmem:[%s216 + $0x898] sm:$0xff]
        %v585 = vld [vmem:[%s216 + $0x8a0] sm:$0xff]
        %v586 = vld [vmem:[%s216 + $0x8a8] sm:$0xff]
        %v587 = vld [vmem:[%s216 + $0x8b0] sm:$0xff]
        %v588 = vld [vmem:[%s216 + $0x8b8] sm:$0xff]
        %v589 = vld [vmem:[%s216 + $0x8c0] sm:$0xff]
        %v590 = vld [vmem:[%s216 + $0x8c8] sm:$0xff]
        %v591 = vld [vmem:[%s216 + $0x8d0] sm:$0xff]
        %v592 = vld [vmem:[%s216 + $0x8d8] sm:$0xff]
        %v593 = vld [vmem:[%s216 + $0x8e0] sm:$0xff]
        %v594 = vld [vmem:[%s216 + $0x8e8] sm:$0xff]
        %v595 = vld [vmem:[%s216 + $0x8f0] sm:$0xff]
        %v596 = vld [vmem:[%s216 + $0x8f8] sm:$0xff]
        %v597 = vld [vmem:[%s216 + $0x900] sm:$0xff]
        %v598 = vld [vmem:[%s216 + $0x908] sm:$0xff]
        %v599 = vld [vmem:[%s216 + $0x910] sm:$0xff]
        %v600 = vld [vmem:[%s216 + $0x918] sm:$0xff]
        %v601 = vld [vmem:[%s216 + $0x920] sm:$0xff]
        %v602 = vld [vmem:[%s216 + $0x928] sm:$0xff]
        %v603 = vld [vmem:[%s216 + $0x930] sm:$0xff]
        %v604 = vld [vmem:[%s216 + $0x938] sm:$0xff]
        %v605 = vld [vmem:[%s216 + $0x940] sm:$0xff]
        %v606 = vld [vmem:[%s216 + $0x948] sm:$0xff]
        %v607 = vld [vmem:[%s216 + $0x950] sm:$0xff]
        %v608 = vld [vmem:[%s216 + $0x958] sm:$0xff]
        %v609 = vld [vmem:[%s216 + $0x960] sm:$0xff]
        %v610 = vld [vmem:[%s216 + $0x968] sm:$0xff]
        %v611 = vld [vmem:[%s216 + $0x970] sm:$0xff]
        %v612 = vld [vmem:[%s216 + $0x978] sm:$0xff]
        %v613 = vld [vmem:[%s216 + $0x980] sm:$0xff]
        %v614 = vld [vmem:[%s216 + $0x988] sm:$0xff]
        %v615 = vld [vmem:[%s216 + $0x990] sm:$0xff]
        %v616 = vld [vmem:[%s216 + $0x998] sm:$0xff]
        %v617 = vld [vmem:[%s216 + $0x9a0] sm:$0xff]
        %v618 = vld [vmem:[%s216 + $0x9a8] sm:$0xff]
        %v619 = vld [vmem:[%s216 + $0x9b0] sm:$0xff]
        %v620 = vld [vmem:[%s216 + $0x9b8] sm:$0xff]
        %v621 = vld [vmem:[%s216 + $0x9c0] sm:$0xff]
        %v622 = vld [vmem:[%s216 + $0x9c8] sm:$0xff]
        %v623 = vld [vmem:[%s216 + $0x9d0] sm:$0xff]
        %v624 = vld [vmem:[%s216 + $0x9d8] sm:$0xff]
        %v625 = vld [vmem:[%s216 + $0x9e0] sm:$0xff]
        %v626 = vld [vmem:[%s216 + $0x9e8] sm:$0xff]
        %v627 = vld [vmem:[%s216 + $0x9f0] sm:$0xff]
        %v628 = vld [vmem:[%s216 + $0x9f8] sm:$0xff]
        %v629 = vld [vmem:[%s216 + $0xa00] sm:$0xff]
        %v630 = vld [vmem:[%s216 + $0xa08] sm:$0xff]
        %v631 = vld [vmem:[%s216 + $0xa10] sm:$0xff]
        %v632 = vld [vmem:[%s216 + $0xa18] sm:$0xff]
        %v633 = vld [vmem:[%s216 + $0xa20] sm:$0xff]
        %v634 = vld [vmem:[%s216 + $0xa28] sm:$0xff]
        %v635 = vld [vmem:[%s216 + $0xa30] sm:$0xff]
        %v636 = vld [vmem:[%s216 + $0xa38] sm:$0xff]
        %v637 = vld [vmem:[%s216 + $0xa40] sm:$0xff]
        %v638 = vld [vmem:[%s216 + $0xa48] sm:$0xff]
        %v639 = vld [vmem:[%s216 + $0xa50] sm:$0xff]
        %v640 = vld [vmem:[%s216 + $0xa58] sm:$0xff]
        %v641 = vld [vmem:[%s216 + $0xa60] sm:$0xff]
        %v642 = vld [vmem:[%s216 + $0xa68] sm:$0xff]
        %v643 = vld [vmem:[%s216 + $0xa70] sm:$0xff]
        %v644 = vld [vmem:[%s216 + $0xa78] sm:$0xff]
        %v645 = vld [vmem:[%s216 + $0xa80] sm:$0xff]
        %v646 = vld [vmem:[%s216 + $0xa88] sm:$0xff]
        %v647 = vld [vmem:[%s216 + $0xa90] sm:$0xff]
        %v648 = vld [vmem:[%s216 + $0xa98] sm:$0xff]
        %v649 = vld [vmem:[%s216 + $0xaa0] sm:$0xff]
        %v650 = vld [vmem:[%s216 + $0xaa8] sm:$0xff]
        %v651 = vld [vmem:[%s216 + $0xab0] sm:$0xff]
        %v652 = vld [vmem:[%s216 + $0xab8] sm:$0xff]
        %v653 = vld [vmem:[%s216 + $0xac0] sm:$0xff]
        %v654 = vld [vmem:[%s216 + $0xac8] sm:$0xff]
        %v655 = vld [vmem:[%s216 + $0xad0] sm:$0xff]
        %v656 = vld [vmem:[%s216 + $0xad8] sm:$0xff]
        %v657 = vld [vmem:[%s216 + $0xae0] sm:$0xff]
        %v658 = vld [vmem:[%s216 + $0xae8] sm:$0xff]
        %v659 = vld [vmem:[%s216 + $0xaf0] sm:$0xff]
        %v660 = vld [vmem:[%s216 + $0xaf8] sm:$0xff]
        %v661 = vld [vmem:[%s216 + $0xb00] sm:$0xff]
        %v662 = vld [vmem:[%s216 + $0xb08] sm:$0xff]
        %v663 = vld [vmem:[%s216 + $0xb10] sm:$0xff]
        %v664 = vld [vmem:[%s216 + $0xb18] sm:$0xff]
        %v665 = vld [vmem:[%s216 + $0xb20] sm:$0xff]
        %v666 = vld [vmem:[%s216 + $0xb28] sm:$0xff]
        %v667 = vld [vmem:[%s216 + $0xb30] sm:$0xff]
        %v668 = vld [vmem:[%s216 + $0xb38] sm:$0xff]
        %v669 = vld [vmem:[%s216 + $0xb40] sm:$0xff]
        %v670 = vld [vmem:[%s216 + $0xb48] sm:$0xff]
        %v671 = vld [vmem:[%s216 + $0xb50] sm:$0xff]
        %v672 = vld [vmem:[%s216 + $0xb58] sm:$0xff]
        %v673 = vld [vmem:[%s216 + $0xb60] sm:$0xff]
        %v674 = vld [vmem:[%s216 + $0xb68] sm:$0xff]
        %v675 = vld [vmem:[%s216 + $0xb70] sm:$0xff]
        %v676 = vld [vmem:[%s216 + $0xb78] sm:$0xff]
        %v677 = vld [vmem:[%s216 + $0xb80] sm:$0xff]
        %v678 = vld [vmem:[%s216 + $0xb88] sm:$0xff]
        %v679 = vld [vmem:[%s216 + $0xb90] sm:$0xff]
        %v680 = vld [vmem:[%s216 + $0xb98] sm:$0xff]
        %v681 = vld [vmem:[%s216 + $0xba0] sm:$0xff]
        %v682 = vld [vmem:[%s216 + $0xba8] sm:$0xff]
        %v683 = vld [vmem:[%s216 + $0xbb0] sm:$0xff]
        %v684 = vld [vmem:[%s216 + $0xbb8] sm:$0xff]
        %v685 = vld [vmem:[%s216 + $0xbc0] sm:$0xff]
        %v686 = vld [vmem:[%s216 + $0xbc8] sm:$0xff]
        %v687 = vld [vmem:[%s216 + $0xbd0] sm:$0xff]
        %v688 = vld [vmem:[%s216 + $0xbd8] sm:$0xff]
        %v689 = vld [vmem:[%s216 + $0xbe0] sm:$0xff]
        %v690 = vld [vmem:[%s216 + $0xbe8] sm:$0xff]
        %v691 = vld [vmem:[%s216 + $0xbf0] sm:$0xff]
        %v692 = vld [vmem:[%s216 + $0xbf8] sm:$0xff]
        %v693 = vld [vmem:[%s216 + $0xc00] sm:$0xff]
        %v694 = vld [vmem:[%s216 + $0xc08] sm:$0xff]
        %v695 = vld [vmem:[%s216 + $0xc10] sm:$0xff]
        %v696 = vld [vmem:[%s216 + $0xc18] sm:$0xff]
        %v697 = vld [vmem:[%s216 + $0xc20] sm:$0xff]
        %v698 = vld [vmem:[%s216 + $0xc28] sm:$0xff]
        %v699 = vld [vmem:[%s216 + $0xc30] sm:$0xff]
        %v700 = vld [vmem:[%s216 + $0xc38] sm:$0xff]
        %v701 = vld [vmem:[%s216 + $0xc40] sm:$0xff]
        %v702 = vld [vmem:[%s216 + $0xc48] sm:$0xff]
        %v703 = vld [vmem:[%s216 + $0xc50] sm:$0xff]
        %v704 = vld [vmem:[%s216 + $0xc58] sm:$0xff]
        %v705 = vld [vmem:[%s216 + $0xc60] sm:$0xff]
        %v706 = vld [vmem:[%s216 + $0xc68] sm:$0xff]
        %v707 = vld [vmem:[%s216 + $0xc70] sm:$0xff]
        %v708 = vld [vmem:[%s216 + $0xc78] sm:$0xff]
        %v709 = vld [vmem:[%s216 + $0xc80] sm:$0xff]
        %v710 = vld [vmem:[%s216 + $0xc88] sm:$0xff]
        %v711 = vld [vmem:[%s216 + $0xc90] sm:$0xff]
        %v712 = vld [vmem:[%s216 + $0xc98] sm:$0xff]
        %v713 = vld [vmem:[%s216 + $0xca0] sm:$0xff]
        %v714 = vld [vmem:[%s216 + $0xca8] sm:$0xff]
        %v715 = vld [vmem:[%s216 + $0xcb0] sm:$0xff]
        %v716 = vld [vmem:[%s216 + $0xcb8] sm:$0xff]
        %v717 = vld [vmem:[%s216 + $0xcc0] sm:$0xff]
        %v718 = vld [vmem:[%s216 + $0xcc8] sm:$0xff]
        %v719 = vld [vmem:[%s216 + $0xcd0] sm:$0xff]
        %v720 = vld [vmem:[%s216 + $0xcd8] sm:$0xff]
        %v721 = vld [vmem:[%s216 + $0xce0] sm:$0xff]
        %v722 = vld [vmem:[%s216 + $0xce8] sm:$0xff]
        %v723 = vld [vmem:[%s216 + $0xcf0] sm:$0xff]
        %v724 = vld [vmem:[%s216 + $0xcf8] sm:$0xff]
        %v725 = vld [vmem:[%s216 + $0xd00] sm:$0xff]
        %v726 = vld [vmem:[%s216 + $0xd08] sm:$0xff]
        %v727 = vld [vmem:[%s216 + $0xd10] sm:$0xff]
        %v728 = vld [vmem:[%s216 + $0xd18] sm:$0xff]
        %v729 = vld [vmem:[%s216 + $0xd20] sm:$0xff]
        %v730 = vld [vmem:[%s216 + $0xd28] sm:$0xff]
        %v731 = vld [vmem:[%s216 + $0xd30] sm:$0xff]
        %v732 = vld [vmem:[%s216 + $0xd38] sm:$0xff]
        %v733 = vld [vmem:[%s216 + $0xd40] sm:$0xff]
        %v734 = vld [vmem:[%s216 + $0xd48] sm:$0xff]
        %v735 = vld [vmem:[%s216 + $0xd50] sm:$0xff]
        %v736 = vld [vmem:[%s216 + $0xd58] sm:$0xff]
        %v737 = vld [vmem:[%s216 + $0xd60] sm:$0xff]
        %v738 = vld [vmem:[%s216 + $0xd68] sm:$0xff]
        %v739 = vld [vmem:[%s216 + $0xd70] sm:$0xff]
        %v740 = vld [vmem:[%s216 + $0xd78] sm:$0xff]
        %v741 = vld [vmem:[%s216 + $0xd80] sm:$0xff]
        %v742 = vld [vmem:[%s216 + $0xd88] sm:$0xff]
        %v743 = vld [vmem:[%s216 + $0xd90] sm:$0xff]
        %v744 = vld [vmem:[%s216 + $0xd98] sm:$0xff]
        %v745 = vld [vmem:[%s216 + $0xda0] sm:$0xff]
        %v746 = vld [vmem:[%s216 + $0xda8] sm:$0xff]
        %v747 = vld [vmem:[%s216 + $0xdb0] sm:$0xff]
        %v748 = vld [vmem:[%s216 + $0xdb8] sm:$0xff]
        %v749 = vld [vmem:[%s216 + $0xdc0] sm:$0xff]
        %v750 = vld [vmem:[%s216 + $0xdc8] sm:$0xff]
        %v751 = vld [vmem:[%s216 + $0xdd0] sm:$0xff]
        %v752 = vld [vmem:[%s216 + $0xdd8] sm:$0xff]
        %v753 = vld [vmem:[%s216 + $0xde0] sm:$0xff]
        %v754 = vld [vmem:[%s216 + $0xde8] sm:$0xff]
        %v755 = vld [vmem:[%s216 + $0xdf0] sm:$0xff]
        %v756 = vld [vmem:[%s216 + $0xdf8] sm:$0xff]
        %v757 = vld [vmem:[%s216 + $0xe00] sm:$0xff]
        %v758 = vld [vmem:[%s216 + $0xe08] sm:$0xff]
        %v759 = vld [vmem:[%s216 + $0xe10] sm:$0xff]
        %v760 = vld [vmem:[%s216 + $0xe18] sm:$0xff]
        %v761 = vld [vmem:[%s216 + $0xe20] sm:$0xff]
        %v762 = vld [vmem:[%s216 + $0xe28] sm:$0xff]
        %v763 = vld [vmem:[%s216 + $0xe30] sm:$0xff]
        %v764 = vld [vmem:[%s216 + $0xe38] sm:$0xff]
        %v765 = vld [vmem:[%s216 + $0xe40] sm:$0xff]
        %v766 = vld [vmem:[%s216 + $0xe48] sm:$0xff]
        %v767 = vld [vmem:[%s216 + $0xe50] sm:$0xff]
        %v768 = vld [vmem:[%s216 + $0xe58] sm:$0xff]
        %v769 = vld [vmem:[%s216 + $0xe60] sm:$0xff]
        %v770 = vld [vmem:[%s216 + $0xe68] sm:$0xff]
        %v771 = vld [vmem:[%s216 + $0xe70] sm:$0xff]
        %v772 = vld [vmem:[%s216 + $0xe78] sm:$0xff]
        %v773 = vld [vmem:[%s216 + $0xe80] sm:$0xff]
        %v774 = vld [vmem:[%s216 + $0xe88] sm:$0xff]
        %v775 = vld [vmem:[%s216 + $0xe90] sm:$0xff]
        %v776 = vld [vmem:[%s216 + $0xe98] sm:$0xff]
        %v777 = vld [vmem:[%s216 + $0xea0] sm:$0xff]
        %v778 = vld [vmem:[%s216 + $0xea8] sm:$0xff]
        %v779 = vld [vmem:[%s216 + $0xeb0] sm:$0xff]
        %v780 = vld [vmem:[%s216 + $0xeb8] sm:$0xff]
        %v781 = vld [vmem:[%s216 + $0xec0] sm:$0xff]
        %v782 = vld [vmem:[%s216 + $0xec8] sm:$0xff]
        %v783 = vld [vmem:[%s216 + $0xed0] sm:$0xff]
        %v784 = vld [vmem:[%s216 + $0xed8] sm:$0xff]
        %v785 = vld [vmem:[%s216 + $0xee0] sm:$0xff]
        %v786 = vld [vmem:[%s216 + $0xee8] sm:$0xff]
        %v787 = vld [vmem:[%s216 + $0xef0] sm:$0xff]
        %v788 = vld [vmem:[%s216 + $0xef8] sm:$0xff]
        %v789 = vld [vmem:[%s216 + $0xf00] sm:$0xff]
        %v790 = vld [vmem:[%s216 + $0xf08] sm:$0xff]
        %v791 = vld [vmem:[%s216 + $0xf10] sm:$0xff]
        %v792 = vld [vmem:[%s216 + $0xf18] sm:$0xff]
        %v793 = vld [vmem:[%s216 + $0xf20] sm:$0xff]
        %v794 = vld [vmem:[%s216 + $0xf28] sm:$0xff]
        %v795 = vld [vmem:[%s216 + $0xf30] sm:$0xff]
        %v796 = vld [vmem:[%s216 + $0xf38] sm:$0xff]
        %v797 = vld [vmem:[%s216 + $0xf40] sm:$0xff]
        %v798 = vld [vmem:[%s216 + $0xf48] sm:$0xff]
        %v799 = vld [vmem:[%s216 + $0xf50] sm:$0xff]
        %v800 = vld [vmem:[%s216 + $0xf58] sm:$0xff]
        %v801 = vld [vmem:[%s216 + $0xf60] sm:$0xff]
        %v802 = vld [vmem:[%s216 + $0xf68] sm:$0xff]
        %v803 = vld [vmem:[%s216 + $0xf70] sm:$0xff]
        %v804 = vld [vmem:[%s216 + $0xf78] sm:$0xff]
        %v805 = vld [vmem:[%s216 + $0xf80] sm:$0xff]
        %v806 = vld [vmem:[%s216 + $0xf88] sm:$0xff]
        %v807 = vld [vmem:[%s216 + $0xf90] sm:$0xff]
        %v808 = vld [vmem:[%s216 + $0xf98] sm:$0xff]
        %v809 = vld [vmem:[%s216 + $0xfa0] sm:$0xff]
        %v810 = vld [vmem:[%s216 + $0xfa8] sm:$0xff]
        %v811 = vld [vmem:[%s216 + $0xfb0] sm:$0xff]
        %v812 = vld [vmem:[%s216 + $0xfb8] sm:$0xff]
        %v813 = vld [vmem:[%s216 + $0xfc0] sm:$0xff]
        %v814 = vld [vmem:[%s216 + $0xfc8] sm:$0xff]
        %v815 = vld [vmem:[%s216 + $0xfd0] sm:$0xff]
        %v816 = vld [vmem:[%s216 + $0xfd8] sm:$0xff]
        %v817 = vld [vmem:[%s216 + $0xfe0] sm:$0xff]
        %v818 = vld [vmem:[%s216 + $0xfe8] sm:$0xff]
        %v819 = vld [vmem:[%s216 + $0xff0] sm:$0xff]
        %v820 = vld [vmem:[%s216 + $0xff8] sm:$0xff]
        %v821 = vld [vmem:[%s216 + $0x1000] sm:$0xff]
        %v822 = vld [vmem:[%s216 + $0x1008] sm:$0xff]
        %v823 = vld [vmem:[%s216 + $0x1010] sm:$0xff]
        %v824 = vld [vmem:[%s216 + $0x1018] sm:$0xff]
        %v825 = vld [vmem:[%s216 + $0x1020] sm:$0xff]
        %v826 = vld [vmem:[%s216 + $0x1028] sm:$0xff]
        %v827 = vld [vmem:[%s216 + $0x1030] sm:$0xff]
        %v828 = vld [vmem:[%s216 + $0x1038] sm:$0xff]
        %v829 = vld [vmem:[%s216 + $0x1040] sm:$0xff]
        %v830 = vld [vmem:[%s216 + $0x1048] sm:$0xff]
        %v831 = vld [vmem:[%s216 + $0x1050] sm:$0xff]
        %v832 = vld [vmem:[%s216 + $0x1058] sm:$0xff]
        %v833 = vld [vmem:[%s216 + $0x1060] sm:$0xff]
        %v834 = vld [vmem:[%s216 + $0x1068] sm:$0xff]
        %v835 = vld [vmem:[%s216 + $0x1070] sm:$0xff]
        %v836 = vld [vmem:[%s216 + $0x1078] sm:$0xff]
        %v837 = vld [vmem:[%s216 + $0x1080] sm:$0xff]
        %v838 = vld [vmem:[%s216 + $0x1088] sm:$0xff]
        %v839 = vld [vmem:[%s216 + $0x1090] sm:$0xff]
        %v840 = vld [vmem:[%s216 + $0x1098] sm:$0xff]
        %v841 = vld [vmem:[%s216 + $0x10a0] sm:$0xff]
        %v842 = vld [vmem:[%s216 + $0x10a8] sm:$0xff]
        %v843 = vld [vmem:[%s216 + $0x10b0] sm:$0xff]
        %v844 = vld [vmem:[%s216 + $0x10b8] sm:$0xff]
        %v845 = vld [vmem:[%s216 + $0x10c0] sm:$0xff]
        %v846 = vld [vmem:[%s216 + $0x10c8] sm:$0xff]
        %v847 = vld [vmem:[%s216 + $0x10d0] sm:$0xff]
        %v848 = vld [vmem:[%s216 + $0x10d8] sm:$0xff]
        %v849 = vld [vmem:[%s216 + $0x10e0] sm:$0xff]
        %v850 = vld [vmem:[%s216 + $0x10e8] sm:$0xff]
        %v851 = vld [vmem:[%s216 + $0x10f0] sm:$0xff]
        %v852 = vld [vmem:[%s216 + $0x10f8] sm:$0xff]
        %v853 = vld [vmem:[%s216 + $0x1100] sm:$0xff]
        %v854 = vld [vmem:[%s216 + $0x1108] sm:$0xff]
        %v855 = vld [vmem:[%s216 + $0x1110] sm:$0xff]
        %v856 = vld [vmem:[%s216 + $0x1118] sm:$0xff]
        %v857 = vld [vmem:[%s216 + $0x1120] sm:$0xff]
        %v858 = vld [vmem:[%s216 + $0x1128] sm:$0xff]
        %v859 = vld [vmem:[%s216 + $0x1130] sm:$0xff]
        %v860 = vld [vmem:[%s216 + $0x1138] sm:$0xff]
        %v861 = vld [vmem:[%s216 + $0x1140] sm:$0xff]
        %v862 = vld [vmem:[%s216 + $0x1148] sm:$0xff]
        %v863 = vld [vmem:[%s216 + $0x1150] sm:$0xff]
        %v864 = vld [vmem:[%s216 + $0x1158] sm:$0xff]
        %v865 = vld [vmem:[%s216 + $0x1160] sm:$0xff]
        %v866 = vld [vmem:[%s216 + $0x1168] sm:$0xff]
        %v867 = vld [vmem:[%s216 + $0x1170] sm:$0xff]
        %v868 = vld [vmem:[%s216 + $0x1178] sm:$0xff]
        %v869 = vld [vmem:[%s216 + $0x1180] sm:$0xff]
        %v870 = vld [vmem:[%s216 + $0x1188] sm:$0xff]
        %v871 = vld [vmem:[%s216 + $0x1190] sm:$0xff]
        %v872 = vld [vmem:[%s216 + $0x1198] sm:$0xff]
        %v873 = vld [vmem:[%s216 + $0x11a0] sm:$0xff]
        %v874 = vld [vmem:[%s216 + $0x11a8] sm:$0xff]
        %v875 = vld [vmem:[%s216 + $0x11b0] sm:$0xff]
        %v876 = vld [vmem:[%s216 + $0x11b8] sm:$0xff]
        %v877 = vld [vmem:[%s216 + $0x11c0] sm:$0xff]
        %v878 = vld [vmem:[%s216 + $0x11c8] sm:$0xff]
        %v879 = vld [vmem:[%s216 + $0x11d0] sm:$0xff]
        %v880 = vld [vmem:[%s216 + $0x11d8] sm:$0xff]
        %v881 = vld [vmem:[%s216 + $0x11e0] sm:$0xff]
        %v882 = vld [vmem:[%s216 + $0x11e8] sm:$0xff]
        %v883 = vld [vmem:[%s216 + $0x11f0] sm:$0xff]
        %v884 = vld [vmem:[%s216 + $0x11f8] sm:$0xff]
        %v885 = vld [vmem:[%s216 + $0x1200] sm:$0xff]
        %v886 = vld [vmem:[%s216 + $0x1208] sm:$0xff]
        %v887 = vld [vmem:[%s216 + $0x1210] sm:$0xff]
        %v888 = vld [vmem:[%s216 + $0x1218] sm:$0xff]
        %v889 = vld [vmem:[%s216 + $0x1220] sm:$0xff]
        %v890 = vld [vmem:[%s216 + $0x1228] sm:$0xff]
        %v891 = vld [vmem:[%s216 + $0x1230] sm:$0xff]
        %v892 = vld [vmem:[%s216 + $0x1238] sm:$0xff]
        %v893 = vld [vmem:[%s216 + $0x1240] sm:$0xff]
        %v894 = vld [vmem:[%s216 + $0x1248] sm:$0xff]
        %v895 = vld [vmem:[%s216 + $0x1250] sm:$0xff]
        %v896 = vld [vmem:[%s216 + $0x1258] sm:$0xff]
        %v897 = vld [vmem:[%s216 + $0x1260] sm:$0xff]
        %v898 = vld [vmem:[%s216 + $0x1268] sm:$0xff]
        %v899 = vld [vmem:[%s216 + $0x1270] sm:$0xff]
        %v900 = vld [vmem:[%s216 + $0x1278] sm:$0xff]
        %v901 = vld [vmem:[%s216 + $0x1280] sm:$0xff]
        %v902 = vld [vmem:[%s216 + $0x1288] sm:$0xff]
        %v903 = vld [vmem:[%s216 + $0x1290] sm:$0xff]
        %v904 = vld [vmem:[%s216 + $0x1298] sm:$0xff]
        %v905 = vld [vmem:[%s216 + $0x12a0] sm:$0xff]
        %v906 = vld [vmem:[%s216 + $0x12a8] sm:$0xff]
        %v907 = vld [vmem:[%s216 + $0x12b0] sm:$0xff]
        %v908 = vld [vmem:[%s216 + $0x12b8] sm:$0xff]
        %v909 = vld [vmem:[%s216 + $0x12c0] sm:$0xff]
        %v910 = vld [vmem:[%s216 + $0x12c8] sm:$0xff]
        %v911 = vld [vmem:[%s216 + $0x12d0] sm:$0xff]
        %v912 = vld [vmem:[%s216 + $0x12d8] sm:$0xff]
        %v913 = vld [vmem:[%s216 + $0x12e0] sm:$0xff]
        %v914 = vld [vmem:[%s216 + $0x12e8] sm:$0xff]
        %v915 = vld [vmem:[%s216 + $0x12f0] sm:$0xff]
        %v916 = vld [vmem:[%s216 + $0x12f8] sm:$0xff]
        %v917 = vld [vmem:[%s216 + $0x1300] sm:$0xff]
        %v918 = vld [vmem:[%s216 + $0x1308] sm:$0xff]
        %v919 = vld [vmem:[%s216 + $0x1310] sm:$0xff]
        %v920 = vld [vmem:[%s216 + $0x1318] sm:$0xff]
        %v921 = vld [vmem:[%s216 + $0x1320] sm:$0xff]
        %v922 = vld [vmem:[%s216 + $0x1328] sm:$0xff]
        %v923 = vld [vmem:[%s216 + $0x1330] sm:$0xff]
        %v924 = vld [vmem:[%s216 + $0x1338] sm:$0xff]
        %v925 = vld [vmem:[%s216 + $0x1340] sm:$0xff]
        %v926 = vld [vmem:[%s216 + $0x1348] sm:$0xff]
        %v927 = vld [vmem:[%s216 + $0x1350] sm:$0xff]
        %v928 = vld [vmem:[%s216 + $0x1358] sm:$0xff]
        %v929 = vld [vmem:[%s216 + $0x1360] sm:$0xff]
        %v930 = vld [vmem:[%s216 + $0x1368] sm:$0xff]
        %v931 = vld [vmem:[%s216 + $0x1370] sm:$0xff]
        %v932 = vld [vmem:[%s216 + $0x1378] sm:$0xff]
        %v933 = vld [vmem:[%s216 + $0x1380] sm:$0xff]
        %v934 = vld [vmem:[%s216 + $0x1388] sm:$0xff]
        %v935 = vld [vmem:[%s216 + $0x1390] sm:$0xff]
        %v936 = vld [vmem:[%s216 + $0x1398] sm:$0xff]
        %v937 = vld [vmem:[%s216 + $0x13a0] sm:$0xff]
        %v938 = vld [vmem:[%s216 + $0x13a8] sm:$0xff]
        %v939 = vld [vmem:[%s216 + $0x13b0] sm:$0xff]
        %v940 = vld [vmem:[%s216 + $0x13b8] sm:$0xff]
        %v941 = vld [vmem:[%s216 + $0x13c0] sm:$0xff]
        %v942 = vld [vmem:[%s216 + $0x13c8] sm:$0xff]
        %v943 = vld [vmem:[%s216 + $0x13d0] sm:$0xff]
        %v944 = vld [vmem:[%s216 + $0x13d8] sm:$0xff]
        %v945 = vld [vmem:[%s216 + $0x13e0] sm:$0xff]
        %v946 = vld [vmem:[%s216 + $0x13e8] sm:$0xff]
        %v947 = vld [vmem:[%s216 + $0x13f0] sm:$0xff]
        %v948 = vld [vmem:[%s216 + $0x13f8] sm:$0xff]
        %v949 = vld [vmem:[%s216 + $0x1400] sm:$0xff]
        %v950 = vld [vmem:[%s216 + $0x1408] sm:$0xff]
        %v951 = vld [vmem:[%s216 + $0x1410] sm:$0xff]
        %v952 = vld [vmem:[%s216 + $0x1418] sm:$0xff]
        %v953 = vld [vmem:[%s216 + $0x1420] sm:$0xff]
        %v954 = vld [vmem:[%s216 + $0x1428] sm:$0xff]
        %v955 = vld [vmem:[%s216 + $0x1430] sm:$0xff]
        %v956 = vld [vmem:[%s216 + $0x1438] sm:$0xff]
        %v957 = vld [vmem:[%s216 + $0x1440] sm:$0xff]
        %v958 = vld [vmem:[%s216 + $0x1448] sm:$0xff]
        %v959 = vld [vmem:[%s216 + $0x1450] sm:$0xff]
        %v960 = vld [vmem:[%s216 + $0x1458] sm:$0xff]
        %v961 = vld [vmem:[%s216 + $0x1460] sm:$0xff]
        %v962 = vld [vmem:[%s216 + $0x1468] sm:$0xff]
        %v963 = vld [vmem:[%s216 + $0x1470] sm:$0xff]
        %v964 = vld [vmem:[%s216 + $0x1478] sm:$0xff]
        %v965 = vld [vmem:[%s216 + $0x1480] sm:$0xff]
        %v966 = vld [vmem:[%s216 + $0x1488] sm:$0xff]
        %v967 = vld [vmem:[%s216 + $0x1490] sm:$0xff]
        %v968 = vld [vmem:[%s216 + $0x1498] sm:$0xff]
        %v969 = vld [vmem:[%s216 + $0x14a0] sm:$0xff]
        %v970 = vld [vmem:[%s216 + $0x14a8] sm:$0xff]
        %v971 = vld [vmem:[%s216 + $0x14b0] sm:$0xff]
        %v972 = vld [vmem:[%s216 + $0x14b8] sm:$0xff]
        %v973 = vld [vmem:[%s216 + $0x14c0] sm:$0xff]
        %v974 = vld [vmem:[%s216 + $0x14c8] sm:$0xff]
        %v975 = vld [vmem:[%s216 + $0x14d0] sm:$0xff]
        %v976 = vld [vmem:[%s216 + $0x14d8] sm:$0xff]
        %v977 = vld [vmem:[%s216 + $0x14e0] sm:$0xff]
        %v978 = vld [vmem:[%s216 + $0x14e8] sm:$0xff]
        %v979 = vld [vmem:[%s216 + $0x14f0] sm:$0xff]
        %v980 = vld [vmem:[%s216 + $0x14f8] sm:$0xff]
        %v981 = vld [vmem:[%s216 + $0x1500] sm:$0xff]
        %v982 = vld [vmem:[%s216 + $0x1508] sm:$0xff]
        %v983 = vld [vmem:[%s216 + $0x1510] sm:$0xff]
        %v984 = vld [vmem:[%s216 + $0x1518] sm:$0xff]
        %v985 = vld [vmem:[%s216 + $0x1520] sm:$0xff]
        %v986 = vld [vmem:[%s216 + $0x1528] sm:$0xff]
        %v987 = vld [vmem:[%s216 + $0x1530] sm:$0xff]
        %v988 = vld [vmem:[%s216 + $0x1538] sm:$0xff]
        %v989 = vld [vmem:[%s216 + $0x1540] sm:$0xff]
        %v990 = vld [vmem:[%s216 + $0x1548] sm:$0xff]
        %v991 = vld [vmem:[%s216 + $0x1550] sm:$0xff]
        %v992 = vld [vmem:[%s216 + $0x1558] sm:$0xff]
        %v993 = vld [vmem:[%s216 + $0x1560] sm:$0xff]
        %v994 = vld [vmem:[%s216 + $0x1568] sm:$0xff]
        %v995 = vld [vmem:[%s216 + $0x1570] sm:$0xff]
        %v996 = vld [vmem:[%s216 + $0x1578] sm:$0xff]
        %v997 = vld [vmem:[%s216 + $0x1580] sm:$0xff]
        %v998 = vld [vmem:[%s216 + $0x1588] sm:$0xff]
        %v999 = vld [vmem:[%s216 + $0x1590] sm:$0xff]
        %v1000 = vld [vmem:[%s216 + $0x1598] sm:$0xff]
        %v1001 = vld [vmem:[%s216 + $0x15a0] sm:$0xff]
        %v1002 = vld [vmem:[%s216 + $0x15a8] sm:$0xff]
        %v1003 = vld [vmem:[%s216 + $0x15b0] sm:$0xff]
        %v1004 = vld [vmem:[%s216 + $0x15b8] sm:$0xff]
        %v1005 = vld [vmem:[%s216 + $0x15c0] sm:$0xff]
        %v1006 = vld [vmem:[%s216 + $0x15c8] sm:$0xff]
        %v1007 = vld [vmem:[%s216 + $0x15d0] sm:$0xff]
        %v1008 = vld [vmem:[%s216 + $0x15d8] sm:$0xff]
        %v1009 = vld [vmem:[%s216 + $0x15e0] sm:$0xff]
        %v1010 = vld [vmem:[%s216 + $0x15e8] sm:$0xff]
        %v1011 = vld [vmem:[%s216 + $0x15f0] sm:$0xff]
        %v1012 = vld [vmem:[%s216 + $0x15f8] sm:$0xff]
        %v1013 = vld [vmem:[%s216 + $0x1600] sm:$0xff]
        %v1014 = vld [vmem:[%s216 + $0x1608] sm:$0xff]
        %v1015 = vld [vmem:[%s216 + $0x1610] sm:$0xff]
        %v1016 = vld [vmem:[%s216 + $0x1618] sm:$0xff]
        %v1017 = vld [vmem:[%s216 + $0x1620] sm:$0xff]
        %v1018 = vld [vmem:[%s216 + $0x1628] sm:$0xff]
        %v1019 = vld [vmem:[%s216 + $0x1630] sm:$0xff]
        %v1020 = vld [vmem:[%s216 + $0x1638] sm:$0xff]
        %v1021 = vld [vmem:[%s216 + $0x1640] sm:$0xff]
        %v1022 = vld [vmem:[%s216 + $0x1648] sm:$0xff]
        %v1023 = vld [vmem:[%s216 + $0x1650] sm:$0xff]
        %v1024 = vld [vmem:[%s216 + $0x1658] sm:$0xff]
        %v1025 = vld [vmem:[%s216 + $0x1660] sm:$0xff]
        %v1026 = vld [vmem:[%s216 + $0x1668] sm:$0xff]
        %v1027 = vld [vmem:[%s216 + $0x1670] sm:$0xff]
        %v1028 = vld [vmem:[%s216 + $0x1678] sm:$0xff]
        %v1029 = vld [vmem:[%s216 + $0x1680] sm:$0xff]
        %v1030 = vld [vmem:[%s216 + $0x1688] sm:$0xff]
        %v1031 = vld [vmem:[%s216 + $0x1690] sm:$0xff]
        %v1032 = vld [vmem:[%s216 + $0x1698] sm:$0xff]
        %v1033 = vld [vmem:[%s216 + $0x16a0] sm:$0xff]
        %v1034 = vld [vmem:[%s216 + $0x16a8] sm:$0xff]
        %v1035 = vld [vmem:[%s216 + $0x16b0] sm:$0xff]
        %v1036 = vld [vmem:[%s216 + $0x16b8] sm:$0xff]
        %v1037 = vld [vmem:[%s216 + $0x16c0] sm:$0xff]
        %v1038 = vld [vmem:[%s216 + $0x16c8] sm:$0xff]
        %v1039 = vld [vmem:[%s216 + $0x16d0] sm:$0xff]
        %v1040 = vld [vmem:[%s216 + $0x16d8] sm:$0xff]
        %v1041 = vld [vmem:[%s216 + $0x16e0] sm:$0xff]
        %v1042 = vld [vmem:[%s216 + $0x16e8] sm:$0xff]
        %v1043 = vld [vmem:[%s216 + $0x16f0] sm:$0xff]
        %v1044 = vld [vmem:[%s216 + $0x16f8] sm:$0xff]
        %v1045 = vld [vmem:[%s216 + $0x1700] sm:$0xff]
        %v1046 = vld [vmem:[%s216 + $0x1708] sm:$0xff]
        %v1047 = vld [vmem:[%s216 + $0x1710] sm:$0xff]
        %v1048 = vld [vmem:[%s216 + $0x1718] sm:$0xff]
        %v1049 = vld [vmem:[%s216 + $0x1720] sm:$0xff]
        %v1050 = vld [vmem:[%s216 + $0x1728] sm:$0xff]
        %v1051 = vld [vmem:[%s216 + $0x1730] sm:$0xff]
        %v1052 = vld [vmem:[%s216 + $0x1738] sm:$0xff]
        %v1053 = vld [vmem:[%s216 + $0x1740] sm:$0xff]
        %v1054 = vld [vmem:[%s216 + $0x1748] sm:$0xff]
        %v1055 = vld [vmem:[%s216 + $0x1750] sm:$0xff]
        %v1056 = vld [vmem:[%s216 + $0x1758] sm:$0xff]
        %v1057 = vld [vmem:[%s216 + $0x1760] sm:$0xff]
        %v1058 = vld [vmem:[%s216 + $0x1768] sm:$0xff]
        %v1059 = vld [vmem:[%s216 + $0x1770] sm:$0xff]
        %v1060 = vld [vmem:[%s216 + $0x1778] sm:$0xff]
        %v1061 = vld [vmem:[%s216 + $0x1780] sm:$0xff]
        %v1062 = vld [vmem:[%s216 + $0x1788] sm:$0xff]
        %v1063 = vld [vmem:[%s216 + $0x1790] sm:$0xff]
        %v1064 = vld [vmem:[%s216 + $0x1798] sm:$0xff]
        %v1065 = vld [vmem:[%s216 + $0x17a0] sm:$0xff]
        %v1066 = vld [vmem:[%s216 + $0x17a8] sm:$0xff]
        %v1067 = vld [vmem:[%s216 + $0x17b0] sm:$0xff]
        %v1068 = vld [vmem:[%s216 + $0x17b8] sm:$0xff]
        %v1069 = vld [vmem:[%s216 + $0x17c0] sm:$0xff]
        %v1070 = vld [vmem:[%s216 + $0x17c8] sm:$0xff]
        %v1071 = vld [vmem:[%s216 + $0x17d0] sm:$0xff]
        %v1072 = vld [vmem:[%s216 + $0x17d8] sm:$0xff]
        %v1073 = vld [vmem:[%s216 + $0x17e0] sm:$0xff]
        %v1074 = vld [vmem:[%s216 + $0x17e8] sm:$0xff]
        %v1075 = vld [vmem:[%s216 + $0x17f0] sm:$0xff]
        %v1076 = vld [vmem:[%s216 + $0x17f8] sm:$0xff]
        %v1077 = vld [vmem:[%s216 + $0x1800] sm:$0xff]
        %v1078 = vld [vmem:[%s216 + $0x1808] sm:$0xff]
        %v1079 = vld [vmem:[%s216 + $0x1810] sm:$0xff]
        %v1080 = vld [vmem:[%s216 + $0x1818] sm:$0xff]
        %v1081 = vld [vmem:[%s216 + $0x1820] sm:$0xff]
        %v1082 = vld [vmem:[%s216 + $0x1828] sm:$0xff]
        %v1083 = vld [vmem:[%s216 + $0x1830] sm:$0xff]
        %v1084 = vld [vmem:[%s216 + $0x1838] sm:$0xff]
        %v1085 = vld [vmem:[%s216 + $0x1840] sm:$0xff]
        %v1086 = vld [vmem:[%s216 + $0x1848] sm:$0xff]
        %v1087 = vld [vmem:[%s216 + $0x1850] sm:$0xff]
        %v1088 = vld [vmem:[%s216 + $0x1858] sm:$0xff]
        %v1089 = vld [vmem:[%s216 + $0x1860] sm:$0xff]
        %v1090 = vld [vmem:[%s216 + $0x1868] sm:$0xff]
        %v1091 = vld [vmem:[%s216 + $0x1870] sm:$0xff]
        %v1092 = vld [vmem:[%s216 + $0x1878] sm:$0xff]
        %v1093 = vld [vmem:[%s216 + $0x1880] sm:$0xff]
        %v1094 = vld [vmem:[%s216 + $0x1888] sm:$0xff]
        %v1095 = vld [vmem:[%s216 + $0x1890] sm:$0xff]
        %v1096 = vld [vmem:[%s216 + $0x1898] sm:$0xff]
        %v1097 = vld [vmem:[%s216 + $0x18a0] sm:$0xff]
        %v1098 = vld [vmem:[%s216 + $0x18a8] sm:$0xff]
        %v1099 = vld [vmem:[%s216 + $0x18b0] sm:$0xff]
        %v1100 = vld [vmem:[%s216 + $0x18b8] sm:$0xff]
        %v1101 = vld [vmem:[%s216 + $0x18c0] sm:$0xff]
        %v1102 = vld [vmem:[%s216 + $0x18c8] sm:$0xff]
        %v1103 = vld [vmem:[%s216 + $0x18d0] sm:$0xff]
        %v1104 = vld [vmem:[%s216 + $0x18d8] sm:$0xff]
        %v1105 = vld [vmem:[%s216 + $0x18e0] sm:$0xff]
        %v1106 = vld [vmem:[%s216 + $0x18e8] sm:$0xff]
        %v1107 = vld [vmem:[%s216 + $0x18f0] sm:$0xff]
        %v1108 = vld [vmem:[%s216 + $0x18f8] sm:$0xff]
        %v1109 = vld [vmem:[%s216 + $0x1900] sm:$0xff]
        %v1110 = vld [vmem:[%s216 + $0x1908] sm:$0xff]
        %v1111 = vld [vmem:[%s216 + $0x1910] sm:$0xff]
        %v1112 = vld [vmem:[%s216 + $0x1918] sm:$0xff]
        %v1113 = vld [vmem:[%s216 + $0x1920] sm:$0xff]
        %v1114 = vld [vmem:[%s216 + $0x1928] sm:$0xff]
        %v1115 = vld [vmem:[%s216 + $0x1930] sm:$0xff]
        %v1116 = vld [vmem:[%s216 + $0x1938] sm:$0xff]
        %v1117 = vld [vmem:[%s216 + $0x1940] sm:$0xff]
        %v1118 = vld [vmem:[%s216 + $0x1948] sm:$0xff]
        %v1119 = vld [vmem:[%s216 + $0x1950] sm:$0xff]
        %v1120 = vld [vmem:[%s216 + $0x1958] sm:$0xff]
        %v1121 = vld [vmem:[%s216 + $0x1960] sm:$0xff]
        %v1122 = vld [vmem:[%s216 + $0x1968] sm:$0xff]
        %v1123 = vld [vmem:[%s216 + $0x1970] sm:$0xff]
        %v1124 = vld [vmem:[%s216 + $0x1978] sm:$0xff]
        %v1125 = vld [vmem:[%s216 + $0x1980] sm:$0xff]
        %v1126 = vld [vmem:[%s216 + $0x1988] sm:$0xff]
        %v1127 = vld [vmem:[%s216 + $0x1990] sm:$0xff]
        %v1128 = vld [vmem:[%s216 + $0x1998] sm:$0xff]
        %v1129 = vld [vmem:[%s216 + $0x19a0] sm:$0xff]
        %v1130 = vld [vmem:[%s216 + $0x19a8] sm:$0xff]
        %v1131 = vld [vmem:[%s216 + $0x19b0] sm:$0xff]
        %v1132 = vld [vmem:[%s216 + $0x19b8] sm:$0xff]
        %v1133 = vld [vmem:[%s216 + $0x19c0] sm:$0xff]
        %v1134 = vld [vmem:[%s216 + $0x19c8] sm:$0xff]
        %v1135 = vld [vmem:[%s216 + $0x19d0] sm:$0xff]
        %v1136 = vld [vmem:[%s216 + $0x19d8] sm:$0xff]
        %v1137 = vld [vmem:[%s216 + $0x19e0] sm:$0xff]
        %v1138 = vld [vmem:[%s216 + $0x19e8] sm:$0xff]
        %v1139 = vld [vmem:[%s216 + $0x19f0] sm:$0xff]
        %v1140 = vld [vmem:[%s216 + $0x19f8] sm:$0xff]
        %v1141 = vld [vmem:[%s216 + $0x1a00] sm:$0xff]
        %v1142 = vld [vmem:[%s216 + $0x1a08] sm:$0xff]
        %v1143 = vld [vmem:[%s216 + $0x1a10] sm:$0xff]
        %v1144 = vld [vmem:[%s216 + $0x1a18] sm:$0xff]
        %v1145 = vld [vmem:[%s216 + $0x1a20] sm:$0xff]
        %v1146 = vld [vmem:[%s216 + $0x1a28] sm:$0xff]
        %v1147 = vld [vmem:[%s216 + $0x1a30] sm:$0xff]
        %v1148 = vld [vmem:[%s216 + $0x1a38] sm:$0xff]
        %v1149 = vld [vmem:[%s216 + $0x1a40] sm:$0xff]
        %v1150 = vld [vmem:[%s216 + $0x1a48] sm:$0xff]
        %v1151 = vld [vmem:[%s216 + $0x1a50] sm:$0xff]
        %v1152 = vld [vmem:[%s216 + $0x1a58] sm:$0xff]
        %v1153 = vld [vmem:[%s216 + $0x1a60] sm:$0xff]
        %v1154 = vld [vmem:[%s216 + $0x1a68] sm:$0xff]
        %v1155 = vld [vmem:[%s216 + $0x1a70] sm:$0xff]
        %v1156 = vld [vmem:[%s216 + $0x1a78] sm:$0xff]
        %v1157 = vld [vmem:[%s216 + $0x1a80] sm:$0xff]
        %v1158 = vld [vmem:[%s216 + $0x1a88] sm:$0xff]
        %v1159 = vld [vmem:[%s216 + $0x1a90] sm:$0xff]
        %v1160 = vld [vmem:[%s216 + $0x1a98] sm:$0xff]
        %v1161 = vld [vmem:[%s216 + $0x1aa0] sm:$0xff]
        %v1162 = vld [vmem:[%s216 + $0x1aa8] sm:$0xff]
        %v1163 = vld [vmem:[%s216 + $0x1ab0] sm:$0xff]
        %v1164 = vld [vmem:[%s216 + $0x1ab8] sm:$0xff]
        %v1165 = vld [vmem:[%s216 + $0x1ac0] sm:$0xff]
        %v1166 = vld [vmem:[%s216 + $0x1ac8] sm:$0xff]
        %v1167 = vld [vmem:[%s216 + $0x1ad0] sm:$0xff]
        %v1168 = vld [vmem:[%s216 + $0x1ad8] sm:$0xff]
        %v1169 = vld [vmem:[%s216 + $0x1ae0] sm:$0xff]
        %v1170 = vld [vmem:[%s216 + $0x1ae8] sm:$0xff]
        %v1171 = vld [vmem:[%s216 + $0x1af0] sm:$0xff]
        %v1172 = vld [vmem:[%s216 + $0x1af8] sm:$0xff]
        %v1173 = vld [vmem:[%s216 + $0x1b00] sm:$0xff]
        %v1174 = vld [vmem:[%s216 + $0x1b08] sm:$0xff]
        %v1175 = vld [vmem:[%s216 + $0x1b10] sm:$0xff]
        %v1176 = vld [vmem:[%s216 + $0x1b18] sm:$0xff]
        %v1177 = vld [vmem:[%s216 + $0x1b20] sm:$0xff]
        %v1178 = vld [vmem:[%s216 + $0x1b28] sm:$0xff]
        %v1179 = vld [vmem:[%s216 + $0x1b30] sm:$0xff]
        %v1180 = vld [vmem:[%s216 + $0x1b38] sm:$0xff]
        %v1181 = vld [vmem:[%s216 + $0x1b40] sm:$0xff]
        %v1182 = vld [vmem:[%s216 + $0x1b48] sm:$0xff]
        %v1183 = vld [vmem:[%s216 + $0x1b50] sm:$0xff]
        %v1184 = vld [vmem:[%s216 + $0x1b58] sm:$0xff]
        %v1185 = vld [vmem:[%s216 + $0x1b60] sm:$0xff]
        %v1186 = vld [vmem:[%s216 + $0x1b68] sm:$0xff]
        %v1187 = vld [vmem:[%s216 + $0x1b70] sm:$0xff]
        %v1188 = vld [vmem:[%s216 + $0x1b78] sm:$0xff]
        %v1189 = vld [vmem:[%s216 + $0x1b80] sm:$0xff]
        %v1190 = vld [vmem:[%s216 + $0x1b88] sm:$0xff]
        %v1191 = vld [vmem:[%s216 + $0x1b90] sm:$0xff]
        %v1192 = vld [vmem:[%s216 + $0x1b98] sm:$0xff]
        %v1193 = vld [vmem:[%s216 + $0x1ba0] sm:$0xff]
        %v1194 = vld [vmem:[%s216 + $0x1ba8] sm:$0xff]
        %v1195 = vld [vmem:[%s216 + $0x1bb0] sm:$0xff]
        %v1196 = vld [vmem:[%s216 + $0x1bb8] sm:$0xff]
        %v1197 = vld [vmem:[%s216 + $0x1bc0] sm:$0xff]
        %v1198 = vld [vmem:[%s216 + $0x1bc8] sm:$0xff]
        %v1199 = vld [vmem:[%s216 + $0x1bd0] sm:$0xff]
        %v1200 = vld [vmem:[%s216 + $0x1bd8] sm:$0xff]
        %v1201 = vld [vmem:[%s216 + $0x1be0] sm:$0xff]
        %v1202 = vld [vmem:[%s216 + $0x1be8] sm:$0xff]
        %v1203 = vld [vmem:[%s216 + $0x1bf0] sm:$0xff]
        %v1204 = vld [vmem:[%s216 + $0x1bf8] sm:$0xff]
        %1205 = vmatprep.subr.mxu0 %v370
        %1206 = vmatpush1.msra.mxu0 %v369
        %1207 = vmatprep.subr.mxu0 %v366
        %1208 = vmatpush1.msra.mxu0 %v365
        %1209 = vmatprep.subr.mxu0 %v362
        %1210 = vmatpush1.msra.mxu0 %v361
        %1211 = vmatprep.subr.mxu0 %v358
        %1212 = vmatpush1.msra.mxu0 %v357
        %1213 = vmatprep.subr.mxu0 %v354
        %1214 = vmatpush1.msra.mxu0 %v353
        %1215 = vmatprep.subr.mxu0 %v350
        %1216 = vmatpush1.msra.mxu0 %v349
        %1217 = vmatprep.subr.mxu0 %v346
        %1218 = vmatpush1.msra.mxu0 %v345
        %1219 = vmatprep.subr.mxu0 %v342
        %1220 = vmatpush1.msra.mxu0 %v341
        %1221 = vmatprep.subr.mxu0 %v338
        %1222 = vmatpush1.msra.mxu0 %v337
        %1223 = vmatprep.subr.mxu0 %v334
        %1224 = vmatpush1.msra.mxu0 %v333
        %1225 = vmatprep.subr.mxu0 %v330
        %1226 = vmatpush1.msra.mxu0 %v329
        %1227 = vmatprep.subr.mxu0 %v326
        %1228 = vmatpush1.msra.mxu0 %v325
        %1229 = vmatprep.subr.mxu0 %v322
        %1230 = vmatpush1.msra.mxu0 %v321
        %1231 = vmatprep.subr.mxu0 %v318
        %1232 = vmatpush1.msra.mxu0 %v317
        %1233 = vmatprep.subr.mxu0 %v314
        %1234 = vmatpush1.msra.mxu0 %v313
        %1235 = vmatprep.subr.mxu0 %v310
        %1236 = vmatpush1.msra.mxu0 %v309
        %1237 = vmatprep.subr.mxu0 %v434
        %1238 = vmatpush2.msra.mxu0 %v433
        %1239 = vmatprep.subr.mxu0 %v430
        %1240 = vmatpush2.msra.mxu0 %v429
        %1241 = vmatprep.subr.mxu0 %v426
        %1242 = vmatpush2.msra.mxu0 %v425
        %1243 = vmatprep.subr.mxu0 %v422
        %1244 = vmatpush2.msra.mxu0 %v421
        %1245 = vmatprep.subr.mxu0 %v418
        %1246 = vmatpush2.msra.mxu0 %v417
        %1247 = vmatprep.subr.mxu0 %v414
        %1248 = vmatpush2.msra.mxu0 %v413
        %1249 = vmatprep.subr.mxu0 %v410
        %1250 = vmatpush2.msra.mxu0 %v409
        %1251 = vmatprep.subr.mxu0 %v406
        %1252 = vmatpush2.msra.mxu0 %v405
        %1253 = vmatprep.subr.mxu0 %v402
        %1254 = vmatpush2.msra.mxu0 %v401
        %1255 = vmatprep.subr.mxu0 %v398
        %1256 = vmatpush2.msra.mxu0 %v397
        %1257 = vmatprep.subr.mxu0 %v394
        %1258 = vmatpush2.msra.mxu0 %v393
        %1259 = vmatprep.subr.mxu0 %v390
        %1260 = vmatpush2.msra.mxu0 %v389
        %1261 = vmatprep.subr.mxu0 %v386
        %1262 = vmatpush2.msra.mxu0 %v385
        %1263 = vmatprep.subr.mxu0 %v382
        %1264 = vmatpush2.msra.mxu0 %v381
        %1265 = vmatprep.subr.mxu0 %v378
        %1266 = vmatpush2.msra.mxu0 %v377
        %1267 = vmatprep.subr.mxu0 %v374
        %1268 = vmatpush2.msra.mxu0 %v373
        %1269 = vmatprep.mubr.f32.mxu0 %v296
        %1270 = vmatmul.mubr.f32.gmra.mxu0 %v295
        %v1271 = vpop.f32.mrf.mxu0
        %v1272 = vadd.f32 0.0, %v1271
        %v1273 = vpop.f32.mrf.mxu0
        %v1274 = vadd.f32 0.0, %v1273
        %1275 = vdwg.mxu0
        %1276 = vmatprep.subr.mxu0 %v498
        %1277 = vmatpush1.msra.mxu0 %v497
        %1278 = vmatprep.subr.mxu0 %v494
        %1279 = vmatpush1.msra.mxu0 %v493
        %1280 = vmatprep.subr.mxu0 %v490
        %1281 = vmatpush1.msra.mxu0 %v489
        %1282 = vmatprep.subr.mxu0 %v486
        %1283 = vmatpush1.msra.mxu0 %v485
        %1284 = vmatprep.subr.mxu0 %v482
        %1285 = vmatpush1.msra.mxu0 %v481
        %1286 = vmatprep.subr.mxu0 %v478
        %1287 = vmatpush1.msra.mxu0 %v477
        %1288 = vmatprep.subr.mxu0 %v474
        %1289 = vmatpush1.msra.mxu0 %v473
        %1290 = vmatprep.subr.mxu0 %v470
        %1291 = vmatpush1.msra.mxu0 %v469
        %1292 = vmatprep.subr.mxu0 %v466
        %1293 = vmatpush1.msra.mxu0 %v465
        %1294 = vmatprep.subr.mxu0 %v462
        %1295 = vmatpush1.msra.mxu0 %v461
        %1296 = vmatprep.subr.mxu0 %v458
        %1297 = vmatpush1.msra.mxu0 %v457
        %1298 = vmatprep.subr.mxu0 %v454
        %1299 = vmatpush1.msra.mxu0 %v453
        %1300 = vmatprep.subr.mxu0 %v450
        %1301 = vmatpush1.msra.mxu0 %v449
        %1302 = vmatprep.subr.mxu0 %v446
        %1303 = vmatpush1.msra.mxu0 %v445
        %1304 = vmatprep.subr.mxu0 %v442
        %1305 = vmatpush1.msra.mxu0 %v441
        %1306 = vmatprep.subr.mxu0 %v438
        %1307 = vmatpush1.msra.mxu0 %v437
        %1308 = vmatprep.subr.mxu0 %v562
        %1309 = vmatpush2.msra.mxu0 %v561
        %1310 = vmatprep.subr.mxu0 %v558
        %1311 = vmatpush2.msra.mxu0 %v557
        %1312 = vmatprep.subr.mxu0 %v554
        %1313 = vmatpush2.msra.mxu0 %v553
        %1314 = vmatprep.subr.mxu0 %v550
        %1315 = vmatpush2.msra.mxu0 %v549
        %1316 = vmatprep.subr.mxu0 %v546
        %1317 = vmatpush2.msra.mxu0 %v545
        %1318 = vmatprep.subr.mxu0 %v542
        %1319 = vmatpush2.msra.mxu0 %v541
        %1320 = vmatprep.subr.mxu0 %v538
        %1321 = vmatpush2.msra.mxu0 %v537
        %1322 = vmatprep.subr.mxu0 %v534
        %1323 = vmatpush2.msra.mxu0 %v533
        %1324 = vmatprep.subr.mxu0 %v530
        %1325 = vmatpush2.msra.mxu0 %v529
        %1326 = vmatprep.subr.mxu0 %v526
        %1327 = vmatpush2.msra.mxu0 %v525
        %1328 = vmatprep.subr.mxu0 %v522
        %1329 = vmatpush2.msra.mxu0 %v521
        %1330 = vmatprep.subr.mxu0 %v518
        %1331 = vmatpush2.msra.mxu0 %v517
        %1332 = vmatprep.subr.mxu0 %v514
        %1333 = vmatpush2.msra.mxu0 %v513
        %1334 = vmatprep.subr.mxu0 %v510
        %1335 = vmatpush2.msra.mxu0 %v509
        %1336 = vmatprep.subr.mxu0 %v506
        %1337 = vmatpush2.msra.mxu0 %v505
        %1338 = vmatprep.subr.mxu0 %v502
        %1339 = vmatpush2.msra.mxu0 %v501
        %1340 = vmatprep.mubr.f32.mxu0 %v298
        %1341 = vmatmul.mubr.f32.gmra.mxu0 %v297
        %v1342 = vpop.f32.mrf.mxu0
        %v1343 = vadd.f32 %v1272, %v1342
        %v1344 = vpop.f32.mrf.mxu0
        %v1345 = vadd.f32 %v1274, %v1344
        %1346 = vdwg.mxu0
        %1347 = vmatprep.subr.mxu0 %v626
        %1348 = vmatpush1.msra.mxu0 %v625
        %1349 = vmatprep.subr.mxu0 %v622
        %1350 = vmatpush1.msra.mxu0 %v621
        %1351 = vmatprep.subr.mxu0 %v618
        %1352 = vmatpush1.msra.mxu0 %v617
        %1353 = vmatprep.subr.mxu0 %v614
        %1354 = vmatpush1.msra.mxu0 %v613
        %1355 = vmatprep.subr.mxu0 %v610
        %1356 = vmatpush1.msra.mxu0 %v609
        %1357 = vmatprep.subr.mxu0 %v606
        %1358 = vmatpush1.msra.mxu0 %v605
        %1359 = vmatprep.subr.mxu0 %v602
        %1360 = vmatpush1.msra.mxu0 %v601
        %1361 = vmatprep.subr.mxu0 %v598
        %1362 = vmatpush1.msra.mxu0 %v597
        %1363 = vmatprep.subr.mxu0 %v594
        %1364 = vmatpush1.msra.mxu0 %v593
        %1365 = vmatprep.subr.mxu0 %v590
        %1366 = vmatpush1.msra.mxu0 %v589
        %1367 = vmatprep.subr.mxu0 %v586
        %1368 = vmatpush1.msra.mxu0 %v585
        %1369 = vmatprep.subr.mxu0 %v582
        %1370 = vmatpush1.msra.mxu0 %v581
        %1371 = vmatprep.subr.mxu0 %v578
        %1372 = vmatpush1.msra.mxu0 %v577
        %1373 = vmatprep.subr.mxu0 %v574
        %1374 = vmatpush1.msra.mxu0 %v573
        %1375 = vmatprep.subr.mxu0 %v570
        %1376 = vmatpush1.msra.mxu0 %v569
        %1377 = vmatprep.subr.mxu0 %v566
        %1378 = vmatpush1.msra.mxu0 %v565
        %1379 = vmatprep.subr.mxu0 %v690
        %1380 = vmatpush2.msra.mxu0 %v689
        %1381 = vmatprep.subr.mxu0 %v686
        %1382 = vmatpush2.msra.mxu0 %v685
        %1383 = vmatprep.subr.mxu0 %v682
        %1384 = vmatpush2.msra.mxu0 %v681
        %1385 = vmatprep.subr.mxu0 %v678
        %1386 = vmatpush2.msra.mxu0 %v677
        %1387 = vmatprep.subr.mxu0 %v674
        %1388 = vmatpush2.msra.mxu0 %v673
        %1389 = vmatprep.subr.mxu0 %v670
        %1390 = vmatpush2.msra.mxu0 %v669
        %1391 = vmatprep.subr.mxu0 %v666
        %1392 = vmatpush2.msra.mxu0 %v665
        %1393 = vmatprep.subr.mxu0 %v662
        %1394 = vmatpush2.msra.mxu0 %v661
        %1395 = vmatprep.subr.mxu0 %v658
        %1396 = vmatpush2.msra.mxu0 %v657
        %1397 = vmatprep.subr.mxu0 %v654
        %1398 = vmatpush2.msra.mxu0 %v653
        %1399 = vmatprep.subr.mxu0 %v650
        %1400 = vmatpush2.msra.mxu0 %v649
        %1401 = vmatprep.subr.mxu0 %v646
        %1402 = vmatpush2.msra.mxu0 %v645
        %1403 = vmatprep.subr.mxu0 %v642
        %1404 = vmatpush2.msra.mxu0 %v641
        %1405 = vmatprep.subr.mxu0 %v638
        %1406 = vmatpush2.msra.mxu0 %v637
        %1407 = vmatprep.subr.mxu0 %v634
        %1408 = vmatpush2.msra.mxu0 %v633
        %1409 = vmatprep.subr.mxu0 %v630
        %1410 = vmatpush2.msra.mxu0 %v629
        %1411 = vmatprep.mubr.f32.mxu0 %v300
        %1412 = vmatmul.mubr.f32.gmra.mxu0 %v299
        %v1413 = vpop.f32.mrf.mxu0
        %v1414 = vadd.f32 %v1343, %v1413
        %v1415 = vpop.f32.mrf.mxu0
        %v1416 = vadd.f32 %v1345, %v1415
        %1417 = vdwg.mxu0
        %1418 = vmatprep.subr.mxu0 %v754
        %1419 = vmatpush1.msra.mxu0 %v753
        %1420 = vmatprep.subr.mxu0 %v750
        %1421 = vmatpush1.msra.mxu0 %v749
        %1422 = vmatprep.subr.mxu0 %v746
        %1423 = vmatpush1.msra.mxu0 %v745
        %1424 = vmatprep.subr.mxu0 %v742
        %1425 = vmatpush1.msra.mxu0 %v741
        %1426 = vmatprep.subr.mxu0 %v738
        %1427 = vmatpush1.msra.mxu0 %v737
        %1428 = vmatprep.subr.mxu0 %v734
        %1429 = vmatpush1.msra.mxu0 %v733
        %1430 = vmatprep.subr.mxu0 %v730
        %1431 = vmatpush1.msra.mxu0 %v729
        %1432 = vmatprep.subr.mxu0 %v726
        %1433 = vmatpush1.msra.mxu0 %v725
        %1434 = vmatprep.subr.mxu0 %v722
        %1435 = vmatpush1.msra.mxu0 %v721
        %1436 = vmatprep.subr.mxu0 %v718
        %1437 = vmatpush1.msra.mxu0 %v717
        %1438 = vmatprep.subr.mxu0 %v714
        %1439 = vmatpush1.msra.mxu0 %v713
        %1440 = vmatprep.subr.mxu0 %v710
        %1441 = vmatpush1.msra.mxu0 %v709
        %1442 = vmatprep.subr.mxu0 %v706
        %1443 = vmatpush1.msra.mxu0 %v705
        %1444 = vmatprep.subr.mxu0 %v702
        %1445 = vmatpush1.msra.mxu0 %v701
        %1446 = vmatprep.subr.mxu0 %v698
        %1447 = vmatpush1.msra.mxu0 %v697
        %1448 = vmatprep.subr.mxu0 %v694
        %1449 = vmatpush1.msra.mxu0 %v693
        %1450 = vmatprep.subr.mxu0 %v818
        %1451 = vmatpush2.msra.mxu0 %v817
        %1452 = vmatprep.subr.mxu0 %v814
        %1453 = vmatpush2.msra.mxu0 %v813
        %1454 = vmatprep.subr.mxu0 %v810
        %1455 = vmatpush2.msra.mxu0 %v809
        %1456 = vmatprep.subr.mxu0 %v806
        %1457 = vmatpush2.msra.mxu0 %v805
        %1458 = vmatprep.subr.mxu0 %v802
        %1459 = vmatpush2.msra.mxu0 %v801
        %1460 = vmatprep.subr.mxu0 %v798
        %1461 = vmatpush2.msra.mxu0 %v797
        %1462 = vmatprep.subr.mxu0 %v794
        %1463 = vmatpush2.msra.mxu0 %v793
        %1464 = vmatprep.subr.mxu0 %v790
        %1465 = vmatpush2.msra.mxu0 %v789
        %1466 = vmatprep.subr.mxu0 %v786
        %1467 = vmatpush2.msra.mxu0 %v785
        %1468 = vmatprep.subr.mxu0 %v782
        %1469 = vmatpush2.msra.mxu0 %v781
        %1470 = vmatprep.subr.mxu0 %v778
        %1471 = vmatpush2.msra.mxu0 %v777
        %1472 = vmatprep.subr.mxu0 %v774
        %1473 = vmatpush2.msra.mxu0 %v773
        %1474 = vmatprep.subr.mxu0 %v770
        %1475 = vmatpush2.msra.mxu0 %v769
        %1476 = vmatprep.subr.mxu0 %v766
        %1477 = vmatpush2.msra.mxu0 %v765
        %1478 = vmatprep.subr.mxu0 %v762
        %1479 = vmatpush2.msra.mxu0 %v761
        %1480 = vmatprep.subr.mxu0 %v758
        %1481 = vmatpush2.msra.mxu0 %v757
        %1482 = vmatprep.mubr.f32.mxu0 %v302
        %1483 = vmatmul.mubr.f32.gmra.mxu0 %v301
        %v1484 = vpop.f32.mrf.mxu0
        %v1485 = vadd.f32 %v1414, %v1484
        %v1486 = vpop.f32.mrf.mxu0
        %v1487 = vadd.f32 %v1416, %v1486
        %1488 = vdwg.mxu0
        %1489 = vmatprep.subr.mxu0 %v882
        %1490 = vmatpush1.msra.mxu0 %v881
        %1491 = vmatprep.subr.mxu0 %v878
        %1492 = vmatpush1.msra.mxu0 %v877
        %1493 = vmatprep.subr.mxu0 %v874
        %1494 = vmatpush1.msra.mxu0 %v873
        %1495 = vmatprep.subr.mxu0 %v870
        %1496 = vmatpush1.msra.mxu0 %v869
        %1497 = vmatprep.subr.mxu0 %v866
        %1498 = vmatpush1.msra.mxu0 %v865
        %1499 = vmatprep.subr.mxu0 %v862
        %1500 = vmatpush1.msra.mxu0 %v861
        %1501 = vmatprep.subr.mxu0 %v858
        %1502 = vmatpush1.msra.mxu0 %v857
        %1503 = vmatprep.subr.mxu0 %v854
        %1504 = vmatpush1.msra.mxu0 %v853
        %1505 = vmatprep.subr.mxu0 %v850
        %1506 = vmatpush1.msra.mxu0 %v849
        %1507 = vmatprep.subr.mxu0 %v846
        %1508 = vmatpush1.msra.mxu0 %v845
        %1509 = vmatprep.subr.mxu0 %v842
        %1510 = vmatpush1.msra.mxu0 %v841
        %1511 = vmatprep.subr.mxu0 %v838
        %1512 = vmatpush1.msra.mxu0 %v837
        %1513 = vmatprep.subr.mxu0 %v834
        %1514 = vmatpush1.msra.mxu0 %v833
        %1515 = vmatprep.subr.mxu0 %v830
        %1516 = vmatpush1.msra.mxu0 %v829
        %1517 = vmatprep.subr.mxu0 %v826
        %1518 = vmatpush1.msra.mxu0 %v825
        %1519 = vmatprep.subr.mxu0 %v822
        %1520 = vmatpush1.msra.mxu0 %v821
        %1521 = vmatprep.subr.mxu0 %v946
        %1522 = vmatpush2.msra.mxu0 %v945
        %1523 = vmatprep.subr.mxu0 %v942
        %1524 = vmatpush2.msra.mxu0 %v941
        %1525 = vmatprep.subr.mxu0 %v938
        %1526 = vmatpush2.msra.mxu0 %v937
        %1527 = vmatprep.subr.mxu0 %v934
        %1528 = vmatpush2.msra.mxu0 %v933
        %1529 = vmatprep.subr.mxu0 %v930
        %1530 = vmatpush2.msra.mxu0 %v929
        %1531 = vmatprep.subr.mxu0 %v926
        %1532 = vmatpush2.msra.mxu0 %v925
        %1533 = vmatprep.subr.mxu0 %v922
        %1534 = vmatpush2.msra.mxu0 %v921
        %1535 = vmatprep.subr.mxu0 %v918
        %1536 = vmatpush2.msra.mxu0 %v917
        %1537 = vmatprep.subr.mxu0 %v914
        %1538 = vmatpush2.msra.mxu0 %v913
        %1539 = vmatprep.subr.mxu0 %v910
        %1540 = vmatpush2.msra.mxu0 %v909
        %1541 = vmatprep.subr.mxu0 %v906
        %1542 = vmatpush2.msra.mxu0 %v905
        %1543 = vmatprep.subr.mxu0 %v902
        %1544 = vmatpush2.msra.mxu0 %v901
        %1545 = vmatprep.subr.mxu0 %v898
        %1546 = vmatpush2.msra.mxu0 %v897
        %1547 = vmatprep.subr.mxu0 %v894
        %1548 = vmatpush2.msra.mxu0 %v893
        %1549 = vmatprep.subr.mxu0 %v890
        %1550 = vmatpush2.msra.mxu0 %v889
        %1551 = vmatprep.subr.mxu0 %v886
        %1552 = vmatpush2.msra.mxu0 %v885
        %1553 = vmatprep.mubr.f32.mxu0 %v304
        %1554 = vmatmul.mubr.f32.gmra.mxu0 %v303
        %v1555 = vpop.f32.mrf.mxu0
        %v1556 = vadd.f32 %v1485, %v1555
        %v1557 = vpop.f32.mrf.mxu0
        %v1558 = vadd.f32 %v1487, %v1557
        %1559 = vdwg.mxu0
        %1560 = vmatprep.subr.mxu0 %v1010
        %1561 = vmatpush1.msra.mxu0 %v1009
        %1562 = vmatprep.subr.mxu0 %v1006
        %1563 = vmatpush1.msra.mxu0 %v1005
        %1564 = vmatprep.subr.mxu0 %v1002
        %1565 = vmatpush1.msra.mxu0 %v1001
        %1566 = vmatprep.subr.mxu0 %v998
        %1567 = vmatpush1.msra.mxu0 %v997
        %1568 = vmatprep.subr.mxu0 %v994
        %1569 = vmatpush1.msra.mxu0 %v993
        %1570 = vmatprep.subr.mxu0 %v990
        %1571 = vmatpush1.msra.mxu0 %v989
        %1572 = vmatprep.subr.mxu0 %v986
        %1573 = vmatpush1.msra.mxu0 %v985
        %1574 = vmatprep.subr.mxu0 %v982
        %1575 = vmatpush1.msra.mxu0 %v981
        %1576 = vmatprep.subr.mxu0 %v978
        %1577 = vmatpush1.msra.mxu0 %v977
        %1578 = vmatprep.subr.mxu0 %v974
        %1579 = vmatpush1.msra.mxu0 %v973
        %1580 = vmatprep.subr.mxu0 %v970
        %1581 = vmatpush1.msra.mxu0 %v969
        %1582 = vmatprep.subr.mxu0 %v966
        %1583 = vmatpush1.msra.mxu0 %v965
        %1584 = vmatprep.subr.mxu0 %v962
        %1585 = vmatpush1.msra.mxu0 %v961
        %1586 = vmatprep.subr.mxu0 %v958
        %1587 = vmatpush1.msra.mxu0 %v957
        %1588 = vmatprep.subr.mxu0 %v954
        %1589 = vmatpush1.msra.mxu0 %v953
        %1590 = vmatprep.subr.mxu0 %v950
        %1591 = vmatpush1.msra.mxu0 %v949
        %1592 = vmatprep.subr.mxu0 %v1074
        %1593 = vmatpush2.msra.mxu0 %v1073
        %1594 = vmatprep.subr.mxu0 %v1070
        %1595 = vmatpush2.msra.mxu0 %v1069
        %1596 = vmatprep.subr.mxu0 %v1066
        %1597 = vmatpush2.msra.mxu0 %v1065
        %1598 = vmatprep.subr.mxu0 %v1062
        %1599 = vmatpush2.msra.mxu0 %v1061
        %1600 = vmatprep.subr.mxu0 %v1058
        %1601 = vmatpush2.msra.mxu0 %v1057
        %1602 = vmatprep.subr.mxu0 %v1054
        %1603 = vmatpush2.msra.mxu0 %v1053
        %1604 = vmatprep.subr.mxu0 %v1050
        %1605 = vmatpush2.msra.mxu0 %v1049
        %1606 = vmatprep.subr.mxu0 %v1046
        %1607 = vmatpush2.msra.mxu0 %v1045
        %1608 = vmatprep.subr.mxu0 %v1042
        %1609 = vmatpush2.msra.mxu0 %v1041
        %1610 = vmatprep.subr.mxu0 %v1038
        %1611 = vmatpush2.msra.mxu0 %v1037
        %1612 = vmatprep.subr.mxu0 %v1034
        %1613 = vmatpush2.msra.mxu0 %v1033
        %1614 = vmatprep.subr.mxu0 %v1030
        %1615 = vmatpush2.msra.mxu0 %v1029
        %1616 = vmatprep.subr.mxu0 %v1026
        %1617 = vmatpush2.msra.mxu0 %v1025
        %1618 = vmatprep.subr.mxu0 %v1022
        %1619 = vmatpush2.msra.mxu0 %v1021
        %1620 = vmatprep.subr.mxu0 %v1018
        %1621 = vmatpush2.msra.mxu0 %v1017
        %1622 = vmatprep.subr.mxu0 %v1014
        %1623 = vmatpush2.msra.mxu0 %v1013
        %1624 = vmatprep.mubr.f32.mxu0 %v306
        %1625 = vmatmul.mubr.f32.gmra.mxu0 %v305
        %v1626 = vpop.f32.mrf.mxu0
        %v1627 = vadd.f32 %v1556, %v1626
        %v1628 = vpop.f32.mrf.mxu0
        %v1629 = vadd.f32 %v1558, %v1628
        %1630 = vdwg.mxu0
        %1631 = vmatprep.subr.mxu0 %v1138
        %1632 = vmatpush1.msra.mxu0 %v1137
        %1633 = vmatprep.subr.mxu0 %v1134
        %1634 = vmatpush1.msra.mxu0 %v1133
        %1635 = vmatprep.subr.mxu0 %v1130
        %1636 = vmatpush1.msra.mxu0 %v1129
        %1637 = vmatprep.subr.mxu0 %v1126
        %1638 = vmatpush1.msra.mxu0 %v1125
        %1639 = vmatprep.subr.mxu0 %v1122
        %1640 = vmatpush1.msra.mxu0 %v1121
        %1641 = vmatprep.subr.mxu0 %v1118
        %1642 = vmatpush1.msra.mxu0 %v1117
        %1643 = vmatprep.subr.mxu0 %v1114
        %1644 = vmatpush1.msra.mxu0 %v1113
        %1645 = vmatprep.subr.mxu0 %v1110
        %1646 = vmatpush1.msra.mxu0 %v1109
        %1647 = vmatprep.subr.mxu0 %v1106
        %1648 = vmatpush1.msra.mxu0 %v1105
        %1649 = vmatprep.subr.mxu0 %v1102
        %1650 = vmatpush1.msra.mxu0 %v1101
        %1651 = vmatprep.subr.mxu0 %v1098
        %1652 = vmatpush1.msra.mxu0 %v1097
        %1653 = vmatprep.subr.mxu0 %v1094
        %1654 = vmatpush1.msra.mxu0 %v1093
        %1655 = vmatprep.subr.mxu0 %v1090
        %1656 = vmatpush1.msra.mxu0 %v1089
        %1657 = vmatprep.subr.mxu0 %v1086
        %1658 = vmatpush1.msra.mxu0 %v1085
        %1659 = vmatprep.subr.mxu0 %v1082
        %1660 = vmatpush1.msra.mxu0 %v1081
        %1661 = vmatprep.subr.mxu0 %v1078
        %1662 = vmatpush1.msra.mxu0 %v1077
        %1663 = vmatprep.subr.mxu0 %v1202
        %1664 = vmatpush2.msra.mxu0 %v1201
        %1665 = vmatprep.subr.mxu0 %v1198
        %1666 = vmatpush2.msra.mxu0 %v1197
        %1667 = vmatprep.subr.mxu0 %v1194
        %1668 = vmatpush2.msra.mxu0 %v1193
        %1669 = vmatprep.subr.mxu0 %v1190
        %1670 = vmatpush2.msra.mxu0 %v1189
        %1671 = vmatprep.subr.mxu0 %v1186
        %1672 = vmatpush2.msra.mxu0 %v1185
        %1673 = vmatprep.subr.mxu0 %v1182
        %1674 = vmatpush2.msra.mxu0 %v1181
        %1675 = vmatprep.subr.mxu0 %v1178
        %1676 = vmatpush2.msra.mxu0 %v1177
        %1677 = vmatprep.subr.mxu0 %v1174
        %1678 = vmatpush2.msra.mxu0 %v1173
        %1679 = vmatprep.subr.mxu0 %v1170
        %1680 = vmatpush2.msra.mxu0 %v1169
        %1681 = vmatprep.subr.mxu0 %v1166
        %1682 = vmatpush2.msra.mxu0 %v1165
        %1683 = vmatprep.subr.mxu0 %v1162
        %1684 = vmatpush2.msra.mxu0 %v1161
        %1685 = vmatprep.subr.mxu0 %v1158
        %1686 = vmatpush2.msra.mxu0 %v1157
        %1687 = vmatprep.subr.mxu0 %v1154
        %1688 = vmatpush2.msra.mxu0 %v1153
        %1689 = vmatprep.subr.mxu0 %v1150
        %1690 = vmatpush2.msra.mxu0 %v1149
        %1691 = vmatprep.subr.mxu0 %v1146
        %1692 = vmatpush2.msra.mxu0 %v1145
        %1693 = vmatprep.subr.mxu0 %v1142
        %1694 = vmatpush2.msra.mxu0 %v1141
        %1695 = vmatprep.mubr.f32.mxu0 %v308
        %1696 = vmatmul.mubr.f32.gmra.mxu0 %v307
        %v1697 = vpop.f32.mrf.mxu0
        %v1698 = vadd.f32 %v1627, %v1697
        %v1699 = vpop.f32.mrf.mxu0
        %v1700 = vadd.f32 %v1629, %v1699
        %1701 = vdwg.mxu0
        %1702 = vmatprep.subr.mxu0 %v372
        %1703 = vmatpush1.msra.mxu0 %v371
        %1704 = vmatprep.subr.mxu0 %v368
        %1705 = vmatpush1.msra.mxu0 %v367
        %1706 = vmatprep.subr.mxu0 %v364
        %1707 = vmatpush1.msra.mxu0 %v363
        %1708 = vmatprep.subr.mxu0 %v360
        %1709 = vmatpush1.msra.mxu0 %v359
        %1710 = vmatprep.subr.mxu0 %v356
        %1711 = vmatpush1.msra.mxu0 %v355
        %1712 = vmatprep.subr.mxu0 %v352
        %1713 = vmatpush1.msra.mxu0 %v351
        %1714 = vmatprep.subr.mxu0 %v348
        %1715 = vmatpush1.msra.mxu0 %v347
        %1716 = vmatprep.subr.mxu0 %v344
        %1717 = vmatpush1.msra.mxu0 %v343
        %1718 = vmatprep.subr.mxu0 %v340
        %1719 = vmatpush1.msra.mxu0 %v339
        %1720 = vmatprep.subr.mxu0 %v336
        %1721 = vmatpush1.msra.mxu0 %v335
        %1722 = vmatprep.subr.mxu0 %v332
        %1723 = vmatpush1.msra.mxu0 %v331
        %1724 = vmatprep.subr.mxu0 %v328
        %1725 = vmatpush1.msra.mxu0 %v327
        %1726 = vmatprep.subr.mxu0 %v324
        %1727 = vmatpush1.msra.mxu0 %v323
        %1728 = vmatprep.subr.mxu0 %v320
        %1729 = vmatpush1.msra.mxu0 %v319
        %1730 = vmatprep.subr.mxu0 %v316
        %1731 = vmatpush1.msra.mxu0 %v315
        %1732 = vmatprep.subr.mxu0 %v312
        %1733 = vmatpush1.msra.mxu0 %v311
        %1734 = vmatprep.subr.mxu0 %v436
        %1735 = vmatpush2.msra.mxu0 %v435
        %1736 = vmatprep.subr.mxu0 %v432
        %1737 = vmatpush2.msra.mxu0 %v431
        %1738 = vmatprep.subr.mxu0 %v428
        %1739 = vmatpush2.msra.mxu0 %v427
        %1740 = vmatprep.subr.mxu0 %v424
        %1741 = vmatpush2.msra.mxu0 %v423
        %1742 = vmatprep.subr.mxu0 %v420
        %1743 = vmatpush2.msra.mxu0 %v419
        %1744 = vmatprep.subr.mxu0 %v416
        %1745 = vmatpush2.msra.mxu0 %v415
        %1746 = vmatprep.subr.mxu0 %v412
        %1747 = vmatpush2.msra.mxu0 %v411
        %1748 = vmatprep.subr.mxu0 %v408
        %1749 = vmatpush2.msra.mxu0 %v407
        %1750 = vmatprep.subr.mxu0 %v404
        %1751 = vmatpush2.msra.mxu0 %v403
        %1752 = vmatprep.subr.mxu0 %v400
        %1753 = vmatpush2.msra.mxu0 %v399
        %1754 = vmatprep.subr.mxu0 %v396
        %1755 = vmatpush2.msra.mxu0 %v395
        %1756 = vmatprep.subr.mxu0 %v392
        %1757 = vmatpush2.msra.mxu0 %v391
        %1758 = vmatprep.subr.mxu0 %v388
        %1759 = vmatpush2.msra.mxu0 %v387
        %1760 = vmatprep.subr.mxu0 %v384
        %1761 = vmatpush2.msra.mxu0 %v383
        %1762 = vmatprep.subr.mxu0 %v380
        %1763 = vmatpush2.msra.mxu0 %v379
        %1764 = vmatprep.subr.mxu0 %v376
        %1765 = vmatpush2.msra.mxu0 %v375
        %1766 = vmatprep.mubr.f32.mxu0 %v296
        %1767 = vmatmul.mubr.f32.gmra.mxu0 %v295
        %v1768 = vpop.f32.mrf.mxu0
        %v1769 = vadd.f32 0.0, %v1768
        %v1770 = vpop.f32.mrf.mxu0
        %v1771 = vadd.f32 0.0, %v1770
        %1772 = vdwg.mxu0
        %1773 = vmatprep.subr.mxu0 %v500
        %1774 = vmatpush1.msra.mxu0 %v499
        %1775 = vmatprep.subr.mxu0 %v496
        %1776 = vmatpush1.msra.mxu0 %v495
        %1777 = vmatprep.subr.mxu0 %v492
        %1778 = vmatpush1.msra.mxu0 %v491
        %1779 = vmatprep.subr.mxu0 %v488
        %1780 = vmatpush1.msra.mxu0 %v487
        %1781 = vmatprep.subr.mxu0 %v484
        %1782 = vmatpush1.msra.mxu0 %v483
        %1783 = vmatprep.subr.mxu0 %v480
        %1784 = vmatpush1.msra.mxu0 %v479
        %1785 = vmatprep.subr.mxu0 %v476
        %1786 = vmatpush1.msra.mxu0 %v475
        %1787 = vmatprep.subr.mxu0 %v472
        %1788 = vmatpush1.msra.mxu0 %v471
        %1789 = vmatprep.subr.mxu0 %v468
        %1790 = vmatpush1.msra.mxu0 %v467
        %1791 = vmatprep.subr.mxu0 %v464
        %1792 = vmatpush1.msra.mxu0 %v463
        %1793 = vmatprep.subr.mxu0 %v460
        %1794 = vmatpush1.msra.mxu0 %v459
        %1795 = vmatprep.subr.mxu0 %v456
        %1796 = vmatpush1.msra.mxu0 %v455
        %1797 = vmatprep.subr.mxu0 %v452
        %1798 = vmatpush1.msra.mxu0 %v451
        %1799 = vmatprep.subr.mxu0 %v448
        %1800 = vmatpush1.msra.mxu0 %v447
        %1801 = vmatprep.subr.mxu0 %v444
        %1802 = vmatpush1.msra.mxu0 %v443
        %1803 = vmatprep.subr.mxu0 %v440
        %1804 = vmatpush1.msra.mxu0 %v439
        %1805 = vmatprep.subr.mxu0 %v564
        %1806 = vmatpush2.msra.mxu0 %v563
        %1807 = vmatprep.subr.mxu0 %v560
        %1808 = vmatpush2.msra.mxu0 %v559
        %1809 = vmatprep.subr.mxu0 %v556
        %1810 = vmatpush2.msra.mxu0 %v555
        %1811 = vmatprep.subr.mxu0 %v552
        %1812 = vmatpush2.msra.mxu0 %v551
        %1813 = vmatprep.subr.mxu0 %v548
        %1814 = vmatpush2.msra.mxu0 %v547
        %1815 = vmatprep.subr.mxu0 %v544
        %1816 = vmatpush2.msra.mxu0 %v543
        %1817 = vmatprep.subr.mxu0 %v540
        %1818 = vmatpush2.msra.mxu0 %v539
        %1819 = vmatprep.subr.mxu0 %v536
        %1820 = vmatpush2.msra.mxu0 %v535
        %1821 = vmatprep.subr.mxu0 %v532
        %1822 = vmatpush2.msra.mxu0 %v531
        %1823 = vmatprep.subr.mxu0 %v528
        %1824 = vmatpush2.msra.mxu0 %v527
        %1825 = vmatprep.subr.mxu0 %v524
        %1826 = vmatpush2.msra.mxu0 %v523
        %1827 = vmatprep.subr.mxu0 %v520
        %1828 = vmatpush2.msra.mxu0 %v519
        %1829 = vmatprep.subr.mxu0 %v516
        %1830 = vmatpush2.msra.mxu0 %v515
        %1831 = vmatprep.subr.mxu0 %v512
        %1832 = vmatpush2.msra.mxu0 %v511
        %1833 = vmatprep.subr.mxu0 %v508
        %1834 = vmatpush2.msra.mxu0 %v507
        %1835 = vmatprep.subr.mxu0 %v504
        %1836 = vmatpush2.msra.mxu0 %v503
        %1837 = vmatprep.mubr.f32.mxu0 %v298
        %1838 = vmatmul.mubr.f32.gmra.mxu0 %v297
        %v1839 = vpop.f32.mrf.mxu0
        %v1840 = vadd.f32 %v1769, %v1839
        %v1841 = vpop.f32.mrf.mxu0
        %v1842 = vadd.f32 %v1771, %v1841
        %1843 = vdwg.mxu0
        %1844 = vmatprep.subr.mxu0 %v628
        %1845 = vmatpush1.msra.mxu0 %v627
        %1846 = vmatprep.subr.mxu0 %v624
        %1847 = vmatpush1.msra.mxu0 %v623
        %1848 = vmatprep.subr.mxu0 %v620
        %1849 = vmatpush1.msra.mxu0 %v619
        %1850 = vmatprep.subr.mxu0 %v616
        %1851 = vmatpush1.msra.mxu0 %v615
        %1852 = vmatprep.subr.mxu0 %v612
        %1853 = vmatpush1.msra.mxu0 %v611
        %1854 = vmatprep.subr.mxu0 %v608
        %1855 = vmatpush1.msra.mxu0 %v607
        %1856 = vmatprep.subr.mxu0 %v604
        %1857 = vmatpush1.msra.mxu0 %v603
        %1858 = vmatprep.subr.mxu0 %v600
        %1859 = vmatpush1.msra.mxu0 %v599
        %1860 = vmatprep.subr.mxu0 %v596
        %1861 = vmatpush1.msra.mxu0 %v595
        %1862 = vmatprep.subr.mxu0 %v592
        %1863 = vmatpush1.msra.mxu0 %v591
        %1864 = vmatprep.subr.mxu0 %v588
        %1865 = vmatpush1.msra.mxu0 %v587
        %1866 = vmatprep.subr.mxu0 %v584
        %1867 = vmatpush1.msra.mxu0 %v583
        %1868 = vmatprep.subr.mxu0 %v580
        %1869 = vmatpush1.msra.mxu0 %v579
        %1870 = vmatprep.subr.mxu0 %v576
        %1871 = vmatpush1.msra.mxu0 %v575
        %1872 = vmatprep.subr.mxu0 %v572
        %1873 = vmatpush1.msra.mxu0 %v571
        %1874 = vmatprep.subr.mxu0 %v568
        %1875 = vmatpush1.msra.mxu0 %v567
        %1876 = vmatprep.subr.mxu0 %v692
        %1877 = vmatpush2.msra.mxu0 %v691
        %1878 = vmatprep.subr.mxu0 %v688
        %1879 = vmatpush2.msra.mxu0 %v687
        %1880 = vmatprep.subr.mxu0 %v684
        %1881 = vmatpush2.msra.mxu0 %v683
        %1882 = vmatprep.subr.mxu0 %v680
        %1883 = vmatpush2.msra.mxu0 %v679
        %1884 = vmatprep.subr.mxu0 %v676
        %1885 = vmatpush2.msra.mxu0 %v675
        %1886 = vmatprep.subr.mxu0 %v672
        %1887 = vmatpush2.msra.mxu0 %v671
        %1888 = vmatprep.subr.mxu0 %v668
        %1889 = vmatpush2.msra.mxu0 %v667
        %1890 = vmatprep.subr.mxu0 %v664
        %1891 = vmatpush2.msra.mxu0 %v663
        %1892 = vmatprep.subr.mxu0 %v660
        %1893 = vmatpush2.msra.mxu0 %v659
        %1894 = vmatprep.subr.mxu0 %v656
        %1895 = vmatpush2.msra.mxu0 %v655
        %1896 = vmatprep.subr.mxu0 %v652
        %1897 = vmatpush2.msra.mxu0 %v651
        %1898 = vmatprep.subr.mxu0 %v648
        %1899 = vmatpush2.msra.mxu0 %v647
        %1900 = vmatprep.subr.mxu0 %v644
        %1901 = vmatpush2.msra.mxu0 %v643
        %1902 = vmatprep.subr.mxu0 %v640
        %1903 = vmatpush2.msra.mxu0 %v639
        %1904 = vmatprep.subr.mxu0 %v636
        %1905 = vmatpush2.msra.mxu0 %v635
        %1906 = vmatprep.subr.mxu0 %v632
        %1907 = vmatpush2.msra.mxu0 %v631
        %1908 = vmatprep.mubr.f32.mxu0 %v300
        %1909 = vmatmul.mubr.f32.gmra.mxu0 %v299
        %v1910 = vpop.f32.mrf.mxu0
        %v1911 = vadd.f32 %v1840, %v1910
        %v1912 = vpop.f32.mrf.mxu0
        %v1913 = vadd.f32 %v1842, %v1912
        %1914 = vdwg.mxu0
        %1915 = vmatprep.subr.mxu0 %v756
        %1916 = vmatpush1.msra.mxu0 %v755
        %1917 = vmatprep.subr.mxu0 %v752
        %1918 = vmatpush1.msra.mxu0 %v751
        %1919 = vmatprep.subr.mxu0 %v748
        %1920 = vmatpush1.msra.mxu0 %v747
        %1921 = vmatprep.subr.mxu0 %v744
        %1922 = vmatpush1.msra.mxu0 %v743
        %1923 = vmatprep.subr.mxu0 %v740
        %1924 = vmatpush1.msra.mxu0 %v739
        %1925 = vmatprep.subr.mxu0 %v736
        %1926 = vmatpush1.msra.mxu0 %v735
        %1927 = vmatprep.subr.mxu0 %v732
        %1928 = vmatpush1.msra.mxu0 %v731
        %1929 = vmatprep.subr.mxu0 %v728
        %1930 = vmatpush1.msra.mxu0 %v727
        %1931 = vmatprep.subr.mxu0 %v724
        %1932 = vmatpush1.msra.mxu0 %v723
        %1933 = vmatprep.subr.mxu0 %v720
        %1934 = vmatpush1.msra.mxu0 %v719
        %1935 = vmatprep.subr.mxu0 %v716
        %1936 = vmatpush1.msra.mxu0 %v715
        %1937 = vmatprep.subr.mxu0 %v712
        %1938 = vmatpush1.msra.mxu0 %v711
        %1939 = vmatprep.subr.mxu0 %v708
        %1940 = vmatpush1.msra.mxu0 %v707
        %1941 = vmatprep.subr.mxu0 %v704
        %1942 = vmatpush1.msra.mxu0 %v703
        %1943 = vmatprep.subr.mxu0 %v700
        %1944 = vmatpush1.msra.mxu0 %v699
        %1945 = vmatprep.subr.mxu0 %v696
        %1946 = vmatpush1.msra.mxu0 %v695
        %1947 = vmatprep.subr.mxu0 %v820
        %1948 = vmatpush2.msra.mxu0 %v819
        %1949 = vmatprep.subr.mxu0 %v816
        %1950 = vmatpush2.msra.mxu0 %v815
        %1951 = vmatprep.subr.mxu0 %v812
        %1952 = vmatpush2.msra.mxu0 %v811
        %1953 = vmatprep.subr.mxu0 %v808
        %1954 = vmatpush2.msra.mxu0 %v807
        %1955 = vmatprep.subr.mxu0 %v804
        %1956 = vmatpush2.msra.mxu0 %v803
        %1957 = vmatprep.subr.mxu0 %v800
        %1958 = vmatpush2.msra.mxu0 %v799
        %1959 = vmatprep.subr.mxu0 %v796
        %1960 = vmatpush2.msra.mxu0 %v795
        %1961 = vmatprep.subr.mxu0 %v792
        %1962 = vmatpush2.msra.mxu0 %v791
        %1963 = vmatprep.subr.mxu0 %v788
        %1964 = vmatpush2.msra.mxu0 %v787
        %1965 = vmatprep.subr.mxu0 %v784
        %1966 = vmatpush2.msra.mxu0 %v783
        %1967 = vmatprep.subr.mxu0 %v780
        %1968 = vmatpush2.msra.mxu0 %v779
        %1969 = vmatprep.subr.mxu0 %v776
        %1970 = vmatpush2.msra.mxu0 %v775
        %1971 = vmatprep.subr.mxu0 %v772
        %1972 = vmatpush2.msra.mxu0 %v771
        %1973 = vmatprep.subr.mxu0 %v768
        %1974 = vmatpush2.msra.mxu0 %v767
        %1975 = vmatprep.subr.mxu0 %v764
        %1976 = vmatpush2.msra.mxu0 %v763
        %1977 = vmatprep.subr.mxu0 %v760
        %1978 = vmatpush2.msra.mxu0 %v759
        %1979 = vmatprep.mubr.f32.mxu0 %v302
        %1980 = vmatmul.mubr.f32.gmra.mxu0 %v301
        %v1981 = vpop.f32.mrf.mxu0
        %v1982 = vadd.f32 %v1911, %v1981
        %v1983 = vpop.f32.mrf.mxu0
        %v1984 = vadd.f32 %v1913, %v1983
        %1985 = vdwg.mxu0
        %1986 = vmatprep.subr.mxu0 %v884
        %1987 = vmatpush1.msra.mxu0 %v883
        %1988 = vmatprep.subr.mxu0 %v880
        %1989 = vmatpush1.msra.mxu0 %v879
        %1990 = vmatprep.subr.mxu0 %v876
        %1991 = vmatpush1.msra.mxu0 %v875
        %1992 = vmatprep.subr.mxu0 %v872
        %1993 = vmatpush1.msra.mxu0 %v871
        %1994 = vmatprep.subr.mxu0 %v868
        %1995 = vmatpush1.msra.mxu0 %v867
        %1996 = vmatprep.subr.mxu0 %v864
        %1997 = vmatpush1.msra.mxu0 %v863
        %1998 = vmatprep.subr.mxu0 %v860
        %1999 = vmatpush1.msra.mxu0 %v859
        %2000 = vmatprep.subr.mxu0 %v856
        %2001 = vmatpush1.msra.mxu0 %v855
        %2002 = vmatprep.subr.mxu0 %v852
        %2003 = vmatpush1.msra.mxu0 %v851
        %2004 = vmatprep.subr.mxu0 %v848
        %2005 = vmatpush1.msra.mxu0 %v847
        %2006 = vmatprep.subr.mxu0 %v844
        %2007 = vmatpush1.msra.mxu0 %v843
        %2008 = vmatprep.subr.mxu0 %v840
        %2009 = vmatpush1.msra.mxu0 %v839
        %2010 = vmatprep.subr.mxu0 %v836
        %2011 = vmatpush1.msra.mxu0 %v835
        %2012 = vmatprep.subr.mxu0 %v832
        %2013 = vmatpush1.msra.mxu0 %v831
        %2014 = vmatprep.subr.mxu0 %v828
        %2015 = vmatpush1.msra.mxu0 %v827
        %2016 = vmatprep.subr.mxu0 %v824
        %2017 = vmatpush1.msra.mxu0 %v823
        %2018 = vmatprep.subr.mxu0 %v948
        %2019 = vmatpush2.msra.mxu0 %v947
        %2020 = vmatprep.subr.mxu0 %v944
        %2021 = vmatpush2.msra.mxu0 %v943
        %2022 = vmatprep.subr.mxu0 %v940
        %2023 = vmatpush2.msra.mxu0 %v939
        %2024 = vmatprep.subr.mxu0 %v936
        %2025 = vmatpush2.msra.mxu0 %v935
        %2026 = vmatprep.subr.mxu0 %v932
        %2027 = vmatpush2.msra.mxu0 %v931
        %2028 = vmatprep.subr.mxu0 %v928
        %2029 = vmatpush2.msra.mxu0 %v927
        %2030 = vmatprep.subr.mxu0 %v924
        %2031 = vmatpush2.msra.mxu0 %v923
        %2032 = vmatprep.subr.mxu0 %v920
        %2033 = vmatpush2.msra.mxu0 %v919
        %2034 = vmatprep.subr.mxu0 %v916
        %2035 = vmatpush2.msra.mxu0 %v915
        %2036 = vmatprep.subr.mxu0 %v912
        %2037 = vmatpush2.msra.mxu0 %v911
        %2038 = vmatprep.subr.mxu0 %v908
        %2039 = vmatpush2.msra.mxu0 %v907
        %2040 = vmatprep.subr.mxu0 %v904
        %2041 = vmatpush2.msra.mxu0 %v903
        %2042 = vmatprep.subr.mxu0 %v900
        %2043 = vmatpush2.msra.mxu0 %v899
        %2044 = vmatprep.subr.mxu0 %v896
        %2045 = vmatpush2.msra.mxu0 %v895
        %2046 = vmatprep.subr.mxu0 %v892
        %2047 = vmatpush2.msra.mxu0 %v891
        %2048 = vmatprep.subr.mxu0 %v888
        %2049 = vmatpush2.msra.mxu0 %v887
        %2050 = vmatprep.mubr.f32.mxu0 %v304
        %2051 = vmatmul.mubr.f32.gmra.mxu0 %v303
        %v2052 = vpop.f32.mrf.mxu0
        %v2053 = vadd.f32 %v1982, %v2052
        %v2054 = vpop.f32.mrf.mxu0
        %v2055 = vadd.f32 %v1984, %v2054
        %2056 = vdwg.mxu0
        %2057 = vmatprep.subr.mxu0 %v1012
        %2058 = vmatpush1.msra.mxu0 %v1011
        %2059 = vmatprep.subr.mxu0 %v1008
        %2060 = vmatpush1.msra.mxu0 %v1007
        %2061 = vmatprep.subr.mxu0 %v1004
        %2062 = vmatpush1.msra.mxu0 %v1003
        %2063 = vmatprep.subr.mxu0 %v1000
        %2064 = vmatpush1.msra.mxu0 %v999
        %2065 = vmatprep.subr.mxu0 %v996
        %2066 = vmatpush1.msra.mxu0 %v995
        %2067 = vmatprep.subr.mxu0 %v992
        %2068 = vmatpush1.msra.mxu0 %v991
        %2069 = vmatprep.subr.mxu0 %v988
        %2070 = vmatpush1.msra.mxu0 %v987
        %2071 = vmatprep.subr.mxu0 %v984
        %2072 = vmatpush1.msra.mxu0 %v983
        %2073 = vmatprep.subr.mxu0 %v980
        %2074 = vmatpush1.msra.mxu0 %v979
        %2075 = vmatprep.subr.mxu0 %v976
        %2076 = vmatpush1.msra.mxu0 %v975
        %2077 = vmatprep.subr.mxu0 %v972
        %2078 = vmatpush1.msra.mxu0 %v971
        %2079 = vmatprep.subr.mxu0 %v968
        %2080 = vmatpush1.msra.mxu0 %v967
        %2081 = vmatprep.subr.mxu0 %v964
        %2082 = vmatpush1.msra.mxu0 %v963
        %2083 = vmatprep.subr.mxu0 %v960
        %2084 = vmatpush1.msra.mxu0 %v959
        %2085 = vmatprep.subr.mxu0 %v956
        %2086 = vmatpush1.msra.mxu0 %v955
        %2087 = vmatprep.subr.mxu0 %v952
        %2088 = vmatpush1.msra.mxu0 %v951
        %2089 = vmatprep.subr.mxu0 %v1076
        %2090 = vmatpush2.msra.mxu0 %v1075
        %2091 = vmatprep.subr.mxu0 %v1072
        %2092 = vmatpush2.msra.mxu0 %v1071
        %2093 = vmatprep.subr.mxu0 %v1068
        %2094 = vmatpush2.msra.mxu0 %v1067
        %2095 = vmatprep.subr.mxu0 %v1064
        %2096 = vmatpush2.msra.mxu0 %v1063
        %2097 = vmatprep.subr.mxu0 %v1060
        %2098 = vmatpush2.msra.mxu0 %v1059
        %2099 = vmatprep.subr.mxu0 %v1056
        %2100 = vmatpush2.msra.mxu0 %v1055
        %2101 = vmatprep.subr.mxu0 %v1052
        %2102 = vmatpush2.msra.mxu0 %v1051
        %2103 = vmatprep.subr.mxu0 %v1048
        %2104 = vmatpush2.msra.mxu0 %v1047
        %2105 = vmatprep.subr.mxu0 %v1044
        %2106 = vmatpush2.msra.mxu0 %v1043
        %2107 = vmatprep.subr.mxu0 %v1040
        %2108 = vmatpush2.msra.mxu0 %v1039
        %2109 = vmatprep.subr.mxu0 %v1036
        %2110 = vmatpush2.msra.mxu0 %v1035
        %2111 = vmatprep.subr.mxu0 %v1032
        %2112 = vmatpush2.msra.mxu0 %v1031
        %2113 = vmatprep.subr.mxu0 %v1028
        %2114 = vmatpush2.msra.mxu0 %v1027
        %2115 = vmatprep.subr.mxu0 %v1024
        %2116 = vmatpush2.msra.mxu0 %v1023
        %2117 = vmatprep.subr.mxu0 %v1020
        %2118 = vmatpush2.msra.mxu0 %v1019
        %2119 = vmatprep.subr.mxu0 %v1016
        %2120 = vmatpush2.msra.mxu0 %v1015
        %2121 = vmatprep.mubr.f32.mxu0 %v306
        %2122 = vmatmul.mubr.f32.gmra.mxu0 %v305
        %v2123 = vpop.f32.mrf.mxu0
        %v2124 = vadd.f32 %v2053, %v2123
        %v2125 = vpop.f32.mrf.mxu0
        %v2126 = vadd.f32 %v2055, %v2125
        %2127 = vdwg.mxu0
        %2128 = vmatprep.subr.mxu0 %v1140
        %2129 = vmatpush1.msra.mxu0 %v1139
        %2130 = vmatprep.subr.mxu0 %v1136
        %2131 = vmatpush1.msra.mxu0 %v1135
        %2132 = vmatprep.subr.mxu0 %v1132
        %2133 = vmatpush1.msra.mxu0 %v1131
        %2134 = vmatprep.subr.mxu0 %v1128
        %2135 = vmatpush1.msra.mxu0 %v1127
        %2136 = vmatprep.subr.mxu0 %v1124
        %2137 = vmatpush1.msra.mxu0 %v1123
        %2138 = vmatprep.subr.mxu0 %v1120
        %2139 = vmatpush1.msra.mxu0 %v1119
        %2140 = vmatprep.subr.mxu0 %v1116
        %2141 = vmatpush1.msra.mxu0 %v1115
        %2142 = vmatprep.subr.mxu0 %v1112
        %2143 = vmatpush1.msra.mxu0 %v1111
        %2144 = vmatprep.subr.mxu0 %v1108
        %2145 = vmatpush1.msra.mxu0 %v1107
        %2146 = vmatprep.subr.mxu0 %v1104
        %2147 = vmatpush1.msra.mxu0 %v1103
        %2148 = vmatprep.subr.mxu0 %v1100
        %2149 = vmatpush1.msra.mxu0 %v1099
        %2150 = vmatprep.subr.mxu0 %v1096
        %2151 = vmatpush1.msra.mxu0 %v1095
        %2152 = vmatprep.subr.mxu0 %v1092
        %2153 = vmatpush1.msra.mxu0 %v1091
        %2154 = vmatprep.subr.mxu0 %v1088
        %2155 = vmatpush1.msra.mxu0 %v1087
        %2156 = vmatprep.subr.mxu0 %v1084
        %2157 = vmatpush1.msra.mxu0 %v1083
        %2158 = vmatprep.subr.mxu0 %v1080
        %2159 = vmatpush1.msra.mxu0 %v1079
        %2160 = vmatprep.subr.mxu0 %v1204
        %2161 = vmatpush2.msra.mxu0 %v1203
        %2162 = vmatprep.subr.mxu0 %v1200
        %2163 = vmatpush2.msra.mxu0 %v1199
        %2164 = vmatprep.subr.mxu0 %v1196
        %2165 = vmatpush2.msra.mxu0 %v1195
        %2166 = vmatprep.subr.mxu0 %v1192
        %2167 = vmatpush2.msra.mxu0 %v1191
        %2168 = vmatprep.subr.mxu0 %v1188
        %2169 = vmatpush2.msra.mxu0 %v1187
        %2170 = vmatprep.subr.mxu0 %v1184
        %2171 = vmatpush2.msra.mxu0 %v1183
        %2172 = vmatprep.subr.mxu0 %v1180
        %2173 = vmatpush2.msra.mxu0 %v1179
        %2174 = vmatprep.subr.mxu0 %v1176
        %2175 = vmatpush2.msra.mxu0 %v1175
        %2176 = vmatprep.subr.mxu0 %v1172
        %2177 = vmatpush2.msra.mxu0 %v1171
        %2178 = vmatprep.subr.mxu0 %v1168
        %2179 = vmatpush2.msra.mxu0 %v1167
        %2180 = vmatprep.subr.mxu0 %v1164
        %2181 = vmatpush2.msra.mxu0 %v1163
        %2182 = vmatprep.subr.mxu0 %v1160
        %2183 = vmatpush2.msra.mxu0 %v1159
        %2184 = vmatprep.subr.mxu0 %v1156
        %2185 = vmatpush2.msra.mxu0 %v1155
        %2186 = vmatprep.subr.mxu0 %v1152
        %2187 = vmatpush2.msra.mxu0 %v1151
        %2188 = vmatprep.subr.mxu0 %v1148
        %2189 = vmatpush2.msra.mxu0 %v1147
        %2190 = vmatprep.subr.mxu0 %v1144
        %2191 = vmatpush2.msra.mxu0 %v1143
        %2192 = vmatprep.mubr.f32.mxu0 %v308
        %2193 = vmatmul.mubr.f32.gmra.mxu0 %v307
        %v2194 = vpop.f32.mrf.mxu0
        %v2195 = vadd.f32 %v2124, %v2194
        %v2196 = vpop.f32.mrf.mxu0
        %v2197 = vadd.f32 %v2126, %v2196
        %2198 = vdwg.mxu0
        %v2199 = vadd.f32 %v291, %v1698
        %v2200 = vadd.f32 %v292, %v1700
        %v2201 = vadd.f32 %v293, %v2195
        %v2202 = vadd.f32 %v294, %v2197
        %2203 = vst [vmem:[#allocation2] sm:$0xff] %v2199
        %2204 = vst [vmem:[#allocation2 + $0x8] sm:$0xff] %v2200
        %2205 = vst [vmem:[#allocation2 + $0x10] sm:$0xff] %v2201
        %2206 = vst [vmem:[#allocation2 + $0x18] sm:$0xff] %v2202
        %p2207 = scmp.eq.s32.totalorder %s24, 13
        // Predicated region
        $region41: #{expanded_cnn_forward.10} parent=31 // pred_check
          %p2208 = pneg %p2207
        $region42: #{expanded_cnn_forward.10} parent=31 // pred_check_branch
          %2210 = sbr.rel (%p2208) target = $region44
        $region43: #{expanded_cnn_forward.10} parent=31 // pred_region
          %v2211 = vld [vmem:[#allocation2] sm:$0xff]
          %v2212 = vld [vmem:[#allocation2 + $0x8] sm:$0xff]
          %v2213 = vld [vmem:[#allocation2 + $0x10] sm:$0xff]
          %v2214 = vld [vmem:[#allocation2 + $0x18] sm:$0xff]
          %v2215 = vld [vmem:[%s271] sm:$0xf]
          %v2217 = vlaneseq
          %v2218 = vshrl.u32 %v2217, 7
          %v2219 = vsub.s32 0, %v2218
          %v2220 = vrot.slane %v2215, %v2219
          %v2221 = vlaneseq
          %v2222 = vshrl.u32 %v2221, 7
          %v2223 = vsub.s32 1, %v2222
          %v2224 = vrot.slane %v2215, %v2223
          %v2225 = vlaneseq
          %v2226 = vshrl.u32 %v2225, 7
          %v2227 = vsub.s32 2, %v2226
          %v2228 = vrot.slane %v2215, %v2227
          %v2229 = vlaneseq
          %v2230 = vshrl.u32 %v2229, 7
          %v2231 = vsub.s32 3, %v2230
          %v2232 = vrot.slane %v2215, %v2231
          %v2237 = vadd.f32 %v2211, %v2220
          %v2238 = vadd.f32 %v2212, %v2224
          %v2239 = vadd.f32 %v2213, %v2228
          %v2240 = vadd.f32 %v2214, %v2232
          %v2241 = vmax.f32 %v2237, 0.0
          %v2242 = vmax.f32 %v2238, 0.0
          %v2243 = vmax.f32 %v2239, 0.0
          %v2244 = vmax.f32 %v2240, 0.0
          %2245 = vst [vmem:[%s281] sm:$0xff] %v2241
          %2246 = vst [vmem:[%s281 + $0x8] sm:$0xff] %v2242
          %2247 = vst [vmem:[%s281 + $0x10] sm:$0xff] %v2243
          %2248 = vst [vmem:[%s281 + $0x18] sm:$0xff] %v2244
        $region44: #{expanded_cnn_forward.10} parent=31 // pred_fallthru
          _
        %s2249 = smul.u32 4, %s23
        %p2250 = scmp.lt.s32.totalorder %s22, 0
        %s2251 = scalar_select %p2250, %s22, 0
        %p2252 = scmp.lt.s32.totalorder %s2249, 7
        %s2253 = scalar_select %p2252, %s2249, 7
        %s2254 = smul.addr %s2251, 8
        %s2255 = sadd.s32 %s2253, %s2254
        %s2256 = smul.addr %s2255, 8
        %s2257 = scalar_lea.vmem %s3, %s2256
        // Predicated region
        $region45: #{expanded_cnn_forward.10} parent=31 // pred_check
          %p2258 = pneg %p138
        $region46: #{expanded_cnn_forward.10} parent=31 // pred_check_branch
          %2260 = sbr.rel (%p2258) target = $region48
        $region47: #{expanded_cnn_forward.10} parent=31 // pred_region
          %s2261 = smul.u32 4, %s23
        $region48: #{expanded_cnn_forward.10} parent=31 // pred_fallthru
          _
      $region32: #{expanded_cnn_forward.10} parent=5 // pred_fallthru
        _
      %p2262 = scmp.le.s32.totalorder 2, %s12
      // Predicated region
      $region49: #{expanded_cnn_forward.10} parent=5 // pred_check
        %p2263 = pneg %p2262
      $region50: #{expanded_cnn_forward.10} parent=5 // pred_check_branch
        %2265 = sbr.rel (%p2263) target = $region52
      $region51: #{expanded_cnn_forward.10} parent=5 // pred_region
        %s2266 = ssub.s32 %s12, 2
        // Predicated region
        $region53: #{expanded_cnn_forward.10} parent=51 // pred_check
          %p2267 = pneg %p144
        $region54: #{expanded_cnn_forward.10} parent=51 // pred_check_branch
          %2269 = sbr.rel (%p2267) target = $region56
        $region55: #{expanded_cnn_forward.10} parent=51 // pred_region
          %s2270 = smul.u32 4, %s26
          %p2271 = scmp.lt.s32.totalorder %s25, 0
          %s2272 = scalar_select %p2271, %s25, 0
          %p2273 = scmp.lt.s32.totalorder %s2270, 7
          %s2274 = scalar_select %p2273, %s2270, 7
          %s2275 = smul.addr %s2272, 8
          %s2276 = sadd.s32 %s2274, %s2275
          %s2277 = smul.addr %s2276, 8
          %s2278 = scalar_lea.vmem %s3, %s2277
        $region56: #{expanded_cnn_forward.10} parent=51 // pred_fallthru
          _
      $region52: #{expanded_cnn_forward.10} parent=5 // pred_fallthru
        _
    $region6: #{expanded_cnn_forward.10} parent=1 // loop_footer
      %s16 = sadd.s32 1, %s12
    $region7: #{expanded_cnn_forward.10} parent=1 // loop_footer_branch
      %11 = sbr.rel target = $region3
    $region8: #{expanded_cnn_forward.10} parent=1 // loop_exit
      _
    %2279 = vsyncpa [#allocation4], 1
    %s2280 = scalar_lea.sflag [#allocation4], 1
    %2281 = vsyncpa %s2280, 1

// kernel: expanded_cnn_forward.12
$region0: #{expanded_cnn_forward.12}
  #allocation0 [shape = 'u32[]', space=smem, size = 0x4, offset = 0x4, fixed_abs, tag = 'smem constant byte address 0x4 - core index']
  #allocation1 [shape = 'u32[144,128]{1,0:T(1,128)}', space=vmem, size = 0x12000, scoped, tag = 'internal scratch']
  %s0 = inlined_call_operand.vmem [shape: f32[8,256], index: 0, kind: input, shape index: {}]
  %s1 = inlined_call_operand.vmem [shape: f32[256,128], index: 1, kind: input, shape index: {}]
  %s2 = inlined_call_operand.vmem [shape: f32[1,128], index: 2, kind: input, shape index: {}]
  %s3 = inlined_call_operand.vmem [shape: f32[8,128], index: 3, kind: output, shape index: {}]
  %s4 = sld [smem:[#allocation0]]
  $region22: #{expanded_cnn_forward.12} parent=0
    _
  %s6 = ssub.s32 1, %s4
  %s7 = scalar_select 0, %s6, %s4
  // Predicated region
  $region2: #{expanded_cnn_forward.12} parent=0 // pred_check
    _
  $region3: #{expanded_cnn_forward.12} parent=0 // pred_check_branch
    %9 = sbr.rel (0) target = $region5
  $region4: #{expanded_cnn_forward.12} parent=0 // pred_region
    _
  $region5: #{expanded_cnn_forward.12} parent=0 // pred_fallthru
    _
  // Predicated region
  $region6: #{expanded_cnn_forward.12} parent=0 // pred_check
    _
  $region7: #{expanded_cnn_forward.12} parent=0 // pred_check_branch
    %11 = sbr.rel (0) target = $region9
  $region8: #{expanded_cnn_forward.12} parent=0 // pred_region
    _
  $region9: #{expanded_cnn_forward.12} parent=0 // pred_fallthru
    _
  // Predicated region
  $region10: #{expanded_cnn_forward.12} parent=0 // pred_check
    _
  $region11: #{expanded_cnn_forward.12} parent=0 // pred_check_branch
    %13 = sbr.rel (0) target = $region13
  $region12: #{expanded_cnn_forward.12} parent=0 // pred_region
    _
  $region13: #{expanded_cnn_forward.12} parent=0 // pred_fallthru
    _
  %v14 = vld [vmem:[%s0] sm:$0xff]
  %v15 = vld [vmem:[%s0 + $0x8] sm:$0xff]
  %v16 = vld [vmem:[%s1] sm:$0xff]
  %v17 = vld [vmem:[%s1 + $0x8] sm:$0xff]
  %v18 = vld [vmem:[%s1 + $0x10] sm:$0xff]
  %v19 = vld [vmem:[%s1 + $0x18] sm:$0xff]
  %v20 = vld [vmem:[%s1 + $0x20] sm:$0xff]
  %v21 = vld [vmem:[%s1 + $0x28] sm:$0xff]
  %v22 = vld [vmem:[%s1 + $0x30] sm:$0xff]
  %v23 = vld [vmem:[%s1 + $0x38] sm:$0xff]
  %v24 = vld [vmem:[%s1 + $0x40] sm:$0xff]
  %v25 = vld [vmem:[%s1 + $0x48] sm:$0xff]
  %v26 = vld [vmem:[%s1 + $0x50] sm:$0xff]
  %v27 = vld [vmem:[%s1 + $0x58] sm:$0xff]
  %v28 = vld [vmem:[%s1 + $0x60] sm:$0xff]
  %v29 = vld [vmem:[%s1 + $0x68] sm:$0xff]
  %v30 = vld [vmem:[%s1 + $0x70] sm:$0xff]
  %v31 = vld [vmem:[%s1 + $0x78] sm:$0xff]
  %v32 = vld [vmem:[%s1 + $0x80] sm:$0xff]
  %v33 = vld [vmem:[%s1 + $0x88] sm:$0xff]
  %v34 = vld [vmem:[%s1 + $0x90] sm:$0xff]
  %v35 = vld [vmem:[%s1 + $0x98] sm:$0xff]
  %v36 = vld [vmem:[%s1 + $0xa0] sm:$0xff]
  %v37 = vld [vmem:[%s1 + $0xa8] sm:$0xff]
  %v38 = vld [vmem:[%s1 + $0xb0] sm:$0xff]
  %v39 = vld [vmem:[%s1 + $0xb8] sm:$0xff]
  %v40 = vld [vmem:[%s1 + $0xc0] sm:$0xff]
  %v41 = vld [vmem:[%s1 + $0xc8] sm:$0xff]
  %v42 = vld [vmem:[%s1 + $0xd0] sm:$0xff]
  %v43 = vld [vmem:[%s1 + $0xd8] sm:$0xff]
  %v44 = vld [vmem:[%s1 + $0xe0] sm:$0xff]
  %v45 = vld [vmem:[%s1 + $0xe8] sm:$0xff]
  %v46 = vld [vmem:[%s1 + $0xf0] sm:$0xff]
  %v47 = vld [vmem:[%s1 + $0xf8] sm:$0xff]
  %v48 = vld [vmem:[%s2] sm:$0x1]
  %v50 = vlaneseq
  %v51 = vshrl.u32 %v50, 7
  %v52 = vsub.s32 0, %v51
  %v53 = vrot.slane %v48, %v52
  %55 = vmatprep.subr.mxu0 0.0
  %56 = vmatpush1.msra.mxu0 %v31
  %57 = vmatprep.subr.mxu0 0.0
  %58 = vmatpush1.msra.mxu0 %v30
  %59 = vmatprep.subr.mxu0 0.0
  %60 = vmatpush1.msra.mxu0 %v29
  %61 = vmatprep.subr.mxu0 0.0
  %62 = vmatpush1.msra.mxu0 %v28
  %63 = vmatprep.subr.mxu0 0.0
  %64 = vmatpush1.msra.mxu0 %v27
  %65 = vmatprep.subr.mxu0 0.0
  %66 = vmatpush1.msra.mxu0 %v26
  %67 = vmatprep.subr.mxu0 0.0
  %68 = vmatpush1.msra.mxu0 %v25
  %69 = vmatprep.subr.mxu0 0.0
  %70 = vmatpush1.msra.mxu0 %v24
  %71 = vmatprep.subr.mxu0 0.0
  %72 = vmatpush1.msra.mxu0 %v23
  %73 = vmatprep.subr.mxu0 0.0
  %74 = vmatpush1.msra.mxu0 %v22
  %75 = vmatprep.subr.mxu0 0.0
  %76 = vmatpush1.msra.mxu0 %v21
  %77 = vmatprep.subr.mxu0 0.0
  %78 = vmatpush1.msra.mxu0 %v20
  %79 = vmatprep.subr.mxu0 0.0
  %80 = vmatpush1.msra.mxu0 %v19
  %81 = vmatprep.subr.mxu0 0.0
  %82 = vmatpush1.msra.mxu0 %v18
  %83 = vmatprep.subr.mxu0 0.0
  %84 = vmatpush1.msra.mxu0 %v17
  %85 = vmatprep.subr.mxu0 0.0
  %86 = vmatpush1.msra.mxu0 %v16
  %87 = vmatprep.subr.mxu0 0.0
  %88 = vmatpush2.msra.mxu0 %v47
  %89 = vmatprep.subr.mxu0 0.0
  %90 = vmatpush2.msra.mxu0 %v46
  %91 = vmatprep.subr.mxu0 0.0
  %92 = vmatpush2.msra.mxu0 %v45
  %93 = vmatprep.subr.mxu0 0.0
  %94 = vmatpush2.msra.mxu0 %v44
  %95 = vmatprep.subr.mxu0 0.0
  %96 = vmatpush2.msra.mxu0 %v43
  %97 = vmatprep.subr.mxu0 0.0
  %98 = vmatpush2.msra.mxu0 %v42
  %99 = vmatprep.subr.mxu0 0.0
  %100 = vmatpush2.msra.mxu0 %v41
  %101 = vmatprep.subr.mxu0 0.0
  %102 = vmatpush2.msra.mxu0 %v40
  %103 = vmatprep.subr.mxu0 0.0
  %104 = vmatpush2.msra.mxu0 %v39
  %105 = vmatprep.subr.mxu0 0.0
  %106 = vmatpush2.msra.mxu0 %v38
  %107 = vmatprep.subr.mxu0 0.0
  %108 = vmatpush2.msra.mxu0 %v37
  %109 = vmatprep.subr.mxu0 0.0
  %110 = vmatpush2.msra.mxu0 %v36
  %111 = vmatprep.subr.mxu0 0.0
  %112 = vmatpush2.msra.mxu0 %v35
  %113 = vmatprep.subr.mxu0 0.0
  %114 = vmatpush2.msra.mxu0 %v34
  %115 = vmatprep.subr.mxu0 0.0
  %116 = vmatpush2.msra.mxu0 %v33
  %117 = vmatprep.subr.mxu0 0.0
  %118 = vmatpush2.msra.mxu0 %v32
  %119 = vmatprep.mubr.f32.mxu0 %v15
  %120 = vmatmul.mubr.f32.gmra.mxu0 %v14
  %v121 = vpop.f32.mrf.mxu0
  %v122 = vadd.f32 %v53, %v121
  %v123 = vpop.f32.mrf.mxu0
  %124 = vdwg.mxu0
  %v125 = vmax.f32 %v122, 0.0
  %126 = vst [vmem:[%s3] sm:$0xff] %v125
  // Predicated region
  $region14: #{expanded_cnn_forward.12} parent=0 // pred_check
    _
  $region15: #{expanded_cnn_forward.12} parent=0 // pred_check_branch
    %128 = sbr.rel (0) target = $region17
  $region16: #{expanded_cnn_forward.12} parent=0 // pred_region
    _
  $region17: #{expanded_cnn_forward.12} parent=0 // pred_fallthru
    _
  // Predicated region
  $region18: #{expanded_cnn_forward.12} parent=0 // pred_check
    _
  $region19: #{expanded_cnn_forward.12} parent=0 // pred_check_branch
    %130 = sbr.rel (0) target = $region21
  $region20: #{expanded_cnn_forward.12} parent=0 // pred_region
    _
  $region21: #{expanded_cnn_forward.12} parent=0 // pred_fallthru
    _

// kernel: expanded_cnn_forward.13
$region0: #{expanded_cnn_forward.13}
  #allocation0 [shape = 'u32[]', space=smem, size = 0x4, offset = 0x4, fixed_abs, tag = 'smem constant byte address 0x4 - core index']
  #allocation1 [shape = 'u32[144,128]{1,0:T(1,128)}', space=vmem, size = 0x12000, scoped, tag = 'internal scratch']
  %s0 = inlined_call_operand.vmem [shape: f32[8,128], index: 0, kind: input, shape index: {}]
  %s1 = inlined_call_operand.vmem [shape: f32[128,128], index: 1, kind: input, shape index: {}]
  %s2 = inlined_call_operand.vmem [shape: f32[1,128], index: 2, kind: input, shape index: {}]
  %s3 = inlined_call_operand.vmem [shape: f32[8,128], index: 3, kind: output, shape index: {}]
  %s4 = sld [smem:[#allocation0]]
  $region22: #{expanded_cnn_forward.13} parent=0
    _
  %s6 = ssub.s32 1, %s4
  %s7 = scalar_select 0, %s6, %s4
  // Predicated region
  $region2: #{expanded_cnn_forward.13} parent=0 // pred_check
    _
  $region3: #{expanded_cnn_forward.13} parent=0 // pred_check_branch
    %9 = sbr.rel (0) target = $region5
  $region4: #{expanded_cnn_forward.13} parent=0 // pred_region
    _
  $region5: #{expanded_cnn_forward.13} parent=0 // pred_fallthru
    _
  // Predicated region
  $region6: #{expanded_cnn_forward.13} parent=0 // pred_check
    _
  $region7: #{expanded_cnn_forward.13} parent=0 // pred_check_branch
    %11 = sbr.rel (0) target = $region9
  $region8: #{expanded_cnn_forward.13} parent=0 // pred_region
    _
  $region9: #{expanded_cnn_forward.13} parent=0 // pred_fallthru
    _
  // Predicated region
  $region10: #{expanded_cnn_forward.13} parent=0 // pred_check
    _
  $region11: #{expanded_cnn_forward.13} parent=0 // pred_check_branch
    %13 = sbr.rel (0) target = $region13
  $region12: #{expanded_cnn_forward.13} parent=0 // pred_region
    _
  $region13: #{expanded_cnn_forward.13} parent=0 // pred_fallthru
    _
  %v14 = vld [vmem:[%s0] sm:$0xff]
  %v15 = vld [vmem:[%s1] sm:$0xff]
  %v16 = vld [vmem:[%s1 + $0x8] sm:$0xff]
  %v17 = vld [vmem:[%s1 + $0x10] sm:$0xff]
  %v18 = vld [vmem:[%s1 + $0x18] sm:$0xff]
  %v19 = vld [vmem:[%s1 + $0x20] sm:$0xff]
  %v20 = vld [vmem:[%s1 + $0x28] sm:$0xff]
  %v21 = vld [vmem:[%s1 + $0x30] sm:$0xff]
  %v22 = vld [vmem:[%s1 + $0x38] sm:$0xff]
  %v23 = vld [vmem:[%s1 + $0x40] sm:$0xff]
  %v24 = vld [vmem:[%s1 + $0x48] sm:$0xff]
  %v25 = vld [vmem:[%s1 + $0x50] sm:$0xff]
  %v26 = vld [vmem:[%s1 + $0x58] sm:$0xff]
  %v27 = vld [vmem:[%s1 + $0x60] sm:$0xff]
  %v28 = vld [vmem:[%s1 + $0x68] sm:$0xff]
  %v29 = vld [vmem:[%s1 + $0x70] sm:$0xff]
  %v30 = vld [vmem:[%s1 + $0x78] sm:$0xff]
  %v31 = vld [vmem:[%s2] sm:$0x1]
  %v33 = vlaneseq
  %v34 = vshrl.u32 %v33, 7
  %v35 = vsub.s32 0, %v34
  %v36 = vrot.slane %v31, %v35
  %38 = vmatprep.subr.mxu0 0.0
  %39 = vmatpush1.msra.mxu0 %v30
  %40 = vmatprep.subr.mxu0 0.0
  %41 = vmatpush1.msra.mxu0 %v29
  %42 = vmatprep.subr.mxu0 0.0
  %43 = vmatpush1.msra.mxu0 %v28
  %44 = vmatprep.subr.mxu0 0.0
  %45 = vmatpush1.msra.mxu0 %v27
  %46 = vmatprep.subr.mxu0 0.0
  %47 = vmatpush1.msra.mxu0 %v26
  %48 = vmatprep.subr.mxu0 0.0
  %49 = vmatpush1.msra.mxu0 %v25
  %50 = vmatprep.subr.mxu0 0.0
  %51 = vmatpush1.msra.mxu0 %v24
  %52 = vmatprep.subr.mxu0 0.0
  %53 = vmatpush1.msra.mxu0 %v23
  %54 = vmatprep.subr.mxu0 0.0
  %55 = vmatpush1.msra.mxu0 %v22
  %56 = vmatprep.subr.mxu0 0.0
  %57 = vmatpush1.msra.mxu0 %v21
  %58 = vmatprep.subr.mxu0 0.0
  %59 = vmatpush1.msra.mxu0 %v20
  %60 = vmatprep.subr.mxu0 0.0
  %61 = vmatpush1.msra.mxu0 %v19
  %62 = vmatprep.subr.mxu0 0.0
  %63 = vmatpush1.msra.mxu0 %v18
  %64 = vmatprep.subr.mxu0 0.0
  %65 = vmatpush1.msra.mxu0 %v17
  %66 = vmatprep.subr.mxu0 0.0
  %67 = vmatpush1.msra.mxu0 %v16
  %68 = vmatprep.subr.mxu0 0.0
  %69 = vmatpush1.msra.mxu0 %v15
  %70 = vmatprep.subr.mxu0 0.0
  %71 = vmatpush2.msra.mxu0 0.0
  %72 = vmatprep.subr.mxu0 0.0
  %73 = vmatpush2.msra.mxu0 0.0
  %74 = vmatprep.subr.mxu0 0.0
  %75 = vmatpush2.msra.mxu0 0.0
  %76 = vmatprep.subr.mxu0 0.0
  %77 = vmatpush2.msra.mxu0 0.0
  %78 = vmatprep.subr.mxu0 0.0
  %79 = vmatpush2.msra.mxu0 0.0
  %80 = vmatprep.subr.mxu0 0.0
  %81 = vmatpush2.msra.mxu0 0.0
  %82 = vmatprep.subr.mxu0 0.0
  %83 = vmatpush2.msra.mxu0 0.0
  %84 = vmatprep.subr.mxu0 0.0
  %85 = vmatpush2.msra.mxu0 0.0
  %86 = vmatprep.subr.mxu0 0.0
  %87 = vmatpush2.msra.mxu0 0.0
  %88 = vmatprep.subr.mxu0 0.0
  %89 = vmatpush2.msra.mxu0 0.0
  %90 = vmatprep.subr.mxu0 0.0
  %91 = vmatpush2.msra.mxu0 0.0
  %92 = vmatprep.subr.mxu0 0.0
  %93 = vmatpush2.msra.mxu0 0.0
  %94 = vmatprep.subr.mxu0 0.0
  %95 = vmatpush2.msra.mxu0 0.0
  %96 = vmatprep.subr.mxu0 0.0
  %97 = vmatpush2.msra.mxu0 0.0
  %98 = vmatprep.subr.mxu0 0.0
  %99 = vmatpush2.msra.mxu0 0.0
  %100 = vmatprep.subr.mxu0 0.0
  %101 = vmatpush2.msra.mxu0 0.0
  %102 = vmatprep.mubr.f32.mxu0 0.0
  %103 = vmatmul.mubr.f32.gmra.mxu0 %v14
  %v104 = vpop.f32.mrf.mxu0
  %v105 = vadd.f32 %v36, %v104
  %v106 = vpop.f32.mrf.mxu0
  %107 = vdwg.mxu0
  %108 = vst [vmem:[%s3] sm:$0xff] %v105
  // Predicated region
  $region14: #{expanded_cnn_forward.13} parent=0 // pred_check
    _
  $region15: #{expanded_cnn_forward.13} parent=0 // pred_check_branch
    %110 = sbr.rel (0) target = $region17
  $region16: #{expanded_cnn_forward.13} parent=0 // pred_region
    _
  $region17: #{expanded_cnn_forward.13} parent=0 // pred_fallthru
    _
  // Predicated region
  $region18: #{expanded_cnn_forward.13} parent=0 // pred_check
    _
  $region19: #{expanded_cnn_forward.13} parent=0 // pred_check_branch
    %112 = sbr.rel (0) target = $region21
  $region20: #{expanded_cnn_forward.13} parent=0 // pred_region
    _
  $region21: #{expanded_cnn_forward.13} parent=0 // pred_fallthru
    _

</llo_original>
